<compile_context>
chip_gen: v6e
topology: v6e:2x2x1
jax: 0.10.0
libtpu: 0.0.40
codegen_flags: <defaults>
</compile_context>

<pallas_src>
import math
from functools import partial

import jax
import jax.numpy as jnp
from jax.experimental import pallas as pl
from jax.experimental.pallas import tpu as pltpu


# ----------------------------------------------------------------------------
# In-kernel helpers (all values live in vregs / VMEM)
# ----------------------------------------------------------------------------
def _layernorm(x, g, b):
    # x: (S, D); g/b: (1, D)
    mu = jnp.mean(x, axis=-1, keepdims=True)
    var = jnp.mean((x - mu) ** 2, axis=-1, keepdims=True)
    return (x - mu) * jax.lax.rsqrt(var + 1e-5) * g + b


def _ffn(x, w1, b1, w2, b2):
    h = jnp.maximum(jnp.dot(x, w1, preferred_element_type=jnp.float32) + b1, 0.0)
    return jnp.dot(h, w2, preferred_element_type=jnp.float32) + b2


def _mha(q_src, kv_src, mask_add, wq, wkvo, bq, bkvo, bo, num_heads):
    """Multi-head attention, all heads fused.

    q_src: (Sq, D), kv_src: (Sk, D), mask_add: (1|Sq, Sk) additive mask.
    wq   : (D, D)        Q projection with 1/sqrt(dh) folded in.
    wkvo : (D, D + H*D)  [K | V_0@Wo_0 | ... | V_{H-1}@Wo_{H-1}] fused weights.
    bq   : (1, D)  bkvo: (1, D + H*D)  bo: (1, D)

    out = sum_h softmax(Q_h K_h^T + mask) @ (V_h Wo_h)  + bo
        == concat_h(softmax(...) V_h) Wo + bo   (standard MHA)
    """
    sq, d = q_src.shape
    dh = d // num_heads
    q_all = jnp.dot(q_src, wq, preferred_element_type=jnp.float32) + bq          # (Sq, D)
    kvo = jnp.dot(kv_src, wkvo, preferred_element_type=jnp.float32) + bkvo       # (Sk, D+H*D)

    out = jnp.zeros((sq, d), dtype=jnp.float32)
    for h in range(num_heads):
        q_h = q_all[:, h * dh:(h + 1) * dh]                                      # (Sq, dh)
        k_h = kvo[:, h * dh:(h + 1) * dh]                                        # (Sk, dh)
        vo_h = kvo[:, d + h * d: d + (h + 1) * d]                                # (Sk, D)
        s = jnp.dot(q_h, k_h.T, preferred_element_type=jnp.float32) + mask_add   # (Sq, Sk)
        s = s - jnp.max(s, axis=-1, keepdims=True)
        p = jnp.exp(s)
        p = p * pl.reciprocal(jnp.sum(p, axis=-1, keepdims=True), approx=False)
        out = out + jnp.dot(p, vo_h, preferred_element_type=jnp.float32)
    return out + bo


def _vrow(vec_ref, l, r, w):
    # One packed bias/LN row: load (1, W) from the per-layer slab, keep lanes [0, w).
    return vec_ref[l, r:r + 1, :][:, :w]


# ----------------------------------------------------------------------------
# The fused kernel: one grid step == one batch element, full forward pass
# ----------------------------------------------------------------------------
def _transformer_kernel(x_ref, y_ref, pad_ref,
                        e_wq_ref, e_wkvo_ref, e_w1_ref, e_w2_ref, e_vec_ref,
                        d_swq_ref, d_swkvo_ref, d_cwq_ref, d_cwkvo_ref,
                        d_w1_ref, d_w2_ref, d_vec_ref,
                        hw_ref, hb_ref,
                        o_ref, *, num_heads):
    D = x_ref.shape[-1]
    F = e_w1_ref.shape[-1]
    KW = D + num_heads * D            # width of the fused K|V@Wo projection
    St = y_ref.shape[0]
    n_enc = e_wq_ref.shape[0]
    n_dec = d_swq_ref.shape[0]

    pad_add = pad_ref[...]            # (1, Ss) additive source-padding bias

    # ------------------------- encoder stack -------------------------------
    x = x_ref[...]                    # (Ss, D)
    for l in range(n_enc):
        attn = _mha(x, x, pad_add,
                    e_wq_ref[l], e_wkvo_ref[l],
                    _vrow(e_vec_ref, l, 0, D), _vrow(e_vec_ref, l, 1, KW),
                    _vrow(e_vec_ref, l, 2, D), num_heads)
        h1 = _layernorm(x + attn, _vrow(e_vec_ref, l, 3, D), _vrow(e_vec_ref, l, 4, D))
        f = _ffn(h1, e_w1_ref[l], _vrow(e_vec_ref, l, 5, F),
                 e_w2_ref[l], _vrow(e_vec_ref, l, 6, D))
        x = _layernorm(h1 + f, _vrow(e_vec_ref, l, 7, D), _vrow(e_vec_ref, l, 8, D))
    enc = x

    # ------------------------- decoder stack -------------------------------
    rows = jax.lax.broadcasted_iota(jnp.int32, (St, St), 0)
    cols = jax.lax.broadcasted_iota(jnp.int32, (St, St), 1)
    causal = jnp.where(cols <= rows, 0.0, -1e9).astype(jnp.float32)

    y = y_ref[...]                    # (St, D)
    for l in range(n_dec):
        sa = _mha(y, y, causal,
                  d_swq_ref[l], d_swkvo_ref[l],
                  _vrow(d_vec_ref, l, 0, D), _vrow(d_vec_ref, l, 1, KW),
                  _vrow(d_vec_ref, l, 2, D), num_heads)
        h1 = _layernorm(y + sa, _vrow(d_vec_ref, l, 3, D), _vrow(d_vec_ref, l, 4, D))
        ca = _mha(h1, enc, pad_add,
                  d_cwq_ref[l], d_cwkvo_ref[l],
                  _vrow(d_vec_ref, l, 5, D), _vrow(d_vec_ref, l, 6, KW),
                  _vrow(d_vec_ref, l, 7, D), num_heads)
        h2 = _layernorm(h1 + ca, _vrow(d_vec_ref, l, 8, D), _vrow(d_vec_ref, l, 9, D))
        f = _ffn(h2, d_w1_ref[l], _vrow(d_vec_ref, l, 10, F),
                 d_w2_ref[l], _vrow(d_vec_ref, l, 11, D))
        y = _layernorm(h2 + f, _vrow(d_vec_ref, l, 12, D), _vrow(d_vec_ref, l, 13, D))

    # ------------------------- head + log_softmax --------------------------
    # NOTE: at larger vocab / seq this step becomes its own M-tiled grid axis
    # with the vocab axis kept whole and padded to a multiple of 128, plus
    # vmem_limit_bytes via pltpu.CompilerParams (v7x has 64 MiB VMEM).
    logits = jnp.dot(y, hw_ref[...], preferred_element_type=jnp.float32) + hb_ref[...]
    m = jnp.max(logits, axis=-1, keepdims=True)
    lse = jnp.log(jnp.sum(jnp.exp(logits - m), axis=-1, keepdims=True)) + m
    o_ref[...] = (logits - lse).astype(o_ref.dtype)


# ----------------------------------------------------------------------------
# pallas_call wrapper
# ----------------------------------------------------------------------------
def _whole_array_spec(w):
    nd = w.ndim
    return pl.BlockSpec(w.shape, lambda b: (0,) * nd)   # constant block -> stays resident


def transformer_forward(input_tokens, target_tokens, attention_mask, p, cfg):
    B, Ss = input_tokens.shape
    St = target_tokens.shape[1]
    D = cfg.model_dim
    V = cfg.trg_vocab_size

    # Additive source-padding bias, shared by encoder self-attn and decoder
    # cross-attn: only (B, 1, Ss) -- never expanded to (B*H, S, S) in HBM.
    pad_add = jnp.where(attention_mask[:, None, :] > 0, 0.0, -1e9).astype(jnp.float32)

    # TODO(synk): embedding gather + positional encoding stay as one fused XLA
    # op (a dynamic vocab gather has no clean Mosaic lowering at these sizes).
    x = p["enc_embed"][input_tokens] * math.sqrt(D) + p["pe"][:Ss][None, :, :]
    y = p["dec_embed"][target_tokens] * math.sqrt(D) + p["pe"][:St][None, :, :]

    weights = (p["e_wq"], p["e_wkvo"], p["e_w1"], p["e_w2"], p["e_vec"],
               p["d_swq"], p["d_swkvo"], p["d_cwq"], p["d_cwkvo"],
               p["d_w1"], p["d_w2"], p["d_vec"],
               p["head_w"], p["head_b"])

    out = pl.pallas_call(
        partial(_transformer_kernel, num_heads=cfg.num_heads),
        out_shape=jax.ShapeDtypeStruct((B, St, V), jnp.float32),
        grid=(B,),
        in_specs=[
            pl.BlockSpec((None, Ss, D), lambda b: (b, 0, 0)),   # x embeddings
            pl.BlockSpec((None, St, D), lambda b: (b, 0, 0)),   # y embeddings
            pl.BlockSpec((None, 1, Ss), lambda b: (b, 0, 0)),   # padding bias
            *[_whole_array_spec(w) for w in weights],
        ],
        out_specs=pl.BlockSpec((None, St, V), lambda b: (b, 0, 0)),
        compiler_params=pltpu.CompilerParams(dimension_semantics=("parallel",)),
    )(x, y, pad_add, *weights)
    return out


# ----------------------------------------------------------------------------
# Model config / deterministic parameter init (nn.Linear-style layouts)
# ----------------------------------------------------------------------------
class Config:
    src_vocab_size = 48
    trg_vocab_size = 64
    model_dim = 32
    num_heads = 4
    ff_dim = 64
    num_layers = 2
    max_seq_len = 16


def sinusoidal_pe(max_len, d):
    pos = jnp.arange(max_len, dtype=jnp.float32)[:, None]
    i = jnp.arange(d, dtype=jnp.float32)[None, :]
    angle = pos / jnp.power(10000.0, (2.0 * jnp.floor(i / 2.0)) / d)
    return jnp.where((jnp.arange(d) % 2) == 0, jnp.sin(angle), jnp.cos(angle))


def init_linear_params(key, fan_in, fan_out):
    kw, kb = jax.random.split(key)
    bound = 1.0 / math.sqrt(fan_in)
    return {
        "w": jax.random.uniform(kw, (fan_in, fan_out), jnp.float32, -bound, bound),
        "b": jax.random.uniform(kb, (fan_out,), jnp.float32, -bound, bound),
    }


def init_mha_params(key, d):
    ks = jax.random.split(key, 4)
    return {
        "wq": init_linear_params(ks[0], d, d),
        "wk": init_linear_params(ks[1], d, d),
        "wv": init_linear_params(ks[2], d, d),
        "wo": init_linear_params(ks[3], d, d),
    }


def init_enc_layer(key, cfg):
    ks = jax.random.split(key, 3)
    d = cfg.model_dim
    return {
        "attn": init_mha_params(ks[0], d),
        "fc1": init_linear_params(ks[1], d, cfg.ff_dim),
        "fc2": init_linear_params(ks[2], cfg.ff_dim, d),
        "ln1_g": jnp.ones((d,), jnp.float32), "ln1_b": jnp.zeros((d,), jnp.float32),
        "ln2_g": jnp.ones((d,), jnp.float32), "ln2_b": jnp.zeros((d,), jnp.float32),
    }


def init_dec_layer(key, cfg):
    ks = jax.random.split(key, 4)
    d = cfg.model_dim
    return {
        "self_attn": init_mha_params(ks[0], d),
        "cross_attn": init_mha_params(ks[1], d),
        "fc1": init_linear_params(ks[2], d, cfg.ff_dim),
        "fc2": init_linear_params(ks[3], cfg.ff_dim, d),
        "ln1_g": jnp.ones((d,), jnp.float32), "ln1_b": jnp.zeros((d,), jnp.float32),
        "ln2_g": jnp.ones((d,), jnp.float32), "ln2_b": jnp.zeros((d,), jnp.float32),
        "ln3_g": jnp.ones((d,), jnp.float32), "ln3_b": jnp.zeros((d,), jnp.float32),
    }


def init_params(key, cfg):
    keys = jax.random.split(key, 3 + 2 * cfg.num_layers)
    return {
        "enc_embed": jax.random.normal(keys[0], (cfg.src_vocab_size, cfg.model_dim), jnp.float32),
        "dec_embed": jax.random.normal(keys[1], (cfg.trg_vocab_size, cfg.model_dim), jnp.float32),
        "head": init_linear_params(keys[2], cfg.model_dim, cfg.trg_vocab_size),
        "pe": sinusoidal_pe(cfg.max_seq_len, cfg.model_dim),
        "enc_layers": [init_enc_layer(keys[3 + i], cfg) for i in range(cfg.num_layers)],
        "dec_layers": [init_dec_layer(keys[3 + cfg.num_layers + i], cfg)
                       for i in range(cfg.num_layers)],
    }


# ----------------------------------------------------------------------------
# Packing: fold score scale into Q, fold Wo into per-head V, stack over layers,
# and gather all per-layer biases / LN vectors into one (L, 16, W) slab.
# ----------------------------------------------------------------------------
def pack_params(params, cfg):
    D, H, F = cfg.model_dim, cfg.num_heads, cfg.ff_dim
    dh = D // H
    scale = 1.0 / math.sqrt(dh)
    W = max(D + H * D, F, D)          # packed vector-slab row width

    def row(v):
        v = jnp.asarray(v, jnp.float32).reshape(-1)
        return jnp.pad(v, (0, W - v.shape[0]))

    def vec_slab(vs, n_rows=16):
        rows = [row(v) for v in vs]
        rows += [jnp.zeros((W,), jnp.float32)] * (n_rows - len(rows))
        return jnp.stack(rows)

    def pack_attn(a):
        wq = a["wq"]["w"] * scale
        bq = a["wq"]["b"] * scale
        wo, bo = a["wo"]["w"], a["wo"]["b"]
        wvo_blocks, bvo_blocks = [], []
        for h in range(H):
            wv_h = a["wv"]["w"][:, h * dh:(h + 1) * dh]      # (D, dh)
            bv_h = a["wv"]["b"][h * dh:(h + 1) * dh]         # (dh,)
            wo_h = wo[h * dh:(h + 1) * dh, :]                # (dh, D)
            wvo_blocks.append(wv_h @ wo_h)                   # (D, D)
            bvo_blocks.append(bv_h @ wo_h)                   # (D,)
        wkvo = jnp.concatenate([a["wk"]["w"]] + wvo_blocks, axis=1)   # (D, D+H*D)
        bkvo = jnp.concatenate([a["wk"]["b"]] + bvo_blocks)           # (D+H*D,)
        return wq, bq, wkvo, bkvo, bo

    e_wq, e_wkvo, e_w1, e_w2, e_vec = [], [], [], [], []
    for lp in params["enc_layers"]:
        wq, bq, wkvo, bkvo, bo = pack_attn(lp["attn"])
        e_wq.append(wq); e_wkvo.append(wkvo)
        e_w1.append(lp["fc1"]["w"]); e_w2.append(lp["fc2"]["w"])
        e_vec.append(vec_slab([bq, bkvo, bo,
                               lp["ln1_g"], lp["ln1_b"],
                               lp["fc1"]["b"], lp["fc2"]["b"],
                               lp["ln2_g"], lp["ln2_b"]]))

    d_swq, d_swkvo, d_cwq, d_cwkvo, d_w1, d_w2, d_vec = ([] for _ in range(7))
    for lp in params["dec_layers"]:
        swq, sbq, swkvo, sbkvo, sbo = pack_attn(lp["self_attn"])
        cwq, cbq, cwkvo, cbkvo, cbo = pack_attn(lp["cross_attn"])
        d_swq.append(swq); d_swkvo.append(swkvo)
        d_cwq.append(cwq); d_cwkvo.append(cwkvo)
        d_w1.append(lp["fc1"]["w"]); d_w2.append(lp["fc2"]["w"])
        d_vec.append(vec_slab([sbq, sbkvo, sbo,
                               lp["ln1_g"], lp["ln1_b"],
                               cbq, cbkvo, cbo,
                               lp["ln2_g"], lp["ln2_b"],
                               lp["fc1"]["b"], lp["fc2"]["b"],
                               lp["ln3_g"], lp["ln3_b"]]))

    return {
        "enc_embed": params["enc_embed"],
        "dec_embed": params["dec_embed"],
        "pe": params["pe"],
        "e_wq": jnp.stack(e_wq), "e_wkvo": jnp.stack(e_wkvo),
        "e_w1": jnp.stack(e_w1), "e_w2": jnp.stack(e_w2), "e_vec": jnp.stack(e_vec),
        "d_swq": jnp.stack(d_swq), "d_swkvo": jnp.stack(d_swkvo),
        "d_cwq": jnp.stack(d_cwq), "d_cwkvo": jnp.stack(d_cwkvo),
        "d_w1": jnp.stack(d_w1), "d_w2": jnp.stack(d_w2), "d_vec": jnp.stack(d_vec),
        "head_w": params["head"]["w"],
        "head_b": params["head"]["b"].reshape(1, -1),
    }


# ----------------------------------------------------------------------------
if __name__ == "__main__":
    cfg = Config()
    B, S = 2, 8

    key = jax.random.PRNGKey(0)
    kp, ki, kt = jax.random.split(key, 3)
    params = pack_params(init_params(kp, cfg), cfg)

    input_tokens = jax.random.randint(ki, (B, S), 0, cfg.src_vocab_size, dtype=jnp.int32)
    target_tokens = jax.random.randint(kt, (B, S), 0, cfg.trg_vocab_size, dtype=jnp.int32)
    attention_mask = jnp.ones((B, S), jnp.int32).at[1, -2:].set(0)   # pad last 2 of batch 1

    fwd = jax.jit(lambda it, tt, am, p: transformer_forward(it, tt, am, p, cfg))
    out = jax.block_until_ready(fwd(input_tokens, target_tokens, attention_mask, params))

    assert out.shape == (B, S, cfg.trg_vocab_size)
    # log_softmax rows should sum (in prob space) to ~1
    assert bool(jnp.allclose(jnp.sum(jnp.exp(out), axis=-1), 1.0, atol=1e-4))
    print("KERNEL_OK")
</pallas_src>

<mosaic_0001>
module attributes {stable_mosaic.version = 11 : i64} {
  func.func @_transformer_kernel(%arg0: i32, %arg1: memref<1x8x32xf32, #tpu.memory_space<vmem>>, %arg2: memref<1x8x32xf32, #tpu.memory_space<vmem>>, %arg3: memref<1x1x8xf32, #tpu.memory_space<vmem>>, %arg4: memref<2x32x32xf32, #tpu.memory_space<vmem>>, %arg5: memref<2x32x160xf32, #tpu.memory_space<vmem>>, %arg6: memref<2x32x64xf32, #tpu.memory_space<vmem>>, %arg7: memref<2x64x32xf32, #tpu.memory_space<vmem>>, %arg8: memref<2x16x160xf32, #tpu.memory_space<vmem>>, %arg9: memref<2x32x32xf32, #tpu.memory_space<vmem>>, %arg10: memref<2x32x160xf32, #tpu.memory_space<vmem>>, %arg11: memref<2x32x32xf32, #tpu.memory_space<vmem>>, %arg12: memref<2x32x160xf32, #tpu.memory_space<vmem>>, %arg13: memref<2x32x64xf32, #tpu.memory_space<vmem>>, %arg14: memref<2x64x32xf32, #tpu.memory_space<vmem>>, %arg15: memref<2x16x160xf32, #tpu.memory_space<vmem>>, %arg16: memref<32x64xf32, #tpu.memory_space<vmem>>, %arg17: memref<1x64xf32, #tpu.memory_space<vmem>>, %arg18: memref<1x8x64xf32, #tpu.memory_space<vmem>>) attributes {dimension_semantics = [#tpu.dimension_semantics<parallel>], iteration_bounds = array<i64: 2>, scalar_prefetch = 0 : i64, scratch_operands = 0 : i64, tpu.core_type = #tpu.core_type<tc>, window_params = [{transform_indices = @transform_0, window_bounds = array<i64: 1, 8, 32>}, {transform_indices = @transform_1, window_bounds = array<i64: 1, 8, 32>}, {transform_indices = @transform_2, window_bounds = array<i64: 1, 1, 8>}, {pipeline_mode = #tpu.pipeline_mode<synchronous>, transform_indices = @transform_3, window_bounds = array<i64: 2, 32, 32>}, {pipeline_mode = #tpu.pipeline_mode<synchronous>, transform_indices = @transform_4, window_bounds = array<i64: 2, 32, 160>}, {pipeline_mode = #tpu.pipeline_mode<synchronous>, transform_indices = @transform_5, window_bounds = array<i64: 2, 32, 64>}, {pipeline_mode = #tpu.pipeline_mode<synchronous>, transform_indices = @transform_6, window_bounds = array<i64: 2, 64, 32>}, {pipeline_mode = #tpu.pipeline_mode<synchronous>, transform_indices = @transform_7, window_bounds = array<i64: 2, 16, 160>}, {pipeline_mode = #tpu.pipeline_mode<synchronous>, transform_indices = @transform_8, window_bounds = array<i64: 2, 32, 32>}, {pipeline_mode = #tpu.pipeline_mode<synchronous>, transform_indices = @transform_9, window_bounds = array<i64: 2, 32, 160>}, {pipeline_mode = #tpu.pipeline_mode<synchronous>, transform_indices = @transform_10, window_bounds = array<i64: 2, 32, 32>}, {pipeline_mode = #tpu.pipeline_mode<synchronous>, transform_indices = @transform_11, window_bounds = array<i64: 2, 32, 160>}, {pipeline_mode = #tpu.pipeline_mode<synchronous>, transform_indices = @transform_12, window_bounds = array<i64: 2, 32, 64>}, {pipeline_mode = #tpu.pipeline_mode<synchronous>, transform_indices = @transform_13, window_bounds = array<i64: 2, 64, 32>}, {pipeline_mode = #tpu.pipeline_mode<synchronous>, transform_indices = @transform_14, window_bounds = array<i64: 2, 16, 160>}, {pipeline_mode = #tpu.pipeline_mode<synchronous>, transform_indices = @transform_15, window_bounds = array<i64: 32, 64>}, {pipeline_mode = #tpu.pipeline_mode<synchronous>, transform_indices = @transform_16, window_bounds = array<i64: 1, 64>}, {transform_indices = @transform_17, window_bounds = array<i64: 1, 8, 64>}]} {
    %c0 = arith.constant 0 : index
    %c0_0 = arith.constant 0 : index
    %c0_1 = arith.constant 0 : index
    %0 = vector.load %arg3[%c0, %c0_0, %c0_1] : memref<1x1x8xf32, #tpu.memory_space<vmem>>, vector<1x1x8xf32>
    %1 = vector.shape_cast %0 : vector<1x1x8xf32> to vector<1x8xf32>
    %c0_2 = arith.constant 0 : index
    %c0_3 = arith.constant 0 : index
    %c0_4 = arith.constant 0 : index
    %2 = vector.load %arg1[%c0_2, %c0_3, %c0_4] : memref<1x8x32xf32, #tpu.memory_space<vmem>>, vector<1x8x32xf32>
    %3 = vector.shape_cast %2 : vector<1x8x32xf32> to vector<8x32xf32>
    %c0_5 = arith.constant 0 : index
    %c0_6 = arith.constant 0 : index
    %c0_7 = arith.constant 0 : index
    %4 = vector.load %arg4[%c0_5, %c0_6, %c0_7] : memref<2x32x32xf32, #tpu.memory_space<vmem>>, vector<1x32x32xf32>
    %5 = vector.shape_cast %4 : vector<1x32x32xf32> to vector<32x32xf32>
    %c0_8 = arith.constant 0 : index
    %c0_9 = arith.constant 0 : index
    %c0_10 = arith.constant 0 : index
    %6 = vector.load %arg5[%c0_8, %c0_9, %c0_10] : memref<2x32x160xf32, #tpu.memory_space<vmem>>, vector<1x32x160xf32>
    %7 = vector.shape_cast %6 : vector<1x32x160xf32> to vector<32x160xf32>
    %c0_11 = arith.constant 0 : index
    %c0_12 = arith.constant 0 : index
    %c0_13 = arith.constant 0 : index
    %8 = vector.load %arg8[%c0_11, %c0_12, %c0_13] : memref<2x16x160xf32, #tpu.memory_space<vmem>>, vector<1x1x160xf32>
    %9 = vector.shape_cast %8 : vector<1x1x160xf32> to vector<1x160xf32>
    %10 = vector.extract_strided_slice %9 {offsets = [0, 0], sizes = [1, 32], strides = [1, 1]} : vector<1x160xf32> to vector<1x32xf32>
    %c0_14 = arith.constant 0 : index
    %c1 = arith.constant 1 : index
    %c0_15 = arith.constant 0 : index
    %11 = vector.load %arg8[%c0_14, %c1, %c0_15] : memref<2x16x160xf32, #tpu.memory_space<vmem>>, vector<1x1x160xf32>
    %12 = vector.shape_cast %11 : vector<1x1x160xf32> to vector<1x160xf32>
    %c0_16 = arith.constant 0 : index
    %c2 = arith.constant 2 : index
    %c0_17 = arith.constant 0 : index
    %13 = vector.load %arg8[%c0_16, %c2, %c0_17] : memref<2x16x160xf32, #tpu.memory_space<vmem>>, vector<1x1x160xf32>
    %14 = vector.shape_cast %13 : vector<1x1x160xf32> to vector<1x160xf32>
    %15 = vector.extract_strided_slice %14 {offsets = [0, 0], sizes = [1, 32], strides = [1, 1]} : vector<1x160xf32> to vector<1x32xf32>
    %cst = arith.constant dense<0.000000e+00> : vector<8x32xf32>
    %16 = tpu.matmul %3, %5, %cst {dimension_numbers = #tpu.dot_dimension_numbers<[1], [0], [0], [1], [0, 0, 1, 1], [], []>} : vector<8x32xf32>, vector<32x32xf32>, vector<8x32xf32> -> vector<8x32xf32>
    %17 = vector.broadcast %10 : vector<1x32xf32> to vector<8x32xf32>
    %18 = arith.addf %16, %17 : vector<8x32xf32>
    %cst_18 = arith.constant dense<0.000000e+00> : vector<8x160xf32>
    %19 = tpu.matmul %3, %7, %cst_18 {dimension_numbers = #tpu.dot_dimension_numbers<[1], [0], [0], [1], [0, 0, 1, 1], [], []>} : vector<8x32xf32>, vector<32x160xf32>, vector<8x160xf32> -> vector<8x160xf32>
    %20 = vector.broadcast %12 : vector<1x160xf32> to vector<8x160xf32>
    %21 = arith.addf %19, %20 : vector<8x160xf32>
    %cst_19 = arith.constant 0.000000e+00 : f32
    %22 = vector.broadcast %cst_19 : f32 to vector<8x32xf32>
    %23 = vector.extract_strided_slice %18 {offsets = [0, 0], sizes = [8, 8], strides = [1, 1]} : vector<8x32xf32> to vector<8x8xf32>
    %24 = vector.extract_strided_slice %21 {offsets = [0, 0], sizes = [8, 8], strides = [1, 1]} : vector<8x160xf32> to vector<8x8xf32>
    %25 = vector.extract_strided_slice %21 {offsets = [0, 32], sizes = [8, 32], strides = [1, 1]} : vector<8x160xf32> to vector<8x32xf32>
    %26 = tpu.transpose %24, [1, 0] : vector<8x8xf32> -> vector<8x8xf32>
    %cst_20 = arith.constant dense<0.000000e+00> : vector<8x8xf32>
    %27 = tpu.matmul %23, %26, %cst_20 {dimension_numbers = #tpu.dot_dimension_numbers<[1], [0], [0], [1], [0, 0, 1, 1], [], []>} : vector<8x8xf32>, vector<8x8xf32>, vector<8x8xf32> -> vector<8x8xf32>
    %28 = vector.broadcast %1 : vector<1x8xf32> to vector<8x8xf32>
    %29 = arith.addf %27, %28 : vector<8x8xf32>
    %cst_21 = arith.constant dense<0xFF800000> : vector<8xf32>
    %30 = vector.multi_reduction <maximumf>, %29, %cst_21 [1] : vector<8x8xf32> to vector<8xf32>
    %31 = vector.shape_cast %30 : vector<8xf32> to vector<8x1xf32>
    %32 = vector.broadcast %31 : vector<8x1xf32> to vector<8x8xf32>
    %33 = arith.subf %29, %32 : vector<8x8xf32>
    %34 = math.exp %33 : vector<8x8xf32>
    %cst_22 = arith.constant dense<0.000000e+00> : vector<8xf32>
    %35 = vector.multi_reduction <add>, %34, %cst_22 [1] : vector<8x8xf32> to vector<8xf32>
    %36 = vector.shape_cast %35 : vector<8xf32> to vector<8x1xf32>
    %37 = tpu.reciprocal %36 : vector<8x1xf32> -> vector<8x1xf32>
    %38 = vector.broadcast %37 : vector<8x1xf32> to vector<8x8xf32>
    %39 = arith.mulf %34, %38 : vector<8x8xf32>
    %cst_23 = arith.constant dense<0.000000e+00> : vector<8x32xf32>
    %40 = tpu.matmul %39, %25, %cst_23 {dimension_numbers = #tpu.dot_dimension_numbers<[1], [0], [0], [1], [0, 0, 1, 1], [], []>} : vector<8x8xf32>, vector<8x32xf32>, vector<8x32xf32> -> vector<8x32xf32>
    %41 = arith.addf %22, %40 : vector<8x32xf32>
    %42 = vector.extract_strided_slice %18 {offsets = [0, 8], sizes = [8, 8], strides = [1, 1]} : vector<8x32xf32> to vector<8x8xf32>
    %43 = vector.extract_strided_slice %21 {offsets = [0, 8], sizes = [8, 8], strides = [1, 1]} : vector<8x160xf32> to vector<8x8xf32>
    %44 = vector.extract_strided_slice %21 {offsets = [0, 64], sizes = [8, 32], strides = [1, 1]} : vector<8x160xf32> to vector<8x32xf32>
    %45 = tpu.transpose %43, [1, 0] : vector<8x8xf32> -> vector<8x8xf32>
    %cst_24 = arith.constant dense<0.000000e+00> : vector<8x8xf32>
    %46 = tpu.matmul %42, %45, %cst_24 {dimension_numbers = #tpu.dot_dimension_numbers<[1], [0], [0], [1], [0, 0, 1, 1], [], []>} : vector<8x8xf32>, vector<8x8xf32>, vector<8x8xf32> -> vector<8x8xf32>
    %47 = vector.broadcast %1 : vector<1x8xf32> to vector<8x8xf32>
    %48 = arith.addf %46, %47 : vector<8x8xf32>
    %cst_25 = arith.constant dense<0xFF800000> : vector<8xf32>
    %49 = vector.multi_reduction <maximumf>, %48, %cst_25 [1] : vector<8x8xf32> to vector<8xf32>
    %50 = vector.shape_cast %49 : vector<8xf32> to vector<8x1xf32>
    %51 = vector.broadcast %50 : vector<8x1xf32> to vector<8x8xf32>
    %52 = arith.subf %48, %51 : vector<8x8xf32>
    %53 = math.exp %52 : vector<8x8xf32>
    %cst_26 = arith.constant dense<0.000000e+00> : vector<8xf32>
    %54 = vector.multi_reduction <add>, %53, %cst_26 [1] : vector<8x8xf32> to vector<8xf32>
    %55 = vector.shape_cast %54 : vector<8xf32> to vector<8x1xf32>
    %56 = tpu.reciprocal %55 : vector<8x1xf32> -> vector<8x1xf32>
    %57 = vector.broadcast %56 : vector<8x1xf32> to vector<8x8xf32>
    %58 = arith.mulf %53, %57 : vector<8x8xf32>
    %cst_27 = arith.constant dense<0.000000e+00> : vector<8x32xf32>
    %59 = tpu.matmul %58, %44, %cst_27 {dimension_numbers = #tpu.dot_dimension_numbers<[1], [0], [0], [1], [0, 0, 1, 1], [], []>} : vector<8x8xf32>, vector<8x32xf32>, vector<8x32xf32> -> vector<8x32xf32>
    %60 = arith.addf %41, %59 : vector<8x32xf32>
    %61 = vector.extract_strided_slice %18 {offsets = [0, 16], sizes = [8, 8], strides = [1, 1]} : vector<8x32xf32> to vector<8x8xf32>
    %62 = vector.extract_strided_slice %21 {offsets = [0, 16], sizes = [8, 8], strides = [1, 1]} : vector<8x160xf32> to vector<8x8xf32>
    %63 = vector.extract_strided_slice %21 {offsets = [0, 96], sizes = [8, 32], strides = [1, 1]} : vector<8x160xf32> to vector<8x32xf32>
    %64 = tpu.transpose %62, [1, 0] : vector<8x8xf32> -> vector<8x8xf32>
    %cst_28 = arith.constant dense<0.000000e+00> : vector<8x8xf32>
    %65 = tpu.matmul %61, %64, %cst_28 {dimension_numbers = #tpu.dot_dimension_numbers<[1], [0], [0], [1], [0, 0, 1, 1], [], []>} : vector<8x8xf32>, vector<8x8xf32>, vector<8x8xf32> -> vector<8x8xf32>
    %66 = vector.broadcast %1 : vector<1x8xf32> to vector<8x8xf32>
    %67 = arith.addf %65, %66 : vector<8x8xf32>
    %cst_29 = arith.constant dense<0xFF800000> : vector<8xf32>
    %68 = vector.multi_reduction <maximumf>, %67, %cst_29 [1] : vector<8x8xf32> to vector<8xf32>
    %69 = vector.shape_cast %68 : vector<8xf32> to vector<8x1xf32>
    %70 = vector.broadcast %69 : vector<8x1xf32> to vector<8x8xf32>
    %71 = arith.subf %67, %70 : vector<8x8xf32>
    %72 = math.exp %71 : vector<8x8xf32>
    %cst_30 = arith.constant dense<0.000000e+00> : vector<8xf32>
    %73 = vector.multi_reduction <add>, %72, %cst_30 [1] : vector<8x8xf32> to vector<8xf32>
    %74 = vector.shape_cast %73 : vector<8xf32> to vector<8x1xf32>
    %75 = tpu.reciprocal %74 : vector<8x1xf32> -> vector<8x1xf32>
    %76 = vector.broadcast %75 : vector<8x1xf32> to vector<8x8xf32>
    %77 = arith.mulf %72, %76 : vector<8x8xf32>
    %cst_31 = arith.constant dense<0.000000e+00> : vector<8x32xf32>
    %78 = tpu.matmul %77, %63, %cst_31 {dimension_numbers = #tpu.dot_dimension_numbers<[1], [0], [0], [1], [0, 0, 1, 1], [], []>} : vector<8x8xf32>, vector<8x32xf32>, vector<8x32xf32> -> vector<8x32xf32>
    %79 = arith.addf %60, %78 : vector<8x32xf32>
    %80 = vector.extract_strided_slice %18 {offsets = [0, 24], sizes = [8, 8], strides = [1, 1]} : vector<8x32xf32> to vector<8x8xf32>
    %81 = vector.extract_strided_slice %21 {offsets = [0, 24], sizes = [8, 8], strides = [1, 1]} : vector<8x160xf32> to vector<8x8xf32>
    %82 = vector.extract_strided_slice %21 {offsets = [0, 128], sizes = [8, 32], strides = [1, 1]} : vector<8x160xf32> to vector<8x32xf32>
    %83 = tpu.transpose %81, [1, 0] : vector<8x8xf32> -> vector<8x8xf32>
    %cst_32 = arith.constant dense<0.000000e+00> : vector<8x8xf32>
    %84 = tpu.matmul %80, %83, %cst_32 {dimension_numbers = #tpu.dot_dimension_numbers<[1], [0], [0], [1], [0, 0, 1, 1], [], []>} : vector<8x8xf32>, vector<8x8xf32>, vector<8x8xf32> -> vector<8x8xf32>
    %85 = vector.broadcast %1 : vector<1x8xf32> to vector<8x8xf32>
    %86 = arith.addf %84, %85 : vector<8x8xf32>
    %cst_33 = arith.constant dense<0xFF800000> : vector<8xf32>
    %87 = vector.multi_reduction <maximumf>, %86, %cst_33 [1] : vector<8x8xf32> to vector<8xf32>
    %88 = vector.shape_cast %87 : vector<8xf32> to vector<8x1xf32>
    %89 = vector.broadcast %88 : vector<8x1xf32> to vector<8x8xf32>
    %90 = arith.subf %86, %89 : vector<8x8xf32>
    %91 = math.exp %90 : vector<8x8xf32>
    %cst_34 = arith.constant dense<0.000000e+00> : vector<8xf32>
    %92 = vector.multi_reduction <add>, %91, %cst_34 [1] : vector<8x8xf32> to vector<8xf32>
    %93 = vector.shape_cast %92 : vector<8xf32> to vector<8x1xf32>
    %94 = tpu.reciprocal %93 : vector<8x1xf32> -> vector<8x1xf32>
    %95 = vector.broadcast %94 : vector<8x1xf32> to vector<8x8xf32>
    %96 = arith.mulf %91, %95 : vector<8x8xf32>
    %cst_35 = arith.constant dense<0.000000e+00> : vector<8x32xf32>
    %97 = tpu.matmul %96, %82, %cst_35 {dimension_numbers = #tpu.dot_dimension_numbers<[1], [0], [0], [1], [0, 0, 1, 1], [], []>} : vector<8x8xf32>, vector<8x32xf32>, vector<8x32xf32> -> vector<8x32xf32>
    %98 = arith.addf %79, %97 : vector<8x32xf32>
    %99 = vector.broadcast %15 : vector<1x32xf32> to vector<8x32xf32>
    %100 = arith.addf %98, %99 : vector<8x32xf32>
    %101 = arith.addf %3, %100 : vector<8x32xf32>
    %c0_36 = arith.constant 0 : index
    %c3 = arith.constant 3 : index
    %c0_37 = arith.constant 0 : index
    %102 = vector.load %arg8[%c0_36, %c3, %c0_37] : memref<2x16x160xf32, #tpu.memory_space<vmem>>, vector<1x1x160xf32>
    %103 = vector.shape_cast %102 : vector<1x1x160xf32> to vector<1x160xf32>
    %104 = vector.extract_strided_slice %103 {offsets = [0, 0], sizes = [1, 32], strides = [1, 1]} : vector<1x160xf32> to vector<1x32xf32>
    %c0_38 = arith.constant 0 : index
    %c4 = arith.constant 4 : index
    %c0_39 = arith.constant 0 : index
    %105 = vector.load %arg8[%c0_38, %c4, %c0_39] : memref<2x16x160xf32, #tpu.memory_space<vmem>>, vector<1x1x160xf32>
    %106 = vector.shape_cast %105 : vector<1x1x160xf32> to vector<1x160xf32>
    %107 = vector.extract_strided_slice %106 {offsets = [0, 0], sizes = [1, 32], strides = [1, 1]} : vector<1x160xf32> to vector<1x32xf32>
    %cst_40 = arith.constant dense<0.000000e+00> : vector<8xf32>
    %108 = vector.multi_reduction <add>, %101, %cst_40 [1] : vector<8x32xf32> to vector<8xf32>
    %109 = vector.shape_cast %108 : vector<8xf32> to vector<8x1xf32>
    %cst_41 = arith.constant 3.200000e+01 : f32
    %110 = vector.broadcast %cst_41 : f32 to vector<8x1xf32>
    %111 = arith.divf %109, %110 : vector<8x1xf32>
    %112 = vector.broadcast %111 : vector<8x1xf32> to vector<8x32xf32>
    %113 = arith.subf %101, %112 : vector<8x32xf32>
    %114 = arith.mulf %113, %113 : vector<8x32xf32>
    %cst_42 = arith.constant dense<0.000000e+00> : vector<8xf32>
    %115 = vector.multi_reduction <add>, %114, %cst_42 [1] : vector<8x32xf32> to vector<8xf32>
    %116 = vector.shape_cast %115 : vector<8xf32> to vector<8x1xf32>
    %cst_43 = arith.constant 3.200000e+01 : f32
    %117 = vector.broadcast %cst_43 : f32 to vector<8x1xf32>
    %118 = arith.divf %116, %117 : vector<8x1xf32>
    %119 = vector.broadcast %111 : vector<8x1xf32> to vector<8x32xf32>
    %120 = arith.subf %101, %119 : vector<8x32xf32>
    %cst_44 = arith.constant 9.99999974E-6 : f32
    %121 = vector.broadcast %cst_44 : f32 to vector<8x1xf32>
    %122 = arith.addf %118, %121 : vector<8x1xf32>
    %123 = math.rsqrt %122 : vector<8x1xf32>
    %124 = vector.broadcast %123 : vector<8x1xf32> to vector<8x32xf32>
    %125 = arith.mulf %120, %124 : vector<8x32xf32>
    %126 = vector.broadcast %104 : vector<1x32xf32> to vector<8x32xf32>
    %127 = arith.mulf %125, %126 : vector<8x32xf32>
    %128 = vector.broadcast %107 : vector<1x32xf32> to vector<8x32xf32>
    %129 = arith.addf %127, %128 : vector<8x32xf32>
    %c0_45 = arith.constant 0 : index
    %c0_46 = arith.constant 0 : index
    %c0_47 = arith.constant 0 : index
    %130 = vector.load %arg6[%c0_45, %c0_46, %c0_47] : memref<2x32x64xf32, #tpu.memory_space<vmem>>, vector<1x32x64xf32>
    %131 = vector.shape_cast %130 : vector<1x32x64xf32> to vector<32x64xf32>
    %c0_48 = arith.constant 0 : index
    %c5 = arith.constant 5 : index
    %c0_49 = arith.constant 0 : index
    %132 = vector.load %arg8[%c0_48, %c5, %c0_49] : memref<2x16x160xf32, #tpu.memory_space<vmem>>, vector<1x1x160xf32>
    %133 = vector.shape_cast %132 : vector<1x1x160xf32> to vector<1x160xf32>
    %134 = vector.extract_strided_slice %133 {offsets = [0, 0], sizes = [1, 64], strides = [1, 1]} : vector<1x160xf32> to vector<1x64xf32>
    %c0_50 = arith.constant 0 : index
    %c0_51 = arith.constant 0 : index
    %c0_52 = arith.constant 0 : index
    %135 = vector.load %arg7[%c0_50, %c0_51, %c0_52] : memref<2x64x32xf32, #tpu.memory_space<vmem>>, vector<1x64x32xf32>
    %136 = vector.shape_cast %135 : vector<1x64x32xf32> to vector<64x32xf32>
    %c0_53 = arith.constant 0 : index
    %c6 = arith.constant 6 : index
    %c0_54 = arith.constant 0 : index
    %137 = vector.load %arg8[%c0_53, %c6, %c0_54] : memref<2x16x160xf32, #tpu.memory_space<vmem>>, vector<1x1x160xf32>
    %138 = vector.shape_cast %137 : vector<1x1x160xf32> to vector<1x160xf32>
    %139 = vector.extract_strided_slice %138 {offsets = [0, 0], sizes = [1, 32], strides = [1, 1]} : vector<1x160xf32> to vector<1x32xf32>
    %cst_55 = arith.constant dense<0.000000e+00> : vector<8x64xf32>
    %140 = tpu.matmul %129, %131, %cst_55 {dimension_numbers = #tpu.dot_dimension_numbers<[1], [0], [0], [1], [0, 0, 1, 1], [], []>} : vector<8x32xf32>, vector<32x64xf32>, vector<8x64xf32> -> vector<8x64xf32>
    %141 = vector.broadcast %134 : vector<1x64xf32> to vector<8x64xf32>
    %142 = arith.addf %140, %141 : vector<8x64xf32>
    %cst_56 = arith.constant 0.000000e+00 : f32
    %143 = vector.broadcast %cst_56 : f32 to vector<8x64xf32>
    %144 = arith.maximumf %142, %143 : vector<8x64xf32>
    %cst_57 = arith.constant dense<0.000000e+00> : vector<8x32xf32>
    %145 = tpu.matmul %144, %136, %cst_57 {dimension_numbers = #tpu.dot_dimension_numbers<[1], [0], [0], [1], [0, 0, 1, 1], [], []>} : vector<8x64xf32>, vector<64x32xf32>, vector<8x32xf32> -> vector<8x32xf32>
    %146 = vector.broadcast %139 : vector<1x32xf32> to vector<8x32xf32>
    %147 = arith.addf %145, %146 : vector<8x32xf32>
    %148 = arith.addf %129, %147 : vector<8x32xf32>
    %c0_58 = arith.constant 0 : index
    %c7 = arith.constant 7 : index
    %c0_59 = arith.constant 0 : index
    %149 = vector.load %arg8[%c0_58, %c7, %c0_59] : memref<2x16x160xf32, #tpu.memory_space<vmem>>, vector<1x1x160xf32>
    %150 = vector.shape_cast %149 : vector<1x1x160xf32> to vector<1x160xf32>
    %151 = vector.extract_strided_slice %150 {offsets = [0, 0], sizes = [1, 32], strides = [1, 1]} : vector<1x160xf32> to vector<1x32xf32>
    %c0_60 = arith.constant 0 : index
    %c8 = arith.constant 8 : index
    %c0_61 = arith.constant 0 : index
    %152 = vector.load %arg8[%c0_60, %c8, %c0_61] : memref<2x16x160xf32, #tpu.memory_space<vmem>>, vector<1x1x160xf32>
    %153 = vector.shape_cast %152 : vector<1x1x160xf32> to vector<1x160xf32>
    %154 = vector.extract_strided_slice %153 {offsets = [0, 0], sizes = [1, 32], strides = [1, 1]} : vector<1x160xf32> to vector<1x32xf32>
    %cst_62 = arith.constant dense<0.000000e+00> : vector<8xf32>
    %155 = vector.multi_reduction <add>, %148, %cst_62 [1] : vector<8x32xf32> to vector<8xf32>
    %156 = vector.shape_cast %155 : vector<8xf32> to vector<8x1xf32>
    %cst_63 = arith.constant 3.200000e+01 : f32
    %157 = vector.broadcast %cst_63 : f32 to vector<8x1xf32>
    %158 = arith.divf %156, %157 : vector<8x1xf32>
    %159 = vector.broadcast %158 : vector<8x1xf32> to vector<8x32xf32>
    %160 = arith.subf %148, %159 : vector<8x32xf32>
    %161 = arith.mulf %160, %160 : vector<8x32xf32>
    %cst_64 = arith.constant dense<0.000000e+00> : vector<8xf32>
    %162 = vector.multi_reduction <add>, %161, %cst_64 [1] : vector<8x32xf32> to vector<8xf32>
    %163 = vector.shape_cast %162 : vector<8xf32> to vector<8x1xf32>
    %cst_65 = arith.constant 3.200000e+01 : f32
    %164 = vector.broadcast %cst_65 : f32 to vector<8x1xf32>
    %165 = arith.divf %163, %164 : vector<8x1xf32>
    %166 = vector.broadcast %158 : vector<8x1xf32> to vector<8x32xf32>
    %167 = arith.subf %148, %166 : vector<8x32xf32>
    %cst_66 = arith.constant 9.99999974E-6 : f32
    %168 = vector.broadcast %cst_66 : f32 to vector<8x1xf32>
    %169 = arith.addf %165, %168 : vector<8x1xf32>
    %170 = math.rsqrt %169 : vector<8x1xf32>
    %171 = vector.broadcast %170 : vector<8x1xf32> to vector<8x32xf32>
    %172 = arith.mulf %167, %171 : vector<8x32xf32>
    %173 = vector.broadcast %151 : vector<1x32xf32> to vector<8x32xf32>
    %174 = arith.mulf %172, %173 : vector<8x32xf32>
    %175 = vector.broadcast %154 : vector<1x32xf32> to vector<8x32xf32>
    %176 = arith.addf %174, %175 : vector<8x32xf32>
    %c1_67 = arith.constant 1 : index
    %c0_68 = arith.constant 0 : index
    %c0_69 = arith.constant 0 : index
    %177 = vector.load %arg4[%c1_67, %c0_68, %c0_69] : memref<2x32x32xf32, #tpu.memory_space<vmem>>, vector<1x32x32xf32>
    %178 = vector.shape_cast %177 : vector<1x32x32xf32> to vector<32x32xf32>
    %c1_70 = arith.constant 1 : index
    %c0_71 = arith.constant 0 : index
    %c0_72 = arith.constant 0 : index
    %179 = vector.load %arg5[%c1_70, %c0_71, %c0_72] : memref<2x32x160xf32, #tpu.memory_space<vmem>>, vector<1x32x160xf32>
    %180 = vector.shape_cast %179 : vector<1x32x160xf32> to vector<32x160xf32>
    %c1_73 = arith.constant 1 : index
    %c0_74 = arith.constant 0 : index
    %c0_75 = arith.constant 0 : index
    %181 = vector.load %arg8[%c1_73, %c0_74, %c0_75] : memref<2x16x160xf32, #tpu.memory_space<vmem>>, vector<1x1x160xf32>
    %182 = vector.shape_cast %181 : vector<1x1x160xf32> to vector<1x160xf32>
    %183 = vector.extract_strided_slice %182 {offsets = [0, 0], sizes = [1, 32], strides = [1, 1]} : vector<1x160xf32> to vector<1x32xf32>
    %c1_76 = arith.constant 1 : index
    %c1_77 = arith.constant 1 : index
    %c0_78 = arith.constant 0 : index
    %184 = vector.load %arg8[%c1_76, %c1_77, %c0_78] : memref<2x16x160xf32, #tpu.memory_space<vmem>>, vector<1x1x160xf32>
    %185 = vector.shape_cast %184 : vector<1x1x160xf32> to vector<1x160xf32>
    %c1_79 = arith.constant 1 : index
    %c2_80 = arith.constant 2 : index
    %c0_81 = arith.constant 0 : index
    %186 = vector.load %arg8[%c1_79, %c2_80, %c0_81] : memref<2x16x160xf32, #tpu.memory_space<vmem>>, vector<1x1x160xf32>
    %187 = vector.shape_cast %186 : vector<1x1x160xf32> to vector<1x160xf32>
    %188 = vector.extract_strided_slice %187 {offsets = [0, 0], sizes = [1, 32], strides = [1, 1]} : vector<1x160xf32> to vector<1x32xf32>
    %cst_82 = arith.constant dense<0.000000e+00> : vector<8x32xf32>
    %189 = tpu.matmul %176, %178, %cst_82 {dimension_numbers = #tpu.dot_dimension_numbers<[1], [0], [0], [1], [0, 0, 1, 1], [], []>} : vector<8x32xf32>, vector<32x32xf32>, vector<8x32xf32> -> vector<8x32xf32>
    %190 = vector.broadcast %183 : vector<1x32xf32> to vector<8x32xf32>
    %191 = arith.addf %189, %190 : vector<8x32xf32>
    %cst_83 = arith.constant dense<0.000000e+00> : vector<8x160xf32>
    %192 = tpu.matmul %176, %180, %cst_83 {dimension_numbers = #tpu.dot_dimension_numbers<[1], [0], [0], [1], [0, 0, 1, 1], [], []>} : vector<8x32xf32>, vector<32x160xf32>, vector<8x160xf32> -> vector<8x160xf32>
    %193 = vector.broadcast %185 : vector<1x160xf32> to vector<8x160xf32>
    %194 = arith.addf %192, %193 : vector<8x160xf32>
    %cst_84 = arith.constant 0.000000e+00 : f32
    %195 = vector.broadcast %cst_84 : f32 to vector<8x32xf32>
    %196 = vector.extract_strided_slice %191 {offsets = [0, 0], sizes = [8, 8], strides = [1, 1]} : vector<8x32xf32> to vector<8x8xf32>
    %197 = vector.extract_strided_slice %194 {offsets = [0, 0], sizes = [8, 8], strides = [1, 1]} : vector<8x160xf32> to vector<8x8xf32>
    %198 = vector.extract_strided_slice %194 {offsets = [0, 32], sizes = [8, 32], strides = [1, 1]} : vector<8x160xf32> to vector<8x32xf32>
    %199 = tpu.transpose %197, [1, 0] : vector<8x8xf32> -> vector<8x8xf32>
    %cst_85 = arith.constant dense<0.000000e+00> : vector<8x8xf32>
    %200 = tpu.matmul %196, %199, %cst_85 {dimension_numbers = #tpu.dot_dimension_numbers<[1], [0], [0], [1], [0, 0, 1, 1], [], []>} : vector<8x8xf32>, vector<8x8xf32>, vector<8x8xf32> -> vector<8x8xf32>
    %201 = vector.broadcast %1 : vector<1x8xf32> to vector<8x8xf32>
    %202 = arith.addf %200, %201 : vector<8x8xf32>
    %cst_86 = arith.constant dense<0xFF800000> : vector<8xf32>
    %203 = vector.multi_reduction <maximumf>, %202, %cst_86 [1] : vector<8x8xf32> to vector<8xf32>
    %204 = vector.shape_cast %203 : vector<8xf32> to vector<8x1xf32>
    %205 = vector.broadcast %204 : vector<8x1xf32> to vector<8x8xf32>
    %206 = arith.subf %202, %205 : vector<8x8xf32>
    %207 = math.exp %206 : vector<8x8xf32>
    %cst_87 = arith.constant dense<0.000000e+00> : vector<8xf32>
    %208 = vector.multi_reduction <add>, %207, %cst_87 [1] : vector<8x8xf32> to vector<8xf32>
    %209 = vector.shape_cast %208 : vector<8xf32> to vector<8x1xf32>
    %210 = tpu.reciprocal %209 : vector<8x1xf32> -> vector<8x1xf32>
    %211 = vector.broadcast %210 : vector<8x1xf32> to vector<8x8xf32>
    %212 = arith.mulf %207, %211 : vector<8x8xf32>
    %cst_88 = arith.constant dense<0.000000e+00> : vector<8x32xf32>
    %213 = tpu.matmul %212, %198, %cst_88 {dimension_numbers = #tpu.dot_dimension_numbers<[1], [0], [0], [1], [0, 0, 1, 1], [], []>} : vector<8x8xf32>, vector<8x32xf32>, vector<8x32xf32> -> vector<8x32xf32>
    %214 = arith.addf %195, %213 : vector<8x32xf32>
    %215 = vector.extract_strided_slice %191 {offsets = [0, 8], sizes = [8, 8], strides = [1, 1]} : vector<8x32xf32> to vector<8x8xf32>
    %216 = vector.extract_strided_slice %194 {offsets = [0, 8], sizes = [8, 8], strides = [1, 1]} : vector<8x160xf32> to vector<8x8xf32>
    %217 = vector.extract_strided_slice %194 {offsets = [0, 64], sizes = [8, 32], strides = [1, 1]} : vector<8x160xf32> to vector<8x32xf32>
    %218 = tpu.transpose %216, [1, 0] : vector<8x8xf32> -> vector<8x8xf32>
    %cst_89 = arith.constant dense<0.000000e+00> : vector<8x8xf32>
    %219 = tpu.matmul %215, %218, %cst_89 {dimension_numbers = #tpu.dot_dimension_numbers<[1], [0], [0], [1], [0, 0, 1, 1], [], []>} : vector<8x8xf32>, vector<8x8xf32>, vector<8x8xf32> -> vector<8x8xf32>
    %220 = vector.broadcast %1 : vector<1x8xf32> to vector<8x8xf32>
    %221 = arith.addf %219, %220 : vector<8x8xf32>
    %cst_90 = arith.constant dense<0xFF800000> : vector<8xf32>
    %222 = vector.multi_reduction <maximumf>, %221, %cst_90 [1] : vector<8x8xf32> to vector<8xf32>
    %223 = vector.shape_cast %222 : vector<8xf32> to vector<8x1xf32>
    %224 = vector.broadcast %223 : vector<8x1xf32> to vector<8x8xf32>
    %225 = arith.subf %221, %224 : vector<8x8xf32>
    %226 = math.exp %225 : vector<8x8xf32>
    %cst_91 = arith.constant dense<0.000000e+00> : vector<8xf32>
    %227 = vector.multi_reduction <add>, %226, %cst_91 [1] : vector<8x8xf32> to vector<8xf32>
    %228 = vector.shape_cast %227 : vector<8xf32> to vector<8x1xf32>
    %229 = tpu.reciprocal %228 : vector<8x1xf32> -> vector<8x1xf32>
    %230 = vector.broadcast %229 : vector<8x1xf32> to vector<8x8xf32>
    %231 = arith.mulf %226, %230 : vector<8x8xf32>
    %cst_92 = arith.constant dense<0.000000e+00> : vector<8x32xf32>
    %232 = tpu.matmul %231, %217, %cst_92 {dimension_numbers = #tpu.dot_dimension_numbers<[1], [0], [0], [1], [0, 0, 1, 1], [], []>} : vector<8x8xf32>, vector<8x32xf32>, vector<8x32xf32> -> vector<8x32xf32>
    %233 = arith.addf %214, %232 : vector<8x32xf32>
    %234 = vector.extract_strided_slice %191 {offsets = [0, 16], sizes = [8, 8], strides = [1, 1]} : vector<8x32xf32> to vector<8x8xf32>
    %235 = vector.extract_strided_slice %194 {offsets = [0, 16], sizes = [8, 8], strides = [1, 1]} : vector<8x160xf32> to vector<8x8xf32>
    %236 = vector.extract_strided_slice %194 {offsets = [0, 96], sizes = [8, 32], strides = [1, 1]} : vector<8x160xf32> to vector<8x32xf32>
    %237 = tpu.transpose %235, [1, 0] : vector<8x8xf32> -> vector<8x8xf32>
    %cst_93 = arith.constant dense<0.000000e+00> : vector<8x8xf32>
    %238 = tpu.matmul %234, %237, %cst_93 {dimension_numbers = #tpu.dot_dimension_numbers<[1], [0], [0], [1], [0, 0, 1, 1], [], []>} : vector<8x8xf32>, vector<8x8xf32>, vector<8x8xf32> -> vector<8x8xf32>
    %239 = vector.broadcast %1 : vector<1x8xf32> to vector<8x8xf32>
    %240 = arith.addf %238, %239 : vector<8x8xf32>
    %cst_94 = arith.constant dense<0xFF800000> : vector<8xf32>
    %241 = vector.multi_reduction <maximumf>, %240, %cst_94 [1] : vector<8x8xf32> to vector<8xf32>
    %242 = vector.shape_cast %241 : vector<8xf32> to vector<8x1xf32>
    %243 = vector.broadcast %242 : vector<8x1xf32> to vector<8x8xf32>
    %244 = arith.subf %240, %243 : vector<8x8xf32>
    %245 = math.exp %244 : vector<8x8xf32>
    %cst_95 = arith.constant dense<0.000000e+00> : vector<8xf32>
    %246 = vector.multi_reduction <add>, %245, %cst_95 [1] : vector<8x8xf32> to vector<8xf32>
    %247 = vector.shape_cast %246 : vector<8xf32> to vector<8x1xf32>
    %248 = tpu.reciprocal %247 : vector<8x1xf32> -> vector<8x1xf32>
    %249 = vector.broadcast %248 : vector<8x1xf32> to vector<8x8xf32>
    %250 = arith.mulf %245, %249 : vector<8x8xf32>
    %cst_96 = arith.constant dense<0.000000e+00> : vector<8x32xf32>
    %251 = tpu.matmul %250, %236, %cst_96 {dimension_numbers = #tpu.dot_dimension_numbers<[1], [0], [0], [1], [0, 0, 1, 1], [], []>} : vector<8x8xf32>, vector<8x32xf32>, vector<8x32xf32> -> vector<8x32xf32>
    %252 = arith.addf %233, %251 : vector<8x32xf32>
    %253 = vector.extract_strided_slice %191 {offsets = [0, 24], sizes = [8, 8], strides = [1, 1]} : vector<8x32xf32> to vector<8x8xf32>
    %254 = vector.extract_strided_slice %194 {offsets = [0, 24], sizes = [8, 8], strides = [1, 1]} : vector<8x160xf32> to vector<8x8xf32>
    %255 = vector.extract_strided_slice %194 {offsets = [0, 128], sizes = [8, 32], strides = [1, 1]} : vector<8x160xf32> to vector<8x32xf32>
    %256 = tpu.transpose %254, [1, 0] : vector<8x8xf32> -> vector<8x8xf32>
    %cst_97 = arith.constant dense<0.000000e+00> : vector<8x8xf32>
    %257 = tpu.matmul %253, %256, %cst_97 {dimension_numbers = #tpu.dot_dimension_numbers<[1], [0], [0], [1], [0, 0, 1, 1], [], []>} : vector<8x8xf32>, vector<8x8xf32>, vector<8x8xf32> -> vector<8x8xf32>
    %258 = vector.broadcast %1 : vector<1x8xf32> to vector<8x8xf32>
    %259 = arith.addf %257, %258 : vector<8x8xf32>
    %cst_98 = arith.constant dense<0xFF800000> : vector<8xf32>
    %260 = vector.multi_reduction <maximumf>, %259, %cst_98 [1] : vector<8x8xf32> to vector<8xf32>
    %261 = vector.shape_cast %260 : vector<8xf32> to vector<8x1xf32>
    %262 = vector.broadcast %261 : vector<8x1xf32> to vector<8x8xf32>
    %263 = arith.subf %259, %262 : vector<8x8xf32>
    %264 = math.exp %263 : vector<8x8xf32>
    %cst_99 = arith.constant dense<0.000000e+00> : vector<8xf32>
    %265 = vector.multi_reduction <add>, %264, %cst_99 [1] : vector<8x8xf32> to vector<8xf32>
    %266 = vector.shape_cast %265 : vector<8xf32> to vector<8x1xf32>
    %267 = tpu.reciprocal %266 : vector<8x1xf32> -> vector<8x1xf32>
    %268 = vector.broadcast %267 : vector<8x1xf32> to vector<8x8xf32>
    %269 = arith.mulf %264, %268 : vector<8x8xf32>
    %cst_100 = arith.constant dense<0.000000e+00> : vector<8x32xf32>
    %270 = tpu.matmul %269, %255, %cst_100 {dimension_numbers = #tpu.dot_dimension_numbers<[1], [0], [0], [1], [0, 0, 1, 1], [], []>} : vector<8x8xf32>, vector<8x32xf32>, vector<8x32xf32> -> vector<8x32xf32>
    %271 = arith.addf %252, %270 : vector<8x32xf32>
    %272 = vector.broadcast %188 : vector<1x32xf32> to vector<8x32xf32>
    %273 = arith.addf %271, %272 : vector<8x32xf32>
    %274 = arith.addf %176, %273 : vector<8x32xf32>
    %c1_101 = arith.constant 1 : index
    %c3_102 = arith.constant 3 : index
    %c0_103 = arith.constant 0 : index
    %275 = vector.load %arg8[%c1_101, %c3_102, %c0_103] : memref<2x16x160xf32, #tpu.memory_space<vmem>>, vector<1x1x160xf32>
    %276 = vector.shape_cast %275 : vector<1x1x160xf32> to vector<1x160xf32>
    %277 = vector.extract_strided_slice %276 {offsets = [0, 0], sizes = [1, 32], strides = [1, 1]} : vector<1x160xf32> to vector<1x32xf32>
    %c1_104 = arith.constant 1 : index
    %c4_105 = arith.constant 4 : index
    %c0_106 = arith.constant 0 : index
    %278 = vector.load %arg8[%c1_104, %c4_105, %c0_106] : memref<2x16x160xf32, #tpu.memory_space<vmem>>, vector<1x1x160xf32>
    %279 = vector.shape_cast %278 : vector<1x1x160xf32> to vector<1x160xf32>
    %280 = vector.extract_strided_slice %279 {offsets = [0, 0], sizes = [1, 32], strides = [1, 1]} : vector<1x160xf32> to vector<1x32xf32>
    %cst_107 = arith.constant dense<0.000000e+00> : vector<8xf32>
    %281 = vector.multi_reduction <add>, %274, %cst_107 [1] : vector<8x32xf32> to vector<8xf32>
    %282 = vector.shape_cast %281 : vector<8xf32> to vector<8x1xf32>
    %cst_108 = arith.constant 3.200000e+01 : f32
    %283 = vector.broadcast %cst_108 : f32 to vector<8x1xf32>
    %284 = arith.divf %282, %283 : vector<8x1xf32>
    %285 = vector.broadcast %284 : vector<8x1xf32> to vector<8x32xf32>
    %286 = arith.subf %274, %285 : vector<8x32xf32>
    %287 = arith.mulf %286, %286 : vector<8x32xf32>
    %cst_109 = arith.constant dense<0.000000e+00> : vector<8xf32>
    %288 = vector.multi_reduction <add>, %287, %cst_109 [1] : vector<8x32xf32> to vector<8xf32>
    %289 = vector.shape_cast %288 : vector<8xf32> to vector<8x1xf32>
    %cst_110 = arith.constant 3.200000e+01 : f32
    %290 = vector.broadcast %cst_110 : f32 to vector<8x1xf32>
    %291 = arith.divf %289, %290 : vector<8x1xf32>
    %292 = vector.broadcast %284 : vector<8x1xf32> to vector<8x32xf32>
    %293 = arith.subf %274, %292 : vector<8x32xf32>
    %cst_111 = arith.constant 9.99999974E-6 : f32
    %294 = vector.broadcast %cst_111 : f32 to vector<8x1xf32>
    %295 = arith.addf %291, %294 : vector<8x1xf32>
    %296 = math.rsqrt %295 : vector<8x1xf32>
    %297 = vector.broadcast %296 : vector<8x1xf32> to vector<8x32xf32>
    %298 = arith.mulf %293, %297 : vector<8x32xf32>
    %299 = vector.broadcast %277 : vector<1x32xf32> to vector<8x32xf32>
    %300 = arith.mulf %298, %299 : vector<8x32xf32>
    %301 = vector.broadcast %280 : vector<1x32xf32> to vector<8x32xf32>
    %302 = arith.addf %300, %301 : vector<8x32xf32>
    %c1_112 = arith.constant 1 : index
    %c0_113 = arith.constant 0 : index
    %c0_114 = arith.constant 0 : index
    %303 = vector.load %arg6[%c1_112, %c0_113, %c0_114] : memref<2x32x64xf32, #tpu.memory_space<vmem>>, vector<1x32x64xf32>
    %304 = vector.shape_cast %303 : vector<1x32x64xf32> to vector<32x64xf32>
    %c1_115 = arith.constant 1 : index
    %c5_116 = arith.constant 5 : index
    %c0_117 = arith.constant 0 : index
    %305 = vector.load %arg8[%c1_115, %c5_116, %c0_117] : memref<2x16x160xf32, #tpu.memory_space<vmem>>, vector<1x1x160xf32>
    %306 = vector.shape_cast %305 : vector<1x1x160xf32> to vector<1x160xf32>
    %307 = vector.extract_strided_slice %306 {offsets = [0, 0], sizes = [1, 64], strides = [1, 1]} : vector<1x160xf32> to vector<1x64xf32>
    %c1_118 = arith.constant 1 : index
    %c0_119 = arith.constant 0 : index
    %c0_120 = arith.constant 0 : index
    %308 = vector.load %arg7[%c1_118, %c0_119, %c0_120] : memref<2x64x32xf32, #tpu.memory_space<vmem>>, vector<1x64x32xf32>
    %309 = vector.shape_cast %308 : vector<1x64x32xf32> to vector<64x32xf32>
    %c1_121 = arith.constant 1 : index
    %c6_122 = arith.constant 6 : index
    %c0_123 = arith.constant 0 : index
    %310 = vector.load %arg8[%c1_121, %c6_122, %c0_123] : memref<2x16x160xf32, #tpu.memory_space<vmem>>, vector<1x1x160xf32>
    %311 = vector.shape_cast %310 : vector<1x1x160xf32> to vector<1x160xf32>
    %312 = vector.extract_strided_slice %311 {offsets = [0, 0], sizes = [1, 32], strides = [1, 1]} : vector<1x160xf32> to vector<1x32xf32>
    %cst_124 = arith.constant dense<0.000000e+00> : vector<8x64xf32>
    %313 = tpu.matmul %302, %304, %cst_124 {dimension_numbers = #tpu.dot_dimension_numbers<[1], [0], [0], [1], [0, 0, 1, 1], [], []>} : vector<8x32xf32>, vector<32x64xf32>, vector<8x64xf32> -> vector<8x64xf32>
    %314 = vector.broadcast %307 : vector<1x64xf32> to vector<8x64xf32>
    %315 = arith.addf %313, %314 : vector<8x64xf32>
    %cst_125 = arith.constant 0.000000e+00 : f32
    %316 = vector.broadcast %cst_125 : f32 to vector<8x64xf32>
    %317 = arith.maximumf %315, %316 : vector<8x64xf32>
    %cst_126 = arith.constant dense<0.000000e+00> : vector<8x32xf32>
    %318 = tpu.matmul %317, %309, %cst_126 {dimension_numbers = #tpu.dot_dimension_numbers<[1], [0], [0], [1], [0, 0, 1, 1], [], []>} : vector<8x64xf32>, vector<64x32xf32>, vector<8x32xf32> -> vector<8x32xf32>
    %319 = vector.broadcast %312 : vector<1x32xf32> to vector<8x32xf32>
    %320 = arith.addf %318, %319 : vector<8x32xf32>
    %321 = arith.addf %302, %320 : vector<8x32xf32>
    %c1_127 = arith.constant 1 : index
    %c7_128 = arith.constant 7 : index
    %c0_129 = arith.constant 0 : index
    %322 = vector.load %arg8[%c1_127, %c7_128, %c0_129] : memref<2x16x160xf32, #tpu.memory_space<vmem>>, vector<1x1x160xf32>
    %323 = vector.shape_cast %322 : vector<1x1x160xf32> to vector<1x160xf32>
    %324 = vector.extract_strided_slice %323 {offsets = [0, 0], sizes = [1, 32], strides = [1, 1]} : vector<1x160xf32> to vector<1x32xf32>
    %c1_130 = arith.constant 1 : index
    %c8_131 = arith.constant 8 : index
    %c0_132 = arith.constant 0 : index
    %325 = vector.load %arg8[%c1_130, %c8_131, %c0_132] : memref<2x16x160xf32, #tpu.memory_space<vmem>>, vector<1x1x160xf32>
    %326 = vector.shape_cast %325 : vector<1x1x160xf32> to vector<1x160xf32>
    %327 = vector.extract_strided_slice %326 {offsets = [0, 0], sizes = [1, 32], strides = [1, 1]} : vector<1x160xf32> to vector<1x32xf32>
    %cst_133 = arith.constant dense<0.000000e+00> : vector<8xf32>
    %328 = vector.multi_reduction <add>, %321, %cst_133 [1] : vector<8x32xf32> to vector<8xf32>
    %329 = vector.shape_cast %328 : vector<8xf32> to vector<8x1xf32>
    %cst_134 = arith.constant 3.200000e+01 : f32
    %330 = vector.broadcast %cst_134 : f32 to vector<8x1xf32>
    %331 = arith.divf %329, %330 : vector<8x1xf32>
    %332 = vector.broadcast %331 : vector<8x1xf32> to vector<8x32xf32>
    %333 = arith.subf %321, %332 : vector<8x32xf32>
    %334 = arith.mulf %333, %333 : vector<8x32xf32>
    %cst_135 = arith.constant dense<0.000000e+00> : vector<8xf32>
    %335 = vector.multi_reduction <add>, %334, %cst_135 [1] : vector<8x32xf32> to vector<8xf32>
    %336 = vector.shape_cast %335 : vector<8xf32> to vector<8x1xf32>
    %cst_136 = arith.constant 3.200000e+01 : f32
    %337 = vector.broadcast %cst_136 : f32 to vector<8x1xf32>
    %338 = arith.divf %336, %337 : vector<8x1xf32>
    %339 = vector.broadcast %331 : vector<8x1xf32> to vector<8x32xf32>
    %340 = arith.subf %321, %339 : vector<8x32xf32>
    %cst_137 = arith.constant 9.99999974E-6 : f32
    %341 = vector.broadcast %cst_137 : f32 to vector<8x1xf32>
    %342 = arith.addf %338, %341 : vector<8x1xf32>
    %343 = math.rsqrt %342 : vector<8x1xf32>
    %344 = vector.broadcast %343 : vector<8x1xf32> to vector<8x32xf32>
    %345 = arith.mulf %340, %344 : vector<8x32xf32>
    %346 = vector.broadcast %324 : vector<1x32xf32> to vector<8x32xf32>
    %347 = arith.mulf %345, %346 : vector<8x32xf32>
    %348 = vector.broadcast %327 : vector<1x32xf32> to vector<8x32xf32>
    %349 = arith.addf %347, %348 : vector<8x32xf32>
    %350 = tpu.iota {dimensions = array<i32: 0>} : vector<8x8xi32>
    %351 = tpu.iota {dimensions = array<i32: 1>} : vector<8x8xi32>
    %352 = arith.cmpi sle, %351, %350 : vector<8x8xi32>
    %cst_138 = arith.constant 0.000000e+00 : f32
    %cst_139 = arith.constant -1.000000e+09 : f32
    %353 = vector.broadcast %cst_138 : f32 to vector<8x8xf32>
    %354 = vector.broadcast %cst_139 : f32 to vector<8x8xf32>
    %355 = arith.select %352, %353, %354 : vector<8x8xi1>, vector<8x8xf32>
    %c0_140 = arith.constant 0 : index
    %c0_141 = arith.constant 0 : index
    %c0_142 = arith.constant 0 : index
    %356 = vector.load %arg2[%c0_140, %c0_141, %c0_142] : memref<1x8x32xf32, #tpu.memory_space<vmem>>, vector<1x8x32xf32>
    %357 = vector.shape_cast %356 : vector<1x8x32xf32> to vector<8x32xf32>
    %c0_143 = arith.constant 0 : index
    %c0_144 = arith.constant 0 : index
    %c0_145 = arith.constant 0 : index
    %358 = vector.load %arg9[%c0_143, %c0_144, %c0_145] : memref<2x32x32xf32, #tpu.memory_space<vmem>>, vector<1x32x32xf32>
    %359 = vector.shape_cast %358 : vector<1x32x32xf32> to vector<32x32xf32>
    %c0_146 = arith.constant 0 : index
    %c0_147 = arith.constant 0 : index
    %c0_148 = arith.constant 0 : index
    %360 = vector.load %arg10[%c0_146, %c0_147, %c0_148] : memref<2x32x160xf32, #tpu.memory_space<vmem>>, vector<1x32x160xf32>
    %361 = vector.shape_cast %360 : vector<1x32x160xf32> to vector<32x160xf32>
    %c0_149 = arith.constant 0 : index
    %c0_150 = arith.constant 0 : index
    %c0_151 = arith.constant 0 : index
    %362 = vector.load %arg15[%c0_149, %c0_150, %c0_151] : memref<2x16x160xf32, #tpu.memory_space<vmem>>, vector<1x1x160xf32>
    %363 = vector.shape_cast %362 : vector<1x1x160xf32> to vector<1x160xf32>
    %364 = vector.extract_strided_slice %363 {offsets = [0, 0], sizes = [1, 32], strides = [1, 1]} : vector<1x160xf32> to vector<1x32xf32>
    %c0_152 = arith.constant 0 : index
    %c1_153 = arith.constant 1 : index
    %c0_154 = arith.constant 0 : index
    %365 = vector.load %arg15[%c0_152, %c1_153, %c0_154] : memref<2x16x160xf32, #tpu.memory_space<vmem>>, vector<1x1x160xf32>
    %366 = vector.shape_cast %365 : vector<1x1x160xf32> to vector<1x160xf32>
    %c0_155 = arith.constant 0 : index
    %c2_156 = arith.constant 2 : index
    %c0_157 = arith.constant 0 : index
    %367 = vector.load %arg15[%c0_155, %c2_156, %c0_157] : memref<2x16x160xf32, #tpu.memory_space<vmem>>, vector<1x1x160xf32>
    %368 = vector.shape_cast %367 : vector<1x1x160xf32> to vector<1x160xf32>
    %369 = vector.extract_strided_slice %368 {offsets = [0, 0], sizes = [1, 32], strides = [1, 1]} : vector<1x160xf32> to vector<1x32xf32>
    %cst_158 = arith.constant dense<0.000000e+00> : vector<8x32xf32>
    %370 = tpu.matmul %357, %359, %cst_158 {dimension_numbers = #tpu.dot_dimension_numbers<[1], [0], [0], [1], [0, 0, 1, 1], [], []>} : vector<8x32xf32>, vector<32x32xf32>, vector<8x32xf32> -> vector<8x32xf32>
    %371 = vector.broadcast %364 : vector<1x32xf32> to vector<8x32xf32>
    %372 = arith.addf %370, %371 : vector<8x32xf32>
    %cst_159 = arith.constant dense<0.000000e+00> : vector<8x160xf32>
    %373 = tpu.matmul %357, %361, %cst_159 {dimension_numbers = #tpu.dot_dimension_numbers<[1], [0], [0], [1], [0, 0, 1, 1], [], []>} : vector<8x32xf32>, vector<32x160xf32>, vector<8x160xf32> -> vector<8x160xf32>
    %374 = vector.broadcast %366 : vector<1x160xf32> to vector<8x160xf32>
    %375 = arith.addf %373, %374 : vector<8x160xf32>
    %cst_160 = arith.constant 0.000000e+00 : f32
    %376 = vector.broadcast %cst_160 : f32 to vector<8x32xf32>
    %377 = vector.extract_strided_slice %372 {offsets = [0, 0], sizes = [8, 8], strides = [1, 1]} : vector<8x32xf32> to vector<8x8xf32>
    %378 = vector.extract_strided_slice %375 {offsets = [0, 0], sizes = [8, 8], strides = [1, 1]} : vector<8x160xf32> to vector<8x8xf32>
    %379 = vector.extract_strided_slice %375 {offsets = [0, 32], sizes = [8, 32], strides = [1, 1]} : vector<8x160xf32> to vector<8x32xf32>
    %380 = tpu.transpose %378, [1, 0] : vector<8x8xf32> -> vector<8x8xf32>
    %cst_161 = arith.constant dense<0.000000e+00> : vector<8x8xf32>
    %381 = tpu.matmul %377, %380, %cst_161 {dimension_numbers = #tpu.dot_dimension_numbers<[1], [0], [0], [1], [0, 0, 1, 1], [], []>} : vector<8x8xf32>, vector<8x8xf32>, vector<8x8xf32> -> vector<8x8xf32>
    %382 = arith.addf %381, %355 : vector<8x8xf32>
    %cst_162 = arith.constant dense<0xFF800000> : vector<8xf32>
    %383 = vector.multi_reduction <maximumf>, %382, %cst_162 [1] : vector<8x8xf32> to vector<8xf32>
    %384 = vector.shape_cast %383 : vector<8xf32> to vector<8x1xf32>
    %385 = vector.broadcast %384 : vector<8x1xf32> to vector<8x8xf32>
    %386 = arith.subf %382, %385 : vector<8x8xf32>
    %387 = math.exp %386 : vector<8x8xf32>
    %cst_163 = arith.constant dense<0.000000e+00> : vector<8xf32>
    %388 = vector.multi_reduction <add>, %387, %cst_163 [1] : vector<8x8xf32> to vector<8xf32>
    %389 = vector.shape_cast %388 : vector<8xf32> to vector<8x1xf32>
    %390 = tpu.reciprocal %389 : vector<8x1xf32> -> vector<8x1xf32>
    %391 = vector.broadcast %390 : vector<8x1xf32> to vector<8x8xf32>
    %392 = arith.mulf %387, %391 : vector<8x8xf32>
    %cst_164 = arith.constant dense<0.000000e+00> : vector<8x32xf32>
    %393 = tpu.matmul %392, %379, %cst_164 {dimension_numbers = #tpu.dot_dimension_numbers<[1], [0], [0], [1], [0, 0, 1, 1], [], []>} : vector<8x8xf32>, vector<8x32xf32>, vector<8x32xf32> -> vector<8x32xf32>
    %394 = arith.addf %376, %393 : vector<8x32xf32>
    %395 = vector.extract_strided_slice %372 {offsets = [0, 8], sizes = [8, 8], strides = [1, 1]} : vector<8x32xf32> to vector<8x8xf32>
    %396 = vector.extract_strided_slice %375 {offsets = [0, 8], sizes = [8, 8], strides = [1, 1]} : vector<8x160xf32> to vector<8x8xf32>
    %397 = vector.extract_strided_slice %375 {offsets = [0, 64], sizes = [8, 32], strides = [1, 1]} : vector<8x160xf32> to vector<8x32xf32>
    %398 = tpu.transpose %396, [1, 0] : vector<8x8xf32> -> vector<8x8xf32>
    %cst_165 = arith.constant dense<0.000000e+00> : vector<8x8xf32>
    %399 = tpu.matmul %395, %398, %cst_165 {dimension_numbers = #tpu.dot_dimension_numbers<[1], [0], [0], [1], [0, 0, 1, 1], [], []>} : vector<8x8xf32>, vector<8x8xf32>, vector<8x8xf32> -> vector<8x8xf32>
    %400 = arith.addf %399, %355 : vector<8x8xf32>
    %cst_166 = arith.constant dense<0xFF800000> : vector<8xf32>
    %401 = vector.multi_reduction <maximumf>, %400, %cst_166 [1] : vector<8x8xf32> to vector<8xf32>
    %402 = vector.shape_cast %401 : vector<8xf32> to vector<8x1xf32>
    %403 = vector.broadcast %402 : vector<8x1xf32> to vector<8x8xf32>
    %404 = arith.subf %400, %403 : vector<8x8xf32>
    %405 = math.exp %404 : vector<8x8xf32>
    %cst_167 = arith.constant dense<0.000000e+00> : vector<8xf32>
    %406 = vector.multi_reduction <add>, %405, %cst_167 [1] : vector<8x8xf32> to vector<8xf32>
    %407 = vector.shape_cast %406 : vector<8xf32> to vector<8x1xf32>
    %408 = tpu.reciprocal %407 : vector<8x1xf32> -> vector<8x1xf32>
    %409 = vector.broadcast %408 : vector<8x1xf32> to vector<8x8xf32>
    %410 = arith.mulf %405, %409 : vector<8x8xf32>
    %cst_168 = arith.constant dense<0.000000e+00> : vector<8x32xf32>
    %411 = tpu.matmul %410, %397, %cst_168 {dimension_numbers = #tpu.dot_dimension_numbers<[1], [0], [0], [1], [0, 0, 1, 1], [], []>} : vector<8x8xf32>, vector<8x32xf32>, vector<8x32xf32> -> vector<8x32xf32>
    %412 = arith.addf %394, %411 : vector<8x32xf32>
    %413 = vector.extract_strided_slice %372 {offsets = [0, 16], sizes = [8, 8], strides = [1, 1]} : vector<8x32xf32> to vector<8x8xf32>
    %414 = vector.extract_strided_slice %375 {offsets = [0, 16], sizes = [8, 8], strides = [1, 1]} : vector<8x160xf32> to vector<8x8xf32>
    %415 = vector.extract_strided_slice %375 {offsets = [0, 96], sizes = [8, 32], strides = [1, 1]} : vector<8x160xf32> to vector<8x32xf32>
    %416 = tpu.transpose %414, [1, 0] : vector<8x8xf32> -> vector<8x8xf32>
    %cst_169 = arith.constant dense<0.000000e+00> : vector<8x8xf32>
    %417 = tpu.matmul %413, %416, %cst_169 {dimension_numbers = #tpu.dot_dimension_numbers<[1], [0], [0], [1], [0, 0, 1, 1], [], []>} : vector<8x8xf32>, vector<8x8xf32>, vector<8x8xf32> -> vector<8x8xf32>
    %418 = arith.addf %417, %355 : vector<8x8xf32>
    %cst_170 = arith.constant dense<0xFF800000> : vector<8xf32>
    %419 = vector.multi_reduction <maximumf>, %418, %cst_170 [1] : vector<8x8xf32> to vector<8xf32>
    %420 = vector.shape_cast %419 : vector<8xf32> to vector<8x1xf32>
    %421 = vector.broadcast %420 : vector<8x1xf32> to vector<8x8xf32>
    %422 = arith.subf %418, %421 : vector<8x8xf32>
    %423 = math.exp %422 : vector<8x8xf32>
    %cst_171 = arith.constant dense<0.000000e+00> : vector<8xf32>
    %424 = vector.multi_reduction <add>, %423, %cst_171 [1] : vector<8x8xf32> to vector<8xf32>
    %425 = vector.shape_cast %424 : vector<8xf32> to vector<8x1xf32>
    %426 = tpu.reciprocal %425 : vector<8x1xf32> -> vector<8x1xf32>
    %427 = vector.broadcast %426 : vector<8x1xf32> to vector<8x8xf32>
    %428 = arith.mulf %423, %427 : vector<8x8xf32>
    %cst_172 = arith.constant dense<0.000000e+00> : vector<8x32xf32>
    %429 = tpu.matmul %428, %415, %cst_172 {dimension_numbers = #tpu.dot_dimension_numbers<[1], [0], [0], [1], [0, 0, 1, 1], [], []>} : vector<8x8xf32>, vector<8x32xf32>, vector<8x32xf32> -> vector<8x32xf32>
    %430 = arith.addf %412, %429 : vector<8x32xf32>
    %431 = vector.extract_strided_slice %372 {offsets = [0, 24], sizes = [8, 8], strides = [1, 1]} : vector<8x32xf32> to vector<8x8xf32>
    %432 = vector.extract_strided_slice %375 {offsets = [0, 24], sizes = [8, 8], strides = [1, 1]} : vector<8x160xf32> to vector<8x8xf32>
    %433 = vector.extract_strided_slice %375 {offsets = [0, 128], sizes = [8, 32], strides = [1, 1]} : vector<8x160xf32> to vector<8x32xf32>
    %434 = tpu.transpose %432, [1, 0] : vector<8x8xf32> -> vector<8x8xf32>
    %cst_173 = arith.constant dense<0.000000e+00> : vector<8x8xf32>
    %435 = tpu.matmul %431, %434, %cst_173 {dimension_numbers = #tpu.dot_dimension_numbers<[1], [0], [0], [1], [0, 0, 1, 1], [], []>} : vector<8x8xf32>, vector<8x8xf32>, vector<8x8xf32> -> vector<8x8xf32>
    %436 = arith.addf %435, %355 : vector<8x8xf32>
    %cst_174 = arith.constant dense<0xFF800000> : vector<8xf32>
    %437 = vector.multi_reduction <maximumf>, %436, %cst_174 [1] : vector<8x8xf32> to vector<8xf32>
    %438 = vector.shape_cast %437 : vector<8xf32> to vector<8x1xf32>
    %439 = vector.broadcast %438 : vector<8x1xf32> to vector<8x8xf32>
    %440 = arith.subf %436, %439 : vector<8x8xf32>
    %441 = math.exp %440 : vector<8x8xf32>
    %cst_175 = arith.constant dense<0.000000e+00> : vector<8xf32>
    %442 = vector.multi_reduction <add>, %441, %cst_175 [1] : vector<8x8xf32> to vector<8xf32>
    %443 = vector.shape_cast %442 : vector<8xf32> to vector<8x1xf32>
    %444 = tpu.reciprocal %443 : vector<8x1xf32> -> vector<8x1xf32>
    %445 = vector.broadcast %444 : vector<8x1xf32> to vector<8x8xf32>
    %446 = arith.mulf %441, %445 : vector<8x8xf32>
    %cst_176 = arith.constant dense<0.000000e+00> : vector<8x32xf32>
    %447 = tpu.matmul %446, %433, %cst_176 {dimension_numbers = #tpu.dot_dimension_numbers<[1], [0], [0], [1], [0, 0, 1, 1], [], []>} : vector<8x8xf32>, vector<8x32xf32>, vector<8x32xf32> -> vector<8x32xf32>
    %448 = arith.addf %430, %447 : vector<8x32xf32>
    %449 = vector.broadcast %369 : vector<1x32xf32> to vector<8x32xf32>
    %450 = arith.addf %448, %449 : vector<8x32xf32>
    %451 = arith.addf %357, %450 : vector<8x32xf32>
    %c0_177 = arith.constant 0 : index
    %c3_178 = arith.constant 3 : index
    %c0_179 = arith.constant 0 : index
    %452 = vector.load %arg15[%c0_177, %c3_178, %c0_179] : memref<2x16x160xf32, #tpu.memory_space<vmem>>, vector<1x1x160xf32>
    %453 = vector.shape_cast %452 : vector<1x1x160xf32> to vector<1x160xf32>
    %454 = vector.extract_strided_slice %453 {offsets = [0, 0], sizes = [1, 32], strides = [1, 1]} : vector<1x160xf32> to vector<1x32xf32>
    %c0_180 = arith.constant 0 : index
    %c4_181 = arith.constant 4 : index
    %c0_182 = arith.constant 0 : index
    %455 = vector.load %arg15[%c0_180, %c4_181, %c0_182] : memref<2x16x160xf32, #tpu.memory_space<vmem>>, vector<1x1x160xf32>
    %456 = vector.shape_cast %455 : vector<1x1x160xf32> to vector<1x160xf32>
    %457 = vector.extract_strided_slice %456 {offsets = [0, 0], sizes = [1, 32], strides = [1, 1]} : vector<1x160xf32> to vector<1x32xf32>
    %cst_183 = arith.constant dense<0.000000e+00> : vector<8xf32>
    %458 = vector.multi_reduction <add>, %451, %cst_183 [1] : vector<8x32xf32> to vector<8xf32>
    %459 = vector.shape_cast %458 : vector<8xf32> to vector<8x1xf32>
    %cst_184 = arith.constant 3.200000e+01 : f32
    %460 = vector.broadcast %cst_184 : f32 to vector<8x1xf32>
    %461 = arith.divf %459, %460 : vector<8x1xf32>
    %462 = vector.broadcast %461 : vector<8x1xf32> to vector<8x32xf32>
    %463 = arith.subf %451, %462 : vector<8x32xf32>
    %464 = arith.mulf %463, %463 : vector<8x32xf32>
    %cst_185 = arith.constant dense<0.000000e+00> : vector<8xf32>
    %465 = vector.multi_reduction <add>, %464, %cst_185 [1] : vector<8x32xf32> to vector<8xf32>
    %466 = vector.shape_cast %465 : vector<8xf32> to vector<8x1xf32>
    %cst_186 = arith.constant 3.200000e+01 : f32
    %467 = vector.broadcast %cst_186 : f32 to vector<8x1xf32>
    %468 = arith.divf %466, %467 : vector<8x1xf32>
    %469 = vector.broadcast %461 : vector<8x1xf32> to vector<8x32xf32>
    %470 = arith.subf %451, %469 : vector<8x32xf32>
    %cst_187 = arith.constant 9.99999974E-6 : f32
    %471 = vector.broadcast %cst_187 : f32 to vector<8x1xf32>
    %472 = arith.addf %468, %471 : vector<8x1xf32>
    %473 = math.rsqrt %472 : vector<8x1xf32>
    %474 = vector.broadcast %473 : vector<8x1xf32> to vector<8x32xf32>
    %475 = arith.mulf %470, %474 : vector<8x32xf32>
    %476 = vector.broadcast %454 : vector<1x32xf32> to vector<8x32xf32>
    %477 = arith.mulf %475, %476 : vector<8x32xf32>
    %478 = vector.broadcast %457 : vector<1x32xf32> to vector<8x32xf32>
    %479 = arith.addf %477, %478 : vector<8x32xf32>
    %c0_188 = arith.constant 0 : index
    %c0_189 = arith.constant 0 : index
    %c0_190 = arith.constant 0 : index
    %480 = vector.load %arg11[%c0_188, %c0_189, %c0_190] : memref<2x32x32xf32, #tpu.memory_space<vmem>>, vector<1x32x32xf32>
    %481 = vector.shape_cast %480 : vector<1x32x32xf32> to vector<32x32xf32>
    %c0_191 = arith.constant 0 : index
    %c0_192 = arith.constant 0 : index
    %c0_193 = arith.constant 0 : index
    %482 = vector.load %arg12[%c0_191, %c0_192, %c0_193] : memref<2x32x160xf32, #tpu.memory_space<vmem>>, vector<1x32x160xf32>
    %483 = vector.shape_cast %482 : vector<1x32x160xf32> to vector<32x160xf32>
    %c0_194 = arith.constant 0 : index
    %c5_195 = arith.constant 5 : index
    %c0_196 = arith.constant 0 : index
    %484 = vector.load %arg15[%c0_194, %c5_195, %c0_196] : memref<2x16x160xf32, #tpu.memory_space<vmem>>, vector<1x1x160xf32>
    %485 = vector.shape_cast %484 : vector<1x1x160xf32> to vector<1x160xf32>
    %486 = vector.extract_strided_slice %485 {offsets = [0, 0], sizes = [1, 32], strides = [1, 1]} : vector<1x160xf32> to vector<1x32xf32>
    %c0_197 = arith.constant 0 : index
    %c6_198 = arith.constant 6 : index
    %c0_199 = arith.constant 0 : index
    %487 = vector.load %arg15[%c0_197, %c6_198, %c0_199] : memref<2x16x160xf32, #tpu.memory_space<vmem>>, vector<1x1x160xf32>
    %488 = vector.shape_cast %487 : vector<1x1x160xf32> to vector<1x160xf32>
    %c0_200 = arith.constant 0 : index
    %c7_201 = arith.constant 7 : index
    %c0_202 = arith.constant 0 : index
    %489 = vector.load %arg15[%c0_200, %c7_201, %c0_202] : memref<2x16x160xf32, #tpu.memory_space<vmem>>, vector<1x1x160xf32>
    %490 = vector.shape_cast %489 : vector<1x1x160xf32> to vector<1x160xf32>
    %491 = vector.extract_strided_slice %490 {offsets = [0, 0], sizes = [1, 32], strides = [1, 1]} : vector<1x160xf32> to vector<1x32xf32>
    %cst_203 = arith.constant dense<0.000000e+00> : vector<8x32xf32>
    %492 = tpu.matmul %479, %481, %cst_203 {dimension_numbers = #tpu.dot_dimension_numbers<[1], [0], [0], [1], [0, 0, 1, 1], [], []>} : vector<8x32xf32>, vector<32x32xf32>, vector<8x32xf32> -> vector<8x32xf32>
    %493 = vector.broadcast %486 : vector<1x32xf32> to vector<8x32xf32>
    %494 = arith.addf %492, %493 : vector<8x32xf32>
    %cst_204 = arith.constant dense<0.000000e+00> : vector<8x160xf32>
    %495 = tpu.matmul %349, %483, %cst_204 {dimension_numbers = #tpu.dot_dimension_numbers<[1], [0], [0], [1], [0, 0, 1, 1], [], []>} : vector<8x32xf32>, vector<32x160xf32>, vector<8x160xf32> -> vector<8x160xf32>
    %496 = vector.broadcast %488 : vector<1x160xf32> to vector<8x160xf32>
    %497 = arith.addf %495, %496 : vector<8x160xf32>
    %cst_205 = arith.constant 0.000000e+00 : f32
    %498 = vector.broadcast %cst_205 : f32 to vector<8x32xf32>
    %499 = vector.extract_strided_slice %494 {offsets = [0, 0], sizes = [8, 8], strides = [1, 1]} : vector<8x32xf32> to vector<8x8xf32>
    %500 = vector.extract_strided_slice %497 {offsets = [0, 0], sizes = [8, 8], strides = [1, 1]} : vector<8x160xf32> to vector<8x8xf32>
    %501 = vector.extract_strided_slice %497 {offsets = [0, 32], sizes = [8, 32], strides = [1, 1]} : vector<8x160xf32> to vector<8x32xf32>
    %502 = tpu.transpose %500, [1, 0] : vector<8x8xf32> -> vector<8x8xf32>
    %cst_206 = arith.constant dense<0.000000e+00> : vector<8x8xf32>
    %503 = tpu.matmul %499, %502, %cst_206 {dimension_numbers = #tpu.dot_dimension_numbers<[1], [0], [0], [1], [0, 0, 1, 1], [], []>} : vector<8x8xf32>, vector<8x8xf32>, vector<8x8xf32> -> vector<8x8xf32>
    %504 = vector.broadcast %1 : vector<1x8xf32> to vector<8x8xf32>
    %505 = arith.addf %503, %504 : vector<8x8xf32>
    %cst_207 = arith.constant dense<0xFF800000> : vector<8xf32>
    %506 = vector.multi_reduction <maximumf>, %505, %cst_207 [1] : vector<8x8xf32> to vector<8xf32>
    %507 = vector.shape_cast %506 : vector<8xf32> to vector<8x1xf32>
    %508 = vector.broadcast %507 : vector<8x1xf32> to vector<8x8xf32>
    %509 = arith.subf %505, %508 : vector<8x8xf32>
    %510 = math.exp %509 : vector<8x8xf32>
    %cst_208 = arith.constant dense<0.000000e+00> : vector<8xf32>
    %511 = vector.multi_reduction <add>, %510, %cst_208 [1] : vector<8x8xf32> to vector<8xf32>
    %512 = vector.shape_cast %511 : vector<8xf32> to vector<8x1xf32>
    %513 = tpu.reciprocal %512 : vector<8x1xf32> -> vector<8x1xf32>
    %514 = vector.broadcast %513 : vector<8x1xf32> to vector<8x8xf32>
    %515 = arith.mulf %510, %514 : vector<8x8xf32>
    %cst_209 = arith.constant dense<0.000000e+00> : vector<8x32xf32>
    %516 = tpu.matmul %515, %501, %cst_209 {dimension_numbers = #tpu.dot_dimension_numbers<[1], [0], [0], [1], [0, 0, 1, 1], [], []>} : vector<8x8xf32>, vector<8x32xf32>, vector<8x32xf32> -> vector<8x32xf32>
    %517 = arith.addf %498, %516 : vector<8x32xf32>
    %518 = vector.extract_strided_slice %494 {offsets = [0, 8], sizes = [8, 8], strides = [1, 1]} : vector<8x32xf32> to vector<8x8xf32>
    %519 = vector.extract_strided_slice %497 {offsets = [0, 8], sizes = [8, 8], strides = [1, 1]} : vector<8x160xf32> to vector<8x8xf32>
    %520 = vector.extract_strided_slice %497 {offsets = [0, 64], sizes = [8, 32], strides = [1, 1]} : vector<8x160xf32> to vector<8x32xf32>
    %521 = tpu.transpose %519, [1, 0] : vector<8x8xf32> -> vector<8x8xf32>
    %cst_210 = arith.constant dense<0.000000e+00> : vector<8x8xf32>
    %522 = tpu.matmul %518, %521, %cst_210 {dimension_numbers = #tpu.dot_dimension_numbers<[1], [0], [0], [1], [0, 0, 1, 1], [], []>} : vector<8x8xf32>, vector<8x8xf32>, vector<8x8xf32> -> vector<8x8xf32>
    %523 = vector.broadcast %1 : vector<1x8xf32> to vector<8x8xf32>
    %524 = arith.addf %522, %523 : vector<8x8xf32>
    %cst_211 = arith.constant dense<0xFF800000> : vector<8xf32>
    %525 = vector.multi_reduction <maximumf>, %524, %cst_211 [1] : vector<8x8xf32> to vector<8xf32>
    %526 = vector.shape_cast %525 : vector<8xf32> to vector<8x1xf32>
    %527 = vector.broadcast %526 : vector<8x1xf32> to vector<8x8xf32>
    %528 = arith.subf %524, %527 : vector<8x8xf32>
    %529 = math.exp %528 : vector<8x8xf32>
    %cst_212 = arith.constant dense<0.000000e+00> : vector<8xf32>
    %530 = vector.multi_reduction <add>, %529, %cst_212 [1] : vector<8x8xf32> to vector<8xf32>
    %531 = vector.shape_cast %530 : vector<8xf32> to vector<8x1xf32>
    %532 = tpu.reciprocal %531 : vector<8x1xf32> -> vector<8x1xf32>
    %533 = vector.broadcast %532 : vector<8x1xf32> to vector<8x8xf32>
    %534 = arith.mulf %529, %533 : vector<8x8xf32>
    %cst_213 = arith.constant dense<0.000000e+00> : vector<8x32xf32>
    %535 = tpu.matmul %534, %520, %cst_213 {dimension_numbers = #tpu.dot_dimension_numbers<[1], [0], [0], [1], [0, 0, 1, 1], [], []>} : vector<8x8xf32>, vector<8x32xf32>, vector<8x32xf32> -> vector<8x32xf32>
    %536 = arith.addf %517, %535 : vector<8x32xf32>
    %537 = vector.extract_strided_slice %494 {offsets = [0, 16], sizes = [8, 8], strides = [1, 1]} : vector<8x32xf32> to vector<8x8xf32>
    %538 = vector.extract_strided_slice %497 {offsets = [0, 16], sizes = [8, 8], strides = [1, 1]} : vector<8x160xf32> to vector<8x8xf32>
    %539 = vector.extract_strided_slice %497 {offsets = [0, 96], sizes = [8, 32], strides = [1, 1]} : vector<8x160xf32> to vector<8x32xf32>
    %540 = tpu.transpose %538, [1, 0] : vector<8x8xf32> -> vector<8x8xf32>
    %cst_214 = arith.constant dense<0.000000e+00> : vector<8x8xf32>
    %541 = tpu.matmul %537, %540, %cst_214 {dimension_numbers = #tpu.dot_dimension_numbers<[1], [0], [0], [1], [0, 0, 1, 1], [], []>} : vector<8x8xf32>, vector<8x8xf32>, vector<8x8xf32> -> vector<8x8xf32>
    %542 = vector.broadcast %1 : vector<1x8xf32> to vector<8x8xf32>
    %543 = arith.addf %541, %542 : vector<8x8xf32>
    %cst_215 = arith.constant dense<0xFF800000> : vector<8xf32>
    %544 = vector.multi_reduction <maximumf>, %543, %cst_215 [1] : vector<8x8xf32> to vector<8xf32>
    %545 = vector.shape_cast %544 : vector<8xf32> to vector<8x1xf32>
    %546 = vector.broadcast %545 : vector<8x1xf32> to vector<8x8xf32>
    %547 = arith.subf %543, %546 : vector<8x8xf32>
    %548 = math.exp %547 : vector<8x8xf32>
    %cst_216 = arith.constant dense<0.000000e+00> : vector<8xf32>
    %549 = vector.multi_reduction <add>, %548, %cst_216 [1] : vector<8x8xf32> to vector<8xf32>
    %550 = vector.shape_cast %549 : vector<8xf32> to vector<8x1xf32>
    %551 = tpu.reciprocal %550 : vector<8x1xf32> -> vector<8x1xf32>
    %552 = vector.broadcast %551 : vector<8x1xf32> to vector<8x8xf32>
    %553 = arith.mulf %548, %552 : vector<8x8xf32>
    %cst_217 = arith.constant dense<0.000000e+00> : vector<8x32xf32>
    %554 = tpu.matmul %553, %539, %cst_217 {dimension_numbers = #tpu.dot_dimension_numbers<[1], [0], [0], [1], [0, 0, 1, 1], [], []>} : vector<8x8xf32>, vector<8x32xf32>, vector<8x32xf32> -> vector<8x32xf32>
    %555 = arith.addf %536, %554 : vector<8x32xf32>
    %556 = vector.extract_strided_slice %494 {offsets = [0, 24], sizes = [8, 8], strides = [1, 1]} : vector<8x32xf32> to vector<8x8xf32>
    %557 = vector.extract_strided_slice %497 {offsets = [0, 24], sizes = [8, 8], strides = [1, 1]} : vector<8x160xf32> to vector<8x8xf32>
    %558 = vector.extract_strided_slice %497 {offsets = [0, 128], sizes = [8, 32], strides = [1, 1]} : vector<8x160xf32> to vector<8x32xf32>
    %559 = tpu.transpose %557, [1, 0] : vector<8x8xf32> -> vector<8x8xf32>
    %cst_218 = arith.constant dense<0.000000e+00> : vector<8x8xf32>
    %560 = tpu.matmul %556, %559, %cst_218 {dimension_numbers = #tpu.dot_dimension_numbers<[1], [0], [0], [1], [0, 0, 1, 1], [], []>} : vector<8x8xf32>, vector<8x8xf32>, vector<8x8xf32> -> vector<8x8xf32>
    %561 = vector.broadcast %1 : vector<1x8xf32> to vector<8x8xf32>
    %562 = arith.addf %560, %561 : vector<8x8xf32>
    %cst_219 = arith.constant dense<0xFF800000> : vector<8xf32>
    %563 = vector.multi_reduction <maximumf>, %562, %cst_219 [1] : vector<8x8xf32> to vector<8xf32>
    %564 = vector.shape_cast %563 : vector<8xf32> to vector<8x1xf32>
    %565 = vector.broadcast %564 : vector<8x1xf32> to vector<8x8xf32>
    %566 = arith.subf %562, %565 : vector<8x8xf32>
    %567 = math.exp %566 : vector<8x8xf32>
    %cst_220 = arith.constant dense<0.000000e+00> : vector<8xf32>
    %568 = vector.multi_reduction <add>, %567, %cst_220 [1] : vector<8x8xf32> to vector<8xf32>
    %569 = vector.shape_cast %568 : vector<8xf32> to vector<8x1xf32>
    %570 = tpu.reciprocal %569 : vector<8x1xf32> -> vector<8x1xf32>
    %571 = vector.broadcast %570 : vector<8x1xf32> to vector<8x8xf32>
    %572 = arith.mulf %567, %571 : vector<8x8xf32>
    %cst_221 = arith.constant dense<0.000000e+00> : vector<8x32xf32>
    %573 = tpu.matmul %572, %558, %cst_221 {dimension_numbers = #tpu.dot_dimension_numbers<[1], [0], [0], [1], [0, 0, 1, 1], [], []>} : vector<8x8xf32>, vector<8x32xf32>, vector<8x32xf32> -> vector<8x32xf32>
    %574 = arith.addf %555, %573 : vector<8x32xf32>
    %575 = vector.broadcast %491 : vector<1x32xf32> to vector<8x32xf32>
    %576 = arith.addf %574, %575 : vector<8x32xf32>
    %577 = arith.addf %479, %576 : vector<8x32xf32>
    %c0_222 = arith.constant 0 : index
    %c8_223 = arith.constant 8 : index
    %c0_224 = arith.constant 0 : index
    %578 = vector.load %arg15[%c0_222, %c8_223, %c0_224] : memref<2x16x160xf32, #tpu.memory_space<vmem>>, vector<1x1x160xf32>
    %579 = vector.shape_cast %578 : vector<1x1x160xf32> to vector<1x160xf32>
    %580 = vector.extract_strided_slice %579 {offsets = [0, 0], sizes = [1, 32], strides = [1, 1]} : vector<1x160xf32> to vector<1x32xf32>
    %c0_225 = arith.constant 0 : index
    %c9 = arith.constant 9 : index
    %c0_226 = arith.constant 0 : index
    %581 = vector.load %arg15[%c0_225, %c9, %c0_226] : memref<2x16x160xf32, #tpu.memory_space<vmem>>, vector<1x1x160xf32>
    %582 = vector.shape_cast %581 : vector<1x1x160xf32> to vector<1x160xf32>
    %583 = vector.extract_strided_slice %582 {offsets = [0, 0], sizes = [1, 32], strides = [1, 1]} : vector<1x160xf32> to vector<1x32xf32>
    %cst_227 = arith.constant dense<0.000000e+00> : vector<8xf32>
    %584 = vector.multi_reduction <add>, %577, %cst_227 [1] : vector<8x32xf32> to vector<8xf32>
    %585 = vector.shape_cast %584 : vector<8xf32> to vector<8x1xf32>
    %cst_228 = arith.constant 3.200000e+01 : f32
    %586 = vector.broadcast %cst_228 : f32 to vector<8x1xf32>
    %587 = arith.divf %585, %586 : vector<8x1xf32>
    %588 = vector.broadcast %587 : vector<8x1xf32> to vector<8x32xf32>
    %589 = arith.subf %577, %588 : vector<8x32xf32>
    %590 = arith.mulf %589, %589 : vector<8x32xf32>
    %cst_229 = arith.constant dense<0.000000e+00> : vector<8xf32>
    %591 = vector.multi_reduction <add>, %590, %cst_229 [1] : vector<8x32xf32> to vector<8xf32>
    %592 = vector.shape_cast %591 : vector<8xf32> to vector<8x1xf32>
    %cst_230 = arith.constant 3.200000e+01 : f32
    %593 = vector.broadcast %cst_230 : f32 to vector<8x1xf32>
    %594 = arith.divf %592, %593 : vector<8x1xf32>
    %595 = vector.broadcast %587 : vector<8x1xf32> to vector<8x32xf32>
    %596 = arith.subf %577, %595 : vector<8x32xf32>
    %cst_231 = arith.constant 9.99999974E-6 : f32
    %597 = vector.broadcast %cst_231 : f32 to vector<8x1xf32>
    %598 = arith.addf %594, %597 : vector<8x1xf32>
    %599 = math.rsqrt %598 : vector<8x1xf32>
    %600 = vector.broadcast %599 : vector<8x1xf32> to vector<8x32xf32>
    %601 = arith.mulf %596, %600 : vector<8x32xf32>
    %602 = vector.broadcast %580 : vector<1x32xf32> to vector<8x32xf32>
    %603 = arith.mulf %601, %602 : vector<8x32xf32>
    %604 = vector.broadcast %583 : vector<1x32xf32> to vector<8x32xf32>
    %605 = arith.addf %603, %604 : vector<8x32xf32>
    %c0_232 = arith.constant 0 : index
    %c0_233 = arith.constant 0 : index
    %c0_234 = arith.constant 0 : index
    %606 = vector.load %arg13[%c0_232, %c0_233, %c0_234] : memref<2x32x64xf32, #tpu.memory_space<vmem>>, vector<1x32x64xf32>
    %607 = vector.shape_cast %606 : vector<1x32x64xf32> to vector<32x64xf32>
    %c0_235 = arith.constant 0 : index
    %c10 = arith.constant 10 : index
    %c0_236 = arith.constant 0 : index
    %608 = vector.load %arg15[%c0_235, %c10, %c0_236] : memref<2x16x160xf32, #tpu.memory_space<vmem>>, vector<1x1x160xf32>
    %609 = vector.shape_cast %608 : vector<1x1x160xf32> to vector<1x160xf32>
    %610 = vector.extract_strided_slice %609 {offsets = [0, 0], sizes = [1, 64], strides = [1, 1]} : vector<1x160xf32> to vector<1x64xf32>
    %c0_237 = arith.constant 0 : index
    %c0_238 = arith.constant 0 : index
    %c0_239 = arith.constant 0 : index
    %611 = vector.load %arg14[%c0_237, %c0_238, %c0_239] : memref<2x64x32xf32, #tpu.memory_space<vmem>>, vector<1x64x32xf32>
    %612 = vector.shape_cast %611 : vector<1x64x32xf32> to vector<64x32xf32>
    %c0_240 = arith.constant 0 : index
    %c11 = arith.constant 11 : index
    %c0_241 = arith.constant 0 : index
    %613 = vector.load %arg15[%c0_240, %c11, %c0_241] : memref<2x16x160xf32, #tpu.memory_space<vmem>>, vector<1x1x160xf32>
    %614 = vector.shape_cast %613 : vector<1x1x160xf32> to vector<1x160xf32>
    %615 = vector.extract_strided_slice %614 {offsets = [0, 0], sizes = [1, 32], strides = [1, 1]} : vector<1x160xf32> to vector<1x32xf32>
    %cst_242 = arith.constant dense<0.000000e+00> : vector<8x64xf32>
    %616 = tpu.matmul %605, %607, %cst_242 {dimension_numbers = #tpu.dot_dimension_numbers<[1], [0], [0], [1], [0, 0, 1, 1], [], []>} : vector<8x32xf32>, vector<32x64xf32>, vector<8x64xf32> -> vector<8x64xf32>
    %617 = vector.broadcast %610 : vector<1x64xf32> to vector<8x64xf32>
    %618 = arith.addf %616, %617 : vector<8x64xf32>
    %cst_243 = arith.constant 0.000000e+00 : f32
    %619 = vector.broadcast %cst_243 : f32 to vector<8x64xf32>
    %620 = arith.maximumf %618, %619 : vector<8x64xf32>
    %cst_244 = arith.constant dense<0.000000e+00> : vector<8x32xf32>
    %621 = tpu.matmul %620, %612, %cst_244 {dimension_numbers = #tpu.dot_dimension_numbers<[1], [0], [0], [1], [0, 0, 1, 1], [], []>} : vector<8x64xf32>, vector<64x32xf32>, vector<8x32xf32> -> vector<8x32xf32>
    %622 = vector.broadcast %615 : vector<1x32xf32> to vector<8x32xf32>
    %623 = arith.addf %621, %622 : vector<8x32xf32>
    %624 = arith.addf %605, %623 : vector<8x32xf32>
    %c0_245 = arith.constant 0 : index
    %c12 = arith.constant 12 : index
    %c0_246 = arith.constant 0 : index
    %625 = vector.load %arg15[%c0_245, %c12, %c0_246] : memref<2x16x160xf32, #tpu.memory_space<vmem>>, vector<1x1x160xf32>
    %626 = vector.shape_cast %625 : vector<1x1x160xf32> to vector<1x160xf32>
    %627 = vector.extract_strided_slice %626 {offsets = [0, 0], sizes = [1, 32], strides = [1, 1]} : vector<1x160xf32> to vector<1x32xf32>
    %c0_247 = arith.constant 0 : index
    %c13 = arith.constant 13 : index
    %c0_248 = arith.constant 0 : index
    %628 = vector.load %arg15[%c0_247, %c13, %c0_248] : memref<2x16x160xf32, #tpu.memory_space<vmem>>, vector<1x1x160xf32>
    %629 = vector.shape_cast %628 : vector<1x1x160xf32> to vector<1x160xf32>
    %630 = vector.extract_strided_slice %629 {offsets = [0, 0], sizes = [1, 32], strides = [1, 1]} : vector<1x160xf32> to vector<1x32xf32>
    %cst_249 = arith.constant dense<0.000000e+00> : vector<8xf32>
    %631 = vector.multi_reduction <add>, %624, %cst_249 [1] : vector<8x32xf32> to vector<8xf32>
    %632 = vector.shape_cast %631 : vector<8xf32> to vector<8x1xf32>
    %cst_250 = arith.constant 3.200000e+01 : f32
    %633 = vector.broadcast %cst_250 : f32 to vector<8x1xf32>
    %634 = arith.divf %632, %633 : vector<8x1xf32>
    %635 = vector.broadcast %634 : vector<8x1xf32> to vector<8x32xf32>
    %636 = arith.subf %624, %635 : vector<8x32xf32>
    %637 = arith.mulf %636, %636 : vector<8x32xf32>
    %cst_251 = arith.constant dense<0.000000e+00> : vector<8xf32>
    %638 = vector.multi_reduction <add>, %637, %cst_251 [1] : vector<8x32xf32> to vector<8xf32>
    %639 = vector.shape_cast %638 : vector<8xf32> to vector<8x1xf32>
    %cst_252 = arith.constant 3.200000e+01 : f32
    %640 = vector.broadcast %cst_252 : f32 to vector<8x1xf32>
    %641 = arith.divf %639, %640 : vector<8x1xf32>
    %642 = vector.broadcast %634 : vector<8x1xf32> to vector<8x32xf32>
    %643 = arith.subf %624, %642 : vector<8x32xf32>
    %cst_253 = arith.constant 9.99999974E-6 : f32
    %644 = vector.broadcast %cst_253 : f32 to vector<8x1xf32>
    %645 = arith.addf %641, %644 : vector<8x1xf32>
    %646 = math.rsqrt %645 : vector<8x1xf32>
    %647 = vector.broadcast %646 : vector<8x1xf32> to vector<8x32xf32>
    %648 = arith.mulf %643, %647 : vector<8x32xf32>
    %649 = vector.broadcast %627 : vector<1x32xf32> to vector<8x32xf32>
    %650 = arith.mulf %648, %649 : vector<8x32xf32>
    %651 = vector.broadcast %630 : vector<1x32xf32> to vector<8x32xf32>
    %652 = arith.addf %650, %651 : vector<8x32xf32>
    %c1_254 = arith.constant 1 : index
    %c0_255 = arith.constant 0 : index
    %c0_256 = arith.constant 0 : index
    %653 = vector.load %arg9[%c1_254, %c0_255, %c0_256] : memref<2x32x32xf32, #tpu.memory_space<vmem>>, vector<1x32x32xf32>
    %654 = vector.shape_cast %653 : vector<1x32x32xf32> to vector<32x32xf32>
    %c1_257 = arith.constant 1 : index
    %c0_258 = arith.constant 0 : index
    %c0_259 = arith.constant 0 : index
    %655 = vector.load %arg10[%c1_257, %c0_258, %c0_259] : memref<2x32x160xf32, #tpu.memory_space<vmem>>, vector<1x32x160xf32>
    %656 = vector.shape_cast %655 : vector<1x32x160xf32> to vector<32x160xf32>
    %c1_260 = arith.constant 1 : index
    %c0_261 = arith.constant 0 : index
    %c0_262 = arith.constant 0 : index
    %657 = vector.load %arg15[%c1_260, %c0_261, %c0_262] : memref<2x16x160xf32, #tpu.memory_space<vmem>>, vector<1x1x160xf32>
    %658 = vector.shape_cast %657 : vector<1x1x160xf32> to vector<1x160xf32>
    %659 = vector.extract_strided_slice %658 {offsets = [0, 0], sizes = [1, 32], strides = [1, 1]} : vector<1x160xf32> to vector<1x32xf32>
    %c1_263 = arith.constant 1 : index
    %c1_264 = arith.constant 1 : index
    %c0_265 = arith.constant 0 : index
    %660 = vector.load %arg15[%c1_263, %c1_264, %c0_265] : memref<2x16x160xf32, #tpu.memory_space<vmem>>, vector<1x1x160xf32>
    %661 = vector.shape_cast %660 : vector<1x1x160xf32> to vector<1x160xf32>
    %c1_266 = arith.constant 1 : index
    %c2_267 = arith.constant 2 : index
    %c0_268 = arith.constant 0 : index
    %662 = vector.load %arg15[%c1_266, %c2_267, %c0_268] : memref<2x16x160xf32, #tpu.memory_space<vmem>>, vector<1x1x160xf32>
    %663 = vector.shape_cast %662 : vector<1x1x160xf32> to vector<1x160xf32>
    %664 = vector.extract_strided_slice %663 {offsets = [0, 0], sizes = [1, 32], strides = [1, 1]} : vector<1x160xf32> to vector<1x32xf32>
    %cst_269 = arith.constant dense<0.000000e+00> : vector<8x32xf32>
    %665 = tpu.matmul %652, %654, %cst_269 {dimension_numbers = #tpu.dot_dimension_numbers<[1], [0], [0], [1], [0, 0, 1, 1], [], []>} : vector<8x32xf32>, vector<32x32xf32>, vector<8x32xf32> -> vector<8x32xf32>
    %666 = vector.broadcast %659 : vector<1x32xf32> to vector<8x32xf32>
    %667 = arith.addf %665, %666 : vector<8x32xf32>
    %cst_270 = arith.constant dense<0.000000e+00> : vector<8x160xf32>
    %668 = tpu.matmul %652, %656, %cst_270 {dimension_numbers = #tpu.dot_dimension_numbers<[1], [0], [0], [1], [0, 0, 1, 1], [], []>} : vector<8x32xf32>, vector<32x160xf32>, vector<8x160xf32> -> vector<8x160xf32>
    %669 = vector.broadcast %661 : vector<1x160xf32> to vector<8x160xf32>
    %670 = arith.addf %668, %669 : vector<8x160xf32>
    %cst_271 = arith.constant 0.000000e+00 : f32
    %671 = vector.broadcast %cst_271 : f32 to vector<8x32xf32>
    %672 = vector.extract_strided_slice %667 {offsets = [0, 0], sizes = [8, 8], strides = [1, 1]} : vector<8x32xf32> to vector<8x8xf32>
    %673 = vector.extract_strided_slice %670 {offsets = [0, 0], sizes = [8, 8], strides = [1, 1]} : vector<8x160xf32> to vector<8x8xf32>
    %674 = vector.extract_strided_slice %670 {offsets = [0, 32], sizes = [8, 32], strides = [1, 1]} : vector<8x160xf32> to vector<8x32xf32>
    %675 = tpu.transpose %673, [1, 0] : vector<8x8xf32> -> vector<8x8xf32>
    %cst_272 = arith.constant dense<0.000000e+00> : vector<8x8xf32>
    %676 = tpu.matmul %672, %675, %cst_272 {dimension_numbers = #tpu.dot_dimension_numbers<[1], [0], [0], [1], [0, 0, 1, 1], [], []>} : vector<8x8xf32>, vector<8x8xf32>, vector<8x8xf32> -> vector<8x8xf32>
    %677 = arith.addf %676, %355 : vector<8x8xf32>
    %cst_273 = arith.constant dense<0xFF800000> : vector<8xf32>
    %678 = vector.multi_reduction <maximumf>, %677, %cst_273 [1] : vector<8x8xf32> to vector<8xf32>
    %679 = vector.shape_cast %678 : vector<8xf32> to vector<8x1xf32>
    %680 = vector.broadcast %679 : vector<8x1xf32> to vector<8x8xf32>
    %681 = arith.subf %677, %680 : vector<8x8xf32>
    %682 = math.exp %681 : vector<8x8xf32>
    %cst_274 = arith.constant dense<0.000000e+00> : vector<8xf32>
    %683 = vector.multi_reduction <add>, %682, %cst_274 [1] : vector<8x8xf32> to vector<8xf32>
    %684 = vector.shape_cast %683 : vector<8xf32> to vector<8x1xf32>
    %685 = tpu.reciprocal %684 : vector<8x1xf32> -> vector<8x1xf32>
    %686 = vector.broadcast %685 : vector<8x1xf32> to vector<8x8xf32>
    %687 = arith.mulf %682, %686 : vector<8x8xf32>
    %cst_275 = arith.constant dense<0.000000e+00> : vector<8x32xf32>
    %688 = tpu.matmul %687, %674, %cst_275 {dimension_numbers = #tpu.dot_dimension_numbers<[1], [0], [0], [1], [0, 0, 1, 1], [], []>} : vector<8x8xf32>, vector<8x32xf32>, vector<8x32xf32> -> vector<8x32xf32>
    %689 = arith.addf %671, %688 : vector<8x32xf32>
    %690 = vector.extract_strided_slice %667 {offsets = [0, 8], sizes = [8, 8], strides = [1, 1]} : vector<8x32xf32> to vector<8x8xf32>
    %691 = vector.extract_strided_slice %670 {offsets = [0, 8], sizes = [8, 8], strides = [1, 1]} : vector<8x160xf32> to vector<8x8xf32>
    %692 = vector.extract_strided_slice %670 {offsets = [0, 64], sizes = [8, 32], strides = [1, 1]} : vector<8x160xf32> to vector<8x32xf32>
    %693 = tpu.transpose %691, [1, 0] : vector<8x8xf32> -> vector<8x8xf32>
    %cst_276 = arith.constant dense<0.000000e+00> : vector<8x8xf32>
    %694 = tpu.matmul %690, %693, %cst_276 {dimension_numbers = #tpu.dot_dimension_numbers<[1], [0], [0], [1], [0, 0, 1, 1], [], []>} : vector<8x8xf32>, vector<8x8xf32>, vector<8x8xf32> -> vector<8x8xf32>
    %695 = arith.addf %694, %355 : vector<8x8xf32>
    %cst_277 = arith.constant dense<0xFF800000> : vector<8xf32>
    %696 = vector.multi_reduction <maximumf>, %695, %cst_277 [1] : vector<8x8xf32> to vector<8xf32>
    %697 = vector.shape_cast %696 : vector<8xf32> to vector<8x1xf32>
    %698 = vector.broadcast %697 : vector<8x1xf32> to vector<8x8xf32>
    %699 = arith.subf %695, %698 : vector<8x8xf32>
    %700 = math.exp %699 : vector<8x8xf32>
    %cst_278 = arith.constant dense<0.000000e+00> : vector<8xf32>
    %701 = vector.multi_reduction <add>, %700, %cst_278 [1] : vector<8x8xf32> to vector<8xf32>
    %702 = vector.shape_cast %701 : vector<8xf32> to vector<8x1xf32>
    %703 = tpu.reciprocal %702 : vector<8x1xf32> -> vector<8x1xf32>
    %704 = vector.broadcast %703 : vector<8x1xf32> to vector<8x8xf32>
    %705 = arith.mulf %700, %704 : vector<8x8xf32>
    %cst_279 = arith.constant dense<0.000000e+00> : vector<8x32xf32>
    %706 = tpu.matmul %705, %692, %cst_279 {dimension_numbers = #tpu.dot_dimension_numbers<[1], [0], [0], [1], [0, 0, 1, 1], [], []>} : vector<8x8xf32>, vector<8x32xf32>, vector<8x32xf32> -> vector<8x32xf32>
    %707 = arith.addf %689, %706 : vector<8x32xf32>
    %708 = vector.extract_strided_slice %667 {offsets = [0, 16], sizes = [8, 8], strides = [1, 1]} : vector<8x32xf32> to vector<8x8xf32>
    %709 = vector.extract_strided_slice %670 {offsets = [0, 16], sizes = [8, 8], strides = [1, 1]} : vector<8x160xf32> to vector<8x8xf32>
    %710 = vector.extract_strided_slice %670 {offsets = [0, 96], sizes = [8, 32], strides = [1, 1]} : vector<8x160xf32> to vector<8x32xf32>
    %711 = tpu.transpose %709, [1, 0] : vector<8x8xf32> -> vector<8x8xf32>
    %cst_280 = arith.constant dense<0.000000e+00> : vector<8x8xf32>
    %712 = tpu.matmul %708, %711, %cst_280 {dimension_numbers = #tpu.dot_dimension_numbers<[1], [0], [0], [1], [0, 0, 1, 1], [], []>} : vector<8x8xf32>, vector<8x8xf32>, vector<8x8xf32> -> vector<8x8xf32>
    %713 = arith.addf %712, %355 : vector<8x8xf32>
    %cst_281 = arith.constant dense<0xFF800000> : vector<8xf32>
    %714 = vector.multi_reduction <maximumf>, %713, %cst_281 [1] : vector<8x8xf32> to vector<8xf32>
    %715 = vector.shape_cast %714 : vector<8xf32> to vector<8x1xf32>
    %716 = vector.broadcast %715 : vector<8x1xf32> to vector<8x8xf32>
    %717 = arith.subf %713, %716 : vector<8x8xf32>
    %718 = math.exp %717 : vector<8x8xf32>
    %cst_282 = arith.constant dense<0.000000e+00> : vector<8xf32>
    %719 = vector.multi_reduction <add>, %718, %cst_282 [1] : vector<8x8xf32> to vector<8xf32>
    %720 = vector.shape_cast %719 : vector<8xf32> to vector<8x1xf32>
    %721 = tpu.reciprocal %720 : vector<8x1xf32> -> vector<8x1xf32>
    %722 = vector.broadcast %721 : vector<8x1xf32> to vector<8x8xf32>
    %723 = arith.mulf %718, %722 : vector<8x8xf32>
    %cst_283 = arith.constant dense<0.000000e+00> : vector<8x32xf32>
    %724 = tpu.matmul %723, %710, %cst_283 {dimension_numbers = #tpu.dot_dimension_numbers<[1], [0], [0], [1], [0, 0, 1, 1], [], []>} : vector<8x8xf32>, vector<8x32xf32>, vector<8x32xf32> -> vector<8x32xf32>
    %725 = arith.addf %707, %724 : vector<8x32xf32>
    %726 = vector.extract_strided_slice %667 {offsets = [0, 24], sizes = [8, 8], strides = [1, 1]} : vector<8x32xf32> to vector<8x8xf32>
    %727 = vector.extract_strided_slice %670 {offsets = [0, 24], sizes = [8, 8], strides = [1, 1]} : vector<8x160xf32> to vector<8x8xf32>
    %728 = vector.extract_strided_slice %670 {offsets = [0, 128], sizes = [8, 32], strides = [1, 1]} : vector<8x160xf32> to vector<8x32xf32>
    %729 = tpu.transpose %727, [1, 0] : vector<8x8xf32> -> vector<8x8xf32>
    %cst_284 = arith.constant dense<0.000000e+00> : vector<8x8xf32>
    %730 = tpu.matmul %726, %729, %cst_284 {dimension_numbers = #tpu.dot_dimension_numbers<[1], [0], [0], [1], [0, 0, 1, 1], [], []>} : vector<8x8xf32>, vector<8x8xf32>, vector<8x8xf32> -> vector<8x8xf32>
    %731 = arith.addf %730, %355 : vector<8x8xf32>
    %cst_285 = arith.constant dense<0xFF800000> : vector<8xf32>
    %732 = vector.multi_reduction <maximumf>, %731, %cst_285 [1] : vector<8x8xf32> to vector<8xf32>
    %733 = vector.shape_cast %732 : vector<8xf32> to vector<8x1xf32>
    %734 = vector.broadcast %733 : vector<8x1xf32> to vector<8x8xf32>
    %735 = arith.subf %731, %734 : vector<8x8xf32>
    %736 = math.exp %735 : vector<8x8xf32>
    %cst_286 = arith.constant dense<0.000000e+00> : vector<8xf32>
    %737 = vector.multi_reduction <add>, %736, %cst_286 [1] : vector<8x8xf32> to vector<8xf32>
    %738 = vector.shape_cast %737 : vector<8xf32> to vector<8x1xf32>
    %739 = tpu.reciprocal %738 : vector<8x1xf32> -> vector<8x1xf32>
    %740 = vector.broadcast %739 : vector<8x1xf32> to vector<8x8xf32>
    %741 = arith.mulf %736, %740 : vector<8x8xf32>
    %cst_287 = arith.constant dense<0.000000e+00> : vector<8x32xf32>
    %742 = tpu.matmul %741, %728, %cst_287 {dimension_numbers = #tpu.dot_dimension_numbers<[1], [0], [0], [1], [0, 0, 1, 1], [], []>} : vector<8x8xf32>, vector<8x32xf32>, vector<8x32xf32> -> vector<8x32xf32>
    %743 = arith.addf %725, %742 : vector<8x32xf32>
    %744 = vector.broadcast %664 : vector<1x32xf32> to vector<8x32xf32>
    %745 = arith.addf %743, %744 : vector<8x32xf32>
    %746 = arith.addf %652, %745 : vector<8x32xf32>
    %c1_288 = arith.constant 1 : index
    %c3_289 = arith.constant 3 : index
    %c0_290 = arith.constant 0 : index
    %747 = vector.load %arg15[%c1_288, %c3_289, %c0_290] : memref<2x16x160xf32, #tpu.memory_space<vmem>>, vector<1x1x160xf32>
    %748 = vector.shape_cast %747 : vector<1x1x160xf32> to vector<1x160xf32>
    %749 = vector.extract_strided_slice %748 {offsets = [0, 0], sizes = [1, 32], strides = [1, 1]} : vector<1x160xf32> to vector<1x32xf32>
    %c1_291 = arith.constant 1 : index
    %c4_292 = arith.constant 4 : index
    %c0_293 = arith.constant 0 : index
    %750 = vector.load %arg15[%c1_291, %c4_292, %c0_293] : memref<2x16x160xf32, #tpu.memory_space<vmem>>, vector<1x1x160xf32>
    %751 = vector.shape_cast %750 : vector<1x1x160xf32> to vector<1x160xf32>
    %752 = vector.extract_strided_slice %751 {offsets = [0, 0], sizes = [1, 32], strides = [1, 1]} : vector<1x160xf32> to vector<1x32xf32>
    %cst_294 = arith.constant dense<0.000000e+00> : vector<8xf32>
    %753 = vector.multi_reduction <add>, %746, %cst_294 [1] : vector<8x32xf32> to vector<8xf32>
    %754 = vector.shape_cast %753 : vector<8xf32> to vector<8x1xf32>
    %cst_295 = arith.constant 3.200000e+01 : f32
    %755 = vector.broadcast %cst_295 : f32 to vector<8x1xf32>
    %756 = arith.divf %754, %755 : vector<8x1xf32>
    %757 = vector.broadcast %756 : vector<8x1xf32> to vector<8x32xf32>
    %758 = arith.subf %746, %757 : vector<8x32xf32>
    %759 = arith.mulf %758, %758 : vector<8x32xf32>
    %cst_296 = arith.constant dense<0.000000e+00> : vector<8xf32>
    %760 = vector.multi_reduction <add>, %759, %cst_296 [1] : vector<8x32xf32> to vector<8xf32>
    %761 = vector.shape_cast %760 : vector<8xf32> to vector<8x1xf32>
    %cst_297 = arith.constant 3.200000e+01 : f32
    %762 = vector.broadcast %cst_297 : f32 to vector<8x1xf32>
    %763 = arith.divf %761, %762 : vector<8x1xf32>
    %764 = vector.broadcast %756 : vector<8x1xf32> to vector<8x32xf32>
    %765 = arith.subf %746, %764 : vector<8x32xf32>
    %cst_298 = arith.constant 9.99999974E-6 : f32
    %766 = vector.broadcast %cst_298 : f32 to vector<8x1xf32>
    %767 = arith.addf %763, %766 : vector<8x1xf32>
    %768 = math.rsqrt %767 : vector<8x1xf32>
    %769 = vector.broadcast %768 : vector<8x1xf32> to vector<8x32xf32>
    %770 = arith.mulf %765, %769 : vector<8x32xf32>
    %771 = vector.broadcast %749 : vector<1x32xf32> to vector<8x32xf32>
    %772 = arith.mulf %770, %771 : vector<8x32xf32>
    %773 = vector.broadcast %752 : vector<1x32xf32> to vector<8x32xf32>
    %774 = arith.addf %772, %773 : vector<8x32xf32>
    %c1_299 = arith.constant 1 : index
    %c0_300 = arith.constant 0 : index
    %c0_301 = arith.constant 0 : index
    %775 = vector.load %arg11[%c1_299, %c0_300, %c0_301] : memref<2x32x32xf32, #tpu.memory_space<vmem>>, vector<1x32x32xf32>
    %776 = vector.shape_cast %775 : vector<1x32x32xf32> to vector<32x32xf32>
    %c1_302 = arith.constant 1 : index
    %c0_303 = arith.constant 0 : index
    %c0_304 = arith.constant 0 : index
    %777 = vector.load %arg12[%c1_302, %c0_303, %c0_304] : memref<2x32x160xf32, #tpu.memory_space<vmem>>, vector<1x32x160xf32>
    %778 = vector.shape_cast %777 : vector<1x32x160xf32> to vector<32x160xf32>
    %c1_305 = arith.constant 1 : index
    %c5_306 = arith.constant 5 : index
    %c0_307 = arith.constant 0 : index
    %779 = vector.load %arg15[%c1_305, %c5_306, %c0_307] : memref<2x16x160xf32, #tpu.memory_space<vmem>>, vector<1x1x160xf32>
    %780 = vector.shape_cast %779 : vector<1x1x160xf32> to vector<1x160xf32>
    %781 = vector.extract_strided_slice %780 {offsets = [0, 0], sizes = [1, 32], strides = [1, 1]} : vector<1x160xf32> to vector<1x32xf32>
    %c1_308 = arith.constant 1 : index
    %c6_309 = arith.constant 6 : index
    %c0_310 = arith.constant 0 : index
    %782 = vector.load %arg15[%c1_308, %c6_309, %c0_310] : memref<2x16x160xf32, #tpu.memory_space<vmem>>, vector<1x1x160xf32>
    %783 = vector.shape_cast %782 : vector<1x1x160xf32> to vector<1x160xf32>
    %c1_311 = arith.constant 1 : index
    %c7_312 = arith.constant 7 : index
    %c0_313 = arith.constant 0 : index
    %784 = vector.load %arg15[%c1_311, %c7_312, %c0_313] : memref<2x16x160xf32, #tpu.memory_space<vmem>>, vector<1x1x160xf32>
    %785 = vector.shape_cast %784 : vector<1x1x160xf32> to vector<1x160xf32>
    %786 = vector.extract_strided_slice %785 {offsets = [0, 0], sizes = [1, 32], strides = [1, 1]} : vector<1x160xf32> to vector<1x32xf32>
    %cst_314 = arith.constant dense<0.000000e+00> : vector<8x32xf32>
    %787 = tpu.matmul %774, %776, %cst_314 {dimension_numbers = #tpu.dot_dimension_numbers<[1], [0], [0], [1], [0, 0, 1, 1], [], []>} : vector<8x32xf32>, vector<32x32xf32>, vector<8x32xf32> -> vector<8x32xf32>
    %788 = vector.broadcast %781 : vector<1x32xf32> to vector<8x32xf32>
    %789 = arith.addf %787, %788 : vector<8x32xf32>
    %cst_315 = arith.constant dense<0.000000e+00> : vector<8x160xf32>
    %790 = tpu.matmul %349, %778, %cst_315 {dimension_numbers = #tpu.dot_dimension_numbers<[1], [0], [0], [1], [0, 0, 1, 1], [], []>} : vector<8x32xf32>, vector<32x160xf32>, vector<8x160xf32> -> vector<8x160xf32>
    %791 = vector.broadcast %783 : vector<1x160xf32> to vector<8x160xf32>
    %792 = arith.addf %790, %791 : vector<8x160xf32>
    %cst_316 = arith.constant 0.000000e+00 : f32
    %793 = vector.broadcast %cst_316 : f32 to vector<8x32xf32>
    %794 = vector.extract_strided_slice %789 {offsets = [0, 0], sizes = [8, 8], strides = [1, 1]} : vector<8x32xf32> to vector<8x8xf32>
    %795 = vector.extract_strided_slice %792 {offsets = [0, 0], sizes = [8, 8], strides = [1, 1]} : vector<8x160xf32> to vector<8x8xf32>
    %796 = vector.extract_strided_slice %792 {offsets = [0, 32], sizes = [8, 32], strides = [1, 1]} : vector<8x160xf32> to vector<8x32xf32>
    %797 = tpu.transpose %795, [1, 0] : vector<8x8xf32> -> vector<8x8xf32>
    %cst_317 = arith.constant dense<0.000000e+00> : vector<8x8xf32>
    %798 = tpu.matmul %794, %797, %cst_317 {dimension_numbers = #tpu.dot_dimension_numbers<[1], [0], [0], [1], [0, 0, 1, 1], [], []>} : vector<8x8xf32>, vector<8x8xf32>, vector<8x8xf32> -> vector<8x8xf32>
    %799 = vector.broadcast %1 : vector<1x8xf32> to vector<8x8xf32>
    %800 = arith.addf %798, %799 : vector<8x8xf32>
    %cst_318 = arith.constant dense<0xFF800000> : vector<8xf32>
    %801 = vector.multi_reduction <maximumf>, %800, %cst_318 [1] : vector<8x8xf32> to vector<8xf32>
    %802 = vector.shape_cast %801 : vector<8xf32> to vector<8x1xf32>
    %803 = vector.broadcast %802 : vector<8x1xf32> to vector<8x8xf32>
    %804 = arith.subf %800, %803 : vector<8x8xf32>
    %805 = math.exp %804 : vector<8x8xf32>
    %cst_319 = arith.constant dense<0.000000e+00> : vector<8xf32>
    %806 = vector.multi_reduction <add>, %805, %cst_319 [1] : vector<8x8xf32> to vector<8xf32>
    %807 = vector.shape_cast %806 : vector<8xf32> to vector<8x1xf32>
    %808 = tpu.reciprocal %807 : vector<8x1xf32> -> vector<8x1xf32>
    %809 = vector.broadcast %808 : vector<8x1xf32> to vector<8x8xf32>
    %810 = arith.mulf %805, %809 : vector<8x8xf32>
    %cst_320 = arith.constant dense<0.000000e+00> : vector<8x32xf32>
    %811 = tpu.matmul %810, %796, %cst_320 {dimension_numbers = #tpu.dot_dimension_numbers<[1], [0], [0], [1], [0, 0, 1, 1], [], []>} : vector<8x8xf32>, vector<8x32xf32>, vector<8x32xf32> -> vector<8x32xf32>
    %812 = arith.addf %793, %811 : vector<8x32xf32>
    %813 = vector.extract_strided_slice %789 {offsets = [0, 8], sizes = [8, 8], strides = [1, 1]} : vector<8x32xf32> to vector<8x8xf32>
    %814 = vector.extract_strided_slice %792 {offsets = [0, 8], sizes = [8, 8], strides = [1, 1]} : vector<8x160xf32> to vector<8x8xf32>
    %815 = vector.extract_strided_slice %792 {offsets = [0, 64], sizes = [8, 32], strides = [1, 1]} : vector<8x160xf32> to vector<8x32xf32>
    %816 = tpu.transpose %814, [1, 0] : vector<8x8xf32> -> vector<8x8xf32>
    %cst_321 = arith.constant dense<0.000000e+00> : vector<8x8xf32>
    %817 = tpu.matmul %813, %816, %cst_321 {dimension_numbers = #tpu.dot_dimension_numbers<[1], [0], [0], [1], [0, 0, 1, 1], [], []>} : vector<8x8xf32>, vector<8x8xf32>, vector<8x8xf32> -> vector<8x8xf32>
    %818 = vector.broadcast %1 : vector<1x8xf32> to vector<8x8xf32>
    %819 = arith.addf %817, %818 : vector<8x8xf32>
    %cst_322 = arith.constant dense<0xFF800000> : vector<8xf32>
    %820 = vector.multi_reduction <maximumf>, %819, %cst_322 [1] : vector<8x8xf32> to vector<8xf32>
    %821 = vector.shape_cast %820 : vector<8xf32> to vector<8x1xf32>
    %822 = vector.broadcast %821 : vector<8x1xf32> to vector<8x8xf32>
    %823 = arith.subf %819, %822 : vector<8x8xf32>
    %824 = math.exp %823 : vector<8x8xf32>
    %cst_323 = arith.constant dense<0.000000e+00> : vector<8xf32>
    %825 = vector.multi_reduction <add>, %824, %cst_323 [1] : vector<8x8xf32> to vector<8xf32>
    %826 = vector.shape_cast %825 : vector<8xf32> to vector<8x1xf32>
    %827 = tpu.reciprocal %826 : vector<8x1xf32> -> vector<8x1xf32>
    %828 = vector.broadcast %827 : vector<8x1xf32> to vector<8x8xf32>
    %829 = arith.mulf %824, %828 : vector<8x8xf32>
    %cst_324 = arith.constant dense<0.000000e+00> : vector<8x32xf32>
    %830 = tpu.matmul %829, %815, %cst_324 {dimension_numbers = #tpu.dot_dimension_numbers<[1], [0], [0], [1], [0, 0, 1, 1], [], []>} : vector<8x8xf32>, vector<8x32xf32>, vector<8x32xf32> -> vector<8x32xf32>
    %831 = arith.addf %812, %830 : vector<8x32xf32>
    %832 = vector.extract_strided_slice %789 {offsets = [0, 16], sizes = [8, 8], strides = [1, 1]} : vector<8x32xf32> to vector<8x8xf32>
    %833 = vector.extract_strided_slice %792 {offsets = [0, 16], sizes = [8, 8], strides = [1, 1]} : vector<8x160xf32> to vector<8x8xf32>
    %834 = vector.extract_strided_slice %792 {offsets = [0, 96], sizes = [8, 32], strides = [1, 1]} : vector<8x160xf32> to vector<8x32xf32>
    %835 = tpu.transpose %833, [1, 0] : vector<8x8xf32> -> vector<8x8xf32>
    %cst_325 = arith.constant dense<0.000000e+00> : vector<8x8xf32>
    %836 = tpu.matmul %832, %835, %cst_325 {dimension_numbers = #tpu.dot_dimension_numbers<[1], [0], [0], [1], [0, 0, 1, 1], [], []>} : vector<8x8xf32>, vector<8x8xf32>, vector<8x8xf32> -> vector<8x8xf32>
    %837 = vector.broadcast %1 : vector<1x8xf32> to vector<8x8xf32>
    %838 = arith.addf %836, %837 : vector<8x8xf32>
    %cst_326 = arith.constant dense<0xFF800000> : vector<8xf32>
    %839 = vector.multi_reduction <maximumf>, %838, %cst_326 [1] : vector<8x8xf32> to vector<8xf32>
    %840 = vector.shape_cast %839 : vector<8xf32> to vector<8x1xf32>
    %841 = vector.broadcast %840 : vector<8x1xf32> to vector<8x8xf32>
    %842 = arith.subf %838, %841 : vector<8x8xf32>
    %843 = math.exp %842 : vector<8x8xf32>
    %cst_327 = arith.constant dense<0.000000e+00> : vector<8xf32>
    %844 = vector.multi_reduction <add>, %843, %cst_327 [1] : vector<8x8xf32> to vector<8xf32>
    %845 = vector.shape_cast %844 : vector<8xf32> to vector<8x1xf32>
    %846 = tpu.reciprocal %845 : vector<8x1xf32> -> vector<8x1xf32>
    %847 = vector.broadcast %846 : vector<8x1xf32> to vector<8x8xf32>
    %848 = arith.mulf %843, %847 : vector<8x8xf32>
    %cst_328 = arith.constant dense<0.000000e+00> : vector<8x32xf32>
    %849 = tpu.matmul %848, %834, %cst_328 {dimension_numbers = #tpu.dot_dimension_numbers<[1], [0], [0], [1], [0, 0, 1, 1], [], []>} : vector<8x8xf32>, vector<8x32xf32>, vector<8x32xf32> -> vector<8x32xf32>
    %850 = arith.addf %831, %849 : vector<8x32xf32>
    %851 = vector.extract_strided_slice %789 {offsets = [0, 24], sizes = [8, 8], strides = [1, 1]} : vector<8x32xf32> to vector<8x8xf32>
    %852 = vector.extract_strided_slice %792 {offsets = [0, 24], sizes = [8, 8], strides = [1, 1]} : vector<8x160xf32> to vector<8x8xf32>
    %853 = vector.extract_strided_slice %792 {offsets = [0, 128], sizes = [8, 32], strides = [1, 1]} : vector<8x160xf32> to vector<8x32xf32>
    %854 = tpu.transpose %852, [1, 0] : vector<8x8xf32> -> vector<8x8xf32>
    %cst_329 = arith.constant dense<0.000000e+00> : vector<8x8xf32>
    %855 = tpu.matmul %851, %854, %cst_329 {dimension_numbers = #tpu.dot_dimension_numbers<[1], [0], [0], [1], [0, 0, 1, 1], [], []>} : vector<8x8xf32>, vector<8x8xf32>, vector<8x8xf32> -> vector<8x8xf32>
    %856 = vector.broadcast %1 : vector<1x8xf32> to vector<8x8xf32>
    %857 = arith.addf %855, %856 : vector<8x8xf32>
    %cst_330 = arith.constant dense<0xFF800000> : vector<8xf32>
    %858 = vector.multi_reduction <maximumf>, %857, %cst_330 [1] : vector<8x8xf32> to vector<8xf32>
    %859 = vector.shape_cast %858 : vector<8xf32> to vector<8x1xf32>
    %860 = vector.broadcast %859 : vector<8x1xf32> to vector<8x8xf32>
    %861 = arith.subf %857, %860 : vector<8x8xf32>
    %862 = math.exp %861 : vector<8x8xf32>
    %cst_331 = arith.constant dense<0.000000e+00> : vector<8xf32>
    %863 = vector.multi_reduction <add>, %862, %cst_331 [1] : vector<8x8xf32> to vector<8xf32>
    %864 = vector.shape_cast %863 : vector<8xf32> to vector<8x1xf32>
    %865 = tpu.reciprocal %864 : vector<8x1xf32> -> vector<8x1xf32>
    %866 = vector.broadcast %865 : vector<8x1xf32> to vector<8x8xf32>
    %867 = arith.mulf %862, %866 : vector<8x8xf32>
    %cst_332 = arith.constant dense<0.000000e+00> : vector<8x32xf32>
    %868 = tpu.matmul %867, %853, %cst_332 {dimension_numbers = #tpu.dot_dimension_numbers<[1], [0], [0], [1], [0, 0, 1, 1], [], []>} : vector<8x8xf32>, vector<8x32xf32>, vector<8x32xf32> -> vector<8x32xf32>
    %869 = arith.addf %850, %868 : vector<8x32xf32>
    %870 = vector.broadcast %786 : vector<1x32xf32> to vector<8x32xf32>
    %871 = arith.addf %869, %870 : vector<8x32xf32>
    %872 = arith.addf %774, %871 : vector<8x32xf32>
    %c1_333 = arith.constant 1 : index
    %c8_334 = arith.constant 8 : index
    %c0_335 = arith.constant 0 : index
    %873 = vector.load %arg15[%c1_333, %c8_334, %c0_335] : memref<2x16x160xf32, #tpu.memory_space<vmem>>, vector<1x1x160xf32>
    %874 = vector.shape_cast %873 : vector<1x1x160xf32> to vector<1x160xf32>
    %875 = vector.extract_strided_slice %874 {offsets = [0, 0], sizes = [1, 32], strides = [1, 1]} : vector<1x160xf32> to vector<1x32xf32>
    %c1_336 = arith.constant 1 : index
    %c9_337 = arith.constant 9 : index
    %c0_338 = arith.constant 0 : index
    %876 = vector.load %arg15[%c1_336, %c9_337, %c0_338] : memref<2x16x160xf32, #tpu.memory_space<vmem>>, vector<1x1x160xf32>
    %877 = vector.shape_cast %876 : vector<1x1x160xf32> to vector<1x160xf32>
    %878 = vector.extract_strided_slice %877 {offsets = [0, 0], sizes = [1, 32], strides = [1, 1]} : vector<1x160xf32> to vector<1x32xf32>
    %cst_339 = arith.constant dense<0.000000e+00> : vector<8xf32>
    %879 = vector.multi_reduction <add>, %872, %cst_339 [1] : vector<8x32xf32> to vector<8xf32>
    %880 = vector.shape_cast %879 : vector<8xf32> to vector<8x1xf32>
    %cst_340 = arith.constant 3.200000e+01 : f32
    %881 = vector.broadcast %cst_340 : f32 to vector<8x1xf32>
    %882 = arith.divf %880, %881 : vector<8x1xf32>
    %883 = vector.broadcast %882 : vector<8x1xf32> to vector<8x32xf32>
    %884 = arith.subf %872, %883 : vector<8x32xf32>
    %885 = arith.mulf %884, %884 : vector<8x32xf32>
    %cst_341 = arith.constant dense<0.000000e+00> : vector<8xf32>
    %886 = vector.multi_reduction <add>, %885, %cst_341 [1] : vector<8x32xf32> to vector<8xf32>
    %887 = vector.shape_cast %886 : vector<8xf32> to vector<8x1xf32>
    %cst_342 = arith.constant 3.200000e+01 : f32
    %888 = vector.broadcast %cst_342 : f32 to vector<8x1xf32>
    %889 = arith.divf %887, %888 : vector<8x1xf32>
    %890 = vector.broadcast %882 : vector<8x1xf32> to vector<8x32xf32>
    %891 = arith.subf %872, %890 : vector<8x32xf32>
    %cst_343 = arith.constant 9.99999974E-6 : f32
    %892 = vector.broadcast %cst_343 : f32 to vector<8x1xf32>
    %893 = arith.addf %889, %892 : vector<8x1xf32>
    %894 = math.rsqrt %893 : vector<8x1xf32>
    %895 = vector.broadcast %894 : vector<8x1xf32> to vector<8x32xf32>
    %896 = arith.mulf %891, %895 : vector<8x32xf32>
    %897 = vector.broadcast %875 : vector<1x32xf32> to vector<8x32xf32>
    %898 = arith.mulf %896, %897 : vector<8x32xf32>
    %899 = vector.broadcast %878 : vector<1x32xf32> to vector<8x32xf32>
    %900 = arith.addf %898, %899 : vector<8x32xf32>
    %c1_344 = arith.constant 1 : index
    %c0_345 = arith.constant 0 : index
    %c0_346 = arith.constant 0 : index
    %901 = vector.load %arg13[%c1_344, %c0_345, %c0_346] : memref<2x32x64xf32, #tpu.memory_space<vmem>>, vector<1x32x64xf32>
    %902 = vector.shape_cast %901 : vector<1x32x64xf32> to vector<32x64xf32>
    %c1_347 = arith.constant 1 : index
    %c10_348 = arith.constant 10 : index
    %c0_349 = arith.constant 0 : index
    %903 = vector.load %arg15[%c1_347, %c10_348, %c0_349] : memref<2x16x160xf32, #tpu.memory_space<vmem>>, vector<1x1x160xf32>
    %904 = vector.shape_cast %903 : vector<1x1x160xf32> to vector<1x160xf32>
    %905 = vector.extract_strided_slice %904 {offsets = [0, 0], sizes = [1, 64], strides = [1, 1]} : vector<1x160xf32> to vector<1x64xf32>
    %c1_350 = arith.constant 1 : index
    %c0_351 = arith.constant 0 : index
    %c0_352 = arith.constant 0 : index
    %906 = vector.load %arg14[%c1_350, %c0_351, %c0_352] : memref<2x64x32xf32, #tpu.memory_space<vmem>>, vector<1x64x32xf32>
    %907 = vector.shape_cast %906 : vector<1x64x32xf32> to vector<64x32xf32>
    %c1_353 = arith.constant 1 : index
    %c11_354 = arith.constant 11 : index
    %c0_355 = arith.constant 0 : index
    %908 = vector.load %arg15[%c1_353, %c11_354, %c0_355] : memref<2x16x160xf32, #tpu.memory_space<vmem>>, vector<1x1x160xf32>
    %909 = vector.shape_cast %908 : vector<1x1x160xf32> to vector<1x160xf32>
    %910 = vector.extract_strided_slice %909 {offsets = [0, 0], sizes = [1, 32], strides = [1, 1]} : vector<1x160xf32> to vector<1x32xf32>
    %cst_356 = arith.constant dense<0.000000e+00> : vector<8x64xf32>
    %911 = tpu.matmul %900, %902, %cst_356 {dimension_numbers = #tpu.dot_dimension_numbers<[1], [0], [0], [1], [0, 0, 1, 1], [], []>} : vector<8x32xf32>, vector<32x64xf32>, vector<8x64xf32> -> vector<8x64xf32>
    %912 = vector.broadcast %905 : vector<1x64xf32> to vector<8x64xf32>
    %913 = arith.addf %911, %912 : vector<8x64xf32>
    %cst_357 = arith.constant 0.000000e+00 : f32
    %914 = vector.broadcast %cst_357 : f32 to vector<8x64xf32>
    %915 = arith.maximumf %913, %914 : vector<8x64xf32>
    %cst_358 = arith.constant dense<0.000000e+00> : vector<8x32xf32>
    %916 = tpu.matmul %915, %907, %cst_358 {dimension_numbers = #tpu.dot_dimension_numbers<[1], [0], [0], [1], [0, 0, 1, 1], [], []>} : vector<8x64xf32>, vector<64x32xf32>, vector<8x32xf32> -> vector<8x32xf32>
    %917 = vector.broadcast %910 : vector<1x32xf32> to vector<8x32xf32>
    %918 = arith.addf %916, %917 : vector<8x32xf32>
    %919 = arith.addf %900, %918 : vector<8x32xf32>
    %c1_359 = arith.constant 1 : index
    %c12_360 = arith.constant 12 : index
    %c0_361 = arith.constant 0 : index
    %920 = vector.load %arg15[%c1_359, %c12_360, %c0_361] : memref<2x16x160xf32, #tpu.memory_space<vmem>>, vector<1x1x160xf32>
    %921 = vector.shape_cast %920 : vector<1x1x160xf32> to vector<1x160xf32>
    %922 = vector.extract_strided_slice %921 {offsets = [0, 0], sizes = [1, 32], strides = [1, 1]} : vector<1x160xf32> to vector<1x32xf32>
    %c1_362 = arith.constant 1 : index
    %c13_363 = arith.constant 13 : index
    %c0_364 = arith.constant 0 : index
    %923 = vector.load %arg15[%c1_362, %c13_363, %c0_364] : memref<2x16x160xf32, #tpu.memory_space<vmem>>, vector<1x1x160xf32>
    %924 = vector.shape_cast %923 : vector<1x1x160xf32> to vector<1x160xf32>
    %925 = vector.extract_strided_slice %924 {offsets = [0, 0], sizes = [1, 32], strides = [1, 1]} : vector<1x160xf32> to vector<1x32xf32>
    %cst_365 = arith.constant dense<0.000000e+00> : vector<8xf32>
    %926 = vector.multi_reduction <add>, %919, %cst_365 [1] : vector<8x32xf32> to vector<8xf32>
    %927 = vector.shape_cast %926 : vector<8xf32> to vector<8x1xf32>
    %cst_366 = arith.constant 3.200000e+01 : f32
    %928 = vector.broadcast %cst_366 : f32 to vector<8x1xf32>
    %929 = arith.divf %927, %928 : vector<8x1xf32>
    %930 = vector.broadcast %929 : vector<8x1xf32> to vector<8x32xf32>
    %931 = arith.subf %919, %930 : vector<8x32xf32>
    %932 = arith.mulf %931, %931 : vector<8x32xf32>
    %cst_367 = arith.constant dense<0.000000e+00> : vector<8xf32>
    %933 = vector.multi_reduction <add>, %932, %cst_367 [1] : vector<8x32xf32> to vector<8xf32>
    %934 = vector.shape_cast %933 : vector<8xf32> to vector<8x1xf32>
    %cst_368 = arith.constant 3.200000e+01 : f32
    %935 = vector.broadcast %cst_368 : f32 to vector<8x1xf32>
    %936 = arith.divf %934, %935 : vector<8x1xf32>
    %937 = vector.broadcast %929 : vector<8x1xf32> to vector<8x32xf32>
    %938 = arith.subf %919, %937 : vector<8x32xf32>
    %cst_369 = arith.constant 9.99999974E-6 : f32
    %939 = vector.broadcast %cst_369 : f32 to vector<8x1xf32>
    %940 = arith.addf %936, %939 : vector<8x1xf32>
    %941 = math.rsqrt %940 : vector<8x1xf32>
    %942 = vector.broadcast %941 : vector<8x1xf32> to vector<8x32xf32>
    %943 = arith.mulf %938, %942 : vector<8x32xf32>
    %944 = vector.broadcast %922 : vector<1x32xf32> to vector<8x32xf32>
    %945 = arith.mulf %943, %944 : vector<8x32xf32>
    %946 = vector.broadcast %925 : vector<1x32xf32> to vector<8x32xf32>
    %947 = arith.addf %945, %946 : vector<8x32xf32>
    %c0_370 = arith.constant 0 : index
    %c0_371 = arith.constant 0 : index
    %948 = vector.load %arg16[%c0_370, %c0_371] : memref<32x64xf32, #tpu.memory_space<vmem>>, vector<32x64xf32>
    %cst_372 = arith.constant dense<0.000000e+00> : vector<8x64xf32>
    %949 = tpu.matmul %947, %948, %cst_372 {dimension_numbers = #tpu.dot_dimension_numbers<[1], [0], [0], [1], [0, 0, 1, 1], [], []>} : vector<8x32xf32>, vector<32x64xf32>, vector<8x64xf32> -> vector<8x64xf32>
    %c0_373 = arith.constant 0 : index
    %c0_374 = arith.constant 0 : index
    %950 = vector.load %arg17[%c0_373, %c0_374] : memref<1x64xf32, #tpu.memory_space<vmem>>, vector<1x64xf32>
    %951 = vector.broadcast %950 : vector<1x64xf32> to vector<8x64xf32>
    %952 = arith.addf %949, %951 : vector<8x64xf32>
    %cst_375 = arith.constant dense<0xFF800000> : vector<8xf32>
    %953 = vector.multi_reduction <maximumf>, %952, %cst_375 [1] : vector<8x64xf32> to vector<8xf32>
    %954 = vector.shape_cast %953 : vector<8xf32> to vector<8x1xf32>
    %955 = vector.broadcast %954 : vector<8x1xf32> to vector<8x64xf32>
    %956 = arith.subf %952, %955 : vector<8x64xf32>
    %957 = math.exp %956 : vector<8x64xf32>
    %cst_376 = arith.constant dense<0.000000e+00> : vector<8xf32>
    %958 = vector.multi_reduction <add>, %957, %cst_376 [1] : vector<8x64xf32> to vector<8xf32>
    %959 = vector.shape_cast %958 : vector<8xf32> to vector<8x1xf32>
    %960 = math.log %959 : vector<8x1xf32>
    %961 = arith.addf %960, %954 : vector<8x1xf32>
    %962 = vector.broadcast %961 : vector<8x1xf32> to vector<8x64xf32>
    %963 = arith.subf %952, %962 : vector<8x64xf32>
    %c0_377 = arith.constant 0 : index
    %c0_378 = arith.constant 0 : index
    %c0_379 = arith.constant 0 : index
    %964 = vector.load %arg18[%c0_377, %c0_378, %c0_379] : memref<1x8x64xf32, #tpu.memory_space<vmem>>, vector<1x8x64xf32>
    %965 = vector.shape_cast %964 : vector<1x8x64xf32> to vector<8x64xf32>
    %966 = vector.shape_cast %963 : vector<8x64xf32> to vector<1x8x64xf32>
    tpu.vector_store %arg18[%c0_377, %c0_378, %c0_379], %966 {strides = array<i32>} : memref<1x8x64xf32, #tpu.memory_space<vmem>>, vector<1x8x64xf32>,
    return
  }
  func.func @transform_0(%arg0: i32) -> (i32, i32, i32) {
    %c0_i32 = arith.constant 0 : i32
    %c0_i32_0 = arith.constant 0 : i32
    %c0_i32_1 = arith.constant 0 : i32
    return %arg0, %c0_i32, %c0_i32_0 : i32, i32, i32
  }
  func.func @transform_1(%arg0: i32) -> (i32, i32, i32) {
    %c0_i32 = arith.constant 0 : i32
    %c0_i32_0 = arith.constant 0 : i32
    %c0_i32_1 = arith.constant 0 : i32
    return %arg0, %c0_i32, %c0_i32_0 : i32, i32, i32
  }
  func.func @transform_2(%arg0: i32) -> (i32, i32, i32) {
    %c0_i32 = arith.constant 0 : i32
    %c0_i32_0 = arith.constant 0 : i32
    %c0_i32_1 = arith.constant 0 : i32
    return %arg0, %c0_i32, %c0_i32_0 : i32, i32, i32
  }
  func.func @transform_3(%arg0: i32) -> (i32, i32, i32) {
    %c0_i32 = arith.constant 0 : i32
    %c0_i32_0 = arith.constant 0 : i32
    %c0_i32_1 = arith.constant 0 : i32
    %c0_i32_2 = arith.constant 0 : i32
    return %c0_i32, %c0_i32_0, %c0_i32_1 : i32, i32, i32
  }
  func.func @transform_4(%arg0: i32) -> (i32, i32, i32) {
    %c0_i32 = arith.constant 0 : i32
    %c0_i32_0 = arith.constant 0 : i32
    %c0_i32_1 = arith.constant 0 : i32
    %c0_i32_2 = arith.constant 0 : i32
    return %c0_i32, %c0_i32_0, %c0_i32_1 : i32, i32, i32
  }
  func.func @transform_5(%arg0: i32) -> (i32, i32, i32) {
    %c0_i32 = arith.constant 0 : i32
    %c0_i32_0 = arith.constant 0 : i32
    %c0_i32_1 = arith.constant 0 : i32
    %c0_i32_2 = arith.constant 0 : i32
    return %c0_i32, %c0_i32_0, %c0_i32_1 : i32, i32, i32
  }
  func.func @transform_6(%arg0: i32) -> (i32, i32, i32) {
    %c0_i32 = arith.constant 0 : i32
    %c0_i32_0 = arith.constant 0 : i32
    %c0_i32_1 = arith.constant 0 : i32
    %c0_i32_2 = arith.constant 0 : i32
    return %c0_i32, %c0_i32_0, %c0_i32_1 : i32, i32, i32
  }
  func.func @transform_7(%arg0: i32) -> (i32, i32, i32) {
    %c0_i32 = arith.constant 0 : i32
    %c0_i32_0 = arith.constant 0 : i32
    %c0_i32_1 = arith.constant 0 : i32
    %c0_i32_2 = arith.constant 0 : i32
    return %c0_i32, %c0_i32_0, %c0_i32_1 : i32, i32, i32
  }
  func.func @transform_8(%arg0: i32) -> (i32, i32, i32) {
    %c0_i32 = arith.constant 0 : i32
    %c0_i32_0 = arith.constant 0 : i32
    %c0_i32_1 = arith.constant 0 : i32
    %c0_i32_2 = arith.constant 0 : i32
    return %c0_i32, %c0_i32_0, %c0_i32_1 : i32, i32, i32
  }
  func.func @transform_9(%arg0: i32) -> (i32, i32, i32) {
    %c0_i32 = arith.constant 0 : i32
    %c0_i32_0 = arith.constant 0 : i32
    %c0_i32_1 = arith.constant 0 : i32
    %c0_i32_2 = arith.constant 0 : i32
    return %c0_i32, %c0_i32_0, %c0_i32_1 : i32, i32, i32
  }
  func.func @transform_10(%arg0: i32) -> (i32, i32, i32) {
    %c0_i32 = arith.constant 0 : i32
    %c0_i32_0 = arith.constant 0 : i32
    %c0_i32_1 = arith.constant 0 : i32
    %c0_i32_2 = arith.constant 0 : i32
    return %c0_i32, %c0_i32_0, %c0_i32_1 : i32, i32, i32
  }
  func.func @transform_11(%arg0: i32) -> (i32, i32, i32) {
    %c0_i32 = arith.constant 0 : i32
    %c0_i32_0 = arith.constant 0 : i32
    %c0_i32_1 = arith.constant 0 : i32
    %c0_i32_2 = arith.constant 0 : i32
    return %c0_i32, %c0_i32_0, %c0_i32_1 : i32, i32, i32
  }
  func.func @transform_12(%arg0: i32) -> (i32, i32, i32) {
    %c0_i32 = arith.constant 0 : i32
    %c0_i32_0 = arith.constant 0 : i32
    %c0_i32_1 = arith.constant 0 : i32
    %c0_i32_2 = arith.constant 0 : i32
    return %c0_i32, %c0_i32_0, %c0_i32_1 : i32, i32, i32
  }
  func.func @transform_13(%arg0: i32) -> (i32, i32, i32) {
    %c0_i32 = arith.constant 0 : i32
    %c0_i32_0 = arith.constant 0 : i32
    %c0_i32_1 = arith.constant 0 : i32
    %c0_i32_2 = arith.constant 0 : i32
    return %c0_i32, %c0_i32_0, %c0_i32_1 : i32, i32, i32
  }
  func.func @transform_14(%arg0: i32) -> (i32, i32, i32) {
    %c0_i32 = arith.constant 0 : i32
    %c0_i32_0 = arith.constant 0 : i32
    %c0_i32_1 = arith.constant 0 : i32
    %c0_i32_2 = arith.constant 0 : i32
    return %c0_i32, %c0_i32_0, %c0_i32_1 : i32, i32, i32
  }
  func.func @transform_15(%arg0: i32) -> (i32, i32) {
    %c0_i32 = arith.constant 0 : i32
    %c0_i32_0 = arith.constant 0 : i32
    %c0_i32_1 = arith.constant 0 : i32
    return %c0_i32, %c0_i32_0 : i32, i32
  }
  func.func @transform_16(%arg0: i32) -> (i32, i32) {
    %c0_i32 = arith.constant 0 : i32
    %c0_i32_0 = arith.constant 0 : i32
    %c0_i32_1 = arith.constant 0 : i32
    return %c0_i32, %c0_i32_0 : i32, i32
  }
  func.func @transform_17(%arg0: i32) -> (i32, i32, i32) {
    %c0_i32 = arith.constant 0 : i32
    %c0_i32_0 = arith.constant 0 : i32
    %c0_i32_1 = arith.constant 0 : i32
    return %arg0, %c0_i32, %c0_i32_0 : i32, i32, i32
  }
}

</mosaic_0001>

<llo_original>
// kernel: _lambda_.1
$region0: #{_lambda_.1}
  #allocation0 [shape = 'u32[]', space=smem, size = 0x4, offset = 0x4, fixed_abs, tag = 'smem constant byte address 0x4 - core index']
  #allocation1 [shape = 'u32[144,128]{1,0:T(1,128)}', space=vmem, size = 0x12000, scoped, tag = 'internal scratch']
  %s0 = inlined_call_operand.vmem [shape: f32[2,8,32], index: 0, kind: input, shape index: {}]
  %s1 = inlined_call_operand.vmem [shape: f32[2,8,32], index: 1, kind: input, shape index: {}]
  %s2 = inlined_call_operand.vmem [shape: f32[2,1,8], index: 2, kind: input, shape index: {}]
  %s3 = inlined_call_operand.vmem [shape: f32[2,32,32], index: 3, kind: input, shape index: {}]
  %s4 = inlined_call_operand.vmem [shape: f32[2,32,160], index: 4, kind: input, shape index: {}]
  %s5 = inlined_call_operand.vmem [shape: f32[2,32,64], index: 5, kind: input, shape index: {}]
  %s6 = inlined_call_operand.vmem [shape: f32[2,64,32], index: 6, kind: input, shape index: {}]
  %s7 = inlined_call_operand.vmem [shape: f32[2,16,160], index: 7, kind: input, shape index: {}]
  %s8 = inlined_call_operand.vmem [shape: f32[2,32,32], index: 8, kind: input, shape index: {}]
  %s9 = inlined_call_operand.vmem [shape: f32[2,32,160], index: 9, kind: input, shape index: {}]
  %s10 = inlined_call_operand.vmem [shape: f32[2,32,32], index: 10, kind: input, shape index: {}]
  %s11 = inlined_call_operand.vmem [shape: f32[2,32,160], index: 11, kind: input, shape index: {}]
  %s12 = inlined_call_operand.vmem [shape: f32[2,32,64], index: 12, kind: input, shape index: {}]
  %s13 = inlined_call_operand.vmem [shape: f32[2,64,32], index: 13, kind: input, shape index: {}]
  %s14 = inlined_call_operand.vmem [shape: f32[2,16,160], index: 14, kind: input, shape index: {}]
  %s15 = inlined_call_operand.hbm [shape: f32[32,64], index: 15, kind: input, shape index: {}]
  %s16 = inlined_call_operand.vmem [shape: f32[1,64], index: 16, kind: input, shape index: {}]
  %s17 = inlined_call_operand.hbm [shape: f32[2,8,64], index: 17, kind: output, shape index: {}]
  %s18 = sld [smem:[#allocation0]]
  $region105: #{_lambda_.1} parent=0
    _
  %s20 = ssub.s32 1, %s18
  %s21 = scalar_select 0, %s20, %s18
  $region1: #{_lambda_.1} parent=0
    #allocation2 [shape = 'u8[16384]{0}', space=vmem, size = 0x4000, scoped, tag = 'input window, operand 15, single buffered']
    #allocation3 [shape = 's32[2]{0}', space=sflag, size = 0x8, scoped, tag = 'scoped memory for _lambda_.1']
    #allocation4 [shape = 's32[2]{0}', space=sflag, size = 0x8, scoped, tag = 'scoped memory for _lambda_.1']
    #allocation5 [shape = 'u8[8192]{0}', space=vmem, size = 0x2000, scoped, tag = 'output window, operand 0']
    %22 = vsyncpa [#allocation3], 0
    %23 = vsyncpa [#allocation4], 0
    %s24 = scalar_lea.sflag [#allocation4], 1
    %25 = vsyncpa %s24, 0
    loop: start=0, step=1, limit=4
    $region2: #{_lambda_.1} parent=1 // loop_pre_header
      _
    $region3: #{_lambda_.1} parent=1 // loop_header
      %s27 = sphi 0, %s31
      %p28 = scmp.ge.s32.totalorder %s27, 4
      %s37 = sphi 0, %s39
      %s40 = sphi 0, %s37
      %s41 = sphi 0, %s40
      %s57 = sphi 0, %s41
      %s63 = sphi 0, %s65
      %s66 = sphi 0, %s63
      %s67 = sphi 0, %s66
      %s83 = sphi 0, %s67
      %s89 = sphi 0, %s91
      %s92 = sphi 0, %s89
      %s93 = sphi 0, %s92
      %s109 = sphi 0, %s93
      %s113 = sphi 0, %s113
      %s115 = sphi 0, %s113
      %s116 = sphi 0, %s115
      %s130 = sphi 0, %s116
      %s134 = sphi 0, %s134
      %s136 = sphi 0, %s134
      %s137 = sphi 0, %s136
      %s151 = sphi 0, %s137
      %s155 = sphi 0, %s155
      %s157 = sphi 0, %s155
      %s158 = sphi 0, %s157
      %s172 = sphi 0, %s158
      %s176 = sphi 0, %s176
      %s178 = sphi 0, %s176
      %s179 = sphi 0, %s178
      %s193 = sphi 0, %s179
      %s197 = sphi 0, %s197
      %s199 = sphi 0, %s197
      %s200 = sphi 0, %s199
      %s214 = sphi 0, %s200
      %s218 = sphi 0, %s218
      %s220 = sphi 0, %s218
      %s221 = sphi 0, %s220
      %s235 = sphi 0, %s221
      %s239 = sphi 0, %s239
      %s241 = sphi 0, %s239
      %s242 = sphi 0, %s241
      %s256 = sphi 0, %s242
      %s260 = sphi 0, %s260
      %s262 = sphi 0, %s260
      %s263 = sphi 0, %s262
      %s277 = sphi 0, %s263
      %s281 = sphi 0, %s281
      %s283 = sphi 0, %s281
      %s284 = sphi 0, %s283
      %s298 = sphi 0, %s284
      %s302 = sphi 0, %s302
      %s304 = sphi 0, %s302
      %s305 = sphi 0, %s304
      %s319 = sphi 0, %s305
      %s323 = sphi 0, %s323
      %s325 = sphi 0, %s323
      %s326 = sphi 0, %s325
      %s340 = sphi 0, %s326
      %s344 = sphi 0, %s344
      %s346 = sphi 0, %s344
      %s347 = sphi 0, %s346
      %s361 = sphi 0, %s347
      %s365 = sphi 0, %s365
      %s367 = sphi 0, %s365
      %s368 = sphi 0, %s367
      %s382 = sphi 0, %s368
      %s386 = sphi 0, %s386
      %s388 = sphi 0, %s386
      %s389 = sphi 0, %s388
      %s403 = sphi 0, %s389
      %s409 = sphi 0, %s411
      %s412 = sphi 0, %s409
      %s413 = sphi 0, %s412
      %s429 = sphi 0, %s413
    $region4: #{_lambda_.1} parent=1 // loop_header_branch
      %30 = sbr.rel (%p28) target = $region8
    $region5: #{_lambda_.1} parent=1 // loop_body
      %s32 = ssub.s32 %s27, 1
      %s33 = ssub.s32 %s27, 2
      %s34 = sadd.s32 %s27, 1
      %s35 = ssub.s32 %s27, %s34
      %p36 = scmp.eq.s32.totalorder %s35, 0
      %s38 = sadd.s32 %s37, 1
      %s39 = scalar_select %p36, %s37, %s38
      %p42 = pneg %p36
      %p43 = scmp.eq.s32.totalorder %s27, 1
      %p44 = por %p42, %p43
      %p45 = scmp.ne.s32.totalorder %s37, %s40
      %p46 = scmp.eq.s32.totalorder %s27, 0
      %p47 = por %p45, %p46
      %p48 = scmp.ne.s32.totalorder %s37, %s40
      %p49 = scmp.eq.s32.totalorder %s32, 1
      %p50 = por %p48, %p49
      %p51 = scmp.ne.s32.totalorder %s40, %s41
      %p52 = scmp.eq.s32.totalorder %s32, 0
      %p53 = por %p51, %p52
      %p54 = scmp.ne.s32.totalorder %s40, %s41
      %p55 = scmp.eq.s32.totalorder %s33, 1
      %p56 = por %p54, %p55
      %p58 = scmp.ne.s32.totalorder %s41, %s57
      %p59 = scmp.eq.s32.totalorder %s33, 0
      %p60 = por %p58, %p59
      %s61 = ssub.s32 %s27, %s34
      %p62 = scmp.eq.s32.totalorder %s61, 0
      %s64 = sadd.s32 %s63, 1
      %s65 = scalar_select %p62, %s63, %s64
      %p68 = pneg %p62
      %p69 = scmp.eq.s32.totalorder %s27, 1
      %p70 = por %p68, %p69
      %p71 = scmp.ne.s32.totalorder %s63, %s66
      %p72 = scmp.eq.s32.totalorder %s27, 0
      %p73 = por %p71, %p72
      %p74 = scmp.ne.s32.totalorder %s63, %s66
      %p75 = scmp.eq.s32.totalorder %s32, 1
      %p76 = por %p74, %p75
      %p77 = scmp.ne.s32.totalorder %s66, %s67
      %p78 = scmp.eq.s32.totalorder %s32, 0
      %p79 = por %p77, %p78
      %p80 = scmp.ne.s32.totalorder %s66, %s67
      %p81 = scmp.eq.s32.totalorder %s33, 1
      %p82 = por %p80, %p81
      %p84 = scmp.ne.s32.totalorder %s67, %s83
      %p85 = scmp.eq.s32.totalorder %s33, 0
      %p86 = por %p84, %p85
      %s87 = ssub.s32 %s27, %s34
      %p88 = scmp.eq.s32.totalorder %s87, 0
      %s90 = sadd.s32 %s89, 1
      %s91 = scalar_select %p88, %s89, %s90
      %p94 = pneg %p88
      %p95 = scmp.eq.s32.totalorder %s27, 1
      %p96 = por %p94, %p95
      %p97 = scmp.ne.s32.totalorder %s89, %s92
      %p98 = scmp.eq.s32.totalorder %s27, 0
      %p99 = por %p97, %p98
      %p100 = scmp.ne.s32.totalorder %s89, %s92
      %p101 = scmp.eq.s32.totalorder %s32, 1
      %p102 = por %p100, %p101
      %p103 = scmp.ne.s32.totalorder %s92, %s93
      %p104 = scmp.eq.s32.totalorder %s32, 0
      %p105 = por %p103, %p104
      %p106 = scmp.ne.s32.totalorder %s92, %s93
      %p107 = scmp.eq.s32.totalorder %s33, 1
      %p108 = por %p106, %p107
      %p110 = scmp.ne.s32.totalorder %s93, %s109
      %p111 = scmp.eq.s32.totalorder %s33, 0
      %p112 = por %p110, %p111
      %s114 = sadd.s32 %s113, 1
      %p117 = scmp.eq.s32.totalorder %s27, 1
      %p118 = scmp.ne.s32.totalorder %s113, %s115
      %p119 = scmp.eq.s32.totalorder %s27, 0
      %p120 = por %p118, %p119
      %p121 = scmp.ne.s32.totalorder %s113, %s115
      %p122 = scmp.eq.s32.totalorder %s32, 1
      %p123 = por %p121, %p122
      %p124 = scmp.ne.s32.totalorder %s115, %s116
      %p125 = scmp.eq.s32.totalorder %s32, 0
      %p126 = por %p124, %p125
      %p127 = scmp.ne.s32.totalorder %s115, %s116
      %p128 = scmp.eq.s32.totalorder %s33, 1
      %p129 = por %p127, %p128
      %p131 = scmp.ne.s32.totalorder %s116, %s130
      %p132 = scmp.eq.s32.totalorder %s33, 0
      %p133 = por %p131, %p132
      %s135 = sadd.s32 %s134, 1
      %p138 = scmp.eq.s32.totalorder %s27, 1
      %p139 = scmp.ne.s32.totalorder %s134, %s136
      %p140 = scmp.eq.s32.totalorder %s27, 0
      %p141 = por %p139, %p140
      %p142 = scmp.ne.s32.totalorder %s134, %s136
      %p143 = scmp.eq.s32.totalorder %s32, 1
      %p144 = por %p142, %p143
      %p145 = scmp.ne.s32.totalorder %s136, %s137
      %p146 = scmp.eq.s32.totalorder %s32, 0
      %p147 = por %p145, %p146
      %p148 = scmp.ne.s32.totalorder %s136, %s137
      %p149 = scmp.eq.s32.totalorder %s33, 1
      %p150 = por %p148, %p149
      %p152 = scmp.ne.s32.totalorder %s137, %s151
      %p153 = scmp.eq.s32.totalorder %s33, 0
      %p154 = por %p152, %p153
      %s156 = sadd.s32 %s155, 1
      %p159 = scmp.eq.s32.totalorder %s27, 1
      %p160 = scmp.ne.s32.totalorder %s155, %s157
      %p161 = scmp.eq.s32.totalorder %s27, 0
      %p162 = por %p160, %p161
      %p163 = scmp.ne.s32.totalorder %s155, %s157
      %p164 = scmp.eq.s32.totalorder %s32, 1
      %p165 = por %p163, %p164
      %p166 = scmp.ne.s32.totalorder %s157, %s158
      %p167 = scmp.eq.s32.totalorder %s32, 0
      %p168 = por %p166, %p167
      %p169 = scmp.ne.s32.totalorder %s157, %s158
      %p170 = scmp.eq.s32.totalorder %s33, 1
      %p171 = por %p169, %p170
      %p173 = scmp.ne.s32.totalorder %s158, %s172
      %p174 = scmp.eq.s32.totalorder %s33, 0
      %p175 = por %p173, %p174
      %s177 = sadd.s32 %s176, 1
      %p180 = scmp.eq.s32.totalorder %s27, 1
      %p181 = scmp.ne.s32.totalorder %s176, %s178
      %p182 = scmp.eq.s32.totalorder %s27, 0
      %p183 = por %p181, %p182
      %p184 = scmp.ne.s32.totalorder %s176, %s178
      %p185 = scmp.eq.s32.totalorder %s32, 1
      %p186 = por %p184, %p185
      %p187 = scmp.ne.s32.totalorder %s178, %s179
      %p188 = scmp.eq.s32.totalorder %s32, 0
      %p189 = por %p187, %p188
      %p190 = scmp.ne.s32.totalorder %s178, %s179
      %p191 = scmp.eq.s32.totalorder %s33, 1
      %p192 = por %p190, %p191
      %p194 = scmp.ne.s32.totalorder %s179, %s193
      %p195 = scmp.eq.s32.totalorder %s33, 0
      %p196 = por %p194, %p195
      %s198 = sadd.s32 %s197, 1
      %p201 = scmp.eq.s32.totalorder %s27, 1
      %p202 = scmp.ne.s32.totalorder %s197, %s199
      %p203 = scmp.eq.s32.totalorder %s27, 0
      %p204 = por %p202, %p203
      %p205 = scmp.ne.s32.totalorder %s197, %s199
      %p206 = scmp.eq.s32.totalorder %s32, 1
      %p207 = por %p205, %p206
      %p208 = scmp.ne.s32.totalorder %s199, %s200
      %p209 = scmp.eq.s32.totalorder %s32, 0
      %p210 = por %p208, %p209
      %p211 = scmp.ne.s32.totalorder %s199, %s200
      %p212 = scmp.eq.s32.totalorder %s33, 1
      %p213 = por %p211, %p212
      %p215 = scmp.ne.s32.totalorder %s200, %s214
      %p216 = scmp.eq.s32.totalorder %s33, 0
      %p217 = por %p215, %p216
      %s219 = sadd.s32 %s218, 1
      %p222 = scmp.eq.s32.totalorder %s27, 1
      %p223 = scmp.ne.s32.totalorder %s218, %s220
      %p224 = scmp.eq.s32.totalorder %s27, 0
      %p225 = por %p223, %p224
      %p226 = scmp.ne.s32.totalorder %s218, %s220
      %p227 = scmp.eq.s32.totalorder %s32, 1
      %p228 = por %p226, %p227
      %p229 = scmp.ne.s32.totalorder %s220, %s221
      %p230 = scmp.eq.s32.totalorder %s32, 0
      %p231 = por %p229, %p230
      %p232 = scmp.ne.s32.totalorder %s220, %s221
      %p233 = scmp.eq.s32.totalorder %s33, 1
      %p234 = por %p232, %p233
      %p236 = scmp.ne.s32.totalorder %s221, %s235
      %p237 = scmp.eq.s32.totalorder %s33, 0
      %p238 = por %p236, %p237
      %s240 = sadd.s32 %s239, 1
      %p243 = scmp.eq.s32.totalorder %s27, 1
      %p244 = scmp.ne.s32.totalorder %s239, %s241
      %p245 = scmp.eq.s32.totalorder %s27, 0
      %p246 = por %p244, %p245
      %p247 = scmp.ne.s32.totalorder %s239, %s241
      %p248 = scmp.eq.s32.totalorder %s32, 1
      %p249 = por %p247, %p248
      %p250 = scmp.ne.s32.totalorder %s241, %s242
      %p251 = scmp.eq.s32.totalorder %s32, 0
      %p252 = por %p250, %p251
      %p253 = scmp.ne.s32.totalorder %s241, %s242
      %p254 = scmp.eq.s32.totalorder %s33, 1
      %p255 = por %p253, %p254
      %p257 = scmp.ne.s32.totalorder %s242, %s256
      %p258 = scmp.eq.s32.totalorder %s33, 0
      %p259 = por %p257, %p258
      %s261 = sadd.s32 %s260, 1
      %p264 = scmp.eq.s32.totalorder %s27, 1
      %p265 = scmp.ne.s32.totalorder %s260, %s262
      %p266 = scmp.eq.s32.totalorder %s27, 0
      %p267 = por %p265, %p266
      %p268 = scmp.ne.s32.totalorder %s260, %s262
      %p269 = scmp.eq.s32.totalorder %s32, 1
      %p270 = por %p268, %p269
      %p271 = scmp.ne.s32.totalorder %s262, %s263
      %p272 = scmp.eq.s32.totalorder %s32, 0
      %p273 = por %p271, %p272
      %p274 = scmp.ne.s32.totalorder %s262, %s263
      %p275 = scmp.eq.s32.totalorder %s33, 1
      %p276 = por %p274, %p275
      %p278 = scmp.ne.s32.totalorder %s263, %s277
      %p279 = scmp.eq.s32.totalorder %s33, 0
      %p280 = por %p278, %p279
      %s282 = sadd.s32 %s281, 1
      %p285 = scmp.eq.s32.totalorder %s27, 1
      %p286 = scmp.ne.s32.totalorder %s281, %s283
      %p287 = scmp.eq.s32.totalorder %s27, 0
      %p288 = por %p286, %p287
      %p289 = scmp.ne.s32.totalorder %s281, %s283
      %p290 = scmp.eq.s32.totalorder %s32, 1
      %p291 = por %p289, %p290
      %p292 = scmp.ne.s32.totalorder %s283, %s284
      %p293 = scmp.eq.s32.totalorder %s32, 0
      %p294 = por %p292, %p293
      %p295 = scmp.ne.s32.totalorder %s283, %s284
      %p296 = scmp.eq.s32.totalorder %s33, 1
      %p297 = por %p295, %p296
      %p299 = scmp.ne.s32.totalorder %s284, %s298
      %p300 = scmp.eq.s32.totalorder %s33, 0
      %p301 = por %p299, %p300
      %s303 = sadd.s32 %s302, 1
      %p306 = scmp.eq.s32.totalorder %s27, 1
      %p307 = scmp.ne.s32.totalorder %s302, %s304
      %p308 = scmp.eq.s32.totalorder %s27, 0
      %p309 = por %p307, %p308
      %p310 = scmp.ne.s32.totalorder %s302, %s304
      %p311 = scmp.eq.s32.totalorder %s32, 1
      %p312 = por %p310, %p311
      %p313 = scmp.ne.s32.totalorder %s304, %s305
      %p314 = scmp.eq.s32.totalorder %s32, 0
      %p315 = por %p313, %p314
      %p316 = scmp.ne.s32.totalorder %s304, %s305
      %p317 = scmp.eq.s32.totalorder %s33, 1
      %p318 = por %p316, %p317
      %p320 = scmp.ne.s32.totalorder %s305, %s319
      %p321 = scmp.eq.s32.totalorder %s33, 0
      %p322 = por %p320, %p321
      %s324 = sadd.s32 %s323, 1
      %p327 = scmp.eq.s32.totalorder %s27, 1
      %p328 = scmp.ne.s32.totalorder %s323, %s325
      %p329 = scmp.eq.s32.totalorder %s27, 0
      %p330 = por %p328, %p329
      %p331 = scmp.ne.s32.totalorder %s323, %s325
      %p332 = scmp.eq.s32.totalorder %s32, 1
      %p333 = por %p331, %p332
      %p334 = scmp.ne.s32.totalorder %s325, %s326
      %p335 = scmp.eq.s32.totalorder %s32, 0
      %p336 = por %p334, %p335
      %p337 = scmp.ne.s32.totalorder %s325, %s326
      %p338 = scmp.eq.s32.totalorder %s33, 1
      %p339 = por %p337, %p338
      %p341 = scmp.ne.s32.totalorder %s326, %s340
      %p342 = scmp.eq.s32.totalorder %s33, 0
      %p343 = por %p341, %p342
      %s345 = sadd.s32 %s344, 1
      %p348 = scmp.eq.s32.totalorder %s27, 1
      %p349 = scmp.ne.s32.totalorder %s344, %s346
      %p350 = scmp.eq.s32.totalorder %s27, 0
      %p351 = por %p349, %p350
      %p352 = scmp.ne.s32.totalorder %s344, %s346
      %p353 = scmp.eq.s32.totalorder %s32, 1
      %p354 = por %p352, %p353
      %p355 = scmp.ne.s32.totalorder %s346, %s347
      %p356 = scmp.eq.s32.totalorder %s32, 0
      %p357 = por %p355, %p356
      %p358 = scmp.ne.s32.totalorder %s346, %s347
      %p359 = scmp.eq.s32.totalorder %s33, 1
      %p360 = por %p358, %p359
      %p362 = scmp.ne.s32.totalorder %s347, %s361
      %p363 = scmp.eq.s32.totalorder %s33, 0
      %p364 = por %p362, %p363
      %s366 = sadd.s32 %s365, 1
      %p369 = scmp.eq.s32.totalorder %s27, 1
      %p370 = scmp.ne.s32.totalorder %s365, %s367
      %p371 = scmp.eq.s32.totalorder %s27, 0
      %p372 = por %p370, %p371
      %p373 = scmp.ne.s32.totalorder %s365, %s367
      %p374 = scmp.eq.s32.totalorder %s32, 1
      %p375 = por %p373, %p374
      %p376 = scmp.ne.s32.totalorder %s367, %s368
      %p377 = scmp.eq.s32.totalorder %s32, 0
      %p378 = por %p376, %p377
      %p379 = scmp.ne.s32.totalorder %s367, %s368
      %p380 = scmp.eq.s32.totalorder %s33, 1
      %p381 = por %p379, %p380
      %p383 = scmp.ne.s32.totalorder %s368, %s382
      %p384 = scmp.eq.s32.totalorder %s33, 0
      %p385 = por %p383, %p384
      %s387 = sadd.s32 %s386, 1
      %p390 = scmp.eq.s32.totalorder %s27, 1
      %p391 = scmp.ne.s32.totalorder %s386, %s388
      %p392 = scmp.eq.s32.totalorder %s27, 0
      %p393 = por %p391, %p392
      %p394 = scmp.ne.s32.totalorder %s386, %s388
      %p395 = scmp.eq.s32.totalorder %s32, 1
      %p396 = por %p394, %p395
      %p397 = scmp.ne.s32.totalorder %s388, %s389
      %p398 = scmp.eq.s32.totalorder %s32, 0
      %p399 = por %p397, %p398
      %p400 = scmp.ne.s32.totalorder %s388, %s389
      %p401 = scmp.eq.s32.totalorder %s33, 1
      %p402 = por %p400, %p401
      %p404 = scmp.ne.s32.totalorder %s389, %s403
      %p405 = scmp.eq.s32.totalorder %s33, 0
      %p406 = por %p404, %p405
      %s407 = ssub.s32 %s27, %s34
      %p408 = scmp.eq.s32.totalorder %s407, 0
      %s410 = sadd.s32 %s409, 1
      %s411 = scalar_select %p408, %s409, %s410
      %p414 = pneg %p408
      %p415 = scmp.eq.s32.totalorder %s27, 1
      %p416 = por %p414, %p415
      %p417 = scmp.ne.s32.totalorder %s409, %s412
      %p418 = scmp.eq.s32.totalorder %s27, 0
      %p419 = por %p417, %p418
      %p420 = scmp.ne.s32.totalorder %s409, %s412
      %p421 = scmp.eq.s32.totalorder %s32, 1
      %p422 = por %p420, %p421
      %p423 = scmp.ne.s32.totalorder %s412, %s413
      %p424 = scmp.eq.s32.totalorder %s32, 0
      %p425 = por %p423, %p424
      %p426 = scmp.ne.s32.totalorder %s412, %s413
      %p427 = scmp.eq.s32.totalorder %s33, 1
      %p428 = por %p426, %p427
      %p430 = scmp.ne.s32.totalorder %s413, %s429
      %p431 = scmp.eq.s32.totalorder %s33, 0
      %p432 = por %p430, %p431
      %p433 = scmp.le.s32.totalorder 1, %s27
      %p434 = scmp.lt.s32.totalorder %s27, 3
      %p435 = pnand %p433, %p434
      %p436 = pneg %p435
      // Predicated region
      $region9: #{_lambda_.1} parent=5 // pred_check
        _
      $region10: #{_lambda_.1} parent=5 // pred_check_branch
        %438 = sbr.rel (%p435) target = $region12
      $region11: #{_lambda_.1} parent=5 // pred_region
        %s439 = ssub.s32 %s27, 1
        // Predicated region
        $region13: #{_lambda_.1} parent=11 // pred_check
          %p440 = pneg %p126
        $region14: #{_lambda_.1} parent=11 // pred_check_branch
          %442 = sbr.rel (%p440) target = $region16
        $region15: #{_lambda_.1} parent=11 // pred_region
          _
        $region16: #{_lambda_.1} parent=11 // pred_fallthru
          _
        // Predicated region
        $region17: #{_lambda_.1} parent=11 // pred_check
          %p443 = pneg %p147
        $region18: #{_lambda_.1} parent=11 // pred_check_branch
          %445 = sbr.rel (%p443) target = $region20
        $region19: #{_lambda_.1} parent=11 // pred_region
          _
        $region20: #{_lambda_.1} parent=11 // pred_fallthru
          _
        // Predicated region
        $region21: #{_lambda_.1} parent=11 // pred_check
          %p446 = pneg %p168
        $region22: #{_lambda_.1} parent=11 // pred_check_branch
          %448 = sbr.rel (%p446) target = $region24
        $region23: #{_lambda_.1} parent=11 // pred_region
          _
        $region24: #{_lambda_.1} parent=11 // pred_fallthru
          _
        // Predicated region
        $region25: #{_lambda_.1} parent=11 // pred_check
          %p449 = pneg %p189
        $region26: #{_lambda_.1} parent=11 // pred_check_branch
          %451 = sbr.rel (%p449) target = $region28
        $region27: #{_lambda_.1} parent=11 // pred_region
          _
        $region28: #{_lambda_.1} parent=11 // pred_fallthru
          _
        // Predicated region
        $region29: #{_lambda_.1} parent=11 // pred_check
          %p452 = pneg %p210
        $region30: #{_lambda_.1} parent=11 // pred_check_branch
          %454 = sbr.rel (%p452) target = $region32
        $region31: #{_lambda_.1} parent=11 // pred_region
          _
        $region32: #{_lambda_.1} parent=11 // pred_fallthru
          _
        // Predicated region
        $region33: #{_lambda_.1} parent=11 // pred_check
          %p455 = pneg %p231
        $region34: #{_lambda_.1} parent=11 // pred_check_branch
          %457 = sbr.rel (%p455) target = $region36
        $region35: #{_lambda_.1} parent=11 // pred_region
          _
        $region36: #{_lambda_.1} parent=11 // pred_fallthru
          _
        // Predicated region
        $region37: #{_lambda_.1} parent=11 // pred_check
          %p458 = pneg %p252
        $region38: #{_lambda_.1} parent=11 // pred_check_branch
          %460 = sbr.rel (%p458) target = $region40
        $region39: #{_lambda_.1} parent=11 // pred_region
          _
        $region40: #{_lambda_.1} parent=11 // pred_fallthru
          _
        // Predicated region
        $region41: #{_lambda_.1} parent=11 // pred_check
          %p461 = pneg %p273
        $region42: #{_lambda_.1} parent=11 // pred_check_branch
          %463 = sbr.rel (%p461) target = $region44
        $region43: #{_lambda_.1} parent=11 // pred_region
          _
        $region44: #{_lambda_.1} parent=11 // pred_fallthru
          _
        // Predicated region
        $region45: #{_lambda_.1} parent=11 // pred_check
          %p464 = pneg %p294
        $region46: #{_lambda_.1} parent=11 // pred_check_branch
          %466 = sbr.rel (%p464) target = $region48
        $region47: #{_lambda_.1} parent=11 // pred_region
          _
        $region48: #{_lambda_.1} parent=11 // pred_fallthru
          _
        // Predicated region
        $region49: #{_lambda_.1} parent=11 // pred_check
          %p467 = pneg %p315
        $region50: #{_lambda_.1} parent=11 // pred_check_branch
          %469 = sbr.rel (%p467) target = $region52
        $region51: #{_lambda_.1} parent=11 // pred_region
          _
        $region52: #{_lambda_.1} parent=11 // pred_fallthru
          _
        // Predicated region
        $region53: #{_lambda_.1} parent=11 // pred_check
          %p470 = pneg %p336
        $region54: #{_lambda_.1} parent=11 // pred_check_branch
          %472 = sbr.rel (%p470) target = $region56
        $region55: #{_lambda_.1} parent=11 // pred_region
          _
        $region56: #{_lambda_.1} parent=11 // pred_fallthru
          _
        // Predicated region
        $region57: #{_lambda_.1} parent=11 // pred_check
          %p473 = pneg %p357
        $region58: #{_lambda_.1} parent=11 // pred_check_branch
          %475 = sbr.rel (%p473) target = $region60
        $region59: #{_lambda_.1} parent=11 // pred_region
          _
        $region60: #{_lambda_.1} parent=11 // pred_fallthru
          _
        // Predicated region
        $region61: #{_lambda_.1} parent=11 // pred_check
          %p476 = pneg %p378
        $region62: #{_lambda_.1} parent=11 // pred_check_branch
          %478 = sbr.rel (%p476) target = $region64
        $region63: #{_lambda_.1} parent=11 // pred_region
          %s480 = ssub.s32 512, 512
          %481 = vsyncadd [#allocation3], %s480
          %s482 = sshll.u32 [#allocation2], 4
          %s483 = int_to_ptr.vmem [resolvable:$true] %s482
          %488 = dma.hbm_to_vmem [thread:$0]  %s15, 512, %s483, [#allocation3], 128, 128, 8
        $region64: #{_lambda_.1} parent=11 // pred_fallthru
          _
        // Predicated region
        $region65: #{_lambda_.1} parent=11 // pred_check
          %p489 = pneg %p399
        $region66: #{_lambda_.1} parent=11 // pred_check_branch
          %491 = sbr.rel (%p489) target = $region68
        $region67: #{_lambda_.1} parent=11 // pred_region
          _
        $region68: #{_lambda_.1} parent=11 // pred_fallthru
          _
      $region12: #{_lambda_.1} parent=5 // pred_fallthru
        _
      %p492 = scmp.lt.s32.totalorder %s27, 2
      // Predicated region
      $region69: #{_lambda_.1} parent=5 // pred_check
        %p493 = pneg %p492
      $region70: #{_lambda_.1} parent=5 // pred_check_branch
        %495 = sbr.rel (%p493) target = $region72
      $region71: #{_lambda_.1} parent=5 // pred_region
        // Predicated region
        $region73: #{_lambda_.1} parent=71 // pred_check
          %p496 = pneg %p47
        $region74: #{_lambda_.1} parent=71 // pred_check_branch
          %498 = sbr.rel (%p496) target = $region76
        $region75: #{_lambda_.1} parent=71 // pred_region
          %p499 = scmp.lt.s32.totalorder %s27, 1
          %s500 = scalar_select %p499, %s27, 1
          %s501 = smul.addr %s500, 8
          %s502 = scalar_lea.vmem %s0, %s501
        $region76: #{_lambda_.1} parent=71 // pred_fallthru
          _
        // Predicated region
        $region77: #{_lambda_.1} parent=71 // pred_check
          %p503 = pneg %p73
        $region78: #{_lambda_.1} parent=71 // pred_check_branch
          %505 = sbr.rel (%p503) target = $region80
        $region79: #{_lambda_.1} parent=71 // pred_region
          %p506 = scmp.lt.s32.totalorder %s27, 1
          %s507 = scalar_select %p506, %s27, 1
          %s508 = smul.addr %s507, 8
          %s509 = scalar_lea.vmem %s1, %s508
        $region80: #{_lambda_.1} parent=71 // pred_fallthru
          _
        // Predicated region
        $region81: #{_lambda_.1} parent=71 // pred_check
          %p510 = pneg %p99
        $region82: #{_lambda_.1} parent=71 // pred_check_branch
          %512 = sbr.rel (%p510) target = $region84
        $region83: #{_lambda_.1} parent=71 // pred_region
          %p513 = scmp.lt.s32.totalorder %s27, 1
          %s514 = scalar_select %p513, %s27, 1
          %s515 = scalar_lea.vmem %s2, %s514
        $region84: #{_lambda_.1} parent=71 // pred_fallthru
          _
      $region72: #{_lambda_.1} parent=5 // pred_fallthru
        _
      %p516 = scmp.le.s32.totalorder 1, %s27
      %p517 = scmp.lt.s32.totalorder %s27, 3
      %p518 = pnand %p516, %p517
      %p519 = pneg %p518
      // Predicated region
      $region85: #{_lambda_.1} parent=5 // pred_check
        _
      $region86: #{_lambda_.1} parent=5 // pred_check_branch
        %521 = sbr.rel (%p518) target = $region88
      $region87: #{_lambda_.1} parent=5 // pred_region
        %s522 = ssub.s32 %s27, 1
        // Predicated region
        $region89: #{_lambda_.1} parent=87 // pred_check
          %p523 = pneg %p378
        $region90: #{_lambda_.1} parent=87 // pred_check_branch
          %525 = sbr.rel (%p523) target = $region92
        $region91: #{_lambda_.1} parent=87 // pred_region
          %526 = dma.done [#allocation3], 512
        $region92: #{_lambda_.1} parent=87 // pred_fallthru
          _
        %p527 = scmp.lt.s32.totalorder %s32, 1
        %s528 = scalar_select %p527, %s32, 1
        %s529 = smul.addr %s528, 8
        %s530 = scalar_lea.vmem %s0, %s529
        %p531 = pneg %p53
        %p532 = pneg %p50
        %p533 = scmp.lt.s32.totalorder %s32, 1
        %s534 = scalar_select %p533, %s32, 1
        %s535 = smul.addr %s534, 8
        %s536 = scalar_lea.vmem %s1, %s535
        %p537 = pneg %p79
        %p538 = pneg %p76
        %p539 = scmp.lt.s32.totalorder %s32, 1
        %s540 = scalar_select %p539, %s32, 1
        %s541 = scalar_lea.vmem %s2, %s540
        %p542 = pneg %p105
        %p543 = pneg %p102
        %p544 = pneg %p126
        %p545 = pneg %p123
        %p546 = pneg %p147
        %p547 = pneg %p144
        %p548 = pneg %p168
        %p549 = pneg %p165
        %p550 = pneg %p189
        %p551 = pneg %p186
        %p552 = pneg %p210
        %p553 = pneg %p207
        %p554 = pneg %p231
        %p555 = pneg %p228
        %p556 = pneg %p252
        %p557 = pneg %p249
        %p558 = pneg %p273
        %p559 = pneg %p270
        %p560 = pneg %p294
        %p561 = pneg %p291
        %p562 = pneg %p315
        %p563 = pneg %p312
        %p564 = pneg %p336
        %p565 = pneg %p333
        %p566 = pneg %p357
        %p567 = pneg %p354
        %p568 = pneg %p378
        %p569 = pneg %p375
        %p570 = pneg %p399
        %p571 = pneg %p396
        %p572 = pneg %p425
        %p573 = pneg %p422
        %s574 = sand.u32 %s412, 1
        %s575 = scalar_lea.sflag [#allocation4], %s574
        %s576 = sand.u32 %s412, 1
        %s577 = smul.addr %s576, 8
        %s578 = scalar_lea.vmem [#allocation5], %s577
        %p579 = scmp.lt.s32.totalorder %s32, 1
        %s580 = scalar_select %p579, %s32, 1
        %s581 = smul.addr %s580, 8
        %s582 = scalar_lea.vmem %s0, %s581
        %p583 = scmp.lt.s32.totalorder %s32, 1
        %s584 = scalar_select %p583, %s32, 1
        %s585 = smul.addr %s584, 8
        %s586 = scalar_lea.vmem %s1, %s585
        %p587 = scmp.lt.s32.totalorder %s32, 1
        %s588 = scalar_select %p587, %s32, 1
        %s589 = scalar_lea.vmem %s2, %s588
        %v590 = vld [vmem:[%s589] sm:$0x1]
        %v591 = vld [vmem:[%s582] sm:$0xff]
        %v592 = vld [vmem:[%s3] sm:$0xff]
        %v593 = vld [vmem:[%s3 + $0x8] sm:$0xff]
        %v594 = vld [vmem:[%s3 + $0x10] sm:$0xff]
        %v595 = vld [vmem:[%s3 + $0x18] sm:$0xff]
        %v596 = vld [vmem:[%s4] sm:$0xff]
        %v597 = vld [vmem:[%s4 + $0x8] sm:$0xff]
        %v598 = vld [vmem:[%s4 + $0x10] sm:$0xff]
        %v599 = vld [vmem:[%s4 + $0x18] sm:$0xff]
        %v600 = vld [vmem:[%s4 + $0x20] sm:$0xff]
        %v601 = vld [vmem:[%s4 + $0x28] sm:$0xff]
        %v602 = vld [vmem:[%s4 + $0x30] sm:$0xff]
        %v603 = vld [vmem:[%s4 + $0x38] sm:$0xff]
        %v604 = vld [vmem:[%s7] ss:$8 sm:$0x3]
        %s605 = scalar_lea.vmem %s7, 1
        %v606 = vld [vmem:[%s605] ss:$8 sm:$0x3]
        %s607 = scalar_lea.vmem %s7, 2
        %v608 = vld [vmem:[%s607] ss:$8 sm:$0x3]
        %v610 = vlaneseq
        %v611 = vshrl.u32 %v610, 7
        %v612 = vsub.s32 0, %v611
        %v613 = vrot.slane %v604, %v612
        %vm615 = vcmask 261120
        %v617 = vsel %vm615, %v591, 0
        %619 = vmatprep.subr.mxu0 0.0
        %620 = vmatpush1.msra.mxu0 0.0
        %621 = vmatprep.subr.mxu0 0.0
        %622 = vmatpush1.msra.mxu0 0.0
        %623 = vmatprep.subr.mxu0 0.0
        %624 = vmatpush1.msra.mxu0 0.0
        %625 = vmatprep.subr.mxu0 0.0
        %626 = vmatpush1.msra.mxu0 0.0
        %627 = vmatprep.subr.mxu0 0.0
        %628 = vmatpush1.msra.mxu0 0.0
        %629 = vmatprep.subr.mxu0 0.0
        %630 = vmatpush1.msra.mxu0 0.0
        %631 = vmatprep.subr.mxu0 0.0
        %632 = vmatpush1.msra.mxu0 0.0
        %633 = vmatprep.subr.mxu0 0.0
        %634 = vmatpush1.msra.mxu0 0.0
        %635 = vmatprep.subr.mxu0 0.0
        %636 = vmatpush1.msra.mxu0 0.0
        %637 = vmatprep.subr.mxu0 0.0
        %638 = vmatpush1.msra.mxu0 0.0
        %639 = vmatprep.subr.mxu0 0.0
        %640 = vmatpush1.msra.mxu0 0.0
        %641 = vmatprep.subr.mxu0 0.0
        %642 = vmatpush1.msra.mxu0 0.0
        %643 = vmatprep.subr.mxu0 0.0
        %644 = vmatpush1.msra.mxu0 %v595
        %645 = vmatprep.subr.mxu0 0.0
        %646 = vmatpush1.msra.mxu0 %v594
        %647 = vmatprep.subr.mxu0 0.0
        %648 = vmatpush1.msra.mxu0 %v593
        %649 = vmatprep.subr.mxu0 0.0
        %650 = vmatpush1.msra.mxu0 %v592
        %651 = vmatprep.subr.mxu0 0.0
        %652 = vmatpush2.msra.mxu0 0.0
        %653 = vmatprep.subr.mxu0 0.0
        %654 = vmatpush2.msra.mxu0 0.0
        %655 = vmatprep.subr.mxu0 0.0
        %656 = vmatpush2.msra.mxu0 0.0
        %657 = vmatprep.subr.mxu0 0.0
        %658 = vmatpush2.msra.mxu0 0.0
        %659 = vmatprep.subr.mxu0 0.0
        %660 = vmatpush2.msra.mxu0 0.0
        %661 = vmatprep.subr.mxu0 0.0
        %662 = vmatpush2.msra.mxu0 0.0
        %663 = vmatprep.subr.mxu0 0.0
        %664 = vmatpush2.msra.mxu0 0.0
        %665 = vmatprep.subr.mxu0 0.0
        %666 = vmatpush2.msra.mxu0 0.0
        %667 = vmatprep.subr.mxu0 0.0
        %668 = vmatpush2.msra.mxu0 0.0
        %669 = vmatprep.subr.mxu0 0.0
        %670 = vmatpush2.msra.mxu0 0.0
        %671 = vmatprep.subr.mxu0 0.0
        %672 = vmatpush2.msra.mxu0 0.0
        %673 = vmatprep.subr.mxu0 0.0
        %674 = vmatpush2.msra.mxu0 0.0
        %675 = vmatprep.subr.mxu0 0.0
        %676 = vmatpush2.msra.mxu0 0.0
        %677 = vmatprep.subr.mxu0 0.0
        %678 = vmatpush2.msra.mxu0 0.0
        %679 = vmatprep.subr.mxu0 0.0
        %680 = vmatpush2.msra.mxu0 0.0
        %681 = vmatprep.subr.mxu0 0.0
        %682 = vmatpush2.msra.mxu0 0.0
        %683 = vmatprep.mubr.f32.mxu0 0.0
        %684 = vmatmul.mubr.f32.gmra.mxu0 %v617
        %v685 = vpop.f32.mrf.mxu0
        %v686 = vadd.f32 %v613, %v685
        %v687 = vpop.f32.mrf.mxu0
        %688 = vdwg.mxu0
        %v690 = vlaneseq
        %v691 = vshrl.u32 %v690, 7
        %v692 = vsub.s32 0, %v691
        %v693 = vrot.slane %v606, %v692
        %v694 = vlaneseq
        %v695 = vshrl.u32 %v694, 7
        %v696 = vsub.s32 1, %v695
        %v697 = vrot.slane %v606, %v696
        %700 = vmatprep.subr.mxu0 0.0
        %701 = vmatpush1.msra.mxu0 0.0
        %702 = vmatprep.subr.mxu0 0.0
        %703 = vmatpush1.msra.mxu0 0.0
        %704 = vmatprep.subr.mxu0 0.0
        %705 = vmatpush1.msra.mxu0 0.0
        %706 = vmatprep.subr.mxu0 0.0
        %707 = vmatpush1.msra.mxu0 0.0
        %708 = vmatprep.subr.mxu0 0.0
        %709 = vmatpush1.msra.mxu0 0.0
        %710 = vmatprep.subr.mxu0 0.0
        %711 = vmatpush1.msra.mxu0 0.0
        %712 = vmatprep.subr.mxu0 0.0
        %713 = vmatpush1.msra.mxu0 0.0
        %714 = vmatprep.subr.mxu0 0.0
        %715 = vmatpush1.msra.mxu0 0.0
        %716 = vmatprep.subr.mxu0 0.0
        %717 = vmatpush1.msra.mxu0 0.0
        %718 = vmatprep.subr.mxu0 0.0
        %719 = vmatpush1.msra.mxu0 0.0
        %720 = vmatprep.subr.mxu0 0.0
        %721 = vmatpush1.msra.mxu0 0.0
        %722 = vmatprep.subr.mxu0 0.0
        %723 = vmatpush1.msra.mxu0 0.0
        %724 = vmatprep.subr.mxu0 %v603
        %725 = vmatpush1.msra.mxu0 %v602
        %726 = vmatprep.subr.mxu0 %v601
        %727 = vmatpush1.msra.mxu0 %v600
        %728 = vmatprep.subr.mxu0 %v599
        %729 = vmatpush1.msra.mxu0 %v598
        %730 = vmatprep.subr.mxu0 %v597
        %731 = vmatpush1.msra.mxu0 %v596
        %732 = vmatprep.subr.mxu0 0.0
        %733 = vmatpush2.msra.mxu0 0.0
        %734 = vmatprep.subr.mxu0 0.0
        %735 = vmatpush2.msra.mxu0 0.0
        %736 = vmatprep.subr.mxu0 0.0
        %737 = vmatpush2.msra.mxu0 0.0
        %738 = vmatprep.subr.mxu0 0.0
        %739 = vmatpush2.msra.mxu0 0.0
        %740 = vmatprep.subr.mxu0 0.0
        %741 = vmatpush2.msra.mxu0 0.0
        %742 = vmatprep.subr.mxu0 0.0
        %743 = vmatpush2.msra.mxu0 0.0
        %744 = vmatprep.subr.mxu0 0.0
        %745 = vmatpush2.msra.mxu0 0.0
        %746 = vmatprep.subr.mxu0 0.0
        %747 = vmatpush2.msra.mxu0 0.0
        %748 = vmatprep.subr.mxu0 0.0
        %749 = vmatpush2.msra.mxu0 0.0
        %750 = vmatprep.subr.mxu0 0.0
        %751 = vmatpush2.msra.mxu0 0.0
        %752 = vmatprep.subr.mxu0 0.0
        %753 = vmatpush2.msra.mxu0 0.0
        %754 = vmatprep.subr.mxu0 0.0
        %755 = vmatpush2.msra.mxu0 0.0
        %756 = vmatprep.subr.mxu0 0.0
        %757 = vmatpush2.msra.mxu0 0.0
        %758 = vmatprep.subr.mxu0 0.0
        %759 = vmatpush2.msra.mxu0 0.0
        %760 = vmatprep.subr.mxu0 0.0
        %761 = vmatpush2.msra.mxu0 0.0
        %762 = vmatprep.subr.mxu0 0.0
        %763 = vmatpush2.msra.mxu0 0.0
        %764 = vmatprep.mubr.f32.mxu0 0.0
        %765 = vmatmul.mubr.f32.gmra.mxu0 %v617
        %v766 = vpop.f32.mrf.mxu0
        %v767 = vadd.f32 %v693, %v766
        %v768 = vpop.f32.mrf.mxu0
        %v769 = vadd.f32 %v697, %v768
        %770 = vdwg.mxu0
        %v772 = vlaneseq
        %v773 = vshrl.u32 %v772, 7
        %v774 = vsub.s32 0, %v773
        %v775 = vrot.slane %v590, %v774
        %vm777 = vcmask 64512
        %v779 = vsel %vm777, %v686, 0
        %v782 = vsel %vm777, %v767, 0
        %784 = vmatprep.subr.mxu0 0.0
        %785 = vmatpush1.xpose.msra.mxu0 0.0
        %786 = vmatprep.subr.mxu0 0.0
        %787 = vmatpush1.xpose.msra.mxu0 0.0
        %788 = vmatprep.subr.mxu0 0.0
        %789 = vmatpush1.xpose.msra.mxu0 0.0
        %790 = vmatprep.subr.mxu0 0.0
        %791 = vmatpush1.xpose.msra.mxu0 0.0
        %792 = vmatprep.subr.mxu0 0.0
        %793 = vmatpush1.xpose.msra.mxu0 0.0
        %794 = vmatprep.subr.mxu0 0.0
        %795 = vmatpush1.xpose.msra.mxu0 0.0
        %796 = vmatprep.subr.mxu0 0.0
        %797 = vmatpush1.xpose.msra.mxu0 0.0
        %798 = vmatprep.subr.mxu0 0.0
        %799 = vmatpush1.xpose.msra.mxu0 0.0
        %800 = vmatprep.subr.mxu0 0.0
        %801 = vmatpush1.xpose.msra.mxu0 0.0
        %802 = vmatprep.subr.mxu0 0.0
        %803 = vmatpush1.xpose.msra.mxu0 0.0
        %804 = vmatprep.subr.mxu0 0.0
        %805 = vmatpush1.xpose.msra.mxu0 0.0
        %806 = vmatprep.subr.mxu0 0.0
        %807 = vmatpush1.xpose.msra.mxu0 0.0
        %808 = vmatprep.subr.mxu0 0.0
        %809 = vmatpush1.xpose.msra.mxu0 0.0
        %810 = vmatprep.subr.mxu0 0.0
        %811 = vmatpush1.xpose.msra.mxu0 0.0
        %812 = vmatprep.subr.mxu0 0.0
        %813 = vmatpush1.xpose.msra.mxu0 0.0
        %814 = vmatprep.subr.mxu0 0.0
        %815 = vmatpush1.xpose.msra.mxu0 %v782
        %816 = vmatprep.subr.mxu0 0.0
        %817 = vmatpush2.xpose.msra.mxu0 0.0
        %818 = vmatprep.subr.mxu0 0.0
        %819 = vmatpush2.xpose.msra.mxu0 0.0
        %820 = vmatprep.subr.mxu0 0.0
        %821 = vmatpush2.xpose.msra.mxu0 0.0
        %822 = vmatprep.subr.mxu0 0.0
        %823 = vmatpush2.xpose.msra.mxu0 0.0
        %824 = vmatprep.subr.mxu0 0.0
        %825 = vmatpush2.xpose.msra.mxu0 0.0
        %826 = vmatprep.subr.mxu0 0.0
        %827 = vmatpush2.xpose.msra.mxu0 0.0
        %828 = vmatprep.subr.mxu0 0.0
        %829 = vmatpush2.xpose.msra.mxu0 0.0
        %830 = vmatprep.subr.mxu0 0.0
        %831 = vmatpush2.xpose.msra.mxu0 0.0
        %832 = vmatprep.subr.mxu0 0.0
        %833 = vmatpush2.xpose.msra.mxu0 0.0
        %834 = vmatprep.subr.mxu0 0.0
        %835 = vmatpush2.xpose.msra.mxu0 0.0
        %836 = vmatprep.subr.mxu0 0.0
        %837 = vmatpush2.xpose.msra.mxu0 0.0
        %838 = vmatprep.subr.mxu0 0.0
        %839 = vmatpush2.xpose.msra.mxu0 0.0
        %840 = vmatprep.subr.mxu0 0.0
        %841 = vmatpush2.xpose.msra.mxu0 0.0
        %842 = vmatprep.subr.mxu0 0.0
        %843 = vmatpush2.xpose.msra.mxu0 0.0
        %844 = vmatprep.subr.mxu0 0.0
        %845 = vmatpush2.xpose.msra.mxu0 0.0
        %846 = vmatprep.subr.mxu0 0.0
        %847 = vmatpush2.xpose.msra.mxu0 0.0
        %848 = vmatprep.mubr.f32.mxu0 0.0
        %849 = vmatmul.mubr.f32.gmra.mxu0 %v779
        %v850 = vpop.f32.mrf.mxu0
        %v851 = vadd.f32 %v775, %v850
        %v852 = vpop.f32.mrf.mxu0
        %853 = vdwg.mxu0
        %v854 = vsel %vm777, %v851, -inf
        %855 = vmax.xlane.f32.xlu0 %v854
        %v856 = vpop.xlane.xlu0 %855
        %v857 = vsub.f32 %v851, %v856
        %v858 = vmul.f32 %v857, 1.442695
        %v859 = vpow.pop %v858
        %v860 = vsel %vm777, %v859, 0.0
        %861 = vadd.xlane.f32.xlu0 %v860
        %v862 = vpop.xlane.xlu0 %861
        %v863 = vrcp.pop %v862
        %v864 = vmul.f32 %v859, %v863
        %865 = vrot.lane.b32.xlu0 %v686, 120
        %v866 = vpop.permute.xlu0 %865
        %867 = vrot.lane.b32.xlu0 %v767, 120
        %v868 = vpop.permute.xlu0 %867
        %v869 = vsel %vm777, %v866, 0
        %v871 = vsel %vm777, %v868, 0
        %873 = vmatprep.subr.mxu0 0.0
        %874 = vmatpush1.xpose.msra.mxu0 0.0
        %875 = vmatprep.subr.mxu0 0.0
        %876 = vmatpush1.xpose.msra.mxu0 0.0
        %877 = vmatprep.subr.mxu0 0.0
        %878 = vmatpush1.xpose.msra.mxu0 0.0
        %879 = vmatprep.subr.mxu0 0.0
        %880 = vmatpush1.xpose.msra.mxu0 0.0
        %881 = vmatprep.subr.mxu0 0.0
        %882 = vmatpush1.xpose.msra.mxu0 0.0
        %883 = vmatprep.subr.mxu0 0.0
        %884 = vmatpush1.xpose.msra.mxu0 0.0
        %885 = vmatprep.subr.mxu0 0.0
        %886 = vmatpush1.xpose.msra.mxu0 0.0
        %887 = vmatprep.subr.mxu0 0.0
        %888 = vmatpush1.xpose.msra.mxu0 0.0
        %889 = vmatprep.subr.mxu0 0.0
        %890 = vmatpush1.xpose.msra.mxu0 0.0
        %891 = vmatprep.subr.mxu0 0.0
        %892 = vmatpush1.xpose.msra.mxu0 0.0
        %893 = vmatprep.subr.mxu0 0.0
        %894 = vmatpush1.xpose.msra.mxu0 0.0
        %895 = vmatprep.subr.mxu0 0.0
        %896 = vmatpush1.xpose.msra.mxu0 0.0
        %897 = vmatprep.subr.mxu0 0.0
        %898 = vmatpush1.xpose.msra.mxu0 0.0
        %899 = vmatprep.subr.mxu0 0.0
        %900 = vmatpush1.xpose.msra.mxu0 0.0
        %901 = vmatprep.subr.mxu0 0.0
        %902 = vmatpush1.xpose.msra.mxu0 0.0
        %903 = vmatprep.subr.mxu0 0.0
        %904 = vmatpush1.xpose.msra.mxu0 %v871
        %905 = vmatprep.subr.mxu0 0.0
        %906 = vmatpush2.xpose.msra.mxu0 0.0
        %907 = vmatprep.subr.mxu0 0.0
        %908 = vmatpush2.xpose.msra.mxu0 0.0
        %909 = vmatprep.subr.mxu0 0.0
        %910 = vmatpush2.xpose.msra.mxu0 0.0
        %911 = vmatprep.subr.mxu0 0.0
        %912 = vmatpush2.xpose.msra.mxu0 0.0
        %913 = vmatprep.subr.mxu0 0.0
        %914 = vmatpush2.xpose.msra.mxu0 0.0
        %915 = vmatprep.subr.mxu0 0.0
        %916 = vmatpush2.xpose.msra.mxu0 0.0
        %917 = vmatprep.subr.mxu0 0.0
        %918 = vmatpush2.xpose.msra.mxu0 0.0
        %919 = vmatprep.subr.mxu0 0.0
        %920 = vmatpush2.xpose.msra.mxu0 0.0
        %921 = vmatprep.subr.mxu0 0.0
        %922 = vmatpush2.xpose.msra.mxu0 0.0
        %923 = vmatprep.subr.mxu0 0.0
        %924 = vmatpush2.xpose.msra.mxu0 0.0
        %925 = vmatprep.subr.mxu0 0.0
        %926 = vmatpush2.xpose.msra.mxu0 0.0
        %927 = vmatprep.subr.mxu0 0.0
        %928 = vmatpush2.xpose.msra.mxu0 0.0
        %929 = vmatprep.subr.mxu0 0.0
        %930 = vmatpush2.xpose.msra.mxu0 0.0
        %931 = vmatprep.subr.mxu0 0.0
        %932 = vmatpush2.xpose.msra.mxu0 0.0
        %933 = vmatprep.subr.mxu0 0.0
        %934 = vmatpush2.xpose.msra.mxu0 0.0
        %935 = vmatprep.subr.mxu0 0.0
        %936 = vmatpush2.xpose.msra.mxu0 0.0
        %937 = vmatprep.mubr.f32.mxu0 0.0
        %938 = vmatmul.mubr.f32.gmra.mxu0 %v869
        %v939 = vpop.f32.mrf.mxu0
        %v940 = vadd.f32 %v775, %v939
        %v941 = vpop.f32.mrf.mxu0
        %942 = vdwg.mxu0
        %v943 = vsel %vm777, %v940, -inf
        %944 = vmax.xlane.f32.xlu0 %v943
        %v945 = vpop.xlane.xlu0 %944
        %v946 = vsub.f32 %v940, %v945
        %v947 = vmul.f32 %v946, 1.442695
        %v948 = vpow.pop %v947
        %v949 = vsel %vm777, %v948, 0.0
        %950 = vadd.xlane.f32.xlu0 %v949
        %v951 = vpop.xlane.xlu0 %950
        %v952 = vrcp.pop %v951
        %v953 = vmul.f32 %v948, %v952
        %954 = vrot.lane.b32.xlu0 %v767, 64
        %v955 = vpop.permute.xlu0 %954
        %v958 = vsel %vm777, %v953, 0
        %960 = vmatprep.subr.mxu0 0.0
        %961 = vmatpush1.msra.mxu0 0.0
        %962 = vmatprep.subr.mxu0 0.0
        %963 = vmatpush1.msra.mxu0 0.0
        %964 = vmatprep.subr.mxu0 0.0
        %965 = vmatpush1.msra.mxu0 0.0
        %966 = vmatprep.subr.mxu0 0.0
        %967 = vmatpush1.msra.mxu0 0.0
        %968 = vmatprep.subr.mxu0 0.0
        %969 = vmatpush1.msra.mxu0 0.0
        %970 = vmatprep.subr.mxu0 0.0
        %971 = vmatpush1.msra.mxu0 0.0
        %972 = vmatprep.subr.mxu0 0.0
        %973 = vmatpush1.msra.mxu0 0.0
        %974 = vmatprep.subr.mxu0 0.0
        %975 = vmatpush1.msra.mxu0 0.0
        %976 = vmatprep.subr.mxu0 0.0
        %977 = vmatpush1.msra.mxu0 0.0
        %978 = vmatprep.subr.mxu0 0.0
        %979 = vmatpush1.msra.mxu0 0.0
        %980 = vmatprep.subr.mxu0 0.0
        %981 = vmatpush1.msra.mxu0 0.0
        %982 = vmatprep.subr.mxu0 0.0
        %983 = vmatpush1.msra.mxu0 0.0
        %984 = vmatprep.subr.mxu0 0.0
        %985 = vmatpush1.msra.mxu0 0.0
        %986 = vmatprep.subr.mxu0 0.0
        %987 = vmatpush1.msra.mxu0 0.0
        %988 = vmatprep.subr.mxu0 0.0
        %989 = vmatpush1.msra.mxu0 0.0
        %990 = vmatprep.subr.mxu0 0.0
        %991 = vmatpush1.msra.mxu0 %v955
        %992 = vmatprep.subr.mxu0 0.0
        %993 = vmatpush2.msra.mxu0 0.0
        %994 = vmatprep.subr.mxu0 0.0
        %995 = vmatpush2.msra.mxu0 0.0
        %996 = vmatprep.subr.mxu0 0.0
        %997 = vmatpush2.msra.mxu0 0.0
        %998 = vmatprep.subr.mxu0 0.0
        %999 = vmatpush2.msra.mxu0 0.0
        %1000 = vmatprep.subr.mxu0 0.0
        %1001 = vmatpush2.msra.mxu0 0.0
        %1002 = vmatprep.subr.mxu0 0.0
        %1003 = vmatpush2.msra.mxu0 0.0
        %1004 = vmatprep.subr.mxu0 0.0
        %1005 = vmatpush2.msra.mxu0 0.0
        %1006 = vmatprep.subr.mxu0 0.0
        %1007 = vmatpush2.msra.mxu0 0.0
        %1008 = vmatprep.subr.mxu0 0.0
        %1009 = vmatpush2.msra.mxu0 0.0
        %1010 = vmatprep.subr.mxu0 0.0
        %1011 = vmatpush2.msra.mxu0 0.0
        %1012 = vmatprep.subr.mxu0 0.0
        %1013 = vmatpush2.msra.mxu0 0.0
        %1014 = vmatprep.subr.mxu0 0.0
        %1015 = vmatpush2.msra.mxu0 0.0
        %1016 = vmatprep.subr.mxu0 0.0
        %1017 = vmatpush2.msra.mxu0 0.0
        %1018 = vmatprep.subr.mxu0 0.0
        %1019 = vmatpush2.msra.mxu0 0.0
        %1020 = vmatprep.subr.mxu0 0.0
        %1021 = vmatpush2.msra.mxu0 0.0
        %1022 = vmatprep.subr.mxu0 0.0
        %1023 = vmatpush2.msra.mxu0 0.0
        %1024 = vmatprep.mubr.f32.mxu0 0.0
        %1025 = vmatmul.mubr.f32.gmra.mxu0 %v958
        %v1026 = vpop.f32.mrf.mxu0
        %v1027 = vadd.f32 0.0, %v1026
        %v1028 = vpop.f32.mrf.mxu0
        %1029 = vdwg.mxu0
        %1030 = vrot.lane.b32.xlu0 %v767, 96
        %v1031 = vpop.permute.xlu0 %1030
        %v1034 = vsel %vm777, %v864, 0
        %1036 = vmatprep.subr.mxu0 0.0
        %1037 = vmatpush1.msra.mxu0 0.0
        %1038 = vmatprep.subr.mxu0 0.0
        %1039 = vmatpush1.msra.mxu0 0.0
        %1040 = vmatprep.subr.mxu0 0.0
        %1041 = vmatpush1.msra.mxu0 0.0
        %1042 = vmatprep.subr.mxu0 0.0
        %1043 = vmatpush1.msra.mxu0 0.0
        %1044 = vmatprep.subr.mxu0 0.0
        %1045 = vmatpush1.msra.mxu0 0.0
        %1046 = vmatprep.subr.mxu0 0.0
        %1047 = vmatpush1.msra.mxu0 0.0
        %1048 = vmatprep.subr.mxu0 0.0
        %1049 = vmatpush1.msra.mxu0 0.0
        %1050 = vmatprep.subr.mxu0 0.0
        %1051 = vmatpush1.msra.mxu0 0.0
        %1052 = vmatprep.subr.mxu0 0.0
        %1053 = vmatpush1.msra.mxu0 0.0
        %1054 = vmatprep.subr.mxu0 0.0
        %1055 = vmatpush1.msra.mxu0 0.0
        %1056 = vmatprep.subr.mxu0 0.0
        %1057 = vmatpush1.msra.mxu0 0.0
        %1058 = vmatprep.subr.mxu0 0.0
        %1059 = vmatpush1.msra.mxu0 0.0
        %1060 = vmatprep.subr.mxu0 0.0
        %1061 = vmatpush1.msra.mxu0 0.0
        %1062 = vmatprep.subr.mxu0 0.0
        %1063 = vmatpush1.msra.mxu0 0.0
        %1064 = vmatprep.subr.mxu0 0.0
        %1065 = vmatpush1.msra.mxu0 0.0
        %1066 = vmatprep.subr.mxu0 0.0
        %1067 = vmatpush1.msra.mxu0 %v1031
        %1068 = vmatprep.subr.mxu0 0.0
        %1069 = vmatpush2.msra.mxu0 0.0
        %1070 = vmatprep.subr.mxu0 0.0
        %1071 = vmatpush2.msra.mxu0 0.0
        %1072 = vmatprep.subr.mxu0 0.0
        %1073 = vmatpush2.msra.mxu0 0.0
        %1074 = vmatprep.subr.mxu0 0.0
        %1075 = vmatpush2.msra.mxu0 0.0
        %1076 = vmatprep.subr.mxu0 0.0
        %1077 = vmatpush2.msra.mxu0 0.0
        %1078 = vmatprep.subr.mxu0 0.0
        %1079 = vmatpush2.msra.mxu0 0.0
        %1080 = vmatprep.subr.mxu0 0.0
        %1081 = vmatpush2.msra.mxu0 0.0
        %1082 = vmatprep.subr.mxu0 0.0
        %1083 = vmatpush2.msra.mxu0 0.0
        %1084 = vmatprep.subr.mxu0 0.0
        %1085 = vmatpush2.msra.mxu0 0.0
        %1086 = vmatprep.subr.mxu0 0.0
        %1087 = vmatpush2.msra.mxu0 0.0
        %1088 = vmatprep.subr.mxu0 0.0
        %1089 = vmatpush2.msra.mxu0 0.0
        %1090 = vmatprep.subr.mxu0 0.0
        %1091 = vmatpush2.msra.mxu0 0.0
        %1092 = vmatprep.subr.mxu0 0.0
        %1093 = vmatpush2.msra.mxu0 0.0
        %1094 = vmatprep.subr.mxu0 0.0
        %1095 = vmatpush2.msra.mxu0 0.0
        %1096 = vmatprep.subr.mxu0 0.0
        %1097 = vmatpush2.msra.mxu0 0.0
        %1098 = vmatprep.subr.mxu0 0.0
        %1099 = vmatpush2.msra.mxu0 0.0
        %1100 = vmatprep.mubr.f32.mxu0 0.0
        %1101 = vmatmul.mubr.f32.gmra.mxu0 %v1034
        %v1102 = vpop.f32.mrf.mxu0
        %v1103 = vadd.f32 %v1027, %v1102
        %v1104 = vpop.f32.mrf.mxu0
        %1105 = vdwg.mxu0
        %1106 = vrot.lane.b32.xlu0 %v686, 112
        %v1107 = vpop.permute.xlu0 %1106
        %1108 = vrot.lane.b32.xlu0 %v767, 112
        %v1109 = vpop.permute.xlu0 %1108
        %v1110 = vsel %vm777, %v1107, 0
        %v1112 = vsel %vm777, %v1109, 0
        %1114 = vmatprep.subr.mxu0 0.0
        %1115 = vmatpush1.xpose.msra.mxu0 0.0
        %1116 = vmatprep.subr.mxu0 0.0
        %1117 = vmatpush1.xpose.msra.mxu0 0.0
        %1118 = vmatprep.subr.mxu0 0.0
        %1119 = vmatpush1.xpose.msra.mxu0 0.0
        %1120 = vmatprep.subr.mxu0 0.0
        %1121 = vmatpush1.xpose.msra.mxu0 0.0
        %1122 = vmatprep.subr.mxu0 0.0
        %1123 = vmatpush1.xpose.msra.mxu0 0.0
        %1124 = vmatprep.subr.mxu0 0.0
        %1125 = vmatpush1.xpose.msra.mxu0 0.0
        %1126 = vmatprep.subr.mxu0 0.0
        %1127 = vmatpush1.xpose.msra.mxu0 0.0
        %1128 = vmatprep.subr.mxu0 0.0
        %1129 = vmatpush1.xpose.msra.mxu0 0.0
        %1130 = vmatprep.subr.mxu0 0.0
        %1131 = vmatpush1.xpose.msra.mxu0 0.0
        %1132 = vmatprep.subr.mxu0 0.0
        %1133 = vmatpush1.xpose.msra.mxu0 0.0
        %1134 = vmatprep.subr.mxu0 0.0
        %1135 = vmatpush1.xpose.msra.mxu0 0.0
        %1136 = vmatprep.subr.mxu0 0.0
        %1137 = vmatpush1.xpose.msra.mxu0 0.0
        %1138 = vmatprep.subr.mxu0 0.0
        %1139 = vmatpush1.xpose.msra.mxu0 0.0
        %1140 = vmatprep.subr.mxu0 0.0
        %1141 = vmatpush1.xpose.msra.mxu0 0.0
        %1142 = vmatprep.subr.mxu0 0.0
        %1143 = vmatpush1.xpose.msra.mxu0 0.0
        %1144 = vmatprep.subr.mxu0 0.0
        %1145 = vmatpush1.xpose.msra.mxu0 %v1112
        %1146 = vmatprep.subr.mxu0 0.0
        %1147 = vmatpush2.xpose.msra.mxu0 0.0
        %1148 = vmatprep.subr.mxu0 0.0
        %1149 = vmatpush2.xpose.msra.mxu0 0.0
        %1150 = vmatprep.subr.mxu0 0.0
        %1151 = vmatpush2.xpose.msra.mxu0 0.0
        %1152 = vmatprep.subr.mxu0 0.0
        %1153 = vmatpush2.xpose.msra.mxu0 0.0
        %1154 = vmatprep.subr.mxu0 0.0
        %1155 = vmatpush2.xpose.msra.mxu0 0.0
        %1156 = vmatprep.subr.mxu0 0.0
        %1157 = vmatpush2.xpose.msra.mxu0 0.0
        %1158 = vmatprep.subr.mxu0 0.0
        %1159 = vmatpush2.xpose.msra.mxu0 0.0
        %1160 = vmatprep.subr.mxu0 0.0
        %1161 = vmatpush2.xpose.msra.mxu0 0.0
        %1162 = vmatprep.subr.mxu0 0.0
        %1163 = vmatpush2.xpose.msra.mxu0 0.0
        %1164 = vmatprep.subr.mxu0 0.0
        %1165 = vmatpush2.xpose.msra.mxu0 0.0
        %1166 = vmatprep.subr.mxu0 0.0
        %1167 = vmatpush2.xpose.msra.mxu0 0.0
        %1168 = vmatprep.subr.mxu0 0.0
        %1169 = vmatpush2.xpose.msra.mxu0 0.0
        %1170 = vmatprep.subr.mxu0 0.0
        %1171 = vmatpush2.xpose.msra.mxu0 0.0
        %1172 = vmatprep.subr.mxu0 0.0
        %1173 = vmatpush2.xpose.msra.mxu0 0.0
        %1174 = vmatprep.subr.mxu0 0.0
        %1175 = vmatpush2.xpose.msra.mxu0 0.0
        %1176 = vmatprep.subr.mxu0 0.0
        %1177 = vmatpush2.xpose.msra.mxu0 0.0
        %1178 = vmatprep.mubr.f32.mxu0 0.0
        %1179 = vmatmul.mubr.f32.gmra.mxu0 %v1110
        %v1180 = vpop.f32.mrf.mxu0
        %v1181 = vadd.f32 %v775, %v1180
        %v1182 = vpop.f32.mrf.mxu0
        %1183 = vdwg.mxu0
        %v1184 = vsel %vm777, %v1181, -inf
        %1185 = vmax.xlane.f32.xlu0 %v1184
        %v1186 = vpop.xlane.xlu0 %1185
        %v1187 = vsub.f32 %v1181, %v1186
        %v1188 = vmul.f32 %v1187, 1.442695
        %v1189 = vpow.pop %v1188
        %v1190 = vsel %vm777, %v1189, 0.0
        %1191 = vadd.xlane.f32.xlu0 %v1190
        %v1192 = vpop.xlane.xlu0 %1191
        %v1193 = vrcp.pop %v1192
        %v1194 = vmul.f32 %v1189, %v1193
        %1195 = vrot.lane.b32.xlu0 %v767, 32
        %v1196 = vpop.permute.xlu0 %1195
        %v1199 = vsel %vm777, %v1194, 0
        %1201 = vmatprep.subr.mxu0 0.0
        %1202 = vmatpush1.msra.mxu0 0.0
        %1203 = vmatprep.subr.mxu0 0.0
        %1204 = vmatpush1.msra.mxu0 0.0
        %1205 = vmatprep.subr.mxu0 0.0
        %1206 = vmatpush1.msra.mxu0 0.0
        %1207 = vmatprep.subr.mxu0 0.0
        %1208 = vmatpush1.msra.mxu0 0.0
        %1209 = vmatprep.subr.mxu0 0.0
        %1210 = vmatpush1.msra.mxu0 0.0
        %1211 = vmatprep.subr.mxu0 0.0
        %1212 = vmatpush1.msra.mxu0 0.0
        %1213 = vmatprep.subr.mxu0 0.0
        %1214 = vmatpush1.msra.mxu0 0.0
        %1215 = vmatprep.subr.mxu0 0.0
        %1216 = vmatpush1.msra.mxu0 0.0
        %1217 = vmatprep.subr.mxu0 0.0
        %1218 = vmatpush1.msra.mxu0 0.0
        %1219 = vmatprep.subr.mxu0 0.0
        %1220 = vmatpush1.msra.mxu0 0.0
        %1221 = vmatprep.subr.mxu0 0.0
        %1222 = vmatpush1.msra.mxu0 0.0
        %1223 = vmatprep.subr.mxu0 0.0
        %1224 = vmatpush1.msra.mxu0 0.0
        %1225 = vmatprep.subr.mxu0 0.0
        %1226 = vmatpush1.msra.mxu0 0.0
        %1227 = vmatprep.subr.mxu0 0.0
        %1228 = vmatpush1.msra.mxu0 0.0
        %1229 = vmatprep.subr.mxu0 0.0
        %1230 = vmatpush1.msra.mxu0 0.0
        %1231 = vmatprep.subr.mxu0 0.0
        %1232 = vmatpush1.msra.mxu0 %v1196
        %1233 = vmatprep.subr.mxu0 0.0
        %1234 = vmatpush2.msra.mxu0 0.0
        %1235 = vmatprep.subr.mxu0 0.0
        %1236 = vmatpush2.msra.mxu0 0.0
        %1237 = vmatprep.subr.mxu0 0.0
        %1238 = vmatpush2.msra.mxu0 0.0
        %1239 = vmatprep.subr.mxu0 0.0
        %1240 = vmatpush2.msra.mxu0 0.0
        %1241 = vmatprep.subr.mxu0 0.0
        %1242 = vmatpush2.msra.mxu0 0.0
        %1243 = vmatprep.subr.mxu0 0.0
        %1244 = vmatpush2.msra.mxu0 0.0
        %1245 = vmatprep.subr.mxu0 0.0
        %1246 = vmatpush2.msra.mxu0 0.0
        %1247 = vmatprep.subr.mxu0 0.0
        %1248 = vmatpush2.msra.mxu0 0.0
        %1249 = vmatprep.subr.mxu0 0.0
        %1250 = vmatpush2.msra.mxu0 0.0
        %1251 = vmatprep.subr.mxu0 0.0
        %1252 = vmatpush2.msra.mxu0 0.0
        %1253 = vmatprep.subr.mxu0 0.0
        %1254 = vmatpush2.msra.mxu0 0.0
        %1255 = vmatprep.subr.mxu0 0.0
        %1256 = vmatpush2.msra.mxu0 0.0
        %1257 = vmatprep.subr.mxu0 0.0
        %1258 = vmatpush2.msra.mxu0 0.0
        %1259 = vmatprep.subr.mxu0 0.0
        %1260 = vmatpush2.msra.mxu0 0.0
        %1261 = vmatprep.subr.mxu0 0.0
        %1262 = vmatpush2.msra.mxu0 0.0
        %1263 = vmatprep.subr.mxu0 0.0
        %1264 = vmatpush2.msra.mxu0 0.0
        %1265 = vmatprep.mubr.f32.mxu0 0.0
        %1266 = vmatmul.mubr.f32.gmra.mxu0 %v1199
        %v1267 = vpop.f32.mrf.mxu0
        %v1268 = vadd.f32 0.0, %v1267
        %v1269 = vpop.f32.mrf.mxu0
        %1270 = vdwg.mxu0
        %v1271 = vadd.f32 %v1103, %v1268
        %1272 = vrot.lane.b32.xlu0 %v686, 104
        %v1273 = vpop.permute.xlu0 %1272
        %1274 = vrot.lane.b32.xlu0 %v767, 104
        %v1275 = vpop.permute.xlu0 %1274
        %v1276 = vsel %vm777, %v1273, 0
        %v1278 = vsel %vm777, %v1275, 0
        %1280 = vmatprep.subr.mxu0 0.0
        %1281 = vmatpush1.xpose.msra.mxu0 0.0
        %1282 = vmatprep.subr.mxu0 0.0
        %1283 = vmatpush1.xpose.msra.mxu0 0.0
        %1284 = vmatprep.subr.mxu0 0.0
        %1285 = vmatpush1.xpose.msra.mxu0 0.0
        %1286 = vmatprep.subr.mxu0 0.0
        %1287 = vmatpush1.xpose.msra.mxu0 0.0
        %1288 = vmatprep.subr.mxu0 0.0
        %1289 = vmatpush1.xpose.msra.mxu0 0.0
        %1290 = vmatprep.subr.mxu0 0.0
        %1291 = vmatpush1.xpose.msra.mxu0 0.0
        %1292 = vmatprep.subr.mxu0 0.0
        %1293 = vmatpush1.xpose.msra.mxu0 0.0
        %1294 = vmatprep.subr.mxu0 0.0
        %1295 = vmatpush1.xpose.msra.mxu0 0.0
        %1296 = vmatprep.subr.mxu0 0.0
        %1297 = vmatpush1.xpose.msra.mxu0 0.0
        %1298 = vmatprep.subr.mxu0 0.0
        %1299 = vmatpush1.xpose.msra.mxu0 0.0
        %1300 = vmatprep.subr.mxu0 0.0
        %1301 = vmatpush1.xpose.msra.mxu0 0.0
        %1302 = vmatprep.subr.mxu0 0.0
        %1303 = vmatpush1.xpose.msra.mxu0 0.0
        %1304 = vmatprep.subr.mxu0 0.0
        %1305 = vmatpush1.xpose.msra.mxu0 0.0
        %1306 = vmatprep.subr.mxu0 0.0
        %1307 = vmatpush1.xpose.msra.mxu0 0.0
        %1308 = vmatprep.subr.mxu0 0.0
        %1309 = vmatpush1.xpose.msra.mxu0 0.0
        %1310 = vmatprep.subr.mxu0 0.0
        %1311 = vmatpush1.xpose.msra.mxu0 %v1278
        %1312 = vmatprep.subr.mxu0 0.0
        %1313 = vmatpush2.xpose.msra.mxu0 0.0
        %1314 = vmatprep.subr.mxu0 0.0
        %1315 = vmatpush2.xpose.msra.mxu0 0.0
        %1316 = vmatprep.subr.mxu0 0.0
        %1317 = vmatpush2.xpose.msra.mxu0 0.0
        %1318 = vmatprep.subr.mxu0 0.0
        %1319 = vmatpush2.xpose.msra.mxu0 0.0
        %1320 = vmatprep.subr.mxu0 0.0
        %1321 = vmatpush2.xpose.msra.mxu0 0.0
        %1322 = vmatprep.subr.mxu0 0.0
        %1323 = vmatpush2.xpose.msra.mxu0 0.0
        %1324 = vmatprep.subr.mxu0 0.0
        %1325 = vmatpush2.xpose.msra.mxu0 0.0
        %1326 = vmatprep.subr.mxu0 0.0
        %1327 = vmatpush2.xpose.msra.mxu0 0.0
        %1328 = vmatprep.subr.mxu0 0.0
        %1329 = vmatpush2.xpose.msra.mxu0 0.0
        %1330 = vmatprep.subr.mxu0 0.0
        %1331 = vmatpush2.xpose.msra.mxu0 0.0
        %1332 = vmatprep.subr.mxu0 0.0
        %1333 = vmatpush2.xpose.msra.mxu0 0.0
        %1334 = vmatprep.subr.mxu0 0.0
        %1335 = vmatpush2.xpose.msra.mxu0 0.0
        %1336 = vmatprep.subr.mxu0 0.0
        %1337 = vmatpush2.xpose.msra.mxu0 0.0
        %1338 = vmatprep.subr.mxu0 0.0
        %1339 = vmatpush2.xpose.msra.mxu0 0.0
        %1340 = vmatprep.subr.mxu0 0.0
        %1341 = vmatpush2.xpose.msra.mxu0 0.0
        %1342 = vmatprep.subr.mxu0 0.0
        %1343 = vmatpush2.xpose.msra.mxu0 0.0
        %1344 = vmatprep.mubr.f32.mxu0 0.0
        %1345 = vmatmul.mubr.f32.gmra.mxu0 %v1276
        %v1346 = vpop.f32.mrf.mxu0
        %v1347 = vadd.f32 %v775, %v1346
        %v1348 = vpop.f32.mrf.mxu0
        %1349 = vdwg.mxu0
        %v1350 = vsel %vm777, %v1347, -inf
        %1351 = vmax.xlane.f32.xlu0 %v1350
        %v1352 = vpop.xlane.xlu0 %1351
        %v1353 = vsub.f32 %v1347, %v1352
        %v1354 = vmul.f32 %v1353, 1.442695
        %v1355 = vpow.pop %v1354
        %v1356 = vsel %vm777, %v1355, 0.0
        %1357 = vadd.xlane.f32.xlu0 %v1356
        %v1358 = vpop.xlane.xlu0 %1357
        %v1359 = vrcp.pop %v1358
        %v1360 = vmul.f32 %v1355, %v1359
        %v1362 = vsel %vm777, %v1360, 0
        %1364 = vmatprep.subr.mxu0 0.0
        %1365 = vmatpush1.msra.mxu0 0.0
        %1366 = vmatprep.subr.mxu0 0.0
        %1367 = vmatpush1.msra.mxu0 0.0
        %1368 = vmatprep.subr.mxu0 0.0
        %1369 = vmatpush1.msra.mxu0 0.0
        %1370 = vmatprep.subr.mxu0 0.0
        %1371 = vmatpush1.msra.mxu0 0.0
        %1372 = vmatprep.subr.mxu0 0.0
        %1373 = vmatpush1.msra.mxu0 0.0
        %1374 = vmatprep.subr.mxu0 0.0
        %1375 = vmatpush1.msra.mxu0 0.0
        %1376 = vmatprep.subr.mxu0 0.0
        %1377 = vmatpush1.msra.mxu0 0.0
        %1378 = vmatprep.subr.mxu0 0.0
        %1379 = vmatpush1.msra.mxu0 0.0
        %1380 = vmatprep.subr.mxu0 0.0
        %1381 = vmatpush1.msra.mxu0 0.0
        %1382 = vmatprep.subr.mxu0 0.0
        %1383 = vmatpush1.msra.mxu0 0.0
        %1384 = vmatprep.subr.mxu0 0.0
        %1385 = vmatpush1.msra.mxu0 0.0
        %1386 = vmatprep.subr.mxu0 0.0
        %1387 = vmatpush1.msra.mxu0 0.0
        %1388 = vmatprep.subr.mxu0 0.0
        %1389 = vmatpush1.msra.mxu0 0.0
        %1390 = vmatprep.subr.mxu0 0.0
        %1391 = vmatpush1.msra.mxu0 0.0
        %1392 = vmatprep.subr.mxu0 0.0
        %1393 = vmatpush1.msra.mxu0 0.0
        %1394 = vmatprep.subr.mxu0 0.0
        %1395 = vmatpush1.msra.mxu0 %v769
        %1396 = vmatprep.subr.mxu0 0.0
        %1397 = vmatpush2.msra.mxu0 0.0
        %1398 = vmatprep.subr.mxu0 0.0
        %1399 = vmatpush2.msra.mxu0 0.0
        %1400 = vmatprep.subr.mxu0 0.0
        %1401 = vmatpush2.msra.mxu0 0.0
        %1402 = vmatprep.subr.mxu0 0.0
        %1403 = vmatpush2.msra.mxu0 0.0
        %1404 = vmatprep.subr.mxu0 0.0
        %1405 = vmatpush2.msra.mxu0 0.0
        %1406 = vmatprep.subr.mxu0 0.0
        %1407 = vmatpush2.msra.mxu0 0.0
        %1408 = vmatprep.subr.mxu0 0.0
        %1409 = vmatpush2.msra.mxu0 0.0
        %1410 = vmatprep.subr.mxu0 0.0
        %1411 = vmatpush2.msra.mxu0 0.0
        %1412 = vmatprep.subr.mxu0 0.0
        %1413 = vmatpush2.msra.mxu0 0.0
        %1414 = vmatprep.subr.mxu0 0.0
        %1415 = vmatpush2.msra.mxu0 0.0
        %1416 = vmatprep.subr.mxu0 0.0
        %1417 = vmatpush2.msra.mxu0 0.0
        %1418 = vmatprep.subr.mxu0 0.0
        %1419 = vmatpush2.msra.mxu0 0.0
        %1420 = vmatprep.subr.mxu0 0.0
        %1421 = vmatpush2.msra.mxu0 0.0
        %1422 = vmatprep.subr.mxu0 0.0
        %1423 = vmatpush2.msra.mxu0 0.0
        %1424 = vmatprep.subr.mxu0 0.0
        %1425 = vmatpush2.msra.mxu0 0.0
        %1426 = vmatprep.subr.mxu0 0.0
        %1427 = vmatpush2.msra.mxu0 0.0
        %1428 = vmatprep.mubr.f32.mxu0 0.0
        %1429 = vmatmul.mubr.f32.gmra.mxu0 %v1362
        %v1430 = vpop.f32.mrf.mxu0
        %v1431 = vadd.f32 0.0, %v1430
        %v1432 = vpop.f32.mrf.mxu0
        %1433 = vdwg.mxu0
        %v1434 = vadd.f32 %v1271, %v1431
        %v1436 = vlaneseq
        %v1437 = vshrl.u32 %v1436, 7
        %v1438 = vsub.s32 0, %v1437
        %v1439 = vrot.slane %v608, %v1438
        %v1441 = vadd.f32 %v1434, %v1439
        %v1442 = vadd.f32 %v591, %v1441
        %s1443 = scalar_lea.vmem %s7, 3
        %v1444 = vld [vmem:[%s1443] ss:$8 sm:$0x3]
        %s1445 = scalar_lea.vmem %s7, 4
        %v1446 = vld [vmem:[%s1445] ss:$8 sm:$0x3]
        %v1447 = vsel %vm615, %v1442, 0.0
        %1448 = vadd.xlane.f32.xlu0 %v1447
        %v1449 = vpop.xlane.xlu0 %1448
        %v1450 = vrcp.pop 32.0
        %v1451 = vmul.f32 %v1449, %v1450
        %v1452 = vsub.f32 %v1442, %v1451
        %v1453 = vmul.f32 %v1452, %v1452
        %v1454 = vsel %vm615, %v1453, 0.0
        %1455 = vadd.xlane.f32.xlu0 %v1454
        %v1456 = vpop.xlane.xlu0 %1455
        %v1457 = vmul.f32 %v1456, %v1450
        %v1458 = vadd.f32 %v1457, 1e-05
        %v1459 = vrsqrt.pop %v1458
        %v1460 = vmul.f32 %v1452, %v1459
        %v1462 = vlaneseq
        %v1463 = vshrl.u32 %v1462, 7
        %v1464 = vsub.s32 0, %v1463
        %v1465 = vrot.slane %v1444, %v1464
        %v1467 = vmul.f32 %v1460, %v1465
        %v1469 = vlaneseq
        %v1470 = vshrl.u32 %v1469, 7
        %v1471 = vsub.s32 0, %v1470
        %v1472 = vrot.slane %v1446, %v1471
        %v1474 = vadd.f32 %v1467, %v1472
        %v1475 = vld [vmem:[%s5] sm:$0xff]
        %v1476 = vld [vmem:[%s5 + $0x8] sm:$0xff]
        %v1477 = vld [vmem:[%s5 + $0x10] sm:$0xff]
        %v1478 = vld [vmem:[%s5 + $0x18] sm:$0xff]
        %s1479 = scalar_lea.vmem %s7, 5
        %v1480 = vld [vmem:[%s1479] ss:$8 sm:$0x3]
        %v1481 = vld [vmem:[%s6] sm:$0xff]
        %v1482 = vld [vmem:[%s6 + $0x8] sm:$0xff]
        %v1483 = vld [vmem:[%s6 + $0x10] sm:$0xff]
        %v1484 = vld [vmem:[%s6 + $0x18] sm:$0xff]
        %v1485 = vld [vmem:[%s6 + $0x20] sm:$0xff]
        %v1486 = vld [vmem:[%s6 + $0x28] sm:$0xff]
        %v1487 = vld [vmem:[%s6 + $0x30] sm:$0xff]
        %v1488 = vld [vmem:[%s6 + $0x38] sm:$0xff]
        %s1489 = scalar_lea.vmem %s7, 6
        %v1490 = vld [vmem:[%s1489] ss:$8 sm:$0x3]
        %v1492 = vlaneseq
        %v1493 = vshrl.u32 %v1492, 7
        %v1494 = vsub.s32 0, %v1493
        %v1495 = vrot.slane %v1480, %v1494
        %v1498 = vsel %vm615, %v1474, 0
        %1500 = vmatprep.subr.mxu0 0.0
        %1501 = vmatpush1.msra.mxu0 0.0
        %1502 = vmatprep.subr.mxu0 0.0
        %1503 = vmatpush1.msra.mxu0 0.0
        %1504 = vmatprep.subr.mxu0 0.0
        %1505 = vmatpush1.msra.mxu0 0.0
        %1506 = vmatprep.subr.mxu0 0.0
        %1507 = vmatpush1.msra.mxu0 0.0
        %1508 = vmatprep.subr.mxu0 0.0
        %1509 = vmatpush1.msra.mxu0 0.0
        %1510 = vmatprep.subr.mxu0 0.0
        %1511 = vmatpush1.msra.mxu0 0.0
        %1512 = vmatprep.subr.mxu0 0.0
        %1513 = vmatpush1.msra.mxu0 0.0
        %1514 = vmatprep.subr.mxu0 0.0
        %1515 = vmatpush1.msra.mxu0 0.0
        %1516 = vmatprep.subr.mxu0 0.0
        %1517 = vmatpush1.msra.mxu0 0.0
        %1518 = vmatprep.subr.mxu0 0.0
        %1519 = vmatpush1.msra.mxu0 0.0
        %1520 = vmatprep.subr.mxu0 0.0
        %1521 = vmatpush1.msra.mxu0 0.0
        %1522 = vmatprep.subr.mxu0 0.0
        %1523 = vmatpush1.msra.mxu0 0.0
        %1524 = vmatprep.subr.mxu0 0.0
        %1525 = vmatpush1.msra.mxu0 %v1478
        %1526 = vmatprep.subr.mxu0 0.0
        %1527 = vmatpush1.msra.mxu0 %v1477
        %1528 = vmatprep.subr.mxu0 0.0
        %1529 = vmatpush1.msra.mxu0 %v1476
        %1530 = vmatprep.subr.mxu0 0.0
        %1531 = vmatpush1.msra.mxu0 %v1475
        %1532 = vmatprep.subr.mxu0 0.0
        %1533 = vmatpush2.msra.mxu0 0.0
        %1534 = vmatprep.subr.mxu0 0.0
        %1535 = vmatpush2.msra.mxu0 0.0
        %1536 = vmatprep.subr.mxu0 0.0
        %1537 = vmatpush2.msra.mxu0 0.0
        %1538 = vmatprep.subr.mxu0 0.0
        %1539 = vmatpush2.msra.mxu0 0.0
        %1540 = vmatprep.subr.mxu0 0.0
        %1541 = vmatpush2.msra.mxu0 0.0
        %1542 = vmatprep.subr.mxu0 0.0
        %1543 = vmatpush2.msra.mxu0 0.0
        %1544 = vmatprep.subr.mxu0 0.0
        %1545 = vmatpush2.msra.mxu0 0.0
        %1546 = vmatprep.subr.mxu0 0.0
        %1547 = vmatpush2.msra.mxu0 0.0
        %1548 = vmatprep.subr.mxu0 0.0
        %1549 = vmatpush2.msra.mxu0 0.0
        %1550 = vmatprep.subr.mxu0 0.0
        %1551 = vmatpush2.msra.mxu0 0.0
        %1552 = vmatprep.subr.mxu0 0.0
        %1553 = vmatpush2.msra.mxu0 0.0
        %1554 = vmatprep.subr.mxu0 0.0
        %1555 = vmatpush2.msra.mxu0 0.0
        %1556 = vmatprep.subr.mxu0 0.0
        %1557 = vmatpush2.msra.mxu0 0.0
        %1558 = vmatprep.subr.mxu0 0.0
        %1559 = vmatpush2.msra.mxu0 0.0
        %1560 = vmatprep.subr.mxu0 0.0
        %1561 = vmatpush2.msra.mxu0 0.0
        %1562 = vmatprep.subr.mxu0 0.0
        %1563 = vmatpush2.msra.mxu0 0.0
        %1564 = vmatprep.mubr.f32.mxu0 0.0
        %1565 = vmatmul.mubr.f32.gmra.mxu0 %v1498
        %v1566 = vpop.f32.mrf.mxu0
        %v1567 = vadd.f32 %v1495, %v1566
        %v1568 = vpop.f32.mrf.mxu0
        %1569 = vdwg.mxu0
        %v1570 = vmax.f32 %v1567, 0.0
        %v1572 = vlaneseq
        %v1573 = vshrl.u32 %v1572, 7
        %v1574 = vsub.s32 0, %v1573
        %v1575 = vrot.slane %v1490, %v1574
        %vm1577 = vcmask 523264
        %v1579 = vsel %vm1577, %v1570, 0
        %1581 = vmatprep.subr.mxu0 0.0
        %1582 = vmatpush1.msra.mxu0 0.0
        %1583 = vmatprep.subr.mxu0 0.0
        %1584 = vmatpush1.msra.mxu0 0.0
        %1585 = vmatprep.subr.mxu0 0.0
        %1586 = vmatpush1.msra.mxu0 0.0
        %1587 = vmatprep.subr.mxu0 0.0
        %1588 = vmatpush1.msra.mxu0 0.0
        %1589 = vmatprep.subr.mxu0 0.0
        %1590 = vmatpush1.msra.mxu0 0.0
        %1591 = vmatprep.subr.mxu0 0.0
        %1592 = vmatpush1.msra.mxu0 0.0
        %1593 = vmatprep.subr.mxu0 0.0
        %1594 = vmatpush1.msra.mxu0 0.0
        %1595 = vmatprep.subr.mxu0 0.0
        %1596 = vmatpush1.msra.mxu0 0.0
        %1597 = vmatprep.subr.mxu0 0.0
        %1598 = vmatpush1.msra.mxu0 %v1488
        %1599 = vmatprep.subr.mxu0 0.0
        %1600 = vmatpush1.msra.mxu0 %v1487
        %1601 = vmatprep.subr.mxu0 0.0
        %1602 = vmatpush1.msra.mxu0 %v1486
        %1603 = vmatprep.subr.mxu0 0.0
        %1604 = vmatpush1.msra.mxu0 %v1485
        %1605 = vmatprep.subr.mxu0 0.0
        %1606 = vmatpush1.msra.mxu0 %v1484
        %1607 = vmatprep.subr.mxu0 0.0
        %1608 = vmatpush1.msra.mxu0 %v1483
        %1609 = vmatprep.subr.mxu0 0.0
        %1610 = vmatpush1.msra.mxu0 %v1482
        %1611 = vmatprep.subr.mxu0 0.0
        %1612 = vmatpush1.msra.mxu0 %v1481
        %1613 = vmatprep.subr.mxu0 0.0
        %1614 = vmatpush2.msra.mxu0 0.0
        %1615 = vmatprep.subr.mxu0 0.0
        %1616 = vmatpush2.msra.mxu0 0.0
        %1617 = vmatprep.subr.mxu0 0.0
        %1618 = vmatpush2.msra.mxu0 0.0
        %1619 = vmatprep.subr.mxu0 0.0
        %1620 = vmatpush2.msra.mxu0 0.0
        %1621 = vmatprep.subr.mxu0 0.0
        %1622 = vmatpush2.msra.mxu0 0.0
        %1623 = vmatprep.subr.mxu0 0.0
        %1624 = vmatpush2.msra.mxu0 0.0
        %1625 = vmatprep.subr.mxu0 0.0
        %1626 = vmatpush2.msra.mxu0 0.0
        %1627 = vmatprep.subr.mxu0 0.0
        %1628 = vmatpush2.msra.mxu0 0.0
        %1629 = vmatprep.subr.mxu0 0.0
        %1630 = vmatpush2.msra.mxu0 0.0
        %1631 = vmatprep.subr.mxu0 0.0
        %1632 = vmatpush2.msra.mxu0 0.0
        %1633 = vmatprep.subr.mxu0 0.0
        %1634 = vmatpush2.msra.mxu0 0.0
        %1635 = vmatprep.subr.mxu0 0.0
        %1636 = vmatpush2.msra.mxu0 0.0
        %1637 = vmatprep.subr.mxu0 0.0
        %1638 = vmatpush2.msra.mxu0 0.0
        %1639 = vmatprep.subr.mxu0 0.0
        %1640 = vmatpush2.msra.mxu0 0.0
        %1641 = vmatprep.subr.mxu0 0.0
        %1642 = vmatpush2.msra.mxu0 0.0
        %1643 = vmatprep.subr.mxu0 0.0
        %1644 = vmatpush2.msra.mxu0 0.0
        %1645 = vmatprep.mubr.f32.mxu0 0.0
        %1646 = vmatmul.mubr.f32.gmra.mxu0 %v1579
        %v1647 = vpop.f32.mrf.mxu0
        %v1648 = vadd.f32 %v1575, %v1647
        %v1649 = vpop.f32.mrf.mxu0
        %1650 = vdwg.mxu0
        %v1651 = vadd.f32 %v1474, %v1648
        %s1652 = scalar_lea.vmem %s7, 7
        %v1653 = vld [vmem:[%s1652] ss:$8 sm:$0x3]
        %s1654 = scalar_lea.vmem %s7, 16
        %v1655 = vld [vmem:[%s1654] ss:$8 sm:$0x3]
        %v1656 = vsel %vm615, %v1651, 0.0
        %1657 = vadd.xlane.f32.xlu0 %v1656
        %v1658 = vpop.xlane.xlu0 %1657
        %v1659 = vmul.f32 %v1658, %v1450
        %v1660 = vsub.f32 %v1651, %v1659
        %v1661 = vmul.f32 %v1660, %v1660
        %v1662 = vsel %vm615, %v1661, 0.0
        %1663 = vadd.xlane.f32.xlu0 %v1662
        %v1664 = vpop.xlane.xlu0 %1663
        %v1665 = vmul.f32 %v1664, %v1450
        %v1666 = vadd.f32 %v1665, 1e-05
        %v1667 = vrsqrt.pop %v1666
        %v1668 = vmul.f32 %v1660, %v1667
        %v1670 = vlaneseq
        %v1671 = vshrl.u32 %v1670, 7
        %v1672 = vsub.s32 0, %v1671
        %v1673 = vrot.slane %v1653, %v1672
        %v1675 = vmul.f32 %v1668, %v1673
        %v1677 = vlaneseq
        %v1678 = vshrl.u32 %v1677, 7
        %v1679 = vsub.s32 0, %v1678
        %v1680 = vrot.slane %v1655, %v1679
        %v1682 = vadd.f32 %v1675, %v1680
        %s1683 = scalar_lea.vmem %s3, 32
        %v1684 = vld [vmem:[%s1683] sm:$0xff]
        %v1685 = vld [vmem:[%s1683 + $0x8] sm:$0xff]
        %v1686 = vld [vmem:[%s1683 + $0x10] sm:$0xff]
        %v1687 = vld [vmem:[%s1683 + $0x18] sm:$0xff]
        %s1688 = scalar_lea.vmem %s4, 64
        %v1689 = vld [vmem:[%s1688] sm:$0xff]
        %v1690 = vld [vmem:[%s1688 + $0x8] sm:$0xff]
        %v1691 = vld [vmem:[%s1688 + $0x10] sm:$0xff]
        %v1692 = vld [vmem:[%s1688 + $0x18] sm:$0xff]
        %v1693 = vld [vmem:[%s1688 + $0x20] sm:$0xff]
        %v1694 = vld [vmem:[%s1688 + $0x28] sm:$0xff]
        %v1695 = vld [vmem:[%s1688 + $0x30] sm:$0xff]
        %v1696 = vld [vmem:[%s1688 + $0x38] sm:$0xff]
        %s1697 = scalar_lea.vmem %s7, 32
        %v1698 = vld [vmem:[%s1697] ss:$8 sm:$0x3]
        %s1699 = scalar_lea.vmem %s1697, 1
        %v1700 = vld [vmem:[%s1699] ss:$8 sm:$0x3]
        %s1701 = scalar_lea.vmem %s1697, 2
        %v1702 = vld [vmem:[%s1701] ss:$8 sm:$0x3]
        %v1704 = vlaneseq
        %v1705 = vshrl.u32 %v1704, 7
        %v1706 = vsub.s32 0, %v1705
        %v1707 = vrot.slane %v1698, %v1706
        %v1710 = vsel %vm615, %v1682, 0
        %1712 = vmatprep.subr.mxu0 0.0
        %1713 = vmatpush1.msra.mxu0 0.0
        %1714 = vmatprep.subr.mxu0 0.0
        %1715 = vmatpush1.msra.mxu0 0.0
        %1716 = vmatprep.subr.mxu0 0.0
        %1717 = vmatpush1.msra.mxu0 0.0
        %1718 = vmatprep.subr.mxu0 0.0
        %1719 = vmatpush1.msra.mxu0 0.0
        %1720 = vmatprep.subr.mxu0 0.0
        %1721 = vmatpush1.msra.mxu0 0.0
        %1722 = vmatprep.subr.mxu0 0.0
        %1723 = vmatpush1.msra.mxu0 0.0
        %1724 = vmatprep.subr.mxu0 0.0
        %1725 = vmatpush1.msra.mxu0 0.0
        %1726 = vmatprep.subr.mxu0 0.0
        %1727 = vmatpush1.msra.mxu0 0.0
        %1728 = vmatprep.subr.mxu0 0.0
        %1729 = vmatpush1.msra.mxu0 0.0
        %1730 = vmatprep.subr.mxu0 0.0
        %1731 = vmatpush1.msra.mxu0 0.0
        %1732 = vmatprep.subr.mxu0 0.0
        %1733 = vmatpush1.msra.mxu0 0.0
        %1734 = vmatprep.subr.mxu0 0.0
        %1735 = vmatpush1.msra.mxu0 0.0
        %1736 = vmatprep.subr.mxu0 0.0
        %1737 = vmatpush1.msra.mxu0 %v1687
        %1738 = vmatprep.subr.mxu0 0.0
        %1739 = vmatpush1.msra.mxu0 %v1686
        %1740 = vmatprep.subr.mxu0 0.0
        %1741 = vmatpush1.msra.mxu0 %v1685
        %1742 = vmatprep.subr.mxu0 0.0
        %1743 = vmatpush1.msra.mxu0 %v1684
        %1744 = vmatprep.subr.mxu0 0.0
        %1745 = vmatpush2.msra.mxu0 0.0
        %1746 = vmatprep.subr.mxu0 0.0
        %1747 = vmatpush2.msra.mxu0 0.0
        %1748 = vmatprep.subr.mxu0 0.0
        %1749 = vmatpush2.msra.mxu0 0.0
        %1750 = vmatprep.subr.mxu0 0.0
        %1751 = vmatpush2.msra.mxu0 0.0
        %1752 = vmatprep.subr.mxu0 0.0
        %1753 = vmatpush2.msra.mxu0 0.0
        %1754 = vmatprep.subr.mxu0 0.0
        %1755 = vmatpush2.msra.mxu0 0.0
        %1756 = vmatprep.subr.mxu0 0.0
        %1757 = vmatpush2.msra.mxu0 0.0
        %1758 = vmatprep.subr.mxu0 0.0
        %1759 = vmatpush2.msra.mxu0 0.0
        %1760 = vmatprep.subr.mxu0 0.0
        %1761 = vmatpush2.msra.mxu0 0.0
        %1762 = vmatprep.subr.mxu0 0.0
        %1763 = vmatpush2.msra.mxu0 0.0
        %1764 = vmatprep.subr.mxu0 0.0
        %1765 = vmatpush2.msra.mxu0 0.0
        %1766 = vmatprep.subr.mxu0 0.0
        %1767 = vmatpush2.msra.mxu0 0.0
        %1768 = vmatprep.subr.mxu0 0.0
        %1769 = vmatpush2.msra.mxu0 0.0
        %1770 = vmatprep.subr.mxu0 0.0
        %1771 = vmatpush2.msra.mxu0 0.0
        %1772 = vmatprep.subr.mxu0 0.0
        %1773 = vmatpush2.msra.mxu0 0.0
        %1774 = vmatprep.subr.mxu0 0.0
        %1775 = vmatpush2.msra.mxu0 0.0
        %1776 = vmatprep.mubr.f32.mxu0 0.0
        %1777 = vmatmul.mubr.f32.gmra.mxu0 %v1710
        %v1778 = vpop.f32.mrf.mxu0
        %v1779 = vadd.f32 %v1707, %v1778
        %v1780 = vpop.f32.mrf.mxu0
        %1781 = vdwg.mxu0
        %v1783 = vlaneseq
        %v1784 = vshrl.u32 %v1783, 7
        %v1785 = vsub.s32 0, %v1784
        %v1786 = vrot.slane %v1700, %v1785
        %v1787 = vlaneseq
        %v1788 = vshrl.u32 %v1787, 7
        %v1789 = vsub.s32 1, %v1788
        %v1790 = vrot.slane %v1700, %v1789
        %1793 = vmatprep.subr.mxu0 0.0
        %1794 = vmatpush1.msra.mxu0 0.0
        %1795 = vmatprep.subr.mxu0 0.0
        %1796 = vmatpush1.msra.mxu0 0.0
        %1797 = vmatprep.subr.mxu0 0.0
        %1798 = vmatpush1.msra.mxu0 0.0
        %1799 = vmatprep.subr.mxu0 0.0
        %1800 = vmatpush1.msra.mxu0 0.0
        %1801 = vmatprep.subr.mxu0 0.0
        %1802 = vmatpush1.msra.mxu0 0.0
        %1803 = vmatprep.subr.mxu0 0.0
        %1804 = vmatpush1.msra.mxu0 0.0
        %1805 = vmatprep.subr.mxu0 0.0
        %1806 = vmatpush1.msra.mxu0 0.0
        %1807 = vmatprep.subr.mxu0 0.0
        %1808 = vmatpush1.msra.mxu0 0.0
        %1809 = vmatprep.subr.mxu0 0.0
        %1810 = vmatpush1.msra.mxu0 0.0
        %1811 = vmatprep.subr.mxu0 0.0
        %1812 = vmatpush1.msra.mxu0 0.0
        %1813 = vmatprep.subr.mxu0 0.0
        %1814 = vmatpush1.msra.mxu0 0.0
        %1815 = vmatprep.subr.mxu0 0.0
        %1816 = vmatpush1.msra.mxu0 0.0
        %1817 = vmatprep.subr.mxu0 %v1696
        %1818 = vmatpush1.msra.mxu0 %v1695
        %1819 = vmatprep.subr.mxu0 %v1694
        %1820 = vmatpush1.msra.mxu0 %v1693
        %1821 = vmatprep.subr.mxu0 %v1692
        %1822 = vmatpush1.msra.mxu0 %v1691
        %1823 = vmatprep.subr.mxu0 %v1690
        %1824 = vmatpush1.msra.mxu0 %v1689
        %1825 = vmatprep.subr.mxu0 0.0
        %1826 = vmatpush2.msra.mxu0 0.0
        %1827 = vmatprep.subr.mxu0 0.0
        %1828 = vmatpush2.msra.mxu0 0.0
        %1829 = vmatprep.subr.mxu0 0.0
        %1830 = vmatpush2.msra.mxu0 0.0
        %1831 = vmatprep.subr.mxu0 0.0
        %1832 = vmatpush2.msra.mxu0 0.0
        %1833 = vmatprep.subr.mxu0 0.0
        %1834 = vmatpush2.msra.mxu0 0.0
        %1835 = vmatprep.subr.mxu0 0.0
        %1836 = vmatpush2.msra.mxu0 0.0
        %1837 = vmatprep.subr.mxu0 0.0
        %1838 = vmatpush2.msra.mxu0 0.0
        %1839 = vmatprep.subr.mxu0 0.0
        %1840 = vmatpush2.msra.mxu0 0.0
        %1841 = vmatprep.subr.mxu0 0.0
        %1842 = vmatpush2.msra.mxu0 0.0
        %1843 = vmatprep.subr.mxu0 0.0
        %1844 = vmatpush2.msra.mxu0 0.0
        %1845 = vmatprep.subr.mxu0 0.0
        %1846 = vmatpush2.msra.mxu0 0.0
        %1847 = vmatprep.subr.mxu0 0.0
        %1848 = vmatpush2.msra.mxu0 0.0
        %1849 = vmatprep.subr.mxu0 0.0
        %1850 = vmatpush2.msra.mxu0 0.0
        %1851 = vmatprep.subr.mxu0 0.0
        %1852 = vmatpush2.msra.mxu0 0.0
        %1853 = vmatprep.subr.mxu0 0.0
        %1854 = vmatpush2.msra.mxu0 0.0
        %1855 = vmatprep.subr.mxu0 0.0
        %1856 = vmatpush2.msra.mxu0 0.0
        %1857 = vmatprep.mubr.f32.mxu0 0.0
        %1858 = vmatmul.mubr.f32.gmra.mxu0 %v1710
        %v1859 = vpop.f32.mrf.mxu0
        %v1860 = vadd.f32 %v1786, %v1859
        %v1861 = vpop.f32.mrf.mxu0
        %v1862 = vadd.f32 %v1790, %v1861
        %1863 = vdwg.mxu0
        %v1865 = vsel %vm777, %v1779, 0
        %v1868 = vsel %vm777, %v1860, 0
        %1870 = vmatprep.subr.mxu0 0.0
        %1871 = vmatpush1.xpose.msra.mxu0 0.0
        %1872 = vmatprep.subr.mxu0 0.0
        %1873 = vmatpush1.xpose.msra.mxu0 0.0
        %1874 = vmatprep.subr.mxu0 0.0
        %1875 = vmatpush1.xpose.msra.mxu0 0.0
        %1876 = vmatprep.subr.mxu0 0.0
        %1877 = vmatpush1.xpose.msra.mxu0 0.0
        %1878 = vmatprep.subr.mxu0 0.0
        %1879 = vmatpush1.xpose.msra.mxu0 0.0
        %1880 = vmatprep.subr.mxu0 0.0
        %1881 = vmatpush1.xpose.msra.mxu0 0.0
        %1882 = vmatprep.subr.mxu0 0.0
        %1883 = vmatpush1.xpose.msra.mxu0 0.0
        %1884 = vmatprep.subr.mxu0 0.0
        %1885 = vmatpush1.xpose.msra.mxu0 0.0
        %1886 = vmatprep.subr.mxu0 0.0
        %1887 = vmatpush1.xpose.msra.mxu0 0.0
        %1888 = vmatprep.subr.mxu0 0.0
        %1889 = vmatpush1.xpose.msra.mxu0 0.0
        %1890 = vmatprep.subr.mxu0 0.0
        %1891 = vmatpush1.xpose.msra.mxu0 0.0
        %1892 = vmatprep.subr.mxu0 0.0
        %1893 = vmatpush1.xpose.msra.mxu0 0.0
        %1894 = vmatprep.subr.mxu0 0.0
        %1895 = vmatpush1.xpose.msra.mxu0 0.0
        %1896 = vmatprep.subr.mxu0 0.0
        %1897 = vmatpush1.xpose.msra.mxu0 0.0
        %1898 = vmatprep.subr.mxu0 0.0
        %1899 = vmatpush1.xpose.msra.mxu0 0.0
        %1900 = vmatprep.subr.mxu0 0.0
        %1901 = vmatpush1.xpose.msra.mxu0 %v1868
        %1902 = vmatprep.subr.mxu0 0.0
        %1903 = vmatpush2.xpose.msra.mxu0 0.0
        %1904 = vmatprep.subr.mxu0 0.0
        %1905 = vmatpush2.xpose.msra.mxu0 0.0
        %1906 = vmatprep.subr.mxu0 0.0
        %1907 = vmatpush2.xpose.msra.mxu0 0.0
        %1908 = vmatprep.subr.mxu0 0.0
        %1909 = vmatpush2.xpose.msra.mxu0 0.0
        %1910 = vmatprep.subr.mxu0 0.0
        %1911 = vmatpush2.xpose.msra.mxu0 0.0
        %1912 = vmatprep.subr.mxu0 0.0
        %1913 = vmatpush2.xpose.msra.mxu0 0.0
        %1914 = vmatprep.subr.mxu0 0.0
        %1915 = vmatpush2.xpose.msra.mxu0 0.0
        %1916 = vmatprep.subr.mxu0 0.0
        %1917 = vmatpush2.xpose.msra.mxu0 0.0
        %1918 = vmatprep.subr.mxu0 0.0
        %1919 = vmatpush2.xpose.msra.mxu0 0.0
        %1920 = vmatprep.subr.mxu0 0.0
        %1921 = vmatpush2.xpose.msra.mxu0 0.0
        %1922 = vmatprep.subr.mxu0 0.0
        %1923 = vmatpush2.xpose.msra.mxu0 0.0
        %1924 = vmatprep.subr.mxu0 0.0
        %1925 = vmatpush2.xpose.msra.mxu0 0.0
        %1926 = vmatprep.subr.mxu0 0.0
        %1927 = vmatpush2.xpose.msra.mxu0 0.0
        %1928 = vmatprep.subr.mxu0 0.0
        %1929 = vmatpush2.xpose.msra.mxu0 0.0
        %1930 = vmatprep.subr.mxu0 0.0
        %1931 = vmatpush2.xpose.msra.mxu0 0.0
        %1932 = vmatprep.subr.mxu0 0.0
        %1933 = vmatpush2.xpose.msra.mxu0 0.0
        %1934 = vmatprep.mubr.f32.mxu0 0.0
        %1935 = vmatmul.mubr.f32.gmra.mxu0 %v1865
        %v1936 = vpop.f32.mrf.mxu0
        %v1937 = vadd.f32 %v775, %v1936
        %v1938 = vpop.f32.mrf.mxu0
        %1939 = vdwg.mxu0
        %v1940 = vsel %vm777, %v1937, -inf
        %1941 = vmax.xlane.f32.xlu0 %v1940
        %v1942 = vpop.xlane.xlu0 %1941
        %v1943 = vsub.f32 %v1937, %v1942
        %v1944 = vmul.f32 %v1943, 1.442695
        %v1945 = vpow.pop %v1944
        %v1946 = vsel %vm777, %v1945, 0.0
        %1947 = vadd.xlane.f32.xlu0 %v1946
        %v1948 = vpop.xlane.xlu0 %1947
        %v1949 = vrcp.pop %v1948
        %v1950 = vmul.f32 %v1945, %v1949
        %1951 = vrot.lane.b32.xlu0 %v1779, 120
        %v1952 = vpop.permute.xlu0 %1951
        %1953 = vrot.lane.b32.xlu0 %v1860, 120
        %v1954 = vpop.permute.xlu0 %1953
        %v1955 = vsel %vm777, %v1952, 0
        %v1957 = vsel %vm777, %v1954, 0
        %1959 = vmatprep.subr.mxu0 0.0
        %1960 = vmatpush1.xpose.msra.mxu0 0.0
        %1961 = vmatprep.subr.mxu0 0.0
        %1962 = vmatpush1.xpose.msra.mxu0 0.0
        %1963 = vmatprep.subr.mxu0 0.0
        %1964 = vmatpush1.xpose.msra.mxu0 0.0
        %1965 = vmatprep.subr.mxu0 0.0
        %1966 = vmatpush1.xpose.msra.mxu0 0.0
        %1967 = vmatprep.subr.mxu0 0.0
        %1968 = vmatpush1.xpose.msra.mxu0 0.0
        %1969 = vmatprep.subr.mxu0 0.0
        %1970 = vmatpush1.xpose.msra.mxu0 0.0
        %1971 = vmatprep.subr.mxu0 0.0
        %1972 = vmatpush1.xpose.msra.mxu0 0.0
        %1973 = vmatprep.subr.mxu0 0.0
        %1974 = vmatpush1.xpose.msra.mxu0 0.0
        %1975 = vmatprep.subr.mxu0 0.0
        %1976 = vmatpush1.xpose.msra.mxu0 0.0
        %1977 = vmatprep.subr.mxu0 0.0
        %1978 = vmatpush1.xpose.msra.mxu0 0.0
        %1979 = vmatprep.subr.mxu0 0.0
        %1980 = vmatpush1.xpose.msra.mxu0 0.0
        %1981 = vmatprep.subr.mxu0 0.0
        %1982 = vmatpush1.xpose.msra.mxu0 0.0
        %1983 = vmatprep.subr.mxu0 0.0
        %1984 = vmatpush1.xpose.msra.mxu0 0.0
        %1985 = vmatprep.subr.mxu0 0.0
        %1986 = vmatpush1.xpose.msra.mxu0 0.0
        %1987 = vmatprep.subr.mxu0 0.0
        %1988 = vmatpush1.xpose.msra.mxu0 0.0
        %1989 = vmatprep.subr.mxu0 0.0
        %1990 = vmatpush1.xpose.msra.mxu0 %v1957
        %1991 = vmatprep.subr.mxu0 0.0
        %1992 = vmatpush2.xpose.msra.mxu0 0.0
        %1993 = vmatprep.subr.mxu0 0.0
        %1994 = vmatpush2.xpose.msra.mxu0 0.0
        %1995 = vmatprep.subr.mxu0 0.0
        %1996 = vmatpush2.xpose.msra.mxu0 0.0
        %1997 = vmatprep.subr.mxu0 0.0
        %1998 = vmatpush2.xpose.msra.mxu0 0.0
        %1999 = vmatprep.subr.mxu0 0.0
        %2000 = vmatpush2.xpose.msra.mxu0 0.0
        %2001 = vmatprep.subr.mxu0 0.0
        %2002 = vmatpush2.xpose.msra.mxu0 0.0
        %2003 = vmatprep.subr.mxu0 0.0
        %2004 = vmatpush2.xpose.msra.mxu0 0.0
        %2005 = vmatprep.subr.mxu0 0.0
        %2006 = vmatpush2.xpose.msra.mxu0 0.0
        %2007 = vmatprep.subr.mxu0 0.0
        %2008 = vmatpush2.xpose.msra.mxu0 0.0
        %2009 = vmatprep.subr.mxu0 0.0
        %2010 = vmatpush2.xpose.msra.mxu0 0.0
        %2011 = vmatprep.subr.mxu0 0.0
        %2012 = vmatpush2.xpose.msra.mxu0 0.0
        %2013 = vmatprep.subr.mxu0 0.0
        %2014 = vmatpush2.xpose.msra.mxu0 0.0
        %2015 = vmatprep.subr.mxu0 0.0
        %2016 = vmatpush2.xpose.msra.mxu0 0.0
        %2017 = vmatprep.subr.mxu0 0.0
        %2018 = vmatpush2.xpose.msra.mxu0 0.0
        %2019 = vmatprep.subr.mxu0 0.0
        %2020 = vmatpush2.xpose.msra.mxu0 0.0
        %2021 = vmatprep.subr.mxu0 0.0
        %2022 = vmatpush2.xpose.msra.mxu0 0.0
        %2023 = vmatprep.mubr.f32.mxu0 0.0
        %2024 = vmatmul.mubr.f32.gmra.mxu0 %v1955
        %v2025 = vpop.f32.mrf.mxu0
        %v2026 = vadd.f32 %v775, %v2025
        %v2027 = vpop.f32.mrf.mxu0
        %2028 = vdwg.mxu0
        %v2029 = vsel %vm777, %v2026, -inf
        %2030 = vmax.xlane.f32.xlu0 %v2029
        %v2031 = vpop.xlane.xlu0 %2030
        %v2032 = vsub.f32 %v2026, %v2031
        %v2033 = vmul.f32 %v2032, 1.442695
        %v2034 = vpow.pop %v2033
        %v2035 = vsel %vm777, %v2034, 0.0
        %2036 = vadd.xlane.f32.xlu0 %v2035
        %v2037 = vpop.xlane.xlu0 %2036
        %v2038 = vrcp.pop %v2037
        %v2039 = vmul.f32 %v2034, %v2038
        %2040 = vrot.lane.b32.xlu0 %v1860, 64
        %v2041 = vpop.permute.xlu0 %2040
        %v2044 = vsel %vm777, %v2039, 0
        %2046 = vmatprep.subr.mxu0 0.0
        %2047 = vmatpush1.msra.mxu0 0.0
        %2048 = vmatprep.subr.mxu0 0.0
        %2049 = vmatpush1.msra.mxu0 0.0
        %2050 = vmatprep.subr.mxu0 0.0
        %2051 = vmatpush1.msra.mxu0 0.0
        %2052 = vmatprep.subr.mxu0 0.0
        %2053 = vmatpush1.msra.mxu0 0.0
        %2054 = vmatprep.subr.mxu0 0.0
        %2055 = vmatpush1.msra.mxu0 0.0
        %2056 = vmatprep.subr.mxu0 0.0
        %2057 = vmatpush1.msra.mxu0 0.0
        %2058 = vmatprep.subr.mxu0 0.0
        %2059 = vmatpush1.msra.mxu0 0.0
        %2060 = vmatprep.subr.mxu0 0.0
        %2061 = vmatpush1.msra.mxu0 0.0
        %2062 = vmatprep.subr.mxu0 0.0
        %2063 = vmatpush1.msra.mxu0 0.0
        %2064 = vmatprep.subr.mxu0 0.0
        %2065 = vmatpush1.msra.mxu0 0.0
        %2066 = vmatprep.subr.mxu0 0.0
        %2067 = vmatpush1.msra.mxu0 0.0
        %2068 = vmatprep.subr.mxu0 0.0
        %2069 = vmatpush1.msra.mxu0 0.0
        %2070 = vmatprep.subr.mxu0 0.0
        %2071 = vmatpush1.msra.mxu0 0.0
        %2072 = vmatprep.subr.mxu0 0.0
        %2073 = vmatpush1.msra.mxu0 0.0
        %2074 = vmatprep.subr.mxu0 0.0
        %2075 = vmatpush1.msra.mxu0 0.0
        %2076 = vmatprep.subr.mxu0 0.0
        %2077 = vmatpush1.msra.mxu0 %v2041
        %2078 = vmatprep.subr.mxu0 0.0
        %2079 = vmatpush2.msra.mxu0 0.0
        %2080 = vmatprep.subr.mxu0 0.0
        %2081 = vmatpush2.msra.mxu0 0.0
        %2082 = vmatprep.subr.mxu0 0.0
        %2083 = vmatpush2.msra.mxu0 0.0
        %2084 = vmatprep.subr.mxu0 0.0
        %2085 = vmatpush2.msra.mxu0 0.0
        %2086 = vmatprep.subr.mxu0 0.0
        %2087 = vmatpush2.msra.mxu0 0.0
        %2088 = vmatprep.subr.mxu0 0.0
        %2089 = vmatpush2.msra.mxu0 0.0
        %2090 = vmatprep.subr.mxu0 0.0
        %2091 = vmatpush2.msra.mxu0 0.0
        %2092 = vmatprep.subr.mxu0 0.0
        %2093 = vmatpush2.msra.mxu0 0.0
        %2094 = vmatprep.subr.mxu0 0.0
        %2095 = vmatpush2.msra.mxu0 0.0
        %2096 = vmatprep.subr.mxu0 0.0
        %2097 = vmatpush2.msra.mxu0 0.0
        %2098 = vmatprep.subr.mxu0 0.0
        %2099 = vmatpush2.msra.mxu0 0.0
        %2100 = vmatprep.subr.mxu0 0.0
        %2101 = vmatpush2.msra.mxu0 0.0
        %2102 = vmatprep.subr.mxu0 0.0
        %2103 = vmatpush2.msra.mxu0 0.0
        %2104 = vmatprep.subr.mxu0 0.0
        %2105 = vmatpush2.msra.mxu0 0.0
        %2106 = vmatprep.subr.mxu0 0.0
        %2107 = vmatpush2.msra.mxu0 0.0
        %2108 = vmatprep.subr.mxu0 0.0
        %2109 = vmatpush2.msra.mxu0 0.0
        %2110 = vmatprep.mubr.f32.mxu0 0.0
        %2111 = vmatmul.mubr.f32.gmra.mxu0 %v2044
        %v2112 = vpop.f32.mrf.mxu0
        %v2113 = vadd.f32 0.0, %v2112
        %v2114 = vpop.f32.mrf.mxu0
        %2115 = vdwg.mxu0
        %2116 = vrot.lane.b32.xlu0 %v1860, 96
        %v2117 = vpop.permute.xlu0 %2116
        %v2120 = vsel %vm777, %v1950, 0
        %2122 = vmatprep.subr.mxu0 0.0
        %2123 = vmatpush1.msra.mxu0 0.0
        %2124 = vmatprep.subr.mxu0 0.0
        %2125 = vmatpush1.msra.mxu0 0.0
        %2126 = vmatprep.subr.mxu0 0.0
        %2127 = vmatpush1.msra.mxu0 0.0
        %2128 = vmatprep.subr.mxu0 0.0
        %2129 = vmatpush1.msra.mxu0 0.0
        %2130 = vmatprep.subr.mxu0 0.0
        %2131 = vmatpush1.msra.mxu0 0.0
        %2132 = vmatprep.subr.mxu0 0.0
        %2133 = vmatpush1.msra.mxu0 0.0
        %2134 = vmatprep.subr.mxu0 0.0
        %2135 = vmatpush1.msra.mxu0 0.0
        %2136 = vmatprep.subr.mxu0 0.0
        %2137 = vmatpush1.msra.mxu0 0.0
        %2138 = vmatprep.subr.mxu0 0.0
        %2139 = vmatpush1.msra.mxu0 0.0
        %2140 = vmatprep.subr.mxu0 0.0
        %2141 = vmatpush1.msra.mxu0 0.0
        %2142 = vmatprep.subr.mxu0 0.0
        %2143 = vmatpush1.msra.mxu0 0.0
        %2144 = vmatprep.subr.mxu0 0.0
        %2145 = vmatpush1.msra.mxu0 0.0
        %2146 = vmatprep.subr.mxu0 0.0
        %2147 = vmatpush1.msra.mxu0 0.0
        %2148 = vmatprep.subr.mxu0 0.0
        %2149 = vmatpush1.msra.mxu0 0.0
        %2150 = vmatprep.subr.mxu0 0.0
        %2151 = vmatpush1.msra.mxu0 0.0
        %2152 = vmatprep.subr.mxu0 0.0
        %2153 = vmatpush1.msra.mxu0 %v2117
        %2154 = vmatprep.subr.mxu0 0.0
        %2155 = vmatpush2.msra.mxu0 0.0
        %2156 = vmatprep.subr.mxu0 0.0
        %2157 = vmatpush2.msra.mxu0 0.0
        %2158 = vmatprep.subr.mxu0 0.0
        %2159 = vmatpush2.msra.mxu0 0.0
        %2160 = vmatprep.subr.mxu0 0.0
        %2161 = vmatpush2.msra.mxu0 0.0
        %2162 = vmatprep.subr.mxu0 0.0
        %2163 = vmatpush2.msra.mxu0 0.0
        %2164 = vmatprep.subr.mxu0 0.0
        %2165 = vmatpush2.msra.mxu0 0.0
        %2166 = vmatprep.subr.mxu0 0.0
        %2167 = vmatpush2.msra.mxu0 0.0
        %2168 = vmatprep.subr.mxu0 0.0
        %2169 = vmatpush2.msra.mxu0 0.0
        %2170 = vmatprep.subr.mxu0 0.0
        %2171 = vmatpush2.msra.mxu0 0.0
        %2172 = vmatprep.subr.mxu0 0.0
        %2173 = vmatpush2.msra.mxu0 0.0
        %2174 = vmatprep.subr.mxu0 0.0
        %2175 = vmatpush2.msra.mxu0 0.0
        %2176 = vmatprep.subr.mxu0 0.0
        %2177 = vmatpush2.msra.mxu0 0.0
        %2178 = vmatprep.subr.mxu0 0.0
        %2179 = vmatpush2.msra.mxu0 0.0
        %2180 = vmatprep.subr.mxu0 0.0
        %2181 = vmatpush2.msra.mxu0 0.0
        %2182 = vmatprep.subr.mxu0 0.0
        %2183 = vmatpush2.msra.mxu0 0.0
        %2184 = vmatprep.subr.mxu0 0.0
        %2185 = vmatpush2.msra.mxu0 0.0
        %2186 = vmatprep.mubr.f32.mxu0 0.0
        %2187 = vmatmul.mubr.f32.gmra.mxu0 %v2120
        %v2188 = vpop.f32.mrf.mxu0
        %v2189 = vadd.f32 %v2113, %v2188
        %v2190 = vpop.f32.mrf.mxu0
        %2191 = vdwg.mxu0
        %2192 = vrot.lane.b32.xlu0 %v1779, 112
        %v2193 = vpop.permute.xlu0 %2192
        %2194 = vrot.lane.b32.xlu0 %v1860, 112
        %v2195 = vpop.permute.xlu0 %2194
        %v2196 = vsel %vm777, %v2193, 0
        %v2198 = vsel %vm777, %v2195, 0
        %2200 = vmatprep.subr.mxu0 0.0
        %2201 = vmatpush1.xpose.msra.mxu0 0.0
        %2202 = vmatprep.subr.mxu0 0.0
        %2203 = vmatpush1.xpose.msra.mxu0 0.0
        %2204 = vmatprep.subr.mxu0 0.0
        %2205 = vmatpush1.xpose.msra.mxu0 0.0
        %2206 = vmatprep.subr.mxu0 0.0
        %2207 = vmatpush1.xpose.msra.mxu0 0.0
        %2208 = vmatprep.subr.mxu0 0.0
        %2209 = vmatpush1.xpose.msra.mxu0 0.0
        %2210 = vmatprep.subr.mxu0 0.0
        %2211 = vmatpush1.xpose.msra.mxu0 0.0
        %2212 = vmatprep.subr.mxu0 0.0
        %2213 = vmatpush1.xpose.msra.mxu0 0.0
        %2214 = vmatprep.subr.mxu0 0.0
        %2215 = vmatpush1.xpose.msra.mxu0 0.0
        %2216 = vmatprep.subr.mxu0 0.0
        %2217 = vmatpush1.xpose.msra.mxu0 0.0
        %2218 = vmatprep.subr.mxu0 0.0
        %2219 = vmatpush1.xpose.msra.mxu0 0.0
        %2220 = vmatprep.subr.mxu0 0.0
        %2221 = vmatpush1.xpose.msra.mxu0 0.0
        %2222 = vmatprep.subr.mxu0 0.0
        %2223 = vmatpush1.xpose.msra.mxu0 0.0
        %2224 = vmatprep.subr.mxu0 0.0
        %2225 = vmatpush1.xpose.msra.mxu0 0.0
        %2226 = vmatprep.subr.mxu0 0.0
        %2227 = vmatpush1.xpose.msra.mxu0 0.0
        %2228 = vmatprep.subr.mxu0 0.0
        %2229 = vmatpush1.xpose.msra.mxu0 0.0
        %2230 = vmatprep.subr.mxu0 0.0
        %2231 = vmatpush1.xpose.msra.mxu0 %v2198
        %2232 = vmatprep.subr.mxu0 0.0
        %2233 = vmatpush2.xpose.msra.mxu0 0.0
        %2234 = vmatprep.subr.mxu0 0.0
        %2235 = vmatpush2.xpose.msra.mxu0 0.0
        %2236 = vmatprep.subr.mxu0 0.0
        %2237 = vmatpush2.xpose.msra.mxu0 0.0
        %2238 = vmatprep.subr.mxu0 0.0
        %2239 = vmatpush2.xpose.msra.mxu0 0.0
        %2240 = vmatprep.subr.mxu0 0.0
        %2241 = vmatpush2.xpose.msra.mxu0 0.0
        %2242 = vmatprep.subr.mxu0 0.0
        %2243 = vmatpush2.xpose.msra.mxu0 0.0
        %2244 = vmatprep.subr.mxu0 0.0
        %2245 = vmatpush2.xpose.msra.mxu0 0.0
        %2246 = vmatprep.subr.mxu0 0.0
        %2247 = vmatpush2.xpose.msra.mxu0 0.0
        %2248 = vmatprep.subr.mxu0 0.0
        %2249 = vmatpush2.xpose.msra.mxu0 0.0
        %2250 = vmatprep.subr.mxu0 0.0
        %2251 = vmatpush2.xpose.msra.mxu0 0.0
        %2252 = vmatprep.subr.mxu0 0.0
        %2253 = vmatpush2.xpose.msra.mxu0 0.0
        %2254 = vmatprep.subr.mxu0 0.0
        %2255 = vmatpush2.xpose.msra.mxu0 0.0
        %2256 = vmatprep.subr.mxu0 0.0
        %2257 = vmatpush2.xpose.msra.mxu0 0.0
        %2258 = vmatprep.subr.mxu0 0.0
        %2259 = vmatpush2.xpose.msra.mxu0 0.0
        %2260 = vmatprep.subr.mxu0 0.0
        %2261 = vmatpush2.xpose.msra.mxu0 0.0
        %2262 = vmatprep.subr.mxu0 0.0
        %2263 = vmatpush2.xpose.msra.mxu0 0.0
        %2264 = vmatprep.mubr.f32.mxu0 0.0
        %2265 = vmatmul.mubr.f32.gmra.mxu0 %v2196
        %v2266 = vpop.f32.mrf.mxu0
        %v2267 = vadd.f32 %v775, %v2266
        %v2268 = vpop.f32.mrf.mxu0
        %2269 = vdwg.mxu0
        %v2270 = vsel %vm777, %v2267, -inf
        %2271 = vmax.xlane.f32.xlu0 %v2270
        %v2272 = vpop.xlane.xlu0 %2271
        %v2273 = vsub.f32 %v2267, %v2272
        %v2274 = vmul.f32 %v2273, 1.442695
        %v2275 = vpow.pop %v2274
        %v2276 = vsel %vm777, %v2275, 0.0
        %2277 = vadd.xlane.f32.xlu0 %v2276
        %v2278 = vpop.xlane.xlu0 %2277
        %v2279 = vrcp.pop %v2278
        %v2280 = vmul.f32 %v2275, %v2279
        %2281 = vrot.lane.b32.xlu0 %v1860, 32
        %v2282 = vpop.permute.xlu0 %2281
        %v2285 = vsel %vm777, %v2280, 0
        %2287 = vmatprep.subr.mxu0 0.0
        %2288 = vmatpush1.msra.mxu0 0.0
        %2289 = vmatprep.subr.mxu0 0.0
        %2290 = vmatpush1.msra.mxu0 0.0
        %2291 = vmatprep.subr.mxu0 0.0
        %2292 = vmatpush1.msra.mxu0 0.0
        %2293 = vmatprep.subr.mxu0 0.0
        %2294 = vmatpush1.msra.mxu0 0.0
        %2295 = vmatprep.subr.mxu0 0.0
        %2296 = vmatpush1.msra.mxu0 0.0
        %2297 = vmatprep.subr.mxu0 0.0
        %2298 = vmatpush1.msra.mxu0 0.0
        %2299 = vmatprep.subr.mxu0 0.0
        %2300 = vmatpush1.msra.mxu0 0.0
        %2301 = vmatprep.subr.mxu0 0.0
        %2302 = vmatpush1.msra.mxu0 0.0
        %2303 = vmatprep.subr.mxu0 0.0
        %2304 = vmatpush1.msra.mxu0 0.0
        %2305 = vmatprep.subr.mxu0 0.0
        %2306 = vmatpush1.msra.mxu0 0.0
        %2307 = vmatprep.subr.mxu0 0.0
        %2308 = vmatpush1.msra.mxu0 0.0
        %2309 = vmatprep.subr.mxu0 0.0
        %2310 = vmatpush1.msra.mxu0 0.0
        %2311 = vmatprep.subr.mxu0 0.0
        %2312 = vmatpush1.msra.mxu0 0.0
        %2313 = vmatprep.subr.mxu0 0.0
        %2314 = vmatpush1.msra.mxu0 0.0
        %2315 = vmatprep.subr.mxu0 0.0
        %2316 = vmatpush1.msra.mxu0 0.0
        %2317 = vmatprep.subr.mxu0 0.0
        %2318 = vmatpush1.msra.mxu0 %v2282
        %2319 = vmatprep.subr.mxu0 0.0
        %2320 = vmatpush2.msra.mxu0 0.0
        %2321 = vmatprep.subr.mxu0 0.0
        %2322 = vmatpush2.msra.mxu0 0.0
        %2323 = vmatprep.subr.mxu0 0.0
        %2324 = vmatpush2.msra.mxu0 0.0
        %2325 = vmatprep.subr.mxu0 0.0
        %2326 = vmatpush2.msra.mxu0 0.0
        %2327 = vmatprep.subr.mxu0 0.0
        %2328 = vmatpush2.msra.mxu0 0.0
        %2329 = vmatprep.subr.mxu0 0.0
        %2330 = vmatpush2.msra.mxu0 0.0
        %2331 = vmatprep.subr.mxu0 0.0
        %2332 = vmatpush2.msra.mxu0 0.0
        %2333 = vmatprep.subr.mxu0 0.0
        %2334 = vmatpush2.msra.mxu0 0.0
        %2335 = vmatprep.subr.mxu0 0.0
        %2336 = vmatpush2.msra.mxu0 0.0
        %2337 = vmatprep.subr.mxu0 0.0
        %2338 = vmatpush2.msra.mxu0 0.0
        %2339 = vmatprep.subr.mxu0 0.0
        %2340 = vmatpush2.msra.mxu0 0.0
        %2341 = vmatprep.subr.mxu0 0.0
        %2342 = vmatpush2.msra.mxu0 0.0
        %2343 = vmatprep.subr.mxu0 0.0
        %2344 = vmatpush2.msra.mxu0 0.0
        %2345 = vmatprep.subr.mxu0 0.0
        %2346 = vmatpush2.msra.mxu0 0.0
        %2347 = vmatprep.subr.mxu0 0.0
        %2348 = vmatpush2.msra.mxu0 0.0
        %2349 = vmatprep.subr.mxu0 0.0
        %2350 = vmatpush2.msra.mxu0 0.0
        %2351 = vmatprep.mubr.f32.mxu0 0.0
        %2352 = vmatmul.mubr.f32.gmra.mxu0 %v2285
        %v2353 = vpop.f32.mrf.mxu0
        %v2354 = vadd.f32 0.0, %v2353
        %v2355 = vpop.f32.mrf.mxu0
        %2356 = vdwg.mxu0
        %v2357 = vadd.f32 %v2189, %v2354
        %2358 = vrot.lane.b32.xlu0 %v1779, 104
        %v2359 = vpop.permute.xlu0 %2358
        %2360 = vrot.lane.b32.xlu0 %v1860, 104
        %v2361 = vpop.permute.xlu0 %2360
        %v2362 = vsel %vm777, %v2359, 0
        %v2364 = vsel %vm777, %v2361, 0
        %2366 = vmatprep.subr.mxu0 0.0
        %2367 = vmatpush1.xpose.msra.mxu0 0.0
        %2368 = vmatprep.subr.mxu0 0.0
        %2369 = vmatpush1.xpose.msra.mxu0 0.0
        %2370 = vmatprep.subr.mxu0 0.0
        %2371 = vmatpush1.xpose.msra.mxu0 0.0
        %2372 = vmatprep.subr.mxu0 0.0
        %2373 = vmatpush1.xpose.msra.mxu0 0.0
        %2374 = vmatprep.subr.mxu0 0.0
        %2375 = vmatpush1.xpose.msra.mxu0 0.0
        %2376 = vmatprep.subr.mxu0 0.0
        %2377 = vmatpush1.xpose.msra.mxu0 0.0
        %2378 = vmatprep.subr.mxu0 0.0
        %2379 = vmatpush1.xpose.msra.mxu0 0.0
        %2380 = vmatprep.subr.mxu0 0.0
        %2381 = vmatpush1.xpose.msra.mxu0 0.0
        %2382 = vmatprep.subr.mxu0 0.0
        %2383 = vmatpush1.xpose.msra.mxu0 0.0
        %2384 = vmatprep.subr.mxu0 0.0
        %2385 = vmatpush1.xpose.msra.mxu0 0.0
        %2386 = vmatprep.subr.mxu0 0.0
        %2387 = vmatpush1.xpose.msra.mxu0 0.0
        %2388 = vmatprep.subr.mxu0 0.0
        %2389 = vmatpush1.xpose.msra.mxu0 0.0
        %2390 = vmatprep.subr.mxu0 0.0
        %2391 = vmatpush1.xpose.msra.mxu0 0.0
        %2392 = vmatprep.subr.mxu0 0.0
        %2393 = vmatpush1.xpose.msra.mxu0 0.0
        %2394 = vmatprep.subr.mxu0 0.0
        %2395 = vmatpush1.xpose.msra.mxu0 0.0
        %2396 = vmatprep.subr.mxu0 0.0
        %2397 = vmatpush1.xpose.msra.mxu0 %v2364
        %2398 = vmatprep.subr.mxu0 0.0
        %2399 = vmatpush2.xpose.msra.mxu0 0.0
        %2400 = vmatprep.subr.mxu0 0.0
        %2401 = vmatpush2.xpose.msra.mxu0 0.0
        %2402 = vmatprep.subr.mxu0 0.0
        %2403 = vmatpush2.xpose.msra.mxu0 0.0
        %2404 = vmatprep.subr.mxu0 0.0
        %2405 = vmatpush2.xpose.msra.mxu0 0.0
        %2406 = vmatprep.subr.mxu0 0.0
        %2407 = vmatpush2.xpose.msra.mxu0 0.0
        %2408 = vmatprep.subr.mxu0 0.0
        %2409 = vmatpush2.xpose.msra.mxu0 0.0
        %2410 = vmatprep.subr.mxu0 0.0
        %2411 = vmatpush2.xpose.msra.mxu0 0.0
        %2412 = vmatprep.subr.mxu0 0.0
        %2413 = vmatpush2.xpose.msra.mxu0 0.0
        %2414 = vmatprep.subr.mxu0 0.0
        %2415 = vmatpush2.xpose.msra.mxu0 0.0
        %2416 = vmatprep.subr.mxu0 0.0
        %2417 = vmatpush2.xpose.msra.mxu0 0.0
        %2418 = vmatprep.subr.mxu0 0.0
        %2419 = vmatpush2.xpose.msra.mxu0 0.0
        %2420 = vmatprep.subr.mxu0 0.0
        %2421 = vmatpush2.xpose.msra.mxu0 0.0
        %2422 = vmatprep.subr.mxu0 0.0
        %2423 = vmatpush2.xpose.msra.mxu0 0.0
        %2424 = vmatprep.subr.mxu0 0.0
        %2425 = vmatpush2.xpose.msra.mxu0 0.0
        %2426 = vmatprep.subr.mxu0 0.0
        %2427 = vmatpush2.xpose.msra.mxu0 0.0
        %2428 = vmatprep.subr.mxu0 0.0
        %2429 = vmatpush2.xpose.msra.mxu0 0.0
        %2430 = vmatprep.mubr.f32.mxu0 0.0
        %2431 = vmatmul.mubr.f32.gmra.mxu0 %v2362
        %v2432 = vpop.f32.mrf.mxu0
        %v2433 = vadd.f32 %v775, %v2432
        %v2434 = vpop.f32.mrf.mxu0
        %2435 = vdwg.mxu0
        %v2436 = vsel %vm777, %v2433, -inf
        %2437 = vmax.xlane.f32.xlu0 %v2436
        %v2438 = vpop.xlane.xlu0 %2437
        %v2439 = vsub.f32 %v2433, %v2438
        %v2440 = vmul.f32 %v2439, 1.442695
        %v2441 = vpow.pop %v2440
        %v2442 = vsel %vm777, %v2441, 0.0
        %2443 = vadd.xlane.f32.xlu0 %v2442
        %v2444 = vpop.xlane.xlu0 %2443
        %v2445 = vrcp.pop %v2444
        %v2446 = vmul.f32 %v2441, %v2445
        %v2448 = vsel %vm777, %v2446, 0
        %2450 = vmatprep.subr.mxu0 0.0
        %2451 = vmatpush1.msra.mxu0 0.0
        %2452 = vmatprep.subr.mxu0 0.0
        %2453 = vmatpush1.msra.mxu0 0.0
        %2454 = vmatprep.subr.mxu0 0.0
        %2455 = vmatpush1.msra.mxu0 0.0
        %2456 = vmatprep.subr.mxu0 0.0
        %2457 = vmatpush1.msra.mxu0 0.0
        %2458 = vmatprep.subr.mxu0 0.0
        %2459 = vmatpush1.msra.mxu0 0.0
        %2460 = vmatprep.subr.mxu0 0.0
        %2461 = vmatpush1.msra.mxu0 0.0
        %2462 = vmatprep.subr.mxu0 0.0
        %2463 = vmatpush1.msra.mxu0 0.0
        %2464 = vmatprep.subr.mxu0 0.0
        %2465 = vmatpush1.msra.mxu0 0.0
        %2466 = vmatprep.subr.mxu0 0.0
        %2467 = vmatpush1.msra.mxu0 0.0
        %2468 = vmatprep.subr.mxu0 0.0
        %2469 = vmatpush1.msra.mxu0 0.0
        %2470 = vmatprep.subr.mxu0 0.0
        %2471 = vmatpush1.msra.mxu0 0.0
        %2472 = vmatprep.subr.mxu0 0.0
        %2473 = vmatpush1.msra.mxu0 0.0
        %2474 = vmatprep.subr.mxu0 0.0
        %2475 = vmatpush1.msra.mxu0 0.0
        %2476 = vmatprep.subr.mxu0 0.0
        %2477 = vmatpush1.msra.mxu0 0.0
        %2478 = vmatprep.subr.mxu0 0.0
        %2479 = vmatpush1.msra.mxu0 0.0
        %2480 = vmatprep.subr.mxu0 0.0
        %2481 = vmatpush1.msra.mxu0 %v1862
        %2482 = vmatprep.subr.mxu0 0.0
        %2483 = vmatpush2.msra.mxu0 0.0
        %2484 = vmatprep.subr.mxu0 0.0
        %2485 = vmatpush2.msra.mxu0 0.0
        %2486 = vmatprep.subr.mxu0 0.0
        %2487 = vmatpush2.msra.mxu0 0.0
        %2488 = vmatprep.subr.mxu0 0.0
        %2489 = vmatpush2.msra.mxu0 0.0
        %2490 = vmatprep.subr.mxu0 0.0
        %2491 = vmatpush2.msra.mxu0 0.0
        %2492 = vmatprep.subr.mxu0 0.0
        %2493 = vmatpush2.msra.mxu0 0.0
        %2494 = vmatprep.subr.mxu0 0.0
        %2495 = vmatpush2.msra.mxu0 0.0
        %2496 = vmatprep.subr.mxu0 0.0
        %2497 = vmatpush2.msra.mxu0 0.0
        %2498 = vmatprep.subr.mxu0 0.0
        %2499 = vmatpush2.msra.mxu0 0.0
        %2500 = vmatprep.subr.mxu0 0.0
        %2501 = vmatpush2.msra.mxu0 0.0
        %2502 = vmatprep.subr.mxu0 0.0
        %2503 = vmatpush2.msra.mxu0 0.0
        %2504 = vmatprep.subr.mxu0 0.0
        %2505 = vmatpush2.msra.mxu0 0.0
        %2506 = vmatprep.subr.mxu0 0.0
        %2507 = vmatpush2.msra.mxu0 0.0
        %2508 = vmatprep.subr.mxu0 0.0
        %2509 = vmatpush2.msra.mxu0 0.0
        %2510 = vmatprep.subr.mxu0 0.0
        %2511 = vmatpush2.msra.mxu0 0.0
        %2512 = vmatprep.subr.mxu0 0.0
        %2513 = vmatpush2.msra.mxu0 0.0
        %2514 = vmatprep.mubr.f32.mxu0 0.0
        %2515 = vmatmul.mubr.f32.gmra.mxu0 %v2448
        %v2516 = vpop.f32.mrf.mxu0
        %v2517 = vadd.f32 0.0, %v2516
        %v2518 = vpop.f32.mrf.mxu0
        %2519 = vdwg.mxu0
        %v2520 = vadd.f32 %v2357, %v2517
        %v2522 = vlaneseq
        %v2523 = vshrl.u32 %v2522, 7
        %v2524 = vsub.s32 0, %v2523
        %v2525 = vrot.slane %v1702, %v2524
        %v2527 = vadd.f32 %v2520, %v2525
        %v2528 = vadd.f32 %v1682, %v2527
        %s2529 = scalar_lea.vmem %s1697, 3
        %v2530 = vld [vmem:[%s2529] ss:$8 sm:$0x3]
        %s2531 = scalar_lea.vmem %s1697, 4
        %v2532 = vld [vmem:[%s2531] ss:$8 sm:$0x3]
        %v2533 = vsel %vm615, %v2528, 0.0
        %2534 = vadd.xlane.f32.xlu0 %v2533
        %v2535 = vpop.xlane.xlu0 %2534
        %v2536 = vmul.f32 %v2535, %v1450
        %v2537 = vsub.f32 %v2528, %v2536
        %v2538 = vmul.f32 %v2537, %v2537
        %v2539 = vsel %vm615, %v2538, 0.0
        %2540 = vadd.xlane.f32.xlu0 %v2539
        %v2541 = vpop.xlane.xlu0 %2540
        %v2542 = vmul.f32 %v2541, %v1450
        %v2543 = vadd.f32 %v2542, 1e-05
        %v2544 = vrsqrt.pop %v2543
        %v2545 = vmul.f32 %v2537, %v2544
        %v2547 = vlaneseq
        %v2548 = vshrl.u32 %v2547, 7
        %v2549 = vsub.s32 0, %v2548
        %v2550 = vrot.slane %v2530, %v2549
        %v2552 = vmul.f32 %v2545, %v2550
        %v2554 = vlaneseq
        %v2555 = vshrl.u32 %v2554, 7
        %v2556 = vsub.s32 0, %v2555
        %v2557 = vrot.slane %v2532, %v2556
        %v2559 = vadd.f32 %v2552, %v2557
        %s2560 = scalar_lea.vmem %s5, 32
        %v2561 = vld [vmem:[%s2560] sm:$0xff]
        %v2562 = vld [vmem:[%s2560 + $0x8] sm:$0xff]
        %v2563 = vld [vmem:[%s2560 + $0x10] sm:$0xff]
        %v2564 = vld [vmem:[%s2560 + $0x18] sm:$0xff]
        %s2565 = scalar_lea.vmem %s1697, 5
        %v2566 = vld [vmem:[%s2565] ss:$8 sm:$0x3]
        %s2567 = scalar_lea.vmem %s6, 64
        %v2568 = vld [vmem:[%s2567] sm:$0xff]
        %v2569 = vld [vmem:[%s2567 + $0x8] sm:$0xff]
        %v2570 = vld [vmem:[%s2567 + $0x10] sm:$0xff]
        %v2571 = vld [vmem:[%s2567 + $0x18] sm:$0xff]
        %v2572 = vld [vmem:[%s2567 + $0x20] sm:$0xff]
        %v2573 = vld [vmem:[%s2567 + $0x28] sm:$0xff]
        %v2574 = vld [vmem:[%s2567 + $0x30] sm:$0xff]
        %v2575 = vld [vmem:[%s2567 + $0x38] sm:$0xff]
        %s2576 = scalar_lea.vmem %s1697, 6
        %v2577 = vld [vmem:[%s2576] ss:$8 sm:$0x3]
        %v2579 = vlaneseq
        %v2580 = vshrl.u32 %v2579, 7
        %v2581 = vsub.s32 0, %v2580
        %v2582 = vrot.slane %v2566, %v2581
        %v2585 = vsel %vm615, %v2559, 0
        %2587 = vmatprep.subr.mxu0 0.0
        %2588 = vmatpush1.msra.mxu0 0.0
        %2589 = vmatprep.subr.mxu0 0.0
        %2590 = vmatpush1.msra.mxu0 0.0
        %2591 = vmatprep.subr.mxu0 0.0
        %2592 = vmatpush1.msra.mxu0 0.0
        %2593 = vmatprep.subr.mxu0 0.0
        %2594 = vmatpush1.msra.mxu0 0.0
        %2595 = vmatprep.subr.mxu0 0.0
        %2596 = vmatpush1.msra.mxu0 0.0
        %2597 = vmatprep.subr.mxu0 0.0
        %2598 = vmatpush1.msra.mxu0 0.0
        %2599 = vmatprep.subr.mxu0 0.0
        %2600 = vmatpush1.msra.mxu0 0.0
        %2601 = vmatprep.subr.mxu0 0.0
        %2602 = vmatpush1.msra.mxu0 0.0
        %2603 = vmatprep.subr.mxu0 0.0
        %2604 = vmatpush1.msra.mxu0 0.0
        %2605 = vmatprep.subr.mxu0 0.0
        %2606 = vmatpush1.msra.mxu0 0.0
        %2607 = vmatprep.subr.mxu0 0.0
        %2608 = vmatpush1.msra.mxu0 0.0
        %2609 = vmatprep.subr.mxu0 0.0
        %2610 = vmatpush1.msra.mxu0 0.0
        %2611 = vmatprep.subr.mxu0 0.0
        %2612 = vmatpush1.msra.mxu0 %v2564
        %2613 = vmatprep.subr.mxu0 0.0
        %2614 = vmatpush1.msra.mxu0 %v2563
        %2615 = vmatprep.subr.mxu0 0.0
        %2616 = vmatpush1.msra.mxu0 %v2562
        %2617 = vmatprep.subr.mxu0 0.0
        %2618 = vmatpush1.msra.mxu0 %v2561
        %2619 = vmatprep.subr.mxu0 0.0
        %2620 = vmatpush2.msra.mxu0 0.0
        %2621 = vmatprep.subr.mxu0 0.0
        %2622 = vmatpush2.msra.mxu0 0.0
        %2623 = vmatprep.subr.mxu0 0.0
        %2624 = vmatpush2.msra.mxu0 0.0
        %2625 = vmatprep.subr.mxu0 0.0
        %2626 = vmatpush2.msra.mxu0 0.0
        %2627 = vmatprep.subr.mxu0 0.0
        %2628 = vmatpush2.msra.mxu0 0.0
        %2629 = vmatprep.subr.mxu0 0.0
        %2630 = vmatpush2.msra.mxu0 0.0
        %2631 = vmatprep.subr.mxu0 0.0
        %2632 = vmatpush2.msra.mxu0 0.0
        %2633 = vmatprep.subr.mxu0 0.0
        %2634 = vmatpush2.msra.mxu0 0.0
        %2635 = vmatprep.subr.mxu0 0.0
        %2636 = vmatpush2.msra.mxu0 0.0
        %2637 = vmatprep.subr.mxu0 0.0
        %2638 = vmatpush2.msra.mxu0 0.0
        %2639 = vmatprep.subr.mxu0 0.0
        %2640 = vmatpush2.msra.mxu0 0.0
        %2641 = vmatprep.subr.mxu0 0.0
        %2642 = vmatpush2.msra.mxu0 0.0
        %2643 = vmatprep.subr.mxu0 0.0
        %2644 = vmatpush2.msra.mxu0 0.0
        %2645 = vmatprep.subr.mxu0 0.0
        %2646 = vmatpush2.msra.mxu0 0.0
        %2647 = vmatprep.subr.mxu0 0.0
        %2648 = vmatpush2.msra.mxu0 0.0
        %2649 = vmatprep.subr.mxu0 0.0
        %2650 = vmatpush2.msra.mxu0 0.0
        %2651 = vmatprep.mubr.f32.mxu0 0.0
        %2652 = vmatmul.mubr.f32.gmra.mxu0 %v2585
        %v2653 = vpop.f32.mrf.mxu0
        %v2654 = vadd.f32 %v2582, %v2653
        %v2655 = vpop.f32.mrf.mxu0
        %2656 = vdwg.mxu0
        %v2657 = vmax.f32 %v2654, 0.0
        %v2659 = vlaneseq
        %v2660 = vshrl.u32 %v2659, 7
        %v2661 = vsub.s32 0, %v2660
        %v2662 = vrot.slane %v2577, %v2661
        %v2665 = vsel %vm1577, %v2657, 0
        %2667 = vmatprep.subr.mxu0 0.0
        %2668 = vmatpush1.msra.mxu0 0.0
        %2669 = vmatprep.subr.mxu0 0.0
        %2670 = vmatpush1.msra.mxu0 0.0
        %2671 = vmatprep.subr.mxu0 0.0
        %2672 = vmatpush1.msra.mxu0 0.0
        %2673 = vmatprep.subr.mxu0 0.0
        %2674 = vmatpush1.msra.mxu0 0.0
        %2675 = vmatprep.subr.mxu0 0.0
        %2676 = vmatpush1.msra.mxu0 0.0
        %2677 = vmatprep.subr.mxu0 0.0
        %2678 = vmatpush1.msra.mxu0 0.0
        %2679 = vmatprep.subr.mxu0 0.0
        %2680 = vmatpush1.msra.mxu0 0.0
        %2681 = vmatprep.subr.mxu0 0.0
        %2682 = vmatpush1.msra.mxu0 0.0
        %2683 = vmatprep.subr.mxu0 0.0
        %2684 = vmatpush1.msra.mxu0 %v2575
        %2685 = vmatprep.subr.mxu0 0.0
        %2686 = vmatpush1.msra.mxu0 %v2574
        %2687 = vmatprep.subr.mxu0 0.0
        %2688 = vmatpush1.msra.mxu0 %v2573
        %2689 = vmatprep.subr.mxu0 0.0
        %2690 = vmatpush1.msra.mxu0 %v2572
        %2691 = vmatprep.subr.mxu0 0.0
        %2692 = vmatpush1.msra.mxu0 %v2571
        %2693 = vmatprep.subr.mxu0 0.0
        %2694 = vmatpush1.msra.mxu0 %v2570
        %2695 = vmatprep.subr.mxu0 0.0
        %2696 = vmatpush1.msra.mxu0 %v2569
        %2697 = vmatprep.subr.mxu0 0.0
        %2698 = vmatpush1.msra.mxu0 %v2568
        %2699 = vmatprep.subr.mxu0 0.0
        %2700 = vmatpush2.msra.mxu0 0.0
        %2701 = vmatprep.subr.mxu0 0.0
        %2702 = vmatpush2.msra.mxu0 0.0
        %2703 = vmatprep.subr.mxu0 0.0
        %2704 = vmatpush2.msra.mxu0 0.0
        %2705 = vmatprep.subr.mxu0 0.0
        %2706 = vmatpush2.msra.mxu0 0.0
        %2707 = vmatprep.subr.mxu0 0.0
        %2708 = vmatpush2.msra.mxu0 0.0
        %2709 = vmatprep.subr.mxu0 0.0
        %2710 = vmatpush2.msra.mxu0 0.0
        %2711 = vmatprep.subr.mxu0 0.0
        %2712 = vmatpush2.msra.mxu0 0.0
        %2713 = vmatprep.subr.mxu0 0.0
        %2714 = vmatpush2.msra.mxu0 0.0
        %2715 = vmatprep.subr.mxu0 0.0
        %2716 = vmatpush2.msra.mxu0 0.0
        %2717 = vmatprep.subr.mxu0 0.0
        %2718 = vmatpush2.msra.mxu0 0.0
        %2719 = vmatprep.subr.mxu0 0.0
        %2720 = vmatpush2.msra.mxu0 0.0
        %2721 = vmatprep.subr.mxu0 0.0
        %2722 = vmatpush2.msra.mxu0 0.0
        %2723 = vmatprep.subr.mxu0 0.0
        %2724 = vmatpush2.msra.mxu0 0.0
        %2725 = vmatprep.subr.mxu0 0.0
        %2726 = vmatpush2.msra.mxu0 0.0
        %2727 = vmatprep.subr.mxu0 0.0
        %2728 = vmatpush2.msra.mxu0 0.0
        %2729 = vmatprep.subr.mxu0 0.0
        %2730 = vmatpush2.msra.mxu0 0.0
        %2731 = vmatprep.mubr.f32.mxu0 0.0
        %2732 = vmatmul.mubr.f32.gmra.mxu0 %v2665
        %v2733 = vpop.f32.mrf.mxu0
        %v2734 = vadd.f32 %v2662, %v2733
        %v2735 = vpop.f32.mrf.mxu0
        %2736 = vdwg.mxu0
        %v2737 = vadd.f32 %v2559, %v2734
        %s2738 = scalar_lea.vmem %s1697, 7
        %v2739 = vld [vmem:[%s2738] ss:$8 sm:$0x3]
        %s2740 = scalar_lea.vmem %s1697, 16
        %v2741 = vld [vmem:[%s2740] ss:$8 sm:$0x3]
        %v2742 = vsel %vm615, %v2737, 0.0
        %2743 = vadd.xlane.f32.xlu0 %v2742
        %v2744 = vpop.xlane.xlu0 %2743
        %v2745 = vmul.f32 %v2744, %v1450
        %v2746 = vsub.f32 %v2737, %v2745
        %v2747 = vmul.f32 %v2746, %v2746
        %v2748 = vsel %vm615, %v2747, 0.0
        %2749 = vadd.xlane.f32.xlu0 %v2748
        %v2750 = vpop.xlane.xlu0 %2749
        %v2751 = vmul.f32 %v2750, %v1450
        %v2752 = vadd.f32 %v2751, 1e-05
        %v2753 = vrsqrt.pop %v2752
        %v2754 = vmul.f32 %v2746, %v2753
        %v2756 = vlaneseq
        %v2757 = vshrl.u32 %v2756, 7
        %v2758 = vsub.s32 0, %v2757
        %v2759 = vrot.slane %v2739, %v2758
        %v2761 = vmul.f32 %v2754, %v2759
        %v2763 = vlaneseq
        %v2764 = vshrl.u32 %v2763, 7
        %v2765 = vsub.s32 0, %v2764
        %v2766 = vrot.slane %v2741, %v2765
        %v2768 = vadd.f32 %v2761, %v2766
        %v2769 = vlaneseq
        %v2770 = vshrl.u32 %v2769, 7
        %v2771 = vlaneseq
        %v2772 = vand.u32 %v2771, 127
        %vm2773 = vcmp.le.s32.totalorder %v2772, %v2770
        %v2774 = vsel %vm2773, 0.0, -1e+09
        %v2775 = vld [vmem:[%s586] sm:$0xff]
        %v2776 = vld [vmem:[%s8] sm:$0xff]
        %v2777 = vld [vmem:[%s8 + $0x8] sm:$0xff]
        %v2778 = vld [vmem:[%s8 + $0x10] sm:$0xff]
        %v2779 = vld [vmem:[%s8 + $0x18] sm:$0xff]
        %v2780 = vld [vmem:[%s9] sm:$0xff]
        %v2781 = vld [vmem:[%s9 + $0x8] sm:$0xff]
        %v2782 = vld [vmem:[%s9 + $0x10] sm:$0xff]
        %v2783 = vld [vmem:[%s9 + $0x18] sm:$0xff]
        %v2784 = vld [vmem:[%s9 + $0x20] sm:$0xff]
        %v2785 = vld [vmem:[%s9 + $0x28] sm:$0xff]
        %v2786 = vld [vmem:[%s9 + $0x30] sm:$0xff]
        %v2787 = vld [vmem:[%s9 + $0x38] sm:$0xff]
        %v2788 = vld [vmem:[%s14] ss:$8 sm:$0x3]
        %s2789 = scalar_lea.vmem %s14, 1
        %v2790 = vld [vmem:[%s2789] ss:$8 sm:$0x3]
        %s2791 = scalar_lea.vmem %s14, 2
        %v2792 = vld [vmem:[%s2791] ss:$8 sm:$0x3]
        %v2794 = vlaneseq
        %v2795 = vshrl.u32 %v2794, 7
        %v2796 = vsub.s32 0, %v2795
        %v2797 = vrot.slane %v2788, %v2796
        %v2800 = vsel %vm615, %v2775, 0
        %2802 = vmatprep.subr.mxu0 0.0
        %2803 = vmatpush1.msra.mxu0 0.0
        %2804 = vmatprep.subr.mxu0 0.0
        %2805 = vmatpush1.msra.mxu0 0.0
        %2806 = vmatprep.subr.mxu0 0.0
        %2807 = vmatpush1.msra.mxu0 0.0
        %2808 = vmatprep.subr.mxu0 0.0
        %2809 = vmatpush1.msra.mxu0 0.0
        %2810 = vmatprep.subr.mxu0 0.0
        %2811 = vmatpush1.msra.mxu0 0.0
        %2812 = vmatprep.subr.mxu0 0.0
        %2813 = vmatpush1.msra.mxu0 0.0
        %2814 = vmatprep.subr.mxu0 0.0
        %2815 = vmatpush1.msra.mxu0 0.0
        %2816 = vmatprep.subr.mxu0 0.0
        %2817 = vmatpush1.msra.mxu0 0.0
        %2818 = vmatprep.subr.mxu0 0.0
        %2819 = vmatpush1.msra.mxu0 0.0
        %2820 = vmatprep.subr.mxu0 0.0
        %2821 = vmatpush1.msra.mxu0 0.0
        %2822 = vmatprep.subr.mxu0 0.0
        %2823 = vmatpush1.msra.mxu0 0.0
        %2824 = vmatprep.subr.mxu0 0.0
        %2825 = vmatpush1.msra.mxu0 0.0
        %2826 = vmatprep.subr.mxu0 0.0
        %2827 = vmatpush1.msra.mxu0 %v2779
        %2828 = vmatprep.subr.mxu0 0.0
        %2829 = vmatpush1.msra.mxu0 %v2778
        %2830 = vmatprep.subr.mxu0 0.0
        %2831 = vmatpush1.msra.mxu0 %v2777
        %2832 = vmatprep.subr.mxu0 0.0
        %2833 = vmatpush1.msra.mxu0 %v2776
        %2834 = vmatprep.subr.mxu0 0.0
        %2835 = vmatpush2.msra.mxu0 0.0
        %2836 = vmatprep.subr.mxu0 0.0
        %2837 = vmatpush2.msra.mxu0 0.0
        %2838 = vmatprep.subr.mxu0 0.0
        %2839 = vmatpush2.msra.mxu0 0.0
        %2840 = vmatprep.subr.mxu0 0.0
        %2841 = vmatpush2.msra.mxu0 0.0
        %2842 = vmatprep.subr.mxu0 0.0
        %2843 = vmatpush2.msra.mxu0 0.0
        %2844 = vmatprep.subr.mxu0 0.0
        %2845 = vmatpush2.msra.mxu0 0.0
        %2846 = vmatprep.subr.mxu0 0.0
        %2847 = vmatpush2.msra.mxu0 0.0
        %2848 = vmatprep.subr.mxu0 0.0
        %2849 = vmatpush2.msra.mxu0 0.0
        %2850 = vmatprep.subr.mxu0 0.0
        %2851 = vmatpush2.msra.mxu0 0.0
        %2852 = vmatprep.subr.mxu0 0.0
        %2853 = vmatpush2.msra.mxu0 0.0
        %2854 = vmatprep.subr.mxu0 0.0
        %2855 = vmatpush2.msra.mxu0 0.0
        %2856 = vmatprep.subr.mxu0 0.0
        %2857 = vmatpush2.msra.mxu0 0.0
        %2858 = vmatprep.subr.mxu0 0.0
        %2859 = vmatpush2.msra.mxu0 0.0
        %2860 = vmatprep.subr.mxu0 0.0
        %2861 = vmatpush2.msra.mxu0 0.0
        %2862 = vmatprep.subr.mxu0 0.0
        %2863 = vmatpush2.msra.mxu0 0.0
        %2864 = vmatprep.subr.mxu0 0.0
        %2865 = vmatpush2.msra.mxu0 0.0
        %2866 = vmatprep.mubr.f32.mxu0 0.0
        %2867 = vmatmul.mubr.f32.gmra.mxu0 %v2800
        %v2868 = vpop.f32.mrf.mxu0
        %v2869 = vadd.f32 %v2797, %v2868
        %v2870 = vpop.f32.mrf.mxu0
        %2871 = vdwg.mxu0
        %v2873 = vlaneseq
        %v2874 = vshrl.u32 %v2873, 7
        %v2875 = vsub.s32 0, %v2874
        %v2876 = vrot.slane %v2790, %v2875
        %v2877 = vlaneseq
        %v2878 = vshrl.u32 %v2877, 7
        %v2879 = vsub.s32 1, %v2878
        %v2880 = vrot.slane %v2790, %v2879
        %2883 = vmatprep.subr.mxu0 0.0
        %2884 = vmatpush1.msra.mxu0 0.0
        %2885 = vmatprep.subr.mxu0 0.0
        %2886 = vmatpush1.msra.mxu0 0.0
        %2887 = vmatprep.subr.mxu0 0.0
        %2888 = vmatpush1.msra.mxu0 0.0
        %2889 = vmatprep.subr.mxu0 0.0
        %2890 = vmatpush1.msra.mxu0 0.0
        %2891 = vmatprep.subr.mxu0 0.0
        %2892 = vmatpush1.msra.mxu0 0.0
        %2893 = vmatprep.subr.mxu0 0.0
        %2894 = vmatpush1.msra.mxu0 0.0
        %2895 = vmatprep.subr.mxu0 0.0
        %2896 = vmatpush1.msra.mxu0 0.0
        %2897 = vmatprep.subr.mxu0 0.0
        %2898 = vmatpush1.msra.mxu0 0.0
        %2899 = vmatprep.subr.mxu0 0.0
        %2900 = vmatpush1.msra.mxu0 0.0
        %2901 = vmatprep.subr.mxu0 0.0
        %2902 = vmatpush1.msra.mxu0 0.0
        %2903 = vmatprep.subr.mxu0 0.0
        %2904 = vmatpush1.msra.mxu0 0.0
        %2905 = vmatprep.subr.mxu0 0.0
        %2906 = vmatpush1.msra.mxu0 0.0
        %2907 = vmatprep.subr.mxu0 %v2787
        %2908 = vmatpush1.msra.mxu0 %v2786
        %2909 = vmatprep.subr.mxu0 %v2785
        %2910 = vmatpush1.msra.mxu0 %v2784
        %2911 = vmatprep.subr.mxu0 %v2783
        %2912 = vmatpush1.msra.mxu0 %v2782
        %2913 = vmatprep.subr.mxu0 %v2781
        %2914 = vmatpush1.msra.mxu0 %v2780
        %2915 = vmatprep.subr.mxu0 0.0
        %2916 = vmatpush2.msra.mxu0 0.0
        %2917 = vmatprep.subr.mxu0 0.0
        %2918 = vmatpush2.msra.mxu0 0.0
        %2919 = vmatprep.subr.mxu0 0.0
        %2920 = vmatpush2.msra.mxu0 0.0
        %2921 = vmatprep.subr.mxu0 0.0
        %2922 = vmatpush2.msra.mxu0 0.0
        %2923 = vmatprep.subr.mxu0 0.0
        %2924 = vmatpush2.msra.mxu0 0.0
        %2925 = vmatprep.subr.mxu0 0.0
        %2926 = vmatpush2.msra.mxu0 0.0
        %2927 = vmatprep.subr.mxu0 0.0
        %2928 = vmatpush2.msra.mxu0 0.0
        %2929 = vmatprep.subr.mxu0 0.0
        %2930 = vmatpush2.msra.mxu0 0.0
        %2931 = vmatprep.subr.mxu0 0.0
        %2932 = vmatpush2.msra.mxu0 0.0
        %2933 = vmatprep.subr.mxu0 0.0
        %2934 = vmatpush2.msra.mxu0 0.0
        %2935 = vmatprep.subr.mxu0 0.0
        %2936 = vmatpush2.msra.mxu0 0.0
        %2937 = vmatprep.subr.mxu0 0.0
        %2938 = vmatpush2.msra.mxu0 0.0
        %2939 = vmatprep.subr.mxu0 0.0
        %2940 = vmatpush2.msra.mxu0 0.0
        %2941 = vmatprep.subr.mxu0 0.0
        %2942 = vmatpush2.msra.mxu0 0.0
        %2943 = vmatprep.subr.mxu0 0.0
        %2944 = vmatpush2.msra.mxu0 0.0
        %2945 = vmatprep.subr.mxu0 0.0
        %2946 = vmatpush2.msra.mxu0 0.0
        %2947 = vmatprep.mubr.f32.mxu0 0.0
        %2948 = vmatmul.mubr.f32.gmra.mxu0 %v2800
        %v2949 = vpop.f32.mrf.mxu0
        %v2950 = vadd.f32 %v2876, %v2949
        %v2951 = vpop.f32.mrf.mxu0
        %v2952 = vadd.f32 %v2880, %v2951
        %2953 = vdwg.mxu0
        %v2955 = vsel %vm777, %v2869, 0
        %v2958 = vsel %vm777, %v2950, 0
        %2960 = vmatprep.subr.mxu0 0.0
        %2961 = vmatpush1.xpose.msra.mxu0 0.0
        %2962 = vmatprep.subr.mxu0 0.0
        %2963 = vmatpush1.xpose.msra.mxu0 0.0
        %2964 = vmatprep.subr.mxu0 0.0
        %2965 = vmatpush1.xpose.msra.mxu0 0.0
        %2966 = vmatprep.subr.mxu0 0.0
        %2967 = vmatpush1.xpose.msra.mxu0 0.0
        %2968 = vmatprep.subr.mxu0 0.0
        %2969 = vmatpush1.xpose.msra.mxu0 0.0
        %2970 = vmatprep.subr.mxu0 0.0
        %2971 = vmatpush1.xpose.msra.mxu0 0.0
        %2972 = vmatprep.subr.mxu0 0.0
        %2973 = vmatpush1.xpose.msra.mxu0 0.0
        %2974 = vmatprep.subr.mxu0 0.0
        %2975 = vmatpush1.xpose.msra.mxu0 0.0
        %2976 = vmatprep.subr.mxu0 0.0
        %2977 = vmatpush1.xpose.msra.mxu0 0.0
        %2978 = vmatprep.subr.mxu0 0.0
        %2979 = vmatpush1.xpose.msra.mxu0 0.0
        %2980 = vmatprep.subr.mxu0 0.0
        %2981 = vmatpush1.xpose.msra.mxu0 0.0
        %2982 = vmatprep.subr.mxu0 0.0
        %2983 = vmatpush1.xpose.msra.mxu0 0.0
        %2984 = vmatprep.subr.mxu0 0.0
        %2985 = vmatpush1.xpose.msra.mxu0 0.0
        %2986 = vmatprep.subr.mxu0 0.0
        %2987 = vmatpush1.xpose.msra.mxu0 0.0
        %2988 = vmatprep.subr.mxu0 0.0
        %2989 = vmatpush1.xpose.msra.mxu0 0.0
        %2990 = vmatprep.subr.mxu0 0.0
        %2991 = vmatpush1.xpose.msra.mxu0 %v2958
        %2992 = vmatprep.subr.mxu0 0.0
        %2993 = vmatpush2.xpose.msra.mxu0 0.0
        %2994 = vmatprep.subr.mxu0 0.0
        %2995 = vmatpush2.xpose.msra.mxu0 0.0
        %2996 = vmatprep.subr.mxu0 0.0
        %2997 = vmatpush2.xpose.msra.mxu0 0.0
        %2998 = vmatprep.subr.mxu0 0.0
        %2999 = vmatpush2.xpose.msra.mxu0 0.0
        %3000 = vmatprep.subr.mxu0 0.0
        %3001 = vmatpush2.xpose.msra.mxu0 0.0
        %3002 = vmatprep.subr.mxu0 0.0
        %3003 = vmatpush2.xpose.msra.mxu0 0.0
        %3004 = vmatprep.subr.mxu0 0.0
        %3005 = vmatpush2.xpose.msra.mxu0 0.0
        %3006 = vmatprep.subr.mxu0 0.0
        %3007 = vmatpush2.xpose.msra.mxu0 0.0
        %3008 = vmatprep.subr.mxu0 0.0
        %3009 = vmatpush2.xpose.msra.mxu0 0.0
        %3010 = vmatprep.subr.mxu0 0.0
        %3011 = vmatpush2.xpose.msra.mxu0 0.0
        %3012 = vmatprep.subr.mxu0 0.0
        %3013 = vmatpush2.xpose.msra.mxu0 0.0
        %3014 = vmatprep.subr.mxu0 0.0
        %3015 = vmatpush2.xpose.msra.mxu0 0.0
        %3016 = vmatprep.subr.mxu0 0.0
        %3017 = vmatpush2.xpose.msra.mxu0 0.0
        %3018 = vmatprep.subr.mxu0 0.0
        %3019 = vmatpush2.xpose.msra.mxu0 0.0
        %3020 = vmatprep.subr.mxu0 0.0
        %3021 = vmatpush2.xpose.msra.mxu0 0.0
        %3022 = vmatprep.subr.mxu0 0.0
        %3023 = vmatpush2.xpose.msra.mxu0 0.0
        %3024 = vmatprep.mubr.f32.mxu0 0.0
        %3025 = vmatmul.mubr.f32.gmra.mxu0 %v2955
        %v3026 = vpop.f32.mrf.mxu0
        %v3027 = vadd.f32 %v2774, %v3026
        %v3028 = vpop.f32.mrf.mxu0
        %3029 = vdwg.mxu0
        %v3030 = vsel %vm777, %v3027, -inf
        %3031 = vmax.xlane.f32.xlu0 %v3030
        %v3032 = vpop.xlane.xlu0 %3031
        %v3033 = vsub.f32 %v3027, %v3032
        %v3034 = vmul.f32 %v3033, 1.442695
        %v3035 = vpow.pop %v3034
        %v3036 = vsel %vm777, %v3035, 0.0
        %3037 = vadd.xlane.f32.xlu0 %v3036
        %v3038 = vpop.xlane.xlu0 %3037
        %v3039 = vrcp.pop %v3038
        %v3040 = vmul.f32 %v3035, %v3039
        %3041 = vrot.lane.b32.xlu0 %v2869, 120
        %v3042 = vpop.permute.xlu0 %3041
        %3043 = vrot.lane.b32.xlu0 %v2950, 120
        %v3044 = vpop.permute.xlu0 %3043
        %v3045 = vsel %vm777, %v3042, 0
        %v3047 = vsel %vm777, %v3044, 0
        %3049 = vmatprep.subr.mxu0 0.0
        %3050 = vmatpush1.xpose.msra.mxu0 0.0
        %3051 = vmatprep.subr.mxu0 0.0
        %3052 = vmatpush1.xpose.msra.mxu0 0.0
        %3053 = vmatprep.subr.mxu0 0.0
        %3054 = vmatpush1.xpose.msra.mxu0 0.0
        %3055 = vmatprep.subr.mxu0 0.0
        %3056 = vmatpush1.xpose.msra.mxu0 0.0
        %3057 = vmatprep.subr.mxu0 0.0
        %3058 = vmatpush1.xpose.msra.mxu0 0.0
        %3059 = vmatprep.subr.mxu0 0.0
        %3060 = vmatpush1.xpose.msra.mxu0 0.0
        %3061 = vmatprep.subr.mxu0 0.0
        %3062 = vmatpush1.xpose.msra.mxu0 0.0
        %3063 = vmatprep.subr.mxu0 0.0
        %3064 = vmatpush1.xpose.msra.mxu0 0.0
        %3065 = vmatprep.subr.mxu0 0.0
        %3066 = vmatpush1.xpose.msra.mxu0 0.0
        %3067 = vmatprep.subr.mxu0 0.0
        %3068 = vmatpush1.xpose.msra.mxu0 0.0
        %3069 = vmatprep.subr.mxu0 0.0
        %3070 = vmatpush1.xpose.msra.mxu0 0.0
        %3071 = vmatprep.subr.mxu0 0.0
        %3072 = vmatpush1.xpose.msra.mxu0 0.0
        %3073 = vmatprep.subr.mxu0 0.0
        %3074 = vmatpush1.xpose.msra.mxu0 0.0
        %3075 = vmatprep.subr.mxu0 0.0
        %3076 = vmatpush1.xpose.msra.mxu0 0.0
        %3077 = vmatprep.subr.mxu0 0.0
        %3078 = vmatpush1.xpose.msra.mxu0 0.0
        %3079 = vmatprep.subr.mxu0 0.0
        %3080 = vmatpush1.xpose.msra.mxu0 %v3047
        %3081 = vmatprep.subr.mxu0 0.0
        %3082 = vmatpush2.xpose.msra.mxu0 0.0
        %3083 = vmatprep.subr.mxu0 0.0
        %3084 = vmatpush2.xpose.msra.mxu0 0.0
        %3085 = vmatprep.subr.mxu0 0.0
        %3086 = vmatpush2.xpose.msra.mxu0 0.0
        %3087 = vmatprep.subr.mxu0 0.0
        %3088 = vmatpush2.xpose.msra.mxu0 0.0
        %3089 = vmatprep.subr.mxu0 0.0
        %3090 = vmatpush2.xpose.msra.mxu0 0.0
        %3091 = vmatprep.subr.mxu0 0.0
        %3092 = vmatpush2.xpose.msra.mxu0 0.0
        %3093 = vmatprep.subr.mxu0 0.0
        %3094 = vmatpush2.xpose.msra.mxu0 0.0
        %3095 = vmatprep.subr.mxu0 0.0
        %3096 = vmatpush2.xpose.msra.mxu0 0.0
        %3097 = vmatprep.subr.mxu0 0.0
        %3098 = vmatpush2.xpose.msra.mxu0 0.0
        %3099 = vmatprep.subr.mxu0 0.0
        %3100 = vmatpush2.xpose.msra.mxu0 0.0
        %3101 = vmatprep.subr.mxu0 0.0
        %3102 = vmatpush2.xpose.msra.mxu0 0.0
        %3103 = vmatprep.subr.mxu0 0.0
        %3104 = vmatpush2.xpose.msra.mxu0 0.0
        %3105 = vmatprep.subr.mxu0 0.0
        %3106 = vmatpush2.xpose.msra.mxu0 0.0
        %3107 = vmatprep.subr.mxu0 0.0
        %3108 = vmatpush2.xpose.msra.mxu0 0.0
        %3109 = vmatprep.subr.mxu0 0.0
        %3110 = vmatpush2.xpose.msra.mxu0 0.0
        %3111 = vmatprep.subr.mxu0 0.0
        %3112 = vmatpush2.xpose.msra.mxu0 0.0
        %3113 = vmatprep.mubr.f32.mxu0 0.0
        %3114 = vmatmul.mubr.f32.gmra.mxu0 %v3045
        %v3115 = vpop.f32.mrf.mxu0
        %v3116 = vadd.f32 %v2774, %v3115
        %v3117 = vpop.f32.mrf.mxu0
        %3118 = vdwg.mxu0
        %v3119 = vsel %vm777, %v3116, -inf
        %3120 = vmax.xlane.f32.xlu0 %v3119
        %v3121 = vpop.xlane.xlu0 %3120
        %v3122 = vsub.f32 %v3116, %v3121
        %v3123 = vmul.f32 %v3122, 1.442695
        %v3124 = vpow.pop %v3123
        %v3125 = vsel %vm777, %v3124, 0.0
        %3126 = vadd.xlane.f32.xlu0 %v3125
        %v3127 = vpop.xlane.xlu0 %3126
        %v3128 = vrcp.pop %v3127
        %v3129 = vmul.f32 %v3124, %v3128
        %3130 = vrot.lane.b32.xlu0 %v2950, 64
        %v3131 = vpop.permute.xlu0 %3130
        %v3134 = vsel %vm777, %v3129, 0
        %3136 = vmatprep.subr.mxu0 0.0
        %3137 = vmatpush1.msra.mxu0 0.0
        %3138 = vmatprep.subr.mxu0 0.0
        %3139 = vmatpush1.msra.mxu0 0.0
        %3140 = vmatprep.subr.mxu0 0.0
        %3141 = vmatpush1.msra.mxu0 0.0
        %3142 = vmatprep.subr.mxu0 0.0
        %3143 = vmatpush1.msra.mxu0 0.0
        %3144 = vmatprep.subr.mxu0 0.0
        %3145 = vmatpush1.msra.mxu0 0.0
        %3146 = vmatprep.subr.mxu0 0.0
        %3147 = vmatpush1.msra.mxu0 0.0
        %3148 = vmatprep.subr.mxu0 0.0
        %3149 = vmatpush1.msra.mxu0 0.0
        %3150 = vmatprep.subr.mxu0 0.0
        %3151 = vmatpush1.msra.mxu0 0.0
        %3152 = vmatprep.subr.mxu0 0.0
        %3153 = vmatpush1.msra.mxu0 0.0
        %3154 = vmatprep.subr.mxu0 0.0
        %3155 = vmatpush1.msra.mxu0 0.0
        %3156 = vmatprep.subr.mxu0 0.0
        %3157 = vmatpush1.msra.mxu0 0.0
        %3158 = vmatprep.subr.mxu0 0.0
        %3159 = vmatpush1.msra.mxu0 0.0
        %3160 = vmatprep.subr.mxu0 0.0
        %3161 = vmatpush1.msra.mxu0 0.0
        %3162 = vmatprep.subr.mxu0 0.0
        %3163 = vmatpush1.msra.mxu0 0.0
        %3164 = vmatprep.subr.mxu0 0.0
        %3165 = vmatpush1.msra.mxu0 0.0
        %3166 = vmatprep.subr.mxu0 0.0
        %3167 = vmatpush1.msra.mxu0 %v3131
        %3168 = vmatprep.subr.mxu0 0.0
        %3169 = vmatpush2.msra.mxu0 0.0
        %3170 = vmatprep.subr.mxu0 0.0
        %3171 = vmatpush2.msra.mxu0 0.0
        %3172 = vmatprep.subr.mxu0 0.0
        %3173 = vmatpush2.msra.mxu0 0.0
        %3174 = vmatprep.subr.mxu0 0.0
        %3175 = vmatpush2.msra.mxu0 0.0
        %3176 = vmatprep.subr.mxu0 0.0
        %3177 = vmatpush2.msra.mxu0 0.0
        %3178 = vmatprep.subr.mxu0 0.0
        %3179 = vmatpush2.msra.mxu0 0.0
        %3180 = vmatprep.subr.mxu0 0.0
        %3181 = vmatpush2.msra.mxu0 0.0
        %3182 = vmatprep.subr.mxu0 0.0
        %3183 = vmatpush2.msra.mxu0 0.0
        %3184 = vmatprep.subr.mxu0 0.0
        %3185 = vmatpush2.msra.mxu0 0.0
        %3186 = vmatprep.subr.mxu0 0.0
        %3187 = vmatpush2.msra.mxu0 0.0
        %3188 = vmatprep.subr.mxu0 0.0
        %3189 = vmatpush2.msra.mxu0 0.0
        %3190 = vmatprep.subr.mxu0 0.0
        %3191 = vmatpush2.msra.mxu0 0.0
        %3192 = vmatprep.subr.mxu0 0.0
        %3193 = vmatpush2.msra.mxu0 0.0
        %3194 = vmatprep.subr.mxu0 0.0
        %3195 = vmatpush2.msra.mxu0 0.0
        %3196 = vmatprep.subr.mxu0 0.0
        %3197 = vmatpush2.msra.mxu0 0.0
        %3198 = vmatprep.subr.mxu0 0.0
        %3199 = vmatpush2.msra.mxu0 0.0
        %3200 = vmatprep.mubr.f32.mxu0 0.0
        %3201 = vmatmul.mubr.f32.gmra.mxu0 %v3134
        %v3202 = vpop.f32.mrf.mxu0
        %v3203 = vadd.f32 0.0, %v3202
        %v3204 = vpop.f32.mrf.mxu0
        %3205 = vdwg.mxu0
        %3206 = vrot.lane.b32.xlu0 %v2950, 96
        %v3207 = vpop.permute.xlu0 %3206
        %v3210 = vsel %vm777, %v3040, 0
        %3212 = vmatprep.subr.mxu0 0.0
        %3213 = vmatpush1.msra.mxu0 0.0
        %3214 = vmatprep.subr.mxu0 0.0
        %3215 = vmatpush1.msra.mxu0 0.0
        %3216 = vmatprep.subr.mxu0 0.0
        %3217 = vmatpush1.msra.mxu0 0.0
        %3218 = vmatprep.subr.mxu0 0.0
        %3219 = vmatpush1.msra.mxu0 0.0
        %3220 = vmatprep.subr.mxu0 0.0
        %3221 = vmatpush1.msra.mxu0 0.0
        %3222 = vmatprep.subr.mxu0 0.0
        %3223 = vmatpush1.msra.mxu0 0.0
        %3224 = vmatprep.subr.mxu0 0.0
        %3225 = vmatpush1.msra.mxu0 0.0
        %3226 = vmatprep.subr.mxu0 0.0
        %3227 = vmatpush1.msra.mxu0 0.0
        %3228 = vmatprep.subr.mxu0 0.0
        %3229 = vmatpush1.msra.mxu0 0.0
        %3230 = vmatprep.subr.mxu0 0.0
        %3231 = vmatpush1.msra.mxu0 0.0
        %3232 = vmatprep.subr.mxu0 0.0
        %3233 = vmatpush1.msra.mxu0 0.0
        %3234 = vmatprep.subr.mxu0 0.0
        %3235 = vmatpush1.msra.mxu0 0.0
        %3236 = vmatprep.subr.mxu0 0.0
        %3237 = vmatpush1.msra.mxu0 0.0
        %3238 = vmatprep.subr.mxu0 0.0
        %3239 = vmatpush1.msra.mxu0 0.0
        %3240 = vmatprep.subr.mxu0 0.0
        %3241 = vmatpush1.msra.mxu0 0.0
        %3242 = vmatprep.subr.mxu0 0.0
        %3243 = vmatpush1.msra.mxu0 %v3207
        %3244 = vmatprep.subr.mxu0 0.0
        %3245 = vmatpush2.msra.mxu0 0.0
        %3246 = vmatprep.subr.mxu0 0.0
        %3247 = vmatpush2.msra.mxu0 0.0
        %3248 = vmatprep.subr.mxu0 0.0
        %3249 = vmatpush2.msra.mxu0 0.0
        %3250 = vmatprep.subr.mxu0 0.0
        %3251 = vmatpush2.msra.mxu0 0.0
        %3252 = vmatprep.subr.mxu0 0.0
        %3253 = vmatpush2.msra.mxu0 0.0
        %3254 = vmatprep.subr.mxu0 0.0
        %3255 = vmatpush2.msra.mxu0 0.0
        %3256 = vmatprep.subr.mxu0 0.0
        %3257 = vmatpush2.msra.mxu0 0.0
        %3258 = vmatprep.subr.mxu0 0.0
        %3259 = vmatpush2.msra.mxu0 0.0
        %3260 = vmatprep.subr.mxu0 0.0
        %3261 = vmatpush2.msra.mxu0 0.0
        %3262 = vmatprep.subr.mxu0 0.0
        %3263 = vmatpush2.msra.mxu0 0.0
        %3264 = vmatprep.subr.mxu0 0.0
        %3265 = vmatpush2.msra.mxu0 0.0
        %3266 = vmatprep.subr.mxu0 0.0
        %3267 = vmatpush2.msra.mxu0 0.0
        %3268 = vmatprep.subr.mxu0 0.0
        %3269 = vmatpush2.msra.mxu0 0.0
        %3270 = vmatprep.subr.mxu0 0.0
        %3271 = vmatpush2.msra.mxu0 0.0
        %3272 = vmatprep.subr.mxu0 0.0
        %3273 = vmatpush2.msra.mxu0 0.0
        %3274 = vmatprep.subr.mxu0 0.0
        %3275 = vmatpush2.msra.mxu0 0.0
        %3276 = vmatprep.mubr.f32.mxu0 0.0
        %3277 = vmatmul.mubr.f32.gmra.mxu0 %v3210
        %v3278 = vpop.f32.mrf.mxu0
        %v3279 = vadd.f32 %v3203, %v3278
        %v3280 = vpop.f32.mrf.mxu0
        %3281 = vdwg.mxu0
        %3282 = vrot.lane.b32.xlu0 %v2869, 112
        %v3283 = vpop.permute.xlu0 %3282
        %3284 = vrot.lane.b32.xlu0 %v2950, 112
        %v3285 = vpop.permute.xlu0 %3284
        %v3286 = vsel %vm777, %v3283, 0
        %v3288 = vsel %vm777, %v3285, 0
        %3290 = vmatprep.subr.mxu0 0.0
        %3291 = vmatpush1.xpose.msra.mxu0 0.0
        %3292 = vmatprep.subr.mxu0 0.0
        %3293 = vmatpush1.xpose.msra.mxu0 0.0
        %3294 = vmatprep.subr.mxu0 0.0
        %3295 = vmatpush1.xpose.msra.mxu0 0.0
        %3296 = vmatprep.subr.mxu0 0.0
        %3297 = vmatpush1.xpose.msra.mxu0 0.0
        %3298 = vmatprep.subr.mxu0 0.0
        %3299 = vmatpush1.xpose.msra.mxu0 0.0
        %3300 = vmatprep.subr.mxu0 0.0
        %3301 = vmatpush1.xpose.msra.mxu0 0.0
        %3302 = vmatprep.subr.mxu0 0.0
        %3303 = vmatpush1.xpose.msra.mxu0 0.0
        %3304 = vmatprep.subr.mxu0 0.0
        %3305 = vmatpush1.xpose.msra.mxu0 0.0
        %3306 = vmatprep.subr.mxu0 0.0
        %3307 = vmatpush1.xpose.msra.mxu0 0.0
        %3308 = vmatprep.subr.mxu0 0.0
        %3309 = vmatpush1.xpose.msra.mxu0 0.0
        %3310 = vmatprep.subr.mxu0 0.0
        %3311 = vmatpush1.xpose.msra.mxu0 0.0
        %3312 = vmatprep.subr.mxu0 0.0
        %3313 = vmatpush1.xpose.msra.mxu0 0.0
        %3314 = vmatprep.subr.mxu0 0.0
        %3315 = vmatpush1.xpose.msra.mxu0 0.0
        %3316 = vmatprep.subr.mxu0 0.0
        %3317 = vmatpush1.xpose.msra.mxu0 0.0
        %3318 = vmatprep.subr.mxu0 0.0
        %3319 = vmatpush1.xpose.msra.mxu0 0.0
        %3320 = vmatprep.subr.mxu0 0.0
        %3321 = vmatpush1.xpose.msra.mxu0 %v3288
        %3322 = vmatprep.subr.mxu0 0.0
        %3323 = vmatpush2.xpose.msra.mxu0 0.0
        %3324 = vmatprep.subr.mxu0 0.0
        %3325 = vmatpush2.xpose.msra.mxu0 0.0
        %3326 = vmatprep.subr.mxu0 0.0
        %3327 = vmatpush2.xpose.msra.mxu0 0.0
        %3328 = vmatprep.subr.mxu0 0.0
        %3329 = vmatpush2.xpose.msra.mxu0 0.0
        %3330 = vmatprep.subr.mxu0 0.0
        %3331 = vmatpush2.xpose.msra.mxu0 0.0
        %3332 = vmatprep.subr.mxu0 0.0
        %3333 = vmatpush2.xpose.msra.mxu0 0.0
        %3334 = vmatprep.subr.mxu0 0.0
        %3335 = vmatpush2.xpose.msra.mxu0 0.0
        %3336 = vmatprep.subr.mxu0 0.0
        %3337 = vmatpush2.xpose.msra.mxu0 0.0
        %3338 = vmatprep.subr.mxu0 0.0
        %3339 = vmatpush2.xpose.msra.mxu0 0.0
        %3340 = vmatprep.subr.mxu0 0.0
        %3341 = vmatpush2.xpose.msra.mxu0 0.0
        %3342 = vmatprep.subr.mxu0 0.0
        %3343 = vmatpush2.xpose.msra.mxu0 0.0
        %3344 = vmatprep.subr.mxu0 0.0
        %3345 = vmatpush2.xpose.msra.mxu0 0.0
        %3346 = vmatprep.subr.mxu0 0.0
        %3347 = vmatpush2.xpose.msra.mxu0 0.0
        %3348 = vmatprep.subr.mxu0 0.0
        %3349 = vmatpush2.xpose.msra.mxu0 0.0
        %3350 = vmatprep.subr.mxu0 0.0
        %3351 = vmatpush2.xpose.msra.mxu0 0.0
        %3352 = vmatprep.subr.mxu0 0.0
        %3353 = vmatpush2.xpose.msra.mxu0 0.0
        %3354 = vmatprep.mubr.f32.mxu0 0.0
        %3355 = vmatmul.mubr.f32.gmra.mxu0 %v3286
        %v3356 = vpop.f32.mrf.mxu0
        %v3357 = vadd.f32 %v2774, %v3356
        %v3358 = vpop.f32.mrf.mxu0
        %3359 = vdwg.mxu0
        %v3360 = vsel %vm777, %v3357, -inf
        %3361 = vmax.xlane.f32.xlu0 %v3360
        %v3362 = vpop.xlane.xlu0 %3361
        %v3363 = vsub.f32 %v3357, %v3362
        %v3364 = vmul.f32 %v3363, 1.442695
        %v3365 = vpow.pop %v3364
        %v3366 = vsel %vm777, %v3365, 0.0
        %3367 = vadd.xlane.f32.xlu0 %v3366
        %v3368 = vpop.xlane.xlu0 %3367
        %v3369 = vrcp.pop %v3368
        %v3370 = vmul.f32 %v3365, %v3369
        %3371 = vrot.lane.b32.xlu0 %v2950, 32
        %v3372 = vpop.permute.xlu0 %3371
        %v3375 = vsel %vm777, %v3370, 0
        %3377 = vmatprep.subr.mxu0 0.0
        %3378 = vmatpush1.msra.mxu0 0.0
        %3379 = vmatprep.subr.mxu0 0.0
        %3380 = vmatpush1.msra.mxu0 0.0
        %3381 = vmatprep.subr.mxu0 0.0
        %3382 = vmatpush1.msra.mxu0 0.0
        %3383 = vmatprep.subr.mxu0 0.0
        %3384 = vmatpush1.msra.mxu0 0.0
        %3385 = vmatprep.subr.mxu0 0.0
        %3386 = vmatpush1.msra.mxu0 0.0
        %3387 = vmatprep.subr.mxu0 0.0
        %3388 = vmatpush1.msra.mxu0 0.0
        %3389 = vmatprep.subr.mxu0 0.0
        %3390 = vmatpush1.msra.mxu0 0.0
        %3391 = vmatprep.subr.mxu0 0.0
        %3392 = vmatpush1.msra.mxu0 0.0
        %3393 = vmatprep.subr.mxu0 0.0
        %3394 = vmatpush1.msra.mxu0 0.0
        %3395 = vmatprep.subr.mxu0 0.0
        %3396 = vmatpush1.msra.mxu0 0.0
        %3397 = vmatprep.subr.mxu0 0.0
        %3398 = vmatpush1.msra.mxu0 0.0
        %3399 = vmatprep.subr.mxu0 0.0
        %3400 = vmatpush1.msra.mxu0 0.0
        %3401 = vmatprep.subr.mxu0 0.0
        %3402 = vmatpush1.msra.mxu0 0.0
        %3403 = vmatprep.subr.mxu0 0.0
        %3404 = vmatpush1.msra.mxu0 0.0
        %3405 = vmatprep.subr.mxu0 0.0
        %3406 = vmatpush1.msra.mxu0 0.0
        %3407 = vmatprep.subr.mxu0 0.0
        %3408 = vmatpush1.msra.mxu0 %v3372
        %3409 = vmatprep.subr.mxu0 0.0
        %3410 = vmatpush2.msra.mxu0 0.0
        %3411 = vmatprep.subr.mxu0 0.0
        %3412 = vmatpush2.msra.mxu0 0.0
        %3413 = vmatprep.subr.mxu0 0.0
        %3414 = vmatpush2.msra.mxu0 0.0
        %3415 = vmatprep.subr.mxu0 0.0
        %3416 = vmatpush2.msra.mxu0 0.0
        %3417 = vmatprep.subr.mxu0 0.0
        %3418 = vmatpush2.msra.mxu0 0.0
        %3419 = vmatprep.subr.mxu0 0.0
        %3420 = vmatpush2.msra.mxu0 0.0
        %3421 = vmatprep.subr.mxu0 0.0
        %3422 = vmatpush2.msra.mxu0 0.0
        %3423 = vmatprep.subr.mxu0 0.0
        %3424 = vmatpush2.msra.mxu0 0.0
        %3425 = vmatprep.subr.mxu0 0.0
        %3426 = vmatpush2.msra.mxu0 0.0
        %3427 = vmatprep.subr.mxu0 0.0
        %3428 = vmatpush2.msra.mxu0 0.0
        %3429 = vmatprep.subr.mxu0 0.0
        %3430 = vmatpush2.msra.mxu0 0.0
        %3431 = vmatprep.subr.mxu0 0.0
        %3432 = vmatpush2.msra.mxu0 0.0
        %3433 = vmatprep.subr.mxu0 0.0
        %3434 = vmatpush2.msra.mxu0 0.0
        %3435 = vmatprep.subr.mxu0 0.0
        %3436 = vmatpush2.msra.mxu0 0.0
        %3437 = vmatprep.subr.mxu0 0.0
        %3438 = vmatpush2.msra.mxu0 0.0
        %3439 = vmatprep.subr.mxu0 0.0
        %3440 = vmatpush2.msra.mxu0 0.0
        %3441 = vmatprep.mubr.f32.mxu0 0.0
        %3442 = vmatmul.mubr.f32.gmra.mxu0 %v3375
        %v3443 = vpop.f32.mrf.mxu0
        %v3444 = vadd.f32 0.0, %v3443
        %v3445 = vpop.f32.mrf.mxu0
        %3446 = vdwg.mxu0
        %v3447 = vadd.f32 %v3279, %v3444
        %3448 = vrot.lane.b32.xlu0 %v2869, 104
        %v3449 = vpop.permute.xlu0 %3448
        %3450 = vrot.lane.b32.xlu0 %v2950, 104
        %v3451 = vpop.permute.xlu0 %3450
        %v3452 = vsel %vm777, %v3449, 0
        %v3454 = vsel %vm777, %v3451, 0
        %3456 = vmatprep.subr.mxu0 0.0
        %3457 = vmatpush1.xpose.msra.mxu0 0.0
        %3458 = vmatprep.subr.mxu0 0.0
        %3459 = vmatpush1.xpose.msra.mxu0 0.0
        %3460 = vmatprep.subr.mxu0 0.0
        %3461 = vmatpush1.xpose.msra.mxu0 0.0
        %3462 = vmatprep.subr.mxu0 0.0
        %3463 = vmatpush1.xpose.msra.mxu0 0.0
        %3464 = vmatprep.subr.mxu0 0.0
        %3465 = vmatpush1.xpose.msra.mxu0 0.0
        %3466 = vmatprep.subr.mxu0 0.0
        %3467 = vmatpush1.xpose.msra.mxu0 0.0
        %3468 = vmatprep.subr.mxu0 0.0
        %3469 = vmatpush1.xpose.msra.mxu0 0.0
        %3470 = vmatprep.subr.mxu0 0.0
        %3471 = vmatpush1.xpose.msra.mxu0 0.0
        %3472 = vmatprep.subr.mxu0 0.0
        %3473 = vmatpush1.xpose.msra.mxu0 0.0
        %3474 = vmatprep.subr.mxu0 0.0
        %3475 = vmatpush1.xpose.msra.mxu0 0.0
        %3476 = vmatprep.subr.mxu0 0.0
        %3477 = vmatpush1.xpose.msra.mxu0 0.0
        %3478 = vmatprep.subr.mxu0 0.0
        %3479 = vmatpush1.xpose.msra.mxu0 0.0
        %3480 = vmatprep.subr.mxu0 0.0
        %3481 = vmatpush1.xpose.msra.mxu0 0.0
        %3482 = vmatprep.subr.mxu0 0.0
        %3483 = vmatpush1.xpose.msra.mxu0 0.0
        %3484 = vmatprep.subr.mxu0 0.0
        %3485 = vmatpush1.xpose.msra.mxu0 0.0
        %3486 = vmatprep.subr.mxu0 0.0
        %3487 = vmatpush1.xpose.msra.mxu0 %v3454
        %3488 = vmatprep.subr.mxu0 0.0
        %3489 = vmatpush2.xpose.msra.mxu0 0.0
        %3490 = vmatprep.subr.mxu0 0.0
        %3491 = vmatpush2.xpose.msra.mxu0 0.0
        %3492 = vmatprep.subr.mxu0 0.0
        %3493 = vmatpush2.xpose.msra.mxu0 0.0
        %3494 = vmatprep.subr.mxu0 0.0
        %3495 = vmatpush2.xpose.msra.mxu0 0.0
        %3496 = vmatprep.subr.mxu0 0.0
        %3497 = vmatpush2.xpose.msra.mxu0 0.0
        %3498 = vmatprep.subr.mxu0 0.0
        %3499 = vmatpush2.xpose.msra.mxu0 0.0
        %3500 = vmatprep.subr.mxu0 0.0
        %3501 = vmatpush2.xpose.msra.mxu0 0.0
        %3502 = vmatprep.subr.mxu0 0.0
        %3503 = vmatpush2.xpose.msra.mxu0 0.0
        %3504 = vmatprep.subr.mxu0 0.0
        %3505 = vmatpush2.xpose.msra.mxu0 0.0
        %3506 = vmatprep.subr.mxu0 0.0
        %3507 = vmatpush2.xpose.msra.mxu0 0.0
        %3508 = vmatprep.subr.mxu0 0.0
        %3509 = vmatpush2.xpose.msra.mxu0 0.0
        %3510 = vmatprep.subr.mxu0 0.0
        %3511 = vmatpush2.xpose.msra.mxu0 0.0
        %3512 = vmatprep.subr.mxu0 0.0
        %3513 = vmatpush2.xpose.msra.mxu0 0.0
        %3514 = vmatprep.subr.mxu0 0.0
        %3515 = vmatpush2.xpose.msra.mxu0 0.0
        %3516 = vmatprep.subr.mxu0 0.0
        %3517 = vmatpush2.xpose.msra.mxu0 0.0
        %3518 = vmatprep.subr.mxu0 0.0
        %3519 = vmatpush2.xpose.msra.mxu0 0.0
        %3520 = vmatprep.mubr.f32.mxu0 0.0
        %3521 = vmatmul.mubr.f32.gmra.mxu0 %v3452
        %v3522 = vpop.f32.mrf.mxu0
        %v3523 = vadd.f32 %v2774, %v3522
        %v3524 = vpop.f32.mrf.mxu0
        %3525 = vdwg.mxu0
        %v3526 = vsel %vm777, %v3523, -inf
        %3527 = vmax.xlane.f32.xlu0 %v3526
        %v3528 = vpop.xlane.xlu0 %3527
        %v3529 = vsub.f32 %v3523, %v3528
        %v3530 = vmul.f32 %v3529, 1.442695
        %v3531 = vpow.pop %v3530
        %v3532 = vsel %vm777, %v3531, 0.0
        %3533 = vadd.xlane.f32.xlu0 %v3532
        %v3534 = vpop.xlane.xlu0 %3533
        %v3535 = vrcp.pop %v3534
        %v3536 = vmul.f32 %v3531, %v3535
        %v3538 = vsel %vm777, %v3536, 0
        %3540 = vmatprep.subr.mxu0 0.0
        %3541 = vmatpush1.msra.mxu0 0.0
        %3542 = vmatprep.subr.mxu0 0.0
        %3543 = vmatpush1.msra.mxu0 0.0
        %3544 = vmatprep.subr.mxu0 0.0
        %3545 = vmatpush1.msra.mxu0 0.0
        %3546 = vmatprep.subr.mxu0 0.0
        %3547 = vmatpush1.msra.mxu0 0.0
        %3548 = vmatprep.subr.mxu0 0.0
        %3549 = vmatpush1.msra.mxu0 0.0
        %3550 = vmatprep.subr.mxu0 0.0
        %3551 = vmatpush1.msra.mxu0 0.0
        %3552 = vmatprep.subr.mxu0 0.0
        %3553 = vmatpush1.msra.mxu0 0.0
        %3554 = vmatprep.subr.mxu0 0.0
        %3555 = vmatpush1.msra.mxu0 0.0
        %3556 = vmatprep.subr.mxu0 0.0
        %3557 = vmatpush1.msra.mxu0 0.0
        %3558 = vmatprep.subr.mxu0 0.0
        %3559 = vmatpush1.msra.mxu0 0.0
        %3560 = vmatprep.subr.mxu0 0.0
        %3561 = vmatpush1.msra.mxu0 0.0
        %3562 = vmatprep.subr.mxu0 0.0
        %3563 = vmatpush1.msra.mxu0 0.0
        %3564 = vmatprep.subr.mxu0 0.0
        %3565 = vmatpush1.msra.mxu0 0.0
        %3566 = vmatprep.subr.mxu0 0.0
        %3567 = vmatpush1.msra.mxu0 0.0
        %3568 = vmatprep.subr.mxu0 0.0
        %3569 = vmatpush1.msra.mxu0 0.0
        %3570 = vmatprep.subr.mxu0 0.0
        %3571 = vmatpush1.msra.mxu0 %v2952
        %3572 = vmatprep.subr.mxu0 0.0
        %3573 = vmatpush2.msra.mxu0 0.0
        %3574 = vmatprep.subr.mxu0 0.0
        %3575 = vmatpush2.msra.mxu0 0.0
        %3576 = vmatprep.subr.mxu0 0.0
        %3577 = vmatpush2.msra.mxu0 0.0
        %3578 = vmatprep.subr.mxu0 0.0
        %3579 = vmatpush2.msra.mxu0 0.0
        %3580 = vmatprep.subr.mxu0 0.0
        %3581 = vmatpush2.msra.mxu0 0.0
        %3582 = vmatprep.subr.mxu0 0.0
        %3583 = vmatpush2.msra.mxu0 0.0
        %3584 = vmatprep.subr.mxu0 0.0
        %3585 = vmatpush2.msra.mxu0 0.0
        %3586 = vmatprep.subr.mxu0 0.0
        %3587 = vmatpush2.msra.mxu0 0.0
        %3588 = vmatprep.subr.mxu0 0.0
        %3589 = vmatpush2.msra.mxu0 0.0
        %3590 = vmatprep.subr.mxu0 0.0
        %3591 = vmatpush2.msra.mxu0 0.0
        %3592 = vmatprep.subr.mxu0 0.0
        %3593 = vmatpush2.msra.mxu0 0.0
        %3594 = vmatprep.subr.mxu0 0.0
        %3595 = vmatpush2.msra.mxu0 0.0
        %3596 = vmatprep.subr.mxu0 0.0
        %3597 = vmatpush2.msra.mxu0 0.0
        %3598 = vmatprep.subr.mxu0 0.0
        %3599 = vmatpush2.msra.mxu0 0.0
        %3600 = vmatprep.subr.mxu0 0.0
        %3601 = vmatpush2.msra.mxu0 0.0
        %3602 = vmatprep.subr.mxu0 0.0
        %3603 = vmatpush2.msra.mxu0 0.0
        %3604 = vmatprep.mubr.f32.mxu0 0.0
        %3605 = vmatmul.mubr.f32.gmra.mxu0 %v3538
        %v3606 = vpop.f32.mrf.mxu0
        %v3607 = vadd.f32 0.0, %v3606
        %v3608 = vpop.f32.mrf.mxu0
        %3609 = vdwg.mxu0
        %v3610 = vadd.f32 %v3447, %v3607
        %v3612 = vlaneseq
        %v3613 = vshrl.u32 %v3612, 7
        %v3614 = vsub.s32 0, %v3613
        %v3615 = vrot.slane %v2792, %v3614
        %v3617 = vadd.f32 %v3610, %v3615
        %v3618 = vadd.f32 %v2775, %v3617
        %s3619 = scalar_lea.vmem %s14, 3
        %v3620 = vld [vmem:[%s3619] ss:$8 sm:$0x3]
        %s3621 = scalar_lea.vmem %s14, 4
        %v3622 = vld [vmem:[%s3621] ss:$8 sm:$0x3]
        %v3623 = vsel %vm615, %v3618, 0.0
        %3624 = vadd.xlane.f32.xlu0 %v3623
        %v3625 = vpop.xlane.xlu0 %3624
        %v3626 = vmul.f32 %v3625, %v1450
        %v3627 = vsub.f32 %v3618, %v3626
        %v3628 = vmul.f32 %v3627, %v3627
        %v3629 = vsel %vm615, %v3628, 0.0
        %3630 = vadd.xlane.f32.xlu0 %v3629
        %v3631 = vpop.xlane.xlu0 %3630
        %v3632 = vmul.f32 %v3631, %v1450
        %v3633 = vadd.f32 %v3632, 1e-05
        %v3634 = vrsqrt.pop %v3633
        %v3635 = vmul.f32 %v3627, %v3634
        %v3637 = vlaneseq
        %v3638 = vshrl.u32 %v3637, 7
        %v3639 = vsub.s32 0, %v3638
        %v3640 = vrot.slane %v3620, %v3639
        %v3642 = vmul.f32 %v3635, %v3640
        %v3644 = vlaneseq
        %v3645 = vshrl.u32 %v3644, 7
        %v3646 = vsub.s32 0, %v3645
        %v3647 = vrot.slane %v3622, %v3646
        %v3649 = vadd.f32 %v3642, %v3647
        %v3650 = vld [vmem:[%s10] sm:$0xff]
        %v3651 = vld [vmem:[%s10 + $0x8] sm:$0xff]
        %v3652 = vld [vmem:[%s10 + $0x10] sm:$0xff]
        %v3653 = vld [vmem:[%s10 + $0x18] sm:$0xff]
        %v3654 = vld [vmem:[%s11] sm:$0xff]
        %v3655 = vld [vmem:[%s11 + $0x8] sm:$0xff]
        %v3656 = vld [vmem:[%s11 + $0x10] sm:$0xff]
        %v3657 = vld [vmem:[%s11 + $0x18] sm:$0xff]
        %v3658 = vld [vmem:[%s11 + $0x20] sm:$0xff]
        %v3659 = vld [vmem:[%s11 + $0x28] sm:$0xff]
        %v3660 = vld [vmem:[%s11 + $0x30] sm:$0xff]
        %v3661 = vld [vmem:[%s11 + $0x38] sm:$0xff]
        %s3662 = scalar_lea.vmem %s14, 5
        %v3663 = vld [vmem:[%s3662] ss:$8 sm:$0x3]
        %s3664 = scalar_lea.vmem %s14, 6
        %v3665 = vld [vmem:[%s3664] ss:$8 sm:$0x3]
        %s3666 = scalar_lea.vmem %s14, 7
        %v3667 = vld [vmem:[%s3666] ss:$8 sm:$0x3]
        %v3669 = vlaneseq
        %v3670 = vshrl.u32 %v3669, 7
        %v3671 = vsub.s32 0, %v3670
        %v3672 = vrot.slane %v3663, %v3671
        %v3675 = vsel %vm615, %v3649, 0
        %3677 = vmatprep.subr.mxu0 0.0
        %3678 = vmatpush1.msra.mxu0 0.0
        %3679 = vmatprep.subr.mxu0 0.0
        %3680 = vmatpush1.msra.mxu0 0.0
        %3681 = vmatprep.subr.mxu0 0.0
        %3682 = vmatpush1.msra.mxu0 0.0
        %3683 = vmatprep.subr.mxu0 0.0
        %3684 = vmatpush1.msra.mxu0 0.0
        %3685 = vmatprep.subr.mxu0 0.0
        %3686 = vmatpush1.msra.mxu0 0.0
        %3687 = vmatprep.subr.mxu0 0.0
        %3688 = vmatpush1.msra.mxu0 0.0
        %3689 = vmatprep.subr.mxu0 0.0
        %3690 = vmatpush1.msra.mxu0 0.0
        %3691 = vmatprep.subr.mxu0 0.0
        %3692 = vmatpush1.msra.mxu0 0.0
        %3693 = vmatprep.subr.mxu0 0.0
        %3694 = vmatpush1.msra.mxu0 0.0
        %3695 = vmatprep.subr.mxu0 0.0
        %3696 = vmatpush1.msra.mxu0 0.0
        %3697 = vmatprep.subr.mxu0 0.0
        %3698 = vmatpush1.msra.mxu0 0.0
        %3699 = vmatprep.subr.mxu0 0.0
        %3700 = vmatpush1.msra.mxu0 0.0
        %3701 = vmatprep.subr.mxu0 0.0
        %3702 = vmatpush1.msra.mxu0 %v3653
        %3703 = vmatprep.subr.mxu0 0.0
        %3704 = vmatpush1.msra.mxu0 %v3652
        %3705 = vmatprep.subr.mxu0 0.0
        %3706 = vmatpush1.msra.mxu0 %v3651
        %3707 = vmatprep.subr.mxu0 0.0
        %3708 = vmatpush1.msra.mxu0 %v3650
        %3709 = vmatprep.subr.mxu0 0.0
        %3710 = vmatpush2.msra.mxu0 0.0
        %3711 = vmatprep.subr.mxu0 0.0
        %3712 = vmatpush2.msra.mxu0 0.0
        %3713 = vmatprep.subr.mxu0 0.0
        %3714 = vmatpush2.msra.mxu0 0.0
        %3715 = vmatprep.subr.mxu0 0.0
        %3716 = vmatpush2.msra.mxu0 0.0
        %3717 = vmatprep.subr.mxu0 0.0
        %3718 = vmatpush2.msra.mxu0 0.0
        %3719 = vmatprep.subr.mxu0 0.0
        %3720 = vmatpush2.msra.mxu0 0.0
        %3721 = vmatprep.subr.mxu0 0.0
        %3722 = vmatpush2.msra.mxu0 0.0
        %3723 = vmatprep.subr.mxu0 0.0
        %3724 = vmatpush2.msra.mxu0 0.0
        %3725 = vmatprep.subr.mxu0 0.0
        %3726 = vmatpush2.msra.mxu0 0.0
        %3727 = vmatprep.subr.mxu0 0.0
        %3728 = vmatpush2.msra.mxu0 0.0
        %3729 = vmatprep.subr.mxu0 0.0
        %3730 = vmatpush2.msra.mxu0 0.0
        %3731 = vmatprep.subr.mxu0 0.0
        %3732 = vmatpush2.msra.mxu0 0.0
        %3733 = vmatprep.subr.mxu0 0.0
        %3734 = vmatpush2.msra.mxu0 0.0
        %3735 = vmatprep.subr.mxu0 0.0
        %3736 = vmatpush2.msra.mxu0 0.0
        %3737 = vmatprep.subr.mxu0 0.0
        %3738 = vmatpush2.msra.mxu0 0.0
        %3739 = vmatprep.subr.mxu0 0.0
        %3740 = vmatpush2.msra.mxu0 0.0
        %3741 = vmatprep.mubr.f32.mxu0 0.0
        %3742 = vmatmul.mubr.f32.gmra.mxu0 %v3675
        %v3743 = vpop.f32.mrf.mxu0
        %v3744 = vadd.f32 %v3672, %v3743
        %v3745 = vpop.f32.mrf.mxu0
        %3746 = vdwg.mxu0
        %v3748 = vlaneseq
        %v3749 = vshrl.u32 %v3748, 7
        %v3750 = vsub.s32 0, %v3749
        %v3751 = vrot.slane %v3665, %v3750
        %v3752 = vlaneseq
        %v3753 = vshrl.u32 %v3752, 7
        %v3754 = vsub.s32 1, %v3753
        %v3755 = vrot.slane %v3665, %v3754
        %v3759 = vsel %vm615, %v2768, 0
        %3761 = vmatprep.subr.mxu0 0.0
        %3762 = vmatpush1.msra.mxu0 0.0
        %3763 = vmatprep.subr.mxu0 0.0
        %3764 = vmatpush1.msra.mxu0 0.0
        %3765 = vmatprep.subr.mxu0 0.0
        %3766 = vmatpush1.msra.mxu0 0.0
        %3767 = vmatprep.subr.mxu0 0.0
        %3768 = vmatpush1.msra.mxu0 0.0
        %3769 = vmatprep.subr.mxu0 0.0
        %3770 = vmatpush1.msra.mxu0 0.0
        %3771 = vmatprep.subr.mxu0 0.0
        %3772 = vmatpush1.msra.mxu0 0.0
        %3773 = vmatprep.subr.mxu0 0.0
        %3774 = vmatpush1.msra.mxu0 0.0
        %3775 = vmatprep.subr.mxu0 0.0
        %3776 = vmatpush1.msra.mxu0 0.0
        %3777 = vmatprep.subr.mxu0 0.0
        %3778 = vmatpush1.msra.mxu0 0.0
        %3779 = vmatprep.subr.mxu0 0.0
        %3780 = vmatpush1.msra.mxu0 0.0
        %3781 = vmatprep.subr.mxu0 0.0
        %3782 = vmatpush1.msra.mxu0 0.0
        %3783 = vmatprep.subr.mxu0 0.0
        %3784 = vmatpush1.msra.mxu0 0.0
        %3785 = vmatprep.subr.mxu0 %v3661
        %3786 = vmatpush1.msra.mxu0 %v3660
        %3787 = vmatprep.subr.mxu0 %v3659
        %3788 = vmatpush1.msra.mxu0 %v3658
        %3789 = vmatprep.subr.mxu0 %v3657
        %3790 = vmatpush1.msra.mxu0 %v3656
        %3791 = vmatprep.subr.mxu0 %v3655
        %3792 = vmatpush1.msra.mxu0 %v3654
        %3793 = vmatprep.subr.mxu0 0.0
        %3794 = vmatpush2.msra.mxu0 0.0
        %3795 = vmatprep.subr.mxu0 0.0
        %3796 = vmatpush2.msra.mxu0 0.0
        %3797 = vmatprep.subr.mxu0 0.0
        %3798 = vmatpush2.msra.mxu0 0.0
        %3799 = vmatprep.subr.mxu0 0.0
        %3800 = vmatpush2.msra.mxu0 0.0
        %3801 = vmatprep.subr.mxu0 0.0
        %3802 = vmatpush2.msra.mxu0 0.0
        %3803 = vmatprep.subr.mxu0 0.0
        %3804 = vmatpush2.msra.mxu0 0.0
        %3805 = vmatprep.subr.mxu0 0.0
        %3806 = vmatpush2.msra.mxu0 0.0
        %3807 = vmatprep.subr.mxu0 0.0
        %3808 = vmatpush2.msra.mxu0 0.0
        %3809 = vmatprep.subr.mxu0 0.0
        %3810 = vmatpush2.msra.mxu0 0.0
        %3811 = vmatprep.subr.mxu0 0.0
        %3812 = vmatpush2.msra.mxu0 0.0
        %3813 = vmatprep.subr.mxu0 0.0
        %3814 = vmatpush2.msra.mxu0 0.0
        %3815 = vmatprep.subr.mxu0 0.0
        %3816 = vmatpush2.msra.mxu0 0.0
        %3817 = vmatprep.subr.mxu0 0.0
        %3818 = vmatpush2.msra.mxu0 0.0
        %3819 = vmatprep.subr.mxu0 0.0
        %3820 = vmatpush2.msra.mxu0 0.0
        %3821 = vmatprep.subr.mxu0 0.0
        %3822 = vmatpush2.msra.mxu0 0.0
        %3823 = vmatprep.subr.mxu0 0.0
        %3824 = vmatpush2.msra.mxu0 0.0
        %3825 = vmatprep.mubr.f32.mxu0 0.0
        %3826 = vmatmul.mubr.f32.gmra.mxu0 %v3759
        %v3827 = vpop.f32.mrf.mxu0
        %v3828 = vadd.f32 %v3751, %v3827
        %v3829 = vpop.f32.mrf.mxu0
        %v3830 = vadd.f32 %v3755, %v3829
        %3831 = vdwg.mxu0
        %v3833 = vsel %vm777, %v3744, 0
        %v3836 = vsel %vm777, %v3828, 0
        %3838 = vmatprep.subr.mxu0 0.0
        %3839 = vmatpush1.xpose.msra.mxu0 0.0
        %3840 = vmatprep.subr.mxu0 0.0
        %3841 = vmatpush1.xpose.msra.mxu0 0.0
        %3842 = vmatprep.subr.mxu0 0.0
        %3843 = vmatpush1.xpose.msra.mxu0 0.0
        %3844 = vmatprep.subr.mxu0 0.0
        %3845 = vmatpush1.xpose.msra.mxu0 0.0
        %3846 = vmatprep.subr.mxu0 0.0
        %3847 = vmatpush1.xpose.msra.mxu0 0.0
        %3848 = vmatprep.subr.mxu0 0.0
        %3849 = vmatpush1.xpose.msra.mxu0 0.0
        %3850 = vmatprep.subr.mxu0 0.0
        %3851 = vmatpush1.xpose.msra.mxu0 0.0
        %3852 = vmatprep.subr.mxu0 0.0
        %3853 = vmatpush1.xpose.msra.mxu0 0.0
        %3854 = vmatprep.subr.mxu0 0.0
        %3855 = vmatpush1.xpose.msra.mxu0 0.0
        %3856 = vmatprep.subr.mxu0 0.0
        %3857 = vmatpush1.xpose.msra.mxu0 0.0
        %3858 = vmatprep.subr.mxu0 0.0
        %3859 = vmatpush1.xpose.msra.mxu0 0.0
        %3860 = vmatprep.subr.mxu0 0.0
        %3861 = vmatpush1.xpose.msra.mxu0 0.0
        %3862 = vmatprep.subr.mxu0 0.0
        %3863 = vmatpush1.xpose.msra.mxu0 0.0
        %3864 = vmatprep.subr.mxu0 0.0
        %3865 = vmatpush1.xpose.msra.mxu0 0.0
        %3866 = vmatprep.subr.mxu0 0.0
        %3867 = vmatpush1.xpose.msra.mxu0 0.0
        %3868 = vmatprep.subr.mxu0 0.0
        %3869 = vmatpush1.xpose.msra.mxu0 %v3836
        %3870 = vmatprep.subr.mxu0 0.0
        %3871 = vmatpush2.xpose.msra.mxu0 0.0
        %3872 = vmatprep.subr.mxu0 0.0
        %3873 = vmatpush2.xpose.msra.mxu0 0.0
        %3874 = vmatprep.subr.mxu0 0.0
        %3875 = vmatpush2.xpose.msra.mxu0 0.0
        %3876 = vmatprep.subr.mxu0 0.0
        %3877 = vmatpush2.xpose.msra.mxu0 0.0
        %3878 = vmatprep.subr.mxu0 0.0
        %3879 = vmatpush2.xpose.msra.mxu0 0.0
        %3880 = vmatprep.subr.mxu0 0.0
        %3881 = vmatpush2.xpose.msra.mxu0 0.0
        %3882 = vmatprep.subr.mxu0 0.0
        %3883 = vmatpush2.xpose.msra.mxu0 0.0
        %3884 = vmatprep.subr.mxu0 0.0
        %3885 = vmatpush2.xpose.msra.mxu0 0.0
        %3886 = vmatprep.subr.mxu0 0.0
        %3887 = vmatpush2.xpose.msra.mxu0 0.0
        %3888 = vmatprep.subr.mxu0 0.0
        %3889 = vmatpush2.xpose.msra.mxu0 0.0
        %3890 = vmatprep.subr.mxu0 0.0
        %3891 = vmatpush2.xpose.msra.mxu0 0.0
        %3892 = vmatprep.subr.mxu0 0.0
        %3893 = vmatpush2.xpose.msra.mxu0 0.0
        %3894 = vmatprep.subr.mxu0 0.0
        %3895 = vmatpush2.xpose.msra.mxu0 0.0
        %3896 = vmatprep.subr.mxu0 0.0
        %3897 = vmatpush2.xpose.msra.mxu0 0.0
        %3898 = vmatprep.subr.mxu0 0.0
        %3899 = vmatpush2.xpose.msra.mxu0 0.0
        %3900 = vmatprep.subr.mxu0 0.0
        %3901 = vmatpush2.xpose.msra.mxu0 0.0
        %3902 = vmatprep.mubr.f32.mxu0 0.0
        %3903 = vmatmul.mubr.f32.gmra.mxu0 %v3833
        %v3904 = vpop.f32.mrf.mxu0
        %v3905 = vadd.f32 %v775, %v3904
        %v3906 = vpop.f32.mrf.mxu0
        %3907 = vdwg.mxu0
        %v3908 = vsel %vm777, %v3905, -inf
        %3909 = vmax.xlane.f32.xlu0 %v3908
        %v3910 = vpop.xlane.xlu0 %3909
        %v3911 = vsub.f32 %v3905, %v3910
        %v3912 = vmul.f32 %v3911, 1.442695
        %v3913 = vpow.pop %v3912
        %v3914 = vsel %vm777, %v3913, 0.0
        %3915 = vadd.xlane.f32.xlu0 %v3914
        %v3916 = vpop.xlane.xlu0 %3915
        %v3917 = vrcp.pop %v3916
        %v3918 = vmul.f32 %v3913, %v3917
        %3919 = vrot.lane.b32.xlu0 %v3744, 120
        %v3920 = vpop.permute.xlu0 %3919
        %3921 = vrot.lane.b32.xlu0 %v3828, 120
        %v3922 = vpop.permute.xlu0 %3921
        %v3923 = vsel %vm777, %v3920, 0
        %v3925 = vsel %vm777, %v3922, 0
        %3927 = vmatprep.subr.mxu0 0.0
        %3928 = vmatpush1.xpose.msra.mxu0 0.0
        %3929 = vmatprep.subr.mxu0 0.0
        %3930 = vmatpush1.xpose.msra.mxu0 0.0
        %3931 = vmatprep.subr.mxu0 0.0
        %3932 = vmatpush1.xpose.msra.mxu0 0.0
        %3933 = vmatprep.subr.mxu0 0.0
        %3934 = vmatpush1.xpose.msra.mxu0 0.0
        %3935 = vmatprep.subr.mxu0 0.0
        %3936 = vmatpush1.xpose.msra.mxu0 0.0
        %3937 = vmatprep.subr.mxu0 0.0
        %3938 = vmatpush1.xpose.msra.mxu0 0.0
        %3939 = vmatprep.subr.mxu0 0.0
        %3940 = vmatpush1.xpose.msra.mxu0 0.0
        %3941 = vmatprep.subr.mxu0 0.0
        %3942 = vmatpush1.xpose.msra.mxu0 0.0
        %3943 = vmatprep.subr.mxu0 0.0
        %3944 = vmatpush1.xpose.msra.mxu0 0.0
        %3945 = vmatprep.subr.mxu0 0.0
        %3946 = vmatpush1.xpose.msra.mxu0 0.0
        %3947 = vmatprep.subr.mxu0 0.0
        %3948 = vmatpush1.xpose.msra.mxu0 0.0
        %3949 = vmatprep.subr.mxu0 0.0
        %3950 = vmatpush1.xpose.msra.mxu0 0.0
        %3951 = vmatprep.subr.mxu0 0.0
        %3952 = vmatpush1.xpose.msra.mxu0 0.0
        %3953 = vmatprep.subr.mxu0 0.0
        %3954 = vmatpush1.xpose.msra.mxu0 0.0
        %3955 = vmatprep.subr.mxu0 0.0
        %3956 = vmatpush1.xpose.msra.mxu0 0.0
        %3957 = vmatprep.subr.mxu0 0.0
        %3958 = vmatpush1.xpose.msra.mxu0 %v3925
        %3959 = vmatprep.subr.mxu0 0.0
        %3960 = vmatpush2.xpose.msra.mxu0 0.0
        %3961 = vmatprep.subr.mxu0 0.0
        %3962 = vmatpush2.xpose.msra.mxu0 0.0
        %3963 = vmatprep.subr.mxu0 0.0
        %3964 = vmatpush2.xpose.msra.mxu0 0.0
        %3965 = vmatprep.subr.mxu0 0.0
        %3966 = vmatpush2.xpose.msra.mxu0 0.0
        %3967 = vmatprep.subr.mxu0 0.0
        %3968 = vmatpush2.xpose.msra.mxu0 0.0
        %3969 = vmatprep.subr.mxu0 0.0
        %3970 = vmatpush2.xpose.msra.mxu0 0.0
        %3971 = vmatprep.subr.mxu0 0.0
        %3972 = vmatpush2.xpose.msra.mxu0 0.0
        %3973 = vmatprep.subr.mxu0 0.0
        %3974 = vmatpush2.xpose.msra.mxu0 0.0
        %3975 = vmatprep.subr.mxu0 0.0
        %3976 = vmatpush2.xpose.msra.mxu0 0.0
        %3977 = vmatprep.subr.mxu0 0.0
        %3978 = vmatpush2.xpose.msra.mxu0 0.0
        %3979 = vmatprep.subr.mxu0 0.0
        %3980 = vmatpush2.xpose.msra.mxu0 0.0
        %3981 = vmatprep.subr.mxu0 0.0
        %3982 = vmatpush2.xpose.msra.mxu0 0.0
        %3983 = vmatprep.subr.mxu0 0.0
        %3984 = vmatpush2.xpose.msra.mxu0 0.0
        %3985 = vmatprep.subr.mxu0 0.0
        %3986 = vmatpush2.xpose.msra.mxu0 0.0
        %3987 = vmatprep.subr.mxu0 0.0
        %3988 = vmatpush2.xpose.msra.mxu0 0.0
        %3989 = vmatprep.subr.mxu0 0.0
        %3990 = vmatpush2.xpose.msra.mxu0 0.0
        %3991 = vmatprep.mubr.f32.mxu0 0.0
        %3992 = vmatmul.mubr.f32.gmra.mxu0 %v3923
        %v3993 = vpop.f32.mrf.mxu0
        %v3994 = vadd.f32 %v775, %v3993
        %v3995 = vpop.f32.mrf.mxu0
        %3996 = vdwg.mxu0
        %v3997 = vsel %vm777, %v3994, -inf
        %3998 = vmax.xlane.f32.xlu0 %v3997
        %v3999 = vpop.xlane.xlu0 %3998
        %v4000 = vsub.f32 %v3994, %v3999
        %v4001 = vmul.f32 %v4000, 1.442695
        %v4002 = vpow.pop %v4001
        %v4003 = vsel %vm777, %v4002, 0.0
        %4004 = vadd.xlane.f32.xlu0 %v4003
        %v4005 = vpop.xlane.xlu0 %4004
        %v4006 = vrcp.pop %v4005
        %v4007 = vmul.f32 %v4002, %v4006
        %4008 = vrot.lane.b32.xlu0 %v3828, 64
        %v4009 = vpop.permute.xlu0 %4008
        %v4012 = vsel %vm777, %v4007, 0
        %4014 = vmatprep.subr.mxu0 0.0
        %4015 = vmatpush1.msra.mxu0 0.0
        %4016 = vmatprep.subr.mxu0 0.0
        %4017 = vmatpush1.msra.mxu0 0.0
        %4018 = vmatprep.subr.mxu0 0.0
        %4019 = vmatpush1.msra.mxu0 0.0
        %4020 = vmatprep.subr.mxu0 0.0
        %4021 = vmatpush1.msra.mxu0 0.0
        %4022 = vmatprep.subr.mxu0 0.0
        %4023 = vmatpush1.msra.mxu0 0.0
        %4024 = vmatprep.subr.mxu0 0.0
        %4025 = vmatpush1.msra.mxu0 0.0
        %4026 = vmatprep.subr.mxu0 0.0
        %4027 = vmatpush1.msra.mxu0 0.0
        %4028 = vmatprep.subr.mxu0 0.0
        %4029 = vmatpush1.msra.mxu0 0.0
        %4030 = vmatprep.subr.mxu0 0.0
        %4031 = vmatpush1.msra.mxu0 0.0
        %4032 = vmatprep.subr.mxu0 0.0
        %4033 = vmatpush1.msra.mxu0 0.0
        %4034 = vmatprep.subr.mxu0 0.0
        %4035 = vmatpush1.msra.mxu0 0.0
        %4036 = vmatprep.subr.mxu0 0.0
        %4037 = vmatpush1.msra.mxu0 0.0
        %4038 = vmatprep.subr.mxu0 0.0
        %4039 = vmatpush1.msra.mxu0 0.0
        %4040 = vmatprep.subr.mxu0 0.0
        %4041 = vmatpush1.msra.mxu0 0.0
        %4042 = vmatprep.subr.mxu0 0.0
        %4043 = vmatpush1.msra.mxu0 0.0
        %4044 = vmatprep.subr.mxu0 0.0
        %4045 = vmatpush1.msra.mxu0 %v4009
        %4046 = vmatprep.subr.mxu0 0.0
        %4047 = vmatpush2.msra.mxu0 0.0
        %4048 = vmatprep.subr.mxu0 0.0
        %4049 = vmatpush2.msra.mxu0 0.0
        %4050 = vmatprep.subr.mxu0 0.0
        %4051 = vmatpush2.msra.mxu0 0.0
        %4052 = vmatprep.subr.mxu0 0.0
        %4053 = vmatpush2.msra.mxu0 0.0
        %4054 = vmatprep.subr.mxu0 0.0
        %4055 = vmatpush2.msra.mxu0 0.0
        %4056 = vmatprep.subr.mxu0 0.0
        %4057 = vmatpush2.msra.mxu0 0.0
        %4058 = vmatprep.subr.mxu0 0.0
        %4059 = vmatpush2.msra.mxu0 0.0
        %4060 = vmatprep.subr.mxu0 0.0
        %4061 = vmatpush2.msra.mxu0 0.0
        %4062 = vmatprep.subr.mxu0 0.0
        %4063 = vmatpush2.msra.mxu0 0.0
        %4064 = vmatprep.subr.mxu0 0.0
        %4065 = vmatpush2.msra.mxu0 0.0
        %4066 = vmatprep.subr.mxu0 0.0
        %4067 = vmatpush2.msra.mxu0 0.0
        %4068 = vmatprep.subr.mxu0 0.0
        %4069 = vmatpush2.msra.mxu0 0.0
        %4070 = vmatprep.subr.mxu0 0.0
        %4071 = vmatpush2.msra.mxu0 0.0
        %4072 = vmatprep.subr.mxu0 0.0
        %4073 = vmatpush2.msra.mxu0 0.0
        %4074 = vmatprep.subr.mxu0 0.0
        %4075 = vmatpush2.msra.mxu0 0.0
        %4076 = vmatprep.subr.mxu0 0.0
        %4077 = vmatpush2.msra.mxu0 0.0
        %4078 = vmatprep.mubr.f32.mxu0 0.0
        %4079 = vmatmul.mubr.f32.gmra.mxu0 %v4012
        %v4080 = vpop.f32.mrf.mxu0
        %v4081 = vadd.f32 0.0, %v4080
        %v4082 = vpop.f32.mrf.mxu0
        %4083 = vdwg.mxu0
        %4084 = vrot.lane.b32.xlu0 %v3828, 96
        %v4085 = vpop.permute.xlu0 %4084
        %v4088 = vsel %vm777, %v3918, 0
        %4090 = vmatprep.subr.mxu0 0.0
        %4091 = vmatpush1.msra.mxu0 0.0
        %4092 = vmatprep.subr.mxu0 0.0
        %4093 = vmatpush1.msra.mxu0 0.0
        %4094 = vmatprep.subr.mxu0 0.0
        %4095 = vmatpush1.msra.mxu0 0.0
        %4096 = vmatprep.subr.mxu0 0.0
        %4097 = vmatpush1.msra.mxu0 0.0
        %4098 = vmatprep.subr.mxu0 0.0
        %4099 = vmatpush1.msra.mxu0 0.0
        %4100 = vmatprep.subr.mxu0 0.0
        %4101 = vmatpush1.msra.mxu0 0.0
        %4102 = vmatprep.subr.mxu0 0.0
        %4103 = vmatpush1.msra.mxu0 0.0
        %4104 = vmatprep.subr.mxu0 0.0
        %4105 = vmatpush1.msra.mxu0 0.0
        %4106 = vmatprep.subr.mxu0 0.0
        %4107 = vmatpush1.msra.mxu0 0.0
        %4108 = vmatprep.subr.mxu0 0.0
        %4109 = vmatpush1.msra.mxu0 0.0
        %4110 = vmatprep.subr.mxu0 0.0
        %4111 = vmatpush1.msra.mxu0 0.0
        %4112 = vmatprep.subr.mxu0 0.0
        %4113 = vmatpush1.msra.mxu0 0.0
        %4114 = vmatprep.subr.mxu0 0.0
        %4115 = vmatpush1.msra.mxu0 0.0
        %4116 = vmatprep.subr.mxu0 0.0
        %4117 = vmatpush1.msra.mxu0 0.0
        %4118 = vmatprep.subr.mxu0 0.0
        %4119 = vmatpush1.msra.mxu0 0.0
        %4120 = vmatprep.subr.mxu0 0.0
        %4121 = vmatpush1.msra.mxu0 %v4085
        %4122 = vmatprep.subr.mxu0 0.0
        %4123 = vmatpush2.msra.mxu0 0.0
        %4124 = vmatprep.subr.mxu0 0.0
        %4125 = vmatpush2.msra.mxu0 0.0
        %4126 = vmatprep.subr.mxu0 0.0
        %4127 = vmatpush2.msra.mxu0 0.0
        %4128 = vmatprep.subr.mxu0 0.0
        %4129 = vmatpush2.msra.mxu0 0.0
        %4130 = vmatprep.subr.mxu0 0.0
        %4131 = vmatpush2.msra.mxu0 0.0
        %4132 = vmatprep.subr.mxu0 0.0
        %4133 = vmatpush2.msra.mxu0 0.0
        %4134 = vmatprep.subr.mxu0 0.0
        %4135 = vmatpush2.msra.mxu0 0.0
        %4136 = vmatprep.subr.mxu0 0.0
        %4137 = vmatpush2.msra.mxu0 0.0
        %4138 = vmatprep.subr.mxu0 0.0
        %4139 = vmatpush2.msra.mxu0 0.0
        %4140 = vmatprep.subr.mxu0 0.0
        %4141 = vmatpush2.msra.mxu0 0.0
        %4142 = vmatprep.subr.mxu0 0.0
        %4143 = vmatpush2.msra.mxu0 0.0
        %4144 = vmatprep.subr.mxu0 0.0
        %4145 = vmatpush2.msra.mxu0 0.0
        %4146 = vmatprep.subr.mxu0 0.0
        %4147 = vmatpush2.msra.mxu0 0.0
        %4148 = vmatprep.subr.mxu0 0.0
        %4149 = vmatpush2.msra.mxu0 0.0
        %4150 = vmatprep.subr.mxu0 0.0
        %4151 = vmatpush2.msra.mxu0 0.0
        %4152 = vmatprep.subr.mxu0 0.0
        %4153 = vmatpush2.msra.mxu0 0.0
        %4154 = vmatprep.mubr.f32.mxu0 0.0
        %4155 = vmatmul.mubr.f32.gmra.mxu0 %v4088
        %v4156 = vpop.f32.mrf.mxu0
        %v4157 = vadd.f32 %v4081, %v4156
        %v4158 = vpop.f32.mrf.mxu0
        %4159 = vdwg.mxu0
        %4160 = vrot.lane.b32.xlu0 %v3744, 112
        %v4161 = vpop.permute.xlu0 %4160
        %4162 = vrot.lane.b32.xlu0 %v3828, 112
        %v4163 = vpop.permute.xlu0 %4162
        %v4164 = vsel %vm777, %v4161, 0
        %v4166 = vsel %vm777, %v4163, 0
        %4168 = vmatprep.subr.mxu0 0.0
        %4169 = vmatpush1.xpose.msra.mxu0 0.0
        %4170 = vmatprep.subr.mxu0 0.0
        %4171 = vmatpush1.xpose.msra.mxu0 0.0
        %4172 = vmatprep.subr.mxu0 0.0
        %4173 = vmatpush1.xpose.msra.mxu0 0.0
        %4174 = vmatprep.subr.mxu0 0.0
        %4175 = vmatpush1.xpose.msra.mxu0 0.0
        %4176 = vmatprep.subr.mxu0 0.0
        %4177 = vmatpush1.xpose.msra.mxu0 0.0
        %4178 = vmatprep.subr.mxu0 0.0
        %4179 = vmatpush1.xpose.msra.mxu0 0.0
        %4180 = vmatprep.subr.mxu0 0.0
        %4181 = vmatpush1.xpose.msra.mxu0 0.0
        %4182 = vmatprep.subr.mxu0 0.0
        %4183 = vmatpush1.xpose.msra.mxu0 0.0
        %4184 = vmatprep.subr.mxu0 0.0
        %4185 = vmatpush1.xpose.msra.mxu0 0.0
        %4186 = vmatprep.subr.mxu0 0.0
        %4187 = vmatpush1.xpose.msra.mxu0 0.0
        %4188 = vmatprep.subr.mxu0 0.0
        %4189 = vmatpush1.xpose.msra.mxu0 0.0
        %4190 = vmatprep.subr.mxu0 0.0
        %4191 = vmatpush1.xpose.msra.mxu0 0.0
        %4192 = vmatprep.subr.mxu0 0.0
        %4193 = vmatpush1.xpose.msra.mxu0 0.0
        %4194 = vmatprep.subr.mxu0 0.0
        %4195 = vmatpush1.xpose.msra.mxu0 0.0
        %4196 = vmatprep.subr.mxu0 0.0
        %4197 = vmatpush1.xpose.msra.mxu0 0.0
        %4198 = vmatprep.subr.mxu0 0.0
        %4199 = vmatpush1.xpose.msra.mxu0 %v4166
        %4200 = vmatprep.subr.mxu0 0.0
        %4201 = vmatpush2.xpose.msra.mxu0 0.0
        %4202 = vmatprep.subr.mxu0 0.0
        %4203 = vmatpush2.xpose.msra.mxu0 0.0
        %4204 = vmatprep.subr.mxu0 0.0
        %4205 = vmatpush2.xpose.msra.mxu0 0.0
        %4206 = vmatprep.subr.mxu0 0.0
        %4207 = vmatpush2.xpose.msra.mxu0 0.0
        %4208 = vmatprep.subr.mxu0 0.0
        %4209 = vmatpush2.xpose.msra.mxu0 0.0
        %4210 = vmatprep.subr.mxu0 0.0
        %4211 = vmatpush2.xpose.msra.mxu0 0.0
        %4212 = vmatprep.subr.mxu0 0.0
        %4213 = vmatpush2.xpose.msra.mxu0 0.0
        %4214 = vmatprep.subr.mxu0 0.0
        %4215 = vmatpush2.xpose.msra.mxu0 0.0
        %4216 = vmatprep.subr.mxu0 0.0
        %4217 = vmatpush2.xpose.msra.mxu0 0.0
        %4218 = vmatprep.subr.mxu0 0.0
        %4219 = vmatpush2.xpose.msra.mxu0 0.0
        %4220 = vmatprep.subr.mxu0 0.0
        %4221 = vmatpush2.xpose.msra.mxu0 0.0
        %4222 = vmatprep.subr.mxu0 0.0
        %4223 = vmatpush2.xpose.msra.mxu0 0.0
        %4224 = vmatprep.subr.mxu0 0.0
        %4225 = vmatpush2.xpose.msra.mxu0 0.0
        %4226 = vmatprep.subr.mxu0 0.0
        %4227 = vmatpush2.xpose.msra.mxu0 0.0
        %4228 = vmatprep.subr.mxu0 0.0
        %4229 = vmatpush2.xpose.msra.mxu0 0.0
        %4230 = vmatprep.subr.mxu0 0.0
        %4231 = vmatpush2.xpose.msra.mxu0 0.0
        %4232 = vmatprep.mubr.f32.mxu0 0.0
        %4233 = vmatmul.mubr.f32.gmra.mxu0 %v4164
        %v4234 = vpop.f32.mrf.mxu0
        %v4235 = vadd.f32 %v775, %v4234
        %v4236 = vpop.f32.mrf.mxu0
        %4237 = vdwg.mxu0
        %v4238 = vsel %vm777, %v4235, -inf
        %4239 = vmax.xlane.f32.xlu0 %v4238
        %v4240 = vpop.xlane.xlu0 %4239
        %v4241 = vsub.f32 %v4235, %v4240
        %v4242 = vmul.f32 %v4241, 1.442695
        %v4243 = vpow.pop %v4242
        %v4244 = vsel %vm777, %v4243, 0.0
        %4245 = vadd.xlane.f32.xlu0 %v4244
        %v4246 = vpop.xlane.xlu0 %4245
        %v4247 = vrcp.pop %v4246
        %v4248 = vmul.f32 %v4243, %v4247
        %4249 = vrot.lane.b32.xlu0 %v3828, 32
        %v4250 = vpop.permute.xlu0 %4249
        %v4253 = vsel %vm777, %v4248, 0
        %4255 = vmatprep.subr.mxu0 0.0
        %4256 = vmatpush1.msra.mxu0 0.0
        %4257 = vmatprep.subr.mxu0 0.0
        %4258 = vmatpush1.msra.mxu0 0.0
        %4259 = vmatprep.subr.mxu0 0.0
        %4260 = vmatpush1.msra.mxu0 0.0
        %4261 = vmatprep.subr.mxu0 0.0
        %4262 = vmatpush1.msra.mxu0 0.0
        %4263 = vmatprep.subr.mxu0 0.0
        %4264 = vmatpush1.msra.mxu0 0.0
        %4265 = vmatprep.subr.mxu0 0.0
        %4266 = vmatpush1.msra.mxu0 0.0
        %4267 = vmatprep.subr.mxu0 0.0
        %4268 = vmatpush1.msra.mxu0 0.0
        %4269 = vmatprep.subr.mxu0 0.0
        %4270 = vmatpush1.msra.mxu0 0.0
        %4271 = vmatprep.subr.mxu0 0.0
        %4272 = vmatpush1.msra.mxu0 0.0
        %4273 = vmatprep.subr.mxu0 0.0
        %4274 = vmatpush1.msra.mxu0 0.0
        %4275 = vmatprep.subr.mxu0 0.0
        %4276 = vmatpush1.msra.mxu0 0.0
        %4277 = vmatprep.subr.mxu0 0.0
        %4278 = vmatpush1.msra.mxu0 0.0
        %4279 = vmatprep.subr.mxu0 0.0
        %4280 = vmatpush1.msra.mxu0 0.0
        %4281 = vmatprep.subr.mxu0 0.0
        %4282 = vmatpush1.msra.mxu0 0.0
        %4283 = vmatprep.subr.mxu0 0.0
        %4284 = vmatpush1.msra.mxu0 0.0
        %4285 = vmatprep.subr.mxu0 0.0
        %4286 = vmatpush1.msra.mxu0 %v4250
        %4287 = vmatprep.subr.mxu0 0.0
        %4288 = vmatpush2.msra.mxu0 0.0
        %4289 = vmatprep.subr.mxu0 0.0
        %4290 = vmatpush2.msra.mxu0 0.0
        %4291 = vmatprep.subr.mxu0 0.0
        %4292 = vmatpush2.msra.mxu0 0.0
        %4293 = vmatprep.subr.mxu0 0.0
        %4294 = vmatpush2.msra.mxu0 0.0
        %4295 = vmatprep.subr.mxu0 0.0
        %4296 = vmatpush2.msra.mxu0 0.0
        %4297 = vmatprep.subr.mxu0 0.0
        %4298 = vmatpush2.msra.mxu0 0.0
        %4299 = vmatprep.subr.mxu0 0.0
        %4300 = vmatpush2.msra.mxu0 0.0
        %4301 = vmatprep.subr.mxu0 0.0
        %4302 = vmatpush2.msra.mxu0 0.0
        %4303 = vmatprep.subr.mxu0 0.0
        %4304 = vmatpush2.msra.mxu0 0.0
        %4305 = vmatprep.subr.mxu0 0.0
        %4306 = vmatpush2.msra.mxu0 0.0
        %4307 = vmatprep.subr.mxu0 0.0
        %4308 = vmatpush2.msra.mxu0 0.0
        %4309 = vmatprep.subr.mxu0 0.0
        %4310 = vmatpush2.msra.mxu0 0.0
        %4311 = vmatprep.subr.mxu0 0.0
        %4312 = vmatpush2.msra.mxu0 0.0
        %4313 = vmatprep.subr.mxu0 0.0
        %4314 = vmatpush2.msra.mxu0 0.0
        %4315 = vmatprep.subr.mxu0 0.0
        %4316 = vmatpush2.msra.mxu0 0.0
        %4317 = vmatprep.subr.mxu0 0.0
        %4318 = vmatpush2.msra.mxu0 0.0
        %4319 = vmatprep.mubr.f32.mxu0 0.0
        %4320 = vmatmul.mubr.f32.gmra.mxu0 %v4253
        %v4321 = vpop.f32.mrf.mxu0
        %v4322 = vadd.f32 0.0, %v4321
        %v4323 = vpop.f32.mrf.mxu0
        %4324 = vdwg.mxu0
        %v4325 = vadd.f32 %v4157, %v4322
        %4326 = vrot.lane.b32.xlu0 %v3744, 104
        %v4327 = vpop.permute.xlu0 %4326
        %4328 = vrot.lane.b32.xlu0 %v3828, 104
        %v4329 = vpop.permute.xlu0 %4328
        %v4330 = vsel %vm777, %v4327, 0
        %v4332 = vsel %vm777, %v4329, 0
        %4334 = vmatprep.subr.mxu0 0.0
        %4335 = vmatpush1.xpose.msra.mxu0 0.0
        %4336 = vmatprep.subr.mxu0 0.0
        %4337 = vmatpush1.xpose.msra.mxu0 0.0
        %4338 = vmatprep.subr.mxu0 0.0
        %4339 = vmatpush1.xpose.msra.mxu0 0.0
        %4340 = vmatprep.subr.mxu0 0.0
        %4341 = vmatpush1.xpose.msra.mxu0 0.0
        %4342 = vmatprep.subr.mxu0 0.0
        %4343 = vmatpush1.xpose.msra.mxu0 0.0
        %4344 = vmatprep.subr.mxu0 0.0
        %4345 = vmatpush1.xpose.msra.mxu0 0.0
        %4346 = vmatprep.subr.mxu0 0.0
        %4347 = vmatpush1.xpose.msra.mxu0 0.0
        %4348 = vmatprep.subr.mxu0 0.0
        %4349 = vmatpush1.xpose.msra.mxu0 0.0
        %4350 = vmatprep.subr.mxu0 0.0
        %4351 = vmatpush1.xpose.msra.mxu0 0.0
        %4352 = vmatprep.subr.mxu0 0.0
        %4353 = vmatpush1.xpose.msra.mxu0 0.0
        %4354 = vmatprep.subr.mxu0 0.0
        %4355 = vmatpush1.xpose.msra.mxu0 0.0
        %4356 = vmatprep.subr.mxu0 0.0
        %4357 = vmatpush1.xpose.msra.mxu0 0.0
        %4358 = vmatprep.subr.mxu0 0.0
        %4359 = vmatpush1.xpose.msra.mxu0 0.0
        %4360 = vmatprep.subr.mxu0 0.0
        %4361 = vmatpush1.xpose.msra.mxu0 0.0
        %4362 = vmatprep.subr.mxu0 0.0
        %4363 = vmatpush1.xpose.msra.mxu0 0.0
        %4364 = vmatprep.subr.mxu0 0.0
        %4365 = vmatpush1.xpose.msra.mxu0 %v4332
        %4366 = vmatprep.subr.mxu0 0.0
        %4367 = vmatpush2.xpose.msra.mxu0 0.0
        %4368 = vmatprep.subr.mxu0 0.0
        %4369 = vmatpush2.xpose.msra.mxu0 0.0
        %4370 = vmatprep.subr.mxu0 0.0
        %4371 = vmatpush2.xpose.msra.mxu0 0.0
        %4372 = vmatprep.subr.mxu0 0.0
        %4373 = vmatpush2.xpose.msra.mxu0 0.0
        %4374 = vmatprep.subr.mxu0 0.0
        %4375 = vmatpush2.xpose.msra.mxu0 0.0
        %4376 = vmatprep.subr.mxu0 0.0
        %4377 = vmatpush2.xpose.msra.mxu0 0.0
        %4378 = vmatprep.subr.mxu0 0.0
        %4379 = vmatpush2.xpose.msra.mxu0 0.0
        %4380 = vmatprep.subr.mxu0 0.0
        %4381 = vmatpush2.xpose.msra.mxu0 0.0
        %4382 = vmatprep.subr.mxu0 0.0
        %4383 = vmatpush2.xpose.msra.mxu0 0.0
        %4384 = vmatprep.subr.mxu0 0.0
        %4385 = vmatpush2.xpose.msra.mxu0 0.0
        %4386 = vmatprep.subr.mxu0 0.0
        %4387 = vmatpush2.xpose.msra.mxu0 0.0
        %4388 = vmatprep.subr.mxu0 0.0
        %4389 = vmatpush2.xpose.msra.mxu0 0.0
        %4390 = vmatprep.subr.mxu0 0.0
        %4391 = vmatpush2.xpose.msra.mxu0 0.0
        %4392 = vmatprep.subr.mxu0 0.0
        %4393 = vmatpush2.xpose.msra.mxu0 0.0
        %4394 = vmatprep.subr.mxu0 0.0
        %4395 = vmatpush2.xpose.msra.mxu0 0.0
        %4396 = vmatprep.subr.mxu0 0.0
        %4397 = vmatpush2.xpose.msra.mxu0 0.0
        %4398 = vmatprep.mubr.f32.mxu0 0.0
        %4399 = vmatmul.mubr.f32.gmra.mxu0 %v4330
        %v4400 = vpop.f32.mrf.mxu0
        %v4401 = vadd.f32 %v775, %v4400
        %v4402 = vpop.f32.mrf.mxu0
        %4403 = vdwg.mxu0
        %v4404 = vsel %vm777, %v4401, -inf
        %4405 = vmax.xlane.f32.xlu0 %v4404
        %v4406 = vpop.xlane.xlu0 %4405
        %v4407 = vsub.f32 %v4401, %v4406
        %v4408 = vmul.f32 %v4407, 1.442695
        %v4409 = vpow.pop %v4408
        %v4410 = vsel %vm777, %v4409, 0.0
        %4411 = vadd.xlane.f32.xlu0 %v4410
        %v4412 = vpop.xlane.xlu0 %4411
        %v4413 = vrcp.pop %v4412
        %v4414 = vmul.f32 %v4409, %v4413
        %v4416 = vsel %vm777, %v4414, 0
        %4418 = vmatprep.subr.mxu0 0.0
        %4419 = vmatpush1.msra.mxu0 0.0
        %4420 = vmatprep.subr.mxu0 0.0
        %4421 = vmatpush1.msra.mxu0 0.0
        %4422 = vmatprep.subr.mxu0 0.0
        %4423 = vmatpush1.msra.mxu0 0.0
        %4424 = vmatprep.subr.mxu0 0.0
        %4425 = vmatpush1.msra.mxu0 0.0
        %4426 = vmatprep.subr.mxu0 0.0
        %4427 = vmatpush1.msra.mxu0 0.0
        %4428 = vmatprep.subr.mxu0 0.0
        %4429 = vmatpush1.msra.mxu0 0.0
        %4430 = vmatprep.subr.mxu0 0.0
        %4431 = vmatpush1.msra.mxu0 0.0
        %4432 = vmatprep.subr.mxu0 0.0
        %4433 = vmatpush1.msra.mxu0 0.0
        %4434 = vmatprep.subr.mxu0 0.0
        %4435 = vmatpush1.msra.mxu0 0.0
        %4436 = vmatprep.subr.mxu0 0.0
        %4437 = vmatpush1.msra.mxu0 0.0
        %4438 = vmatprep.subr.mxu0 0.0
        %4439 = vmatpush1.msra.mxu0 0.0
        %4440 = vmatprep.subr.mxu0 0.0
        %4441 = vmatpush1.msra.mxu0 0.0
        %4442 = vmatprep.subr.mxu0 0.0
        %4443 = vmatpush1.msra.mxu0 0.0
        %4444 = vmatprep.subr.mxu0 0.0
        %4445 = vmatpush1.msra.mxu0 0.0
        %4446 = vmatprep.subr.mxu0 0.0
        %4447 = vmatpush1.msra.mxu0 0.0
        %4448 = vmatprep.subr.mxu0 0.0
        %4449 = vmatpush1.msra.mxu0 %v3830
        %4450 = vmatprep.subr.mxu0 0.0
        %4451 = vmatpush2.msra.mxu0 0.0
        %4452 = vmatprep.subr.mxu0 0.0
        %4453 = vmatpush2.msra.mxu0 0.0
        %4454 = vmatprep.subr.mxu0 0.0
        %4455 = vmatpush2.msra.mxu0 0.0
        %4456 = vmatprep.subr.mxu0 0.0
        %4457 = vmatpush2.msra.mxu0 0.0
        %4458 = vmatprep.subr.mxu0 0.0
        %4459 = vmatpush2.msra.mxu0 0.0
        %4460 = vmatprep.subr.mxu0 0.0
        %4461 = vmatpush2.msra.mxu0 0.0
        %4462 = vmatprep.subr.mxu0 0.0
        %4463 = vmatpush2.msra.mxu0 0.0
        %4464 = vmatprep.subr.mxu0 0.0
        %4465 = vmatpush2.msra.mxu0 0.0
        %4466 = vmatprep.subr.mxu0 0.0
        %4467 = vmatpush2.msra.mxu0 0.0
        %4468 = vmatprep.subr.mxu0 0.0
        %4469 = vmatpush2.msra.mxu0 0.0
        %4470 = vmatprep.subr.mxu0 0.0
        %4471 = vmatpush2.msra.mxu0 0.0
        %4472 = vmatprep.subr.mxu0 0.0
        %4473 = vmatpush2.msra.mxu0 0.0
        %4474 = vmatprep.subr.mxu0 0.0
        %4475 = vmatpush2.msra.mxu0 0.0
        %4476 = vmatprep.subr.mxu0 0.0
        %4477 = vmatpush2.msra.mxu0 0.0
        %4478 = vmatprep.subr.mxu0 0.0
        %4479 = vmatpush2.msra.mxu0 0.0
        %4480 = vmatprep.subr.mxu0 0.0
        %4481 = vmatpush2.msra.mxu0 0.0
        %4482 = vmatprep.mubr.f32.mxu0 0.0
        %4483 = vmatmul.mubr.f32.gmra.mxu0 %v4416
        %v4484 = vpop.f32.mrf.mxu0
        %v4485 = vadd.f32 0.0, %v4484
        %v4486 = vpop.f32.mrf.mxu0
        %4487 = vdwg.mxu0
        %v4488 = vadd.f32 %v4325, %v4485
        %v4490 = vlaneseq
        %v4491 = vshrl.u32 %v4490, 7
        %v4492 = vsub.s32 0, %v4491
        %v4493 = vrot.slane %v3667, %v4492
        %v4495 = vadd.f32 %v4488, %v4493
        %v4496 = vadd.f32 %v3649, %v4495
        %s4497 = scalar_lea.vmem %s14, 16
        %v4498 = vld [vmem:[%s4497] ss:$8 sm:$0x3]
        %s4499 = scalar_lea.vmem %s14, 17
        %v4500 = vld [vmem:[%s4499] ss:$8 sm:$0x3]
        %v4501 = vsel %vm615, %v4496, 0.0
        %4502 = vadd.xlane.f32.xlu0 %v4501
        %v4503 = vpop.xlane.xlu0 %4502
        %v4504 = vmul.f32 %v4503, %v1450
        %v4505 = vsub.f32 %v4496, %v4504
        %v4506 = vmul.f32 %v4505, %v4505
        %v4507 = vsel %vm615, %v4506, 0.0
        %4508 = vadd.xlane.f32.xlu0 %v4507
        %v4509 = vpop.xlane.xlu0 %4508
        %v4510 = vmul.f32 %v4509, %v1450
        %v4511 = vadd.f32 %v4510, 1e-05
        %v4512 = vrsqrt.pop %v4511
        %v4513 = vmul.f32 %v4505, %v4512
        %v4515 = vlaneseq
        %v4516 = vshrl.u32 %v4515, 7
        %v4517 = vsub.s32 0, %v4516
        %v4518 = vrot.slane %v4498, %v4517
        %v4520 = vmul.f32 %v4513, %v4518
        %v4522 = vlaneseq
        %v4523 = vshrl.u32 %v4522, 7
        %v4524 = vsub.s32 0, %v4523
        %v4525 = vrot.slane %v4500, %v4524
        %v4527 = vadd.f32 %v4520, %v4525
        %v4528 = vld [vmem:[%s12] sm:$0xff]
        %v4529 = vld [vmem:[%s12 + $0x8] sm:$0xff]
        %v4530 = vld [vmem:[%s12 + $0x10] sm:$0xff]
        %v4531 = vld [vmem:[%s12 + $0x18] sm:$0xff]
        %s4532 = scalar_lea.vmem %s14, 18
        %v4533 = vld [vmem:[%s4532] ss:$8 sm:$0x3]
        %v4534 = vld [vmem:[%s13] sm:$0xff]
        %v4535 = vld [vmem:[%s13 + $0x8] sm:$0xff]
        %v4536 = vld [vmem:[%s13 + $0x10] sm:$0xff]
        %v4537 = vld [vmem:[%s13 + $0x18] sm:$0xff]
        %v4538 = vld [vmem:[%s13 + $0x20] sm:$0xff]
        %v4539 = vld [vmem:[%s13 + $0x28] sm:$0xff]
        %v4540 = vld [vmem:[%s13 + $0x30] sm:$0xff]
        %v4541 = vld [vmem:[%s13 + $0x38] sm:$0xff]
        %s4542 = scalar_lea.vmem %s14, 19
        %v4543 = vld [vmem:[%s4542] ss:$8 sm:$0x3]
        %v4545 = vlaneseq
        %v4546 = vshrl.u32 %v4545, 7
        %v4547 = vsub.s32 0, %v4546
        %v4548 = vrot.slane %v4533, %v4547
        %v4551 = vsel %vm615, %v4527, 0
        %4553 = vmatprep.subr.mxu0 0.0
        %4554 = vmatpush1.msra.mxu0 0.0
        %4555 = vmatprep.subr.mxu0 0.0
        %4556 = vmatpush1.msra.mxu0 0.0
        %4557 = vmatprep.subr.mxu0 0.0
        %4558 = vmatpush1.msra.mxu0 0.0
        %4559 = vmatprep.subr.mxu0 0.0
        %4560 = vmatpush1.msra.mxu0 0.0
        %4561 = vmatprep.subr.mxu0 0.0
        %4562 = vmatpush1.msra.mxu0 0.0
        %4563 = vmatprep.subr.mxu0 0.0
        %4564 = vmatpush1.msra.mxu0 0.0
        %4565 = vmatprep.subr.mxu0 0.0
        %4566 = vmatpush1.msra.mxu0 0.0
        %4567 = vmatprep.subr.mxu0 0.0
        %4568 = vmatpush1.msra.mxu0 0.0
        %4569 = vmatprep.subr.mxu0 0.0
        %4570 = vmatpush1.msra.mxu0 0.0
        %4571 = vmatprep.subr.mxu0 0.0
        %4572 = vmatpush1.msra.mxu0 0.0
        %4573 = vmatprep.subr.mxu0 0.0
        %4574 = vmatpush1.msra.mxu0 0.0
        %4575 = vmatprep.subr.mxu0 0.0
        %4576 = vmatpush1.msra.mxu0 0.0
        %4577 = vmatprep.subr.mxu0 0.0
        %4578 = vmatpush1.msra.mxu0 %v4531
        %4579 = vmatprep.subr.mxu0 0.0
        %4580 = vmatpush1.msra.mxu0 %v4530
        %4581 = vmatprep.subr.mxu0 0.0
        %4582 = vmatpush1.msra.mxu0 %v4529
        %4583 = vmatprep.subr.mxu0 0.0
        %4584 = vmatpush1.msra.mxu0 %v4528
        %4585 = vmatprep.subr.mxu0 0.0
        %4586 = vmatpush2.msra.mxu0 0.0
        %4587 = vmatprep.subr.mxu0 0.0
        %4588 = vmatpush2.msra.mxu0 0.0
        %4589 = vmatprep.subr.mxu0 0.0
        %4590 = vmatpush2.msra.mxu0 0.0
        %4591 = vmatprep.subr.mxu0 0.0
        %4592 = vmatpush2.msra.mxu0 0.0
        %4593 = vmatprep.subr.mxu0 0.0
        %4594 = vmatpush2.msra.mxu0 0.0
        %4595 = vmatprep.subr.mxu0 0.0
        %4596 = vmatpush2.msra.mxu0 0.0
        %4597 = vmatprep.subr.mxu0 0.0
        %4598 = vmatpush2.msra.mxu0 0.0
        %4599 = vmatprep.subr.mxu0 0.0
        %4600 = vmatpush2.msra.mxu0 0.0
        %4601 = vmatprep.subr.mxu0 0.0
        %4602 = vmatpush2.msra.mxu0 0.0
        %4603 = vmatprep.subr.mxu0 0.0
        %4604 = vmatpush2.msra.mxu0 0.0
        %4605 = vmatprep.subr.mxu0 0.0
        %4606 = vmatpush2.msra.mxu0 0.0
        %4607 = vmatprep.subr.mxu0 0.0
        %4608 = vmatpush2.msra.mxu0 0.0
        %4609 = vmatprep.subr.mxu0 0.0
        %4610 = vmatpush2.msra.mxu0 0.0
        %4611 = vmatprep.subr.mxu0 0.0
        %4612 = vmatpush2.msra.mxu0 0.0
        %4613 = vmatprep.subr.mxu0 0.0
        %4614 = vmatpush2.msra.mxu0 0.0
        %4615 = vmatprep.subr.mxu0 0.0
        %4616 = vmatpush2.msra.mxu0 0.0
        %4617 = vmatprep.mubr.f32.mxu0 0.0
        %4618 = vmatmul.mubr.f32.gmra.mxu0 %v4551
        %v4619 = vpop.f32.mrf.mxu0
        %v4620 = vadd.f32 %v4548, %v4619
        %v4621 = vpop.f32.mrf.mxu0
        %4622 = vdwg.mxu0
        %v4623 = vmax.f32 %v4620, 0.0
        %v4625 = vlaneseq
        %v4626 = vshrl.u32 %v4625, 7
        %v4627 = vsub.s32 0, %v4626
        %v4628 = vrot.slane %v4543, %v4627
        %v4631 = vsel %vm1577, %v4623, 0
        %4633 = vmatprep.subr.mxu0 0.0
        %4634 = vmatpush1.msra.mxu0 0.0
        %4635 = vmatprep.subr.mxu0 0.0
        %4636 = vmatpush1.msra.mxu0 0.0
        %4637 = vmatprep.subr.mxu0 0.0
        %4638 = vmatpush1.msra.mxu0 0.0
        %4639 = vmatprep.subr.mxu0 0.0
        %4640 = vmatpush1.msra.mxu0 0.0
        %4641 = vmatprep.subr.mxu0 0.0
        %4642 = vmatpush1.msra.mxu0 0.0
        %4643 = vmatprep.subr.mxu0 0.0
        %4644 = vmatpush1.msra.mxu0 0.0
        %4645 = vmatprep.subr.mxu0 0.0
        %4646 = vmatpush1.msra.mxu0 0.0
        %4647 = vmatprep.subr.mxu0 0.0
        %4648 = vmatpush1.msra.mxu0 0.0
        %4649 = vmatprep.subr.mxu0 0.0
        %4650 = vmatpush1.msra.mxu0 %v4541
        %4651 = vmatprep.subr.mxu0 0.0
        %4652 = vmatpush1.msra.mxu0 %v4540
        %4653 = vmatprep.subr.mxu0 0.0
        %4654 = vmatpush1.msra.mxu0 %v4539
        %4655 = vmatprep.subr.mxu0 0.0
        %4656 = vmatpush1.msra.mxu0 %v4538
        %4657 = vmatprep.subr.mxu0 0.0
        %4658 = vmatpush1.msra.mxu0 %v4537
        %4659 = vmatprep.subr.mxu0 0.0
        %4660 = vmatpush1.msra.mxu0 %v4536
        %4661 = vmatprep.subr.mxu0 0.0
        %4662 = vmatpush1.msra.mxu0 %v4535
        %4663 = vmatprep.subr.mxu0 0.0
        %4664 = vmatpush1.msra.mxu0 %v4534
        %4665 = vmatprep.subr.mxu0 0.0
        %4666 = vmatpush2.msra.mxu0 0.0
        %4667 = vmatprep.subr.mxu0 0.0
        %4668 = vmatpush2.msra.mxu0 0.0
        %4669 = vmatprep.subr.mxu0 0.0
        %4670 = vmatpush2.msra.mxu0 0.0
        %4671 = vmatprep.subr.mxu0 0.0
        %4672 = vmatpush2.msra.mxu0 0.0
        %4673 = vmatprep.subr.mxu0 0.0
        %4674 = vmatpush2.msra.mxu0 0.0
        %4675 = vmatprep.subr.mxu0 0.0
        %4676 = vmatpush2.msra.mxu0 0.0
        %4677 = vmatprep.subr.mxu0 0.0
        %4678 = vmatpush2.msra.mxu0 0.0
        %4679 = vmatprep.subr.mxu0 0.0
        %4680 = vmatpush2.msra.mxu0 0.0
        %4681 = vmatprep.subr.mxu0 0.0
        %4682 = vmatpush2.msra.mxu0 0.0
        %4683 = vmatprep.subr.mxu0 0.0
        %4684 = vmatpush2.msra.mxu0 0.0
        %4685 = vmatprep.subr.mxu0 0.0
        %4686 = vmatpush2.msra.mxu0 0.0
        %4687 = vmatprep.subr.mxu0 0.0
        %4688 = vmatpush2.msra.mxu0 0.0
        %4689 = vmatprep.subr.mxu0 0.0
        %4690 = vmatpush2.msra.mxu0 0.0
        %4691 = vmatprep.subr.mxu0 0.0
        %4692 = vmatpush2.msra.mxu0 0.0
        %4693 = vmatprep.subr.mxu0 0.0
        %4694 = vmatpush2.msra.mxu0 0.0
        %4695 = vmatprep.subr.mxu0 0.0
        %4696 = vmatpush2.msra.mxu0 0.0
        %4697 = vmatprep.mubr.f32.mxu0 0.0
        %4698 = vmatmul.mubr.f32.gmra.mxu0 %v4631
        %v4699 = vpop.f32.mrf.mxu0
        %v4700 = vadd.f32 %v4628, %v4699
        %v4701 = vpop.f32.mrf.mxu0
        %4702 = vdwg.mxu0
        %v4703 = vadd.f32 %v4527, %v4700
        %s4704 = scalar_lea.vmem %s14, 20
        %v4705 = vld [vmem:[%s4704] ss:$8 sm:$0x3]
        %s4706 = scalar_lea.vmem %s14, 21
        %v4707 = vld [vmem:[%s4706] ss:$8 sm:$0x3]
        %v4708 = vsel %vm615, %v4703, 0.0
        %4709 = vadd.xlane.f32.xlu0 %v4708
        %v4710 = vpop.xlane.xlu0 %4709
        %v4711 = vmul.f32 %v4710, %v1450
        %v4712 = vsub.f32 %v4703, %v4711
        %v4713 = vmul.f32 %v4712, %v4712
        %v4714 = vsel %vm615, %v4713, 0.0
        %4715 = vadd.xlane.f32.xlu0 %v4714
        %v4716 = vpop.xlane.xlu0 %4715
        %v4717 = vmul.f32 %v4716, %v1450
        %v4718 = vadd.f32 %v4717, 1e-05
        %v4719 = vrsqrt.pop %v4718
        %v4720 = vmul.f32 %v4712, %v4719
        %v4722 = vlaneseq
        %v4723 = vshrl.u32 %v4722, 7
        %v4724 = vsub.s32 0, %v4723
        %v4725 = vrot.slane %v4705, %v4724
        %v4727 = vmul.f32 %v4720, %v4725
        %v4729 = vlaneseq
        %v4730 = vshrl.u32 %v4729, 7
        %v4731 = vsub.s32 0, %v4730
        %v4732 = vrot.slane %v4707, %v4731
        %v4734 = vadd.f32 %v4727, %v4732
        %s4735 = scalar_lea.vmem %s8, 32
        %v4736 = vld [vmem:[%s4735] sm:$0xff]
        %v4737 = vld [vmem:[%s4735 + $0x8] sm:$0xff]
        %v4738 = vld [vmem:[%s4735 + $0x10] sm:$0xff]
        %v4739 = vld [vmem:[%s4735 + $0x18] sm:$0xff]
        %s4740 = scalar_lea.vmem %s9, 64
        %v4741 = vld [vmem:[%s4740] sm:$0xff]
        %v4742 = vld [vmem:[%s4740 + $0x8] sm:$0xff]
        %v4743 = vld [vmem:[%s4740 + $0x10] sm:$0xff]
        %v4744 = vld [vmem:[%s4740 + $0x18] sm:$0xff]
        %v4745 = vld [vmem:[%s4740 + $0x20] sm:$0xff]
        %v4746 = vld [vmem:[%s4740 + $0x28] sm:$0xff]
        %v4747 = vld [vmem:[%s4740 + $0x30] sm:$0xff]
        %v4748 = vld [vmem:[%s4740 + $0x38] sm:$0xff]
        %s4749 = scalar_lea.vmem %s14, 32
        %v4750 = vld [vmem:[%s4749] ss:$8 sm:$0x3]
        %s4751 = scalar_lea.vmem %s4749, 1
        %v4752 = vld [vmem:[%s4751] ss:$8 sm:$0x3]
        %s4753 = scalar_lea.vmem %s4749, 2
        %v4754 = vld [vmem:[%s4753] ss:$8 sm:$0x3]
        %v4756 = vlaneseq
        %v4757 = vshrl.u32 %v4756, 7
        %v4758 = vsub.s32 0, %v4757
        %v4759 = vrot.slane %v4750, %v4758
        %v4762 = vsel %vm615, %v4734, 0
        %4764 = vmatprep.subr.mxu0 0.0
        %4765 = vmatpush1.msra.mxu0 0.0
        %4766 = vmatprep.subr.mxu0 0.0
        %4767 = vmatpush1.msra.mxu0 0.0
        %4768 = vmatprep.subr.mxu0 0.0
        %4769 = vmatpush1.msra.mxu0 0.0
        %4770 = vmatprep.subr.mxu0 0.0
        %4771 = vmatpush1.msra.mxu0 0.0
        %4772 = vmatprep.subr.mxu0 0.0
        %4773 = vmatpush1.msra.mxu0 0.0
        %4774 = vmatprep.subr.mxu0 0.0
        %4775 = vmatpush1.msra.mxu0 0.0
        %4776 = vmatprep.subr.mxu0 0.0
        %4777 = vmatpush1.msra.mxu0 0.0
        %4778 = vmatprep.subr.mxu0 0.0
        %4779 = vmatpush1.msra.mxu0 0.0
        %4780 = vmatprep.subr.mxu0 0.0
        %4781 = vmatpush1.msra.mxu0 0.0
        %4782 = vmatprep.subr.mxu0 0.0
        %4783 = vmatpush1.msra.mxu0 0.0
        %4784 = vmatprep.subr.mxu0 0.0
        %4785 = vmatpush1.msra.mxu0 0.0
        %4786 = vmatprep.subr.mxu0 0.0
        %4787 = vmatpush1.msra.mxu0 0.0
        %4788 = vmatprep.subr.mxu0 0.0
        %4789 = vmatpush1.msra.mxu0 %v4739
        %4790 = vmatprep.subr.mxu0 0.0
        %4791 = vmatpush1.msra.mxu0 %v4738
        %4792 = vmatprep.subr.mxu0 0.0
        %4793 = vmatpush1.msra.mxu0 %v4737
        %4794 = vmatprep.subr.mxu0 0.0
        %4795 = vmatpush1.msra.mxu0 %v4736
        %4796 = vmatprep.subr.mxu0 0.0
        %4797 = vmatpush2.msra.mxu0 0.0
        %4798 = vmatprep.subr.mxu0 0.0
        %4799 = vmatpush2.msra.mxu0 0.0
        %4800 = vmatprep.subr.mxu0 0.0
        %4801 = vmatpush2.msra.mxu0 0.0
        %4802 = vmatprep.subr.mxu0 0.0
        %4803 = vmatpush2.msra.mxu0 0.0
        %4804 = vmatprep.subr.mxu0 0.0
        %4805 = vmatpush2.msra.mxu0 0.0
        %4806 = vmatprep.subr.mxu0 0.0
        %4807 = vmatpush2.msra.mxu0 0.0
        %4808 = vmatprep.subr.mxu0 0.0
        %4809 = vmatpush2.msra.mxu0 0.0
        %4810 = vmatprep.subr.mxu0 0.0
        %4811 = vmatpush2.msra.mxu0 0.0
        %4812 = vmatprep.subr.mxu0 0.0
        %4813 = vmatpush2.msra.mxu0 0.0
        %4814 = vmatprep.subr.mxu0 0.0
        %4815 = vmatpush2.msra.mxu0 0.0
        %4816 = vmatprep.subr.mxu0 0.0
        %4817 = vmatpush2.msra.mxu0 0.0
        %4818 = vmatprep.subr.mxu0 0.0
        %4819 = vmatpush2.msra.mxu0 0.0
        %4820 = vmatprep.subr.mxu0 0.0
        %4821 = vmatpush2.msra.mxu0 0.0
        %4822 = vmatprep.subr.mxu0 0.0
        %4823 = vmatpush2.msra.mxu0 0.0
        %4824 = vmatprep.subr.mxu0 0.0
        %4825 = vmatpush2.msra.mxu0 0.0
        %4826 = vmatprep.subr.mxu0 0.0
        %4827 = vmatpush2.msra.mxu0 0.0
        %4828 = vmatprep.mubr.f32.mxu0 0.0
        %4829 = vmatmul.mubr.f32.gmra.mxu0 %v4762
        %v4830 = vpop.f32.mrf.mxu0
        %v4831 = vadd.f32 %v4759, %v4830
        %v4832 = vpop.f32.mrf.mxu0
        %4833 = vdwg.mxu0
        %v4835 = vlaneseq
        %v4836 = vshrl.u32 %v4835, 7
        %v4837 = vsub.s32 0, %v4836
        %v4838 = vrot.slane %v4752, %v4837
        %v4839 = vlaneseq
        %v4840 = vshrl.u32 %v4839, 7
        %v4841 = vsub.s32 1, %v4840
        %v4842 = vrot.slane %v4752, %v4841
        %4845 = vmatprep.subr.mxu0 0.0
        %4846 = vmatpush1.msra.mxu0 0.0
        %4847 = vmatprep.subr.mxu0 0.0
        %4848 = vmatpush1.msra.mxu0 0.0
        %4849 = vmatprep.subr.mxu0 0.0
        %4850 = vmatpush1.msra.mxu0 0.0
        %4851 = vmatprep.subr.mxu0 0.0
        %4852 = vmatpush1.msra.mxu0 0.0
        %4853 = vmatprep.subr.mxu0 0.0
        %4854 = vmatpush1.msra.mxu0 0.0
        %4855 = vmatprep.subr.mxu0 0.0
        %4856 = vmatpush1.msra.mxu0 0.0
        %4857 = vmatprep.subr.mxu0 0.0
        %4858 = vmatpush1.msra.mxu0 0.0
        %4859 = vmatprep.subr.mxu0 0.0
        %4860 = vmatpush1.msra.mxu0 0.0
        %4861 = vmatprep.subr.mxu0 0.0
        %4862 = vmatpush1.msra.mxu0 0.0
        %4863 = vmatprep.subr.mxu0 0.0
        %4864 = vmatpush1.msra.mxu0 0.0
        %4865 = vmatprep.subr.mxu0 0.0
        %4866 = vmatpush1.msra.mxu0 0.0
        %4867 = vmatprep.subr.mxu0 0.0
        %4868 = vmatpush1.msra.mxu0 0.0
        %4869 = vmatprep.subr.mxu0 %v4748
        %4870 = vmatpush1.msra.mxu0 %v4747
        %4871 = vmatprep.subr.mxu0 %v4746
        %4872 = vmatpush1.msra.mxu0 %v4745
        %4873 = vmatprep.subr.mxu0 %v4744
        %4874 = vmatpush1.msra.mxu0 %v4743
        %4875 = vmatprep.subr.mxu0 %v4742
        %4876 = vmatpush1.msra.mxu0 %v4741
        %4877 = vmatprep.subr.mxu0 0.0
        %4878 = vmatpush2.msra.mxu0 0.0
        %4879 = vmatprep.subr.mxu0 0.0
        %4880 = vmatpush2.msra.mxu0 0.0
        %4881 = vmatprep.subr.mxu0 0.0
        %4882 = vmatpush2.msra.mxu0 0.0
        %4883 = vmatprep.subr.mxu0 0.0
        %4884 = vmatpush2.msra.mxu0 0.0
        %4885 = vmatprep.subr.mxu0 0.0
        %4886 = vmatpush2.msra.mxu0 0.0
        %4887 = vmatprep.subr.mxu0 0.0
        %4888 = vmatpush2.msra.mxu0 0.0
        %4889 = vmatprep.subr.mxu0 0.0
        %4890 = vmatpush2.msra.mxu0 0.0
        %4891 = vmatprep.subr.mxu0 0.0
        %4892 = vmatpush2.msra.mxu0 0.0
        %4893 = vmatprep.subr.mxu0 0.0
        %4894 = vmatpush2.msra.mxu0 0.0
        %4895 = vmatprep.subr.mxu0 0.0
        %4896 = vmatpush2.msra.mxu0 0.0
        %4897 = vmatprep.subr.mxu0 0.0
        %4898 = vmatpush2.msra.mxu0 0.0
        %4899 = vmatprep.subr.mxu0 0.0
        %4900 = vmatpush2.msra.mxu0 0.0
        %4901 = vmatprep.subr.mxu0 0.0
        %4902 = vmatpush2.msra.mxu0 0.0
        %4903 = vmatprep.subr.mxu0 0.0
        %4904 = vmatpush2.msra.mxu0 0.0
        %4905 = vmatprep.subr.mxu0 0.0
        %4906 = vmatpush2.msra.mxu0 0.0
        %4907 = vmatprep.subr.mxu0 0.0
        %4908 = vmatpush2.msra.mxu0 0.0
        %4909 = vmatprep.mubr.f32.mxu0 0.0
        %4910 = vmatmul.mubr.f32.gmra.mxu0 %v4762
        %v4911 = vpop.f32.mrf.mxu0
        %v4912 = vadd.f32 %v4838, %v4911
        %v4913 = vpop.f32.mrf.mxu0
        %v4914 = vadd.f32 %v4842, %v4913
        %4915 = vdwg.mxu0
        %v4917 = vsel %vm777, %v4831, 0
        %v4920 = vsel %vm777, %v4912, 0
        %4922 = vmatprep.subr.mxu0 0.0
        %4923 = vmatpush1.xpose.msra.mxu0 0.0
        %4924 = vmatprep.subr.mxu0 0.0
        %4925 = vmatpush1.xpose.msra.mxu0 0.0
        %4926 = vmatprep.subr.mxu0 0.0
        %4927 = vmatpush1.xpose.msra.mxu0 0.0
        %4928 = vmatprep.subr.mxu0 0.0
        %4929 = vmatpush1.xpose.msra.mxu0 0.0
        %4930 = vmatprep.subr.mxu0 0.0
        %4931 = vmatpush1.xpose.msra.mxu0 0.0
        %4932 = vmatprep.subr.mxu0 0.0
        %4933 = vmatpush1.xpose.msra.mxu0 0.0
        %4934 = vmatprep.subr.mxu0 0.0
        %4935 = vmatpush1.xpose.msra.mxu0 0.0
        %4936 = vmatprep.subr.mxu0 0.0
        %4937 = vmatpush1.xpose.msra.mxu0 0.0
        %4938 = vmatprep.subr.mxu0 0.0
        %4939 = vmatpush1.xpose.msra.mxu0 0.0
        %4940 = vmatprep.subr.mxu0 0.0
        %4941 = vmatpush1.xpose.msra.mxu0 0.0
        %4942 = vmatprep.subr.mxu0 0.0
        %4943 = vmatpush1.xpose.msra.mxu0 0.0
        %4944 = vmatprep.subr.mxu0 0.0
        %4945 = vmatpush1.xpose.msra.mxu0 0.0
        %4946 = vmatprep.subr.mxu0 0.0
        %4947 = vmatpush1.xpose.msra.mxu0 0.0
        %4948 = vmatprep.subr.mxu0 0.0
        %4949 = vmatpush1.xpose.msra.mxu0 0.0
        %4950 = vmatprep.subr.mxu0 0.0
        %4951 = vmatpush1.xpose.msra.mxu0 0.0
        %4952 = vmatprep.subr.mxu0 0.0
        %4953 = vmatpush1.xpose.msra.mxu0 %v4920
        %4954 = vmatprep.subr.mxu0 0.0
        %4955 = vmatpush2.xpose.msra.mxu0 0.0
        %4956 = vmatprep.subr.mxu0 0.0
        %4957 = vmatpush2.xpose.msra.mxu0 0.0
        %4958 = vmatprep.subr.mxu0 0.0
        %4959 = vmatpush2.xpose.msra.mxu0 0.0
        %4960 = vmatprep.subr.mxu0 0.0
        %4961 = vmatpush2.xpose.msra.mxu0 0.0
        %4962 = vmatprep.subr.mxu0 0.0
        %4963 = vmatpush2.xpose.msra.mxu0 0.0
        %4964 = vmatprep.subr.mxu0 0.0
        %4965 = vmatpush2.xpose.msra.mxu0 0.0
        %4966 = vmatprep.subr.mxu0 0.0
        %4967 = vmatpush2.xpose.msra.mxu0 0.0
        %4968 = vmatprep.subr.mxu0 0.0
        %4969 = vmatpush2.xpose.msra.mxu0 0.0
        %4970 = vmatprep.subr.mxu0 0.0
        %4971 = vmatpush2.xpose.msra.mxu0 0.0
        %4972 = vmatprep.subr.mxu0 0.0
        %4973 = vmatpush2.xpose.msra.mxu0 0.0
        %4974 = vmatprep.subr.mxu0 0.0
        %4975 = vmatpush2.xpose.msra.mxu0 0.0
        %4976 = vmatprep.subr.mxu0 0.0
        %4977 = vmatpush2.xpose.msra.mxu0 0.0
        %4978 = vmatprep.subr.mxu0 0.0
        %4979 = vmatpush2.xpose.msra.mxu0 0.0
        %4980 = vmatprep.subr.mxu0 0.0
        %4981 = vmatpush2.xpose.msra.mxu0 0.0
        %4982 = vmatprep.subr.mxu0 0.0
        %4983 = vmatpush2.xpose.msra.mxu0 0.0
        %4984 = vmatprep.subr.mxu0 0.0
        %4985 = vmatpush2.xpose.msra.mxu0 0.0
        %4986 = vmatprep.mubr.f32.mxu0 0.0
        %4987 = vmatmul.mubr.f32.gmra.mxu0 %v4917
        %v4988 = vpop.f32.mrf.mxu0
        %v4989 = vadd.f32 %v2774, %v4988
        %v4990 = vpop.f32.mrf.mxu0
        %4991 = vdwg.mxu0
        %v4992 = vsel %vm777, %v4989, -inf
        %4993 = vmax.xlane.f32.xlu0 %v4992
        %v4994 = vpop.xlane.xlu0 %4993
        %v4995 = vsub.f32 %v4989, %v4994
        %v4996 = vmul.f32 %v4995, 1.442695
        %v4997 = vpow.pop %v4996
        %v4998 = vsel %vm777, %v4997, 0.0
        %4999 = vadd.xlane.f32.xlu0 %v4998
        %v5000 = vpop.xlane.xlu0 %4999
        %v5001 = vrcp.pop %v5000
        %v5002 = vmul.f32 %v4997, %v5001
        %5003 = vrot.lane.b32.xlu0 %v4831, 120
        %v5004 = vpop.permute.xlu0 %5003
        %5005 = vrot.lane.b32.xlu0 %v4912, 120
        %v5006 = vpop.permute.xlu0 %5005
        %v5007 = vsel %vm777, %v5004, 0
        %v5009 = vsel %vm777, %v5006, 0
        %5011 = vmatprep.subr.mxu0 0.0
        %5012 = vmatpush1.xpose.msra.mxu0 0.0
        %5013 = vmatprep.subr.mxu0 0.0
        %5014 = vmatpush1.xpose.msra.mxu0 0.0
        %5015 = vmatprep.subr.mxu0 0.0
        %5016 = vmatpush1.xpose.msra.mxu0 0.0
        %5017 = vmatprep.subr.mxu0 0.0
        %5018 = vmatpush1.xpose.msra.mxu0 0.0
        %5019 = vmatprep.subr.mxu0 0.0
        %5020 = vmatpush1.xpose.msra.mxu0 0.0
        %5021 = vmatprep.subr.mxu0 0.0
        %5022 = vmatpush1.xpose.msra.mxu0 0.0
        %5023 = vmatprep.subr.mxu0 0.0
        %5024 = vmatpush1.xpose.msra.mxu0 0.0
        %5025 = vmatprep.subr.mxu0 0.0
        %5026 = vmatpush1.xpose.msra.mxu0 0.0
        %5027 = vmatprep.subr.mxu0 0.0
        %5028 = vmatpush1.xpose.msra.mxu0 0.0
        %5029 = vmatprep.subr.mxu0 0.0
        %5030 = vmatpush1.xpose.msra.mxu0 0.0
        %5031 = vmatprep.subr.mxu0 0.0
        %5032 = vmatpush1.xpose.msra.mxu0 0.0
        %5033 = vmatprep.subr.mxu0 0.0
        %5034 = vmatpush1.xpose.msra.mxu0 0.0
        %5035 = vmatprep.subr.mxu0 0.0
        %5036 = vmatpush1.xpose.msra.mxu0 0.0
        %5037 = vmatprep.subr.mxu0 0.0
        %5038 = vmatpush1.xpose.msra.mxu0 0.0
        %5039 = vmatprep.subr.mxu0 0.0
        %5040 = vmatpush1.xpose.msra.mxu0 0.0
        %5041 = vmatprep.subr.mxu0 0.0
        %5042 = vmatpush1.xpose.msra.mxu0 %v5009
        %5043 = vmatprep.subr.mxu0 0.0
        %5044 = vmatpush2.xpose.msra.mxu0 0.0
        %5045 = vmatprep.subr.mxu0 0.0
        %5046 = vmatpush2.xpose.msra.mxu0 0.0
        %5047 = vmatprep.subr.mxu0 0.0
        %5048 = vmatpush2.xpose.msra.mxu0 0.0
        %5049 = vmatprep.subr.mxu0 0.0
        %5050 = vmatpush2.xpose.msra.mxu0 0.0
        %5051 = vmatprep.subr.mxu0 0.0
        %5052 = vmatpush2.xpose.msra.mxu0 0.0
        %5053 = vmatprep.subr.mxu0 0.0
        %5054 = vmatpush2.xpose.msra.mxu0 0.0
        %5055 = vmatprep.subr.mxu0 0.0
        %5056 = vmatpush2.xpose.msra.mxu0 0.0
        %5057 = vmatprep.subr.mxu0 0.0
        %5058 = vmatpush2.xpose.msra.mxu0 0.0
        %5059 = vmatprep.subr.mxu0 0.0
        %5060 = vmatpush2.xpose.msra.mxu0 0.0
        %5061 = vmatprep.subr.mxu0 0.0
        %5062 = vmatpush2.xpose.msra.mxu0 0.0
        %5063 = vmatprep.subr.mxu0 0.0
        %5064 = vmatpush2.xpose.msra.mxu0 0.0
        %5065 = vmatprep.subr.mxu0 0.0
        %5066 = vmatpush2.xpose.msra.mxu0 0.0
        %5067 = vmatprep.subr.mxu0 0.0
        %5068 = vmatpush2.xpose.msra.mxu0 0.0
        %5069 = vmatprep.subr.mxu0 0.0
        %5070 = vmatpush2.xpose.msra.mxu0 0.0
        %5071 = vmatprep.subr.mxu0 0.0
        %5072 = vmatpush2.xpose.msra.mxu0 0.0
        %5073 = vmatprep.subr.mxu0 0.0
        %5074 = vmatpush2.xpose.msra.mxu0 0.0
        %5075 = vmatprep.mubr.f32.mxu0 0.0
        %5076 = vmatmul.mubr.f32.gmra.mxu0 %v5007
        %v5077 = vpop.f32.mrf.mxu0
        %v5078 = vadd.f32 %v2774, %v5077
        %v5079 = vpop.f32.mrf.mxu0
        %5080 = vdwg.mxu0
        %v5081 = vsel %vm777, %v5078, -inf
        %5082 = vmax.xlane.f32.xlu0 %v5081
        %v5083 = vpop.xlane.xlu0 %5082
        %v5084 = vsub.f32 %v5078, %v5083
        %v5085 = vmul.f32 %v5084, 1.442695
        %v5086 = vpow.pop %v5085
        %v5087 = vsel %vm777, %v5086, 0.0
        %5088 = vadd.xlane.f32.xlu0 %v5087
        %v5089 = vpop.xlane.xlu0 %5088
        %v5090 = vrcp.pop %v5089
        %v5091 = vmul.f32 %v5086, %v5090
        %5092 = vrot.lane.b32.xlu0 %v4912, 64
        %v5093 = vpop.permute.xlu0 %5092
        %v5096 = vsel %vm777, %v5091, 0
        %5098 = vmatprep.subr.mxu0 0.0
        %5099 = vmatpush1.msra.mxu0 0.0
        %5100 = vmatprep.subr.mxu0 0.0
        %5101 = vmatpush1.msra.mxu0 0.0
        %5102 = vmatprep.subr.mxu0 0.0
        %5103 = vmatpush1.msra.mxu0 0.0
        %5104 = vmatprep.subr.mxu0 0.0
        %5105 = vmatpush1.msra.mxu0 0.0
        %5106 = vmatprep.subr.mxu0 0.0
        %5107 = vmatpush1.msra.mxu0 0.0
        %5108 = vmatprep.subr.mxu0 0.0
        %5109 = vmatpush1.msra.mxu0 0.0
        %5110 = vmatprep.subr.mxu0 0.0
        %5111 = vmatpush1.msra.mxu0 0.0
        %5112 = vmatprep.subr.mxu0 0.0
        %5113 = vmatpush1.msra.mxu0 0.0
        %5114 = vmatprep.subr.mxu0 0.0
        %5115 = vmatpush1.msra.mxu0 0.0
        %5116 = vmatprep.subr.mxu0 0.0
        %5117 = vmatpush1.msra.mxu0 0.0
        %5118 = vmatprep.subr.mxu0 0.0
        %5119 = vmatpush1.msra.mxu0 0.0
        %5120 = vmatprep.subr.mxu0 0.0
        %5121 = vmatpush1.msra.mxu0 0.0
        %5122 = vmatprep.subr.mxu0 0.0
        %5123 = vmatpush1.msra.mxu0 0.0
        %5124 = vmatprep.subr.mxu0 0.0
        %5125 = vmatpush1.msra.mxu0 0.0
        %5126 = vmatprep.subr.mxu0 0.0
        %5127 = vmatpush1.msra.mxu0 0.0
        %5128 = vmatprep.subr.mxu0 0.0
        %5129 = vmatpush1.msra.mxu0 %v5093
        %5130 = vmatprep.subr.mxu0 0.0
        %5131 = vmatpush2.msra.mxu0 0.0
        %5132 = vmatprep.subr.mxu0 0.0
        %5133 = vmatpush2.msra.mxu0 0.0
        %5134 = vmatprep.subr.mxu0 0.0
        %5135 = vmatpush2.msra.mxu0 0.0
        %5136 = vmatprep.subr.mxu0 0.0
        %5137 = vmatpush2.msra.mxu0 0.0
        %5138 = vmatprep.subr.mxu0 0.0
        %5139 = vmatpush2.msra.mxu0 0.0
        %5140 = vmatprep.subr.mxu0 0.0
        %5141 = vmatpush2.msra.mxu0 0.0
        %5142 = vmatprep.subr.mxu0 0.0
        %5143 = vmatpush2.msra.mxu0 0.0
        %5144 = vmatprep.subr.mxu0 0.0
        %5145 = vmatpush2.msra.mxu0 0.0
        %5146 = vmatprep.subr.mxu0 0.0
        %5147 = vmatpush2.msra.mxu0 0.0
        %5148 = vmatprep.subr.mxu0 0.0
        %5149 = vmatpush2.msra.mxu0 0.0
        %5150 = vmatprep.subr.mxu0 0.0
        %5151 = vmatpush2.msra.mxu0 0.0
        %5152 = vmatprep.subr.mxu0 0.0
        %5153 = vmatpush2.msra.mxu0 0.0
        %5154 = vmatprep.subr.mxu0 0.0
        %5155 = vmatpush2.msra.mxu0 0.0
        %5156 = vmatprep.subr.mxu0 0.0
        %5157 = vmatpush2.msra.mxu0 0.0
        %5158 = vmatprep.subr.mxu0 0.0
        %5159 = vmatpush2.msra.mxu0 0.0
        %5160 = vmatprep.subr.mxu0 0.0
        %5161 = vmatpush2.msra.mxu0 0.0
        %5162 = vmatprep.mubr.f32.mxu0 0.0
        %5163 = vmatmul.mubr.f32.gmra.mxu0 %v5096
        %v5164 = vpop.f32.mrf.mxu0
        %v5165 = vadd.f32 0.0, %v5164
        %v5166 = vpop.f32.mrf.mxu0
        %5167 = vdwg.mxu0
        %5168 = vrot.lane.b32.xlu0 %v4912, 96
        %v5169 = vpop.permute.xlu0 %5168
        %v5172 = vsel %vm777, %v5002, 0
        %5174 = vmatprep.subr.mxu0 0.0
        %5175 = vmatpush1.msra.mxu0 0.0
        %5176 = vmatprep.subr.mxu0 0.0
        %5177 = vmatpush1.msra.mxu0 0.0
        %5178 = vmatprep.subr.mxu0 0.0
        %5179 = vmatpush1.msra.mxu0 0.0
        %5180 = vmatprep.subr.mxu0 0.0
        %5181 = vmatpush1.msra.mxu0 0.0
        %5182 = vmatprep.subr.mxu0 0.0
        %5183 = vmatpush1.msra.mxu0 0.0
        %5184 = vmatprep.subr.mxu0 0.0
        %5185 = vmatpush1.msra.mxu0 0.0
        %5186 = vmatprep.subr.mxu0 0.0
        %5187 = vmatpush1.msra.mxu0 0.0
        %5188 = vmatprep.subr.mxu0 0.0
        %5189 = vmatpush1.msra.mxu0 0.0
        %5190 = vmatprep.subr.mxu0 0.0
        %5191 = vmatpush1.msra.mxu0 0.0
        %5192 = vmatprep.subr.mxu0 0.0
        %5193 = vmatpush1.msra.mxu0 0.0
        %5194 = vmatprep.subr.mxu0 0.0
        %5195 = vmatpush1.msra.mxu0 0.0
        %5196 = vmatprep.subr.mxu0 0.0
        %5197 = vmatpush1.msra.mxu0 0.0
        %5198 = vmatprep.subr.mxu0 0.0
        %5199 = vmatpush1.msra.mxu0 0.0
        %5200 = vmatprep.subr.mxu0 0.0
        %5201 = vmatpush1.msra.mxu0 0.0
        %5202 = vmatprep.subr.mxu0 0.0
        %5203 = vmatpush1.msra.mxu0 0.0
        %5204 = vmatprep.subr.mxu0 0.0
        %5205 = vmatpush1.msra.mxu0 %v5169
        %5206 = vmatprep.subr.mxu0 0.0
        %5207 = vmatpush2.msra.mxu0 0.0
        %5208 = vmatprep.subr.mxu0 0.0
        %5209 = vmatpush2.msra.mxu0 0.0
        %5210 = vmatprep.subr.mxu0 0.0
        %5211 = vmatpush2.msra.mxu0 0.0
        %5212 = vmatprep.subr.mxu0 0.0
        %5213 = vmatpush2.msra.mxu0 0.0
        %5214 = vmatprep.subr.mxu0 0.0
        %5215 = vmatpush2.msra.mxu0 0.0
        %5216 = vmatprep.subr.mxu0 0.0
        %5217 = vmatpush2.msra.mxu0 0.0
        %5218 = vmatprep.subr.mxu0 0.0
        %5219 = vmatpush2.msra.mxu0 0.0
        %5220 = vmatprep.subr.mxu0 0.0
        %5221 = vmatpush2.msra.mxu0 0.0
        %5222 = vmatprep.subr.mxu0 0.0
        %5223 = vmatpush2.msra.mxu0 0.0
        %5224 = vmatprep.subr.mxu0 0.0
        %5225 = vmatpush2.msra.mxu0 0.0
        %5226 = vmatprep.subr.mxu0 0.0
        %5227 = vmatpush2.msra.mxu0 0.0
        %5228 = vmatprep.subr.mxu0 0.0
        %5229 = vmatpush2.msra.mxu0 0.0
        %5230 = vmatprep.subr.mxu0 0.0
        %5231 = vmatpush2.msra.mxu0 0.0
        %5232 = vmatprep.subr.mxu0 0.0
        %5233 = vmatpush2.msra.mxu0 0.0
        %5234 = vmatprep.subr.mxu0 0.0
        %5235 = vmatpush2.msra.mxu0 0.0
        %5236 = vmatprep.subr.mxu0 0.0
        %5237 = vmatpush2.msra.mxu0 0.0
        %5238 = vmatprep.mubr.f32.mxu0 0.0
        %5239 = vmatmul.mubr.f32.gmra.mxu0 %v5172
        %v5240 = vpop.f32.mrf.mxu0
        %v5241 = vadd.f32 %v5165, %v5240
        %v5242 = vpop.f32.mrf.mxu0
        %5243 = vdwg.mxu0
        %5244 = vrot.lane.b32.xlu0 %v4831, 112
        %v5245 = vpop.permute.xlu0 %5244
        %5246 = vrot.lane.b32.xlu0 %v4912, 112
        %v5247 = vpop.permute.xlu0 %5246
        %v5248 = vsel %vm777, %v5245, 0
        %v5250 = vsel %vm777, %v5247, 0
        %5252 = vmatprep.subr.mxu0 0.0
        %5253 = vmatpush1.xpose.msra.mxu0 0.0
        %5254 = vmatprep.subr.mxu0 0.0
        %5255 = vmatpush1.xpose.msra.mxu0 0.0
        %5256 = vmatprep.subr.mxu0 0.0
        %5257 = vmatpush1.xpose.msra.mxu0 0.0
        %5258 = vmatprep.subr.mxu0 0.0
        %5259 = vmatpush1.xpose.msra.mxu0 0.0
        %5260 = vmatprep.subr.mxu0 0.0
        %5261 = vmatpush1.xpose.msra.mxu0 0.0
        %5262 = vmatprep.subr.mxu0 0.0
        %5263 = vmatpush1.xpose.msra.mxu0 0.0
        %5264 = vmatprep.subr.mxu0 0.0
        %5265 = vmatpush1.xpose.msra.mxu0 0.0
        %5266 = vmatprep.subr.mxu0 0.0
        %5267 = vmatpush1.xpose.msra.mxu0 0.0
        %5268 = vmatprep.subr.mxu0 0.0
        %5269 = vmatpush1.xpose.msra.mxu0 0.0
        %5270 = vmatprep.subr.mxu0 0.0
        %5271 = vmatpush1.xpose.msra.mxu0 0.0
        %5272 = vmatprep.subr.mxu0 0.0
        %5273 = vmatpush1.xpose.msra.mxu0 0.0
        %5274 = vmatprep.subr.mxu0 0.0
        %5275 = vmatpush1.xpose.msra.mxu0 0.0
        %5276 = vmatprep.subr.mxu0 0.0
        %5277 = vmatpush1.xpose.msra.mxu0 0.0
        %5278 = vmatprep.subr.mxu0 0.0
        %5279 = vmatpush1.xpose.msra.mxu0 0.0
        %5280 = vmatprep.subr.mxu0 0.0
        %5281 = vmatpush1.xpose.msra.mxu0 0.0
        %5282 = vmatprep.subr.mxu0 0.0
        %5283 = vmatpush1.xpose.msra.mxu0 %v5250
        %5284 = vmatprep.subr.mxu0 0.0
        %5285 = vmatpush2.xpose.msra.mxu0 0.0
        %5286 = vmatprep.subr.mxu0 0.0
        %5287 = vmatpush2.xpose.msra.mxu0 0.0
        %5288 = vmatprep.subr.mxu0 0.0
        %5289 = vmatpush2.xpose.msra.mxu0 0.0
        %5290 = vmatprep.subr.mxu0 0.0
        %5291 = vmatpush2.xpose.msra.mxu0 0.0
        %5292 = vmatprep.subr.mxu0 0.0
        %5293 = vmatpush2.xpose.msra.mxu0 0.0
        %5294 = vmatprep.subr.mxu0 0.0
        %5295 = vmatpush2.xpose.msra.mxu0 0.0
        %5296 = vmatprep.subr.mxu0 0.0
        %5297 = vmatpush2.xpose.msra.mxu0 0.0
        %5298 = vmatprep.subr.mxu0 0.0
        %5299 = vmatpush2.xpose.msra.mxu0 0.0
        %5300 = vmatprep.subr.mxu0 0.0
        %5301 = vmatpush2.xpose.msra.mxu0 0.0
        %5302 = vmatprep.subr.mxu0 0.0
        %5303 = vmatpush2.xpose.msra.mxu0 0.0
        %5304 = vmatprep.subr.mxu0 0.0
        %5305 = vmatpush2.xpose.msra.mxu0 0.0
        %5306 = vmatprep.subr.mxu0 0.0
        %5307 = vmatpush2.xpose.msra.mxu0 0.0
        %5308 = vmatprep.subr.mxu0 0.0
        %5309 = vmatpush2.xpose.msra.mxu0 0.0
        %5310 = vmatprep.subr.mxu0 0.0
        %5311 = vmatpush2.xpose.msra.mxu0 0.0
        %5312 = vmatprep.subr.mxu0 0.0
        %5313 = vmatpush2.xpose.msra.mxu0 0.0
        %5314 = vmatprep.subr.mxu0 0.0
        %5315 = vmatpush2.xpose.msra.mxu0 0.0
        %5316 = vmatprep.mubr.f32.mxu0 0.0
        %5317 = vmatmul.mubr.f32.gmra.mxu0 %v5248
        %v5318 = vpop.f32.mrf.mxu0
        %v5319 = vadd.f32 %v2774, %v5318
        %v5320 = vpop.f32.mrf.mxu0
        %5321 = vdwg.mxu0
        %v5322 = vsel %vm777, %v5319, -inf
        %5323 = vmax.xlane.f32.xlu0 %v5322
        %v5324 = vpop.xlane.xlu0 %5323
        %v5325 = vsub.f32 %v5319, %v5324
        %v5326 = vmul.f32 %v5325, 1.442695
        %v5327 = vpow.pop %v5326
        %v5328 = vsel %vm777, %v5327, 0.0
        %5329 = vadd.xlane.f32.xlu0 %v5328
        %v5330 = vpop.xlane.xlu0 %5329
        %v5331 = vrcp.pop %v5330
        %v5332 = vmul.f32 %v5327, %v5331
        %5333 = vrot.lane.b32.xlu0 %v4912, 32
        %v5334 = vpop.permute.xlu0 %5333
        %v5337 = vsel %vm777, %v5332, 0
        %5339 = vmatprep.subr.mxu0 0.0
        %5340 = vmatpush1.msra.mxu0 0.0
        %5341 = vmatprep.subr.mxu0 0.0
        %5342 = vmatpush1.msra.mxu0 0.0
        %5343 = vmatprep.subr.mxu0 0.0
        %5344 = vmatpush1.msra.mxu0 0.0
        %5345 = vmatprep.subr.mxu0 0.0
        %5346 = vmatpush1.msra.mxu0 0.0
        %5347 = vmatprep.subr.mxu0 0.0
        %5348 = vmatpush1.msra.mxu0 0.0
        %5349 = vmatprep.subr.mxu0 0.0
        %5350 = vmatpush1.msra.mxu0 0.0
        %5351 = vmatprep.subr.mxu0 0.0
        %5352 = vmatpush1.msra.mxu0 0.0
        %5353 = vmatprep.subr.mxu0 0.0
        %5354 = vmatpush1.msra.mxu0 0.0
        %5355 = vmatprep.subr.mxu0 0.0
        %5356 = vmatpush1.msra.mxu0 0.0
        %5357 = vmatprep.subr.mxu0 0.0
        %5358 = vmatpush1.msra.mxu0 0.0
        %5359 = vmatprep.subr.mxu0 0.0
        %5360 = vmatpush1.msra.mxu0 0.0
        %5361 = vmatprep.subr.mxu0 0.0
        %5362 = vmatpush1.msra.mxu0 0.0
        %5363 = vmatprep.subr.mxu0 0.0
        %5364 = vmatpush1.msra.mxu0 0.0
        %5365 = vmatprep.subr.mxu0 0.0
        %5366 = vmatpush1.msra.mxu0 0.0
        %5367 = vmatprep.subr.mxu0 0.0
        %5368 = vmatpush1.msra.mxu0 0.0
        %5369 = vmatprep.subr.mxu0 0.0
        %5370 = vmatpush1.msra.mxu0 %v5334
        %5371 = vmatprep.subr.mxu0 0.0
        %5372 = vmatpush2.msra.mxu0 0.0
        %5373 = vmatprep.subr.mxu0 0.0
        %5374 = vmatpush2.msra.mxu0 0.0
        %5375 = vmatprep.subr.mxu0 0.0
        %5376 = vmatpush2.msra.mxu0 0.0
        %5377 = vmatprep.subr.mxu0 0.0
        %5378 = vmatpush2.msra.mxu0 0.0
        %5379 = vmatprep.subr.mxu0 0.0
        %5380 = vmatpush2.msra.mxu0 0.0
        %5381 = vmatprep.subr.mxu0 0.0
        %5382 = vmatpush2.msra.mxu0 0.0
        %5383 = vmatprep.subr.mxu0 0.0
        %5384 = vmatpush2.msra.mxu0 0.0
        %5385 = vmatprep.subr.mxu0 0.0
        %5386 = vmatpush2.msra.mxu0 0.0
        %5387 = vmatprep.subr.mxu0 0.0
        %5388 = vmatpush2.msra.mxu0 0.0
        %5389 = vmatprep.subr.mxu0 0.0
        %5390 = vmatpush2.msra.mxu0 0.0
        %5391 = vmatprep.subr.mxu0 0.0
        %5392 = vmatpush2.msra.mxu0 0.0
        %5393 = vmatprep.subr.mxu0 0.0
        %5394 = vmatpush2.msra.mxu0 0.0
        %5395 = vmatprep.subr.mxu0 0.0
        %5396 = vmatpush2.msra.mxu0 0.0
        %5397 = vmatprep.subr.mxu0 0.0
        %5398 = vmatpush2.msra.mxu0 0.0
        %5399 = vmatprep.subr.mxu0 0.0
        %5400 = vmatpush2.msra.mxu0 0.0
        %5401 = vmatprep.subr.mxu0 0.0
        %5402 = vmatpush2.msra.mxu0 0.0
        %5403 = vmatprep.mubr.f32.mxu0 0.0
        %5404 = vmatmul.mubr.f32.gmra.mxu0 %v5337
        %v5405 = vpop.f32.mrf.mxu0
        %v5406 = vadd.f32 0.0, %v5405
        %v5407 = vpop.f32.mrf.mxu0
        %5408 = vdwg.mxu0
        %v5409 = vadd.f32 %v5241, %v5406
        %5410 = vrot.lane.b32.xlu0 %v4831, 104
        %v5411 = vpop.permute.xlu0 %5410
        %5412 = vrot.lane.b32.xlu0 %v4912, 104
        %v5413 = vpop.permute.xlu0 %5412
        %v5414 = vsel %vm777, %v5411, 0
        %v5416 = vsel %vm777, %v5413, 0
        %5418 = vmatprep.subr.mxu0 0.0
        %5419 = vmatpush1.xpose.msra.mxu0 0.0
        %5420 = vmatprep.subr.mxu0 0.0
        %5421 = vmatpush1.xpose.msra.mxu0 0.0
        %5422 = vmatprep.subr.mxu0 0.0
        %5423 = vmatpush1.xpose.msra.mxu0 0.0
        %5424 = vmatprep.subr.mxu0 0.0
        %5425 = vmatpush1.xpose.msra.mxu0 0.0
        %5426 = vmatprep.subr.mxu0 0.0
        %5427 = vmatpush1.xpose.msra.mxu0 0.0
        %5428 = vmatprep.subr.mxu0 0.0
        %5429 = vmatpush1.xpose.msra.mxu0 0.0
        %5430 = vmatprep.subr.mxu0 0.0
        %5431 = vmatpush1.xpose.msra.mxu0 0.0
        %5432 = vmatprep.subr.mxu0 0.0
        %5433 = vmatpush1.xpose.msra.mxu0 0.0
        %5434 = vmatprep.subr.mxu0 0.0
        %5435 = vmatpush1.xpose.msra.mxu0 0.0
        %5436 = vmatprep.subr.mxu0 0.0
        %5437 = vmatpush1.xpose.msra.mxu0 0.0
        %5438 = vmatprep.subr.mxu0 0.0
        %5439 = vmatpush1.xpose.msra.mxu0 0.0
        %5440 = vmatprep.subr.mxu0 0.0
        %5441 = vmatpush1.xpose.msra.mxu0 0.0
        %5442 = vmatprep.subr.mxu0 0.0
        %5443 = vmatpush1.xpose.msra.mxu0 0.0
        %5444 = vmatprep.subr.mxu0 0.0
        %5445 = vmatpush1.xpose.msra.mxu0 0.0
        %5446 = vmatprep.subr.mxu0 0.0
        %5447 = vmatpush1.xpose.msra.mxu0 0.0
        %5448 = vmatprep.subr.mxu0 0.0
        %5449 = vmatpush1.xpose.msra.mxu0 %v5416
        %5450 = vmatprep.subr.mxu0 0.0
        %5451 = vmatpush2.xpose.msra.mxu0 0.0
        %5452 = vmatprep.subr.mxu0 0.0
        %5453 = vmatpush2.xpose.msra.mxu0 0.0
        %5454 = vmatprep.subr.mxu0 0.0
        %5455 = vmatpush2.xpose.msra.mxu0 0.0
        %5456 = vmatprep.subr.mxu0 0.0
        %5457 = vmatpush2.xpose.msra.mxu0 0.0
        %5458 = vmatprep.subr.mxu0 0.0
        %5459 = vmatpush2.xpose.msra.mxu0 0.0
        %5460 = vmatprep.subr.mxu0 0.0
        %5461 = vmatpush2.xpose.msra.mxu0 0.0
        %5462 = vmatprep.subr.mxu0 0.0
        %5463 = vmatpush2.xpose.msra.mxu0 0.0
        %5464 = vmatprep.subr.mxu0 0.0
        %5465 = vmatpush2.xpose.msra.mxu0 0.0
        %5466 = vmatprep.subr.mxu0 0.0
        %5467 = vmatpush2.xpose.msra.mxu0 0.0
        %5468 = vmatprep.subr.mxu0 0.0
        %5469 = vmatpush2.xpose.msra.mxu0 0.0
        %5470 = vmatprep.subr.mxu0 0.0
        %5471 = vmatpush2.xpose.msra.mxu0 0.0
        %5472 = vmatprep.subr.mxu0 0.0
        %5473 = vmatpush2.xpose.msra.mxu0 0.0
        %5474 = vmatprep.subr.mxu0 0.0
        %5475 = vmatpush2.xpose.msra.mxu0 0.0
        %5476 = vmatprep.subr.mxu0 0.0
        %5477 = vmatpush2.xpose.msra.mxu0 0.0
        %5478 = vmatprep.subr.mxu0 0.0
        %5479 = vmatpush2.xpose.msra.mxu0 0.0
        %5480 = vmatprep.subr.mxu0 0.0
        %5481 = vmatpush2.xpose.msra.mxu0 0.0
        %5482 = vmatprep.mubr.f32.mxu0 0.0
        %5483 = vmatmul.mubr.f32.gmra.mxu0 %v5414
        %v5484 = vpop.f32.mrf.mxu0
        %v5485 = vadd.f32 %v2774, %v5484
        %v5486 = vpop.f32.mrf.mxu0
        %5487 = vdwg.mxu0
        %v5488 = vsel %vm777, %v5485, -inf
        %5489 = vmax.xlane.f32.xlu0 %v5488
        %v5490 = vpop.xlane.xlu0 %5489
        %v5491 = vsub.f32 %v5485, %v5490
        %v5492 = vmul.f32 %v5491, 1.442695
        %v5493 = vpow.pop %v5492
        %v5494 = vsel %vm777, %v5493, 0.0
        %5495 = vadd.xlane.f32.xlu0 %v5494
        %v5496 = vpop.xlane.xlu0 %5495
        %v5497 = vrcp.pop %v5496
        %v5498 = vmul.f32 %v5493, %v5497
        %v5500 = vsel %vm777, %v5498, 0
        %5502 = vmatprep.subr.mxu0 0.0
        %5503 = vmatpush1.msra.mxu0 0.0
        %5504 = vmatprep.subr.mxu0 0.0
        %5505 = vmatpush1.msra.mxu0 0.0
        %5506 = vmatprep.subr.mxu0 0.0
        %5507 = vmatpush1.msra.mxu0 0.0
        %5508 = vmatprep.subr.mxu0 0.0
        %5509 = vmatpush1.msra.mxu0 0.0
        %5510 = vmatprep.subr.mxu0 0.0
        %5511 = vmatpush1.msra.mxu0 0.0
        %5512 = vmatprep.subr.mxu0 0.0
        %5513 = vmatpush1.msra.mxu0 0.0
        %5514 = vmatprep.subr.mxu0 0.0
        %5515 = vmatpush1.msra.mxu0 0.0
        %5516 = vmatprep.subr.mxu0 0.0
        %5517 = vmatpush1.msra.mxu0 0.0
        %5518 = vmatprep.subr.mxu0 0.0
        %5519 = vmatpush1.msra.mxu0 0.0
        %5520 = vmatprep.subr.mxu0 0.0
        %5521 = vmatpush1.msra.mxu0 0.0
        %5522 = vmatprep.subr.mxu0 0.0
        %5523 = vmatpush1.msra.mxu0 0.0
        %5524 = vmatprep.subr.mxu0 0.0
        %5525 = vmatpush1.msra.mxu0 0.0
        %5526 = vmatprep.subr.mxu0 0.0
        %5527 = vmatpush1.msra.mxu0 0.0
        %5528 = vmatprep.subr.mxu0 0.0
        %5529 = vmatpush1.msra.mxu0 0.0
        %5530 = vmatprep.subr.mxu0 0.0
        %5531 = vmatpush1.msra.mxu0 0.0
        %5532 = vmatprep.subr.mxu0 0.0
        %5533 = vmatpush1.msra.mxu0 %v4914
        %5534 = vmatprep.subr.mxu0 0.0
        %5535 = vmatpush2.msra.mxu0 0.0
        %5536 = vmatprep.subr.mxu0 0.0
        %5537 = vmatpush2.msra.mxu0 0.0
        %5538 = vmatprep.subr.mxu0 0.0
        %5539 = vmatpush2.msra.mxu0 0.0
        %5540 = vmatprep.subr.mxu0 0.0
        %5541 = vmatpush2.msra.mxu0 0.0
        %5542 = vmatprep.subr.mxu0 0.0
        %5543 = vmatpush2.msra.mxu0 0.0
        %5544 = vmatprep.subr.mxu0 0.0
        %5545 = vmatpush2.msra.mxu0 0.0
        %5546 = vmatprep.subr.mxu0 0.0
        %5547 = vmatpush2.msra.mxu0 0.0
        %5548 = vmatprep.subr.mxu0 0.0
        %5549 = vmatpush2.msra.mxu0 0.0
        %5550 = vmatprep.subr.mxu0 0.0
        %5551 = vmatpush2.msra.mxu0 0.0
        %5552 = vmatprep.subr.mxu0 0.0
        %5553 = vmatpush2.msra.mxu0 0.0
        %5554 = vmatprep.subr.mxu0 0.0
        %5555 = vmatpush2.msra.mxu0 0.0
        %5556 = vmatprep.subr.mxu0 0.0
        %5557 = vmatpush2.msra.mxu0 0.0
        %5558 = vmatprep.subr.mxu0 0.0
        %5559 = vmatpush2.msra.mxu0 0.0
        %5560 = vmatprep.subr.mxu0 0.0
        %5561 = vmatpush2.msra.mxu0 0.0
        %5562 = vmatprep.subr.mxu0 0.0
        %5563 = vmatpush2.msra.mxu0 0.0
        %5564 = vmatprep.subr.mxu0 0.0
        %5565 = vmatpush2.msra.mxu0 0.0
        %5566 = vmatprep.mubr.f32.mxu0 0.0
        %5567 = vmatmul.mubr.f32.gmra.mxu0 %v5500
        %v5568 = vpop.f32.mrf.mxu0
        %v5569 = vadd.f32 0.0, %v5568
        %v5570 = vpop.f32.mrf.mxu0
        %5571 = vdwg.mxu0
        %v5572 = vadd.f32 %v5409, %v5569
        %v5574 = vlaneseq
        %v5575 = vshrl.u32 %v5574, 7
        %v5576 = vsub.s32 0, %v5575
        %v5577 = vrot.slane %v4754, %v5576
        %v5579 = vadd.f32 %v5572, %v5577
        %v5580 = vadd.f32 %v4734, %v5579
        %s5581 = scalar_lea.vmem %s4749, 3
        %v5582 = vld [vmem:[%s5581] ss:$8 sm:$0x3]
        %s5583 = scalar_lea.vmem %s4749, 4
        %v5584 = vld [vmem:[%s5583] ss:$8 sm:$0x3]
        %v5585 = vsel %vm615, %v5580, 0.0
        %5586 = vadd.xlane.f32.xlu0 %v5585
        %v5587 = vpop.xlane.xlu0 %5586
        %v5588 = vmul.f32 %v5587, %v1450
        %v5589 = vsub.f32 %v5580, %v5588
        %v5590 = vmul.f32 %v5589, %v5589
        %v5591 = vsel %vm615, %v5590, 0.0
        %5592 = vadd.xlane.f32.xlu0 %v5591
        %v5593 = vpop.xlane.xlu0 %5592
        %v5594 = vmul.f32 %v5593, %v1450
        %v5595 = vadd.f32 %v5594, 1e-05
        %v5596 = vrsqrt.pop %v5595
        %v5597 = vmul.f32 %v5589, %v5596
        %v5599 = vlaneseq
        %v5600 = vshrl.u32 %v5599, 7
        %v5601 = vsub.s32 0, %v5600
        %v5602 = vrot.slane %v5582, %v5601
        %v5604 = vmul.f32 %v5597, %v5602
        %v5606 = vlaneseq
        %v5607 = vshrl.u32 %v5606, 7
        %v5608 = vsub.s32 0, %v5607
        %v5609 = vrot.slane %v5584, %v5608
        %v5611 = vadd.f32 %v5604, %v5609
        %s5612 = scalar_lea.vmem %s10, 32
        %v5613 = vld [vmem:[%s5612] sm:$0xff]
        %v5614 = vld [vmem:[%s5612 + $0x8] sm:$0xff]
        %v5615 = vld [vmem:[%s5612 + $0x10] sm:$0xff]
        %v5616 = vld [vmem:[%s5612 + $0x18] sm:$0xff]
        %s5617 = scalar_lea.vmem %s11, 64
        %v5618 = vld [vmem:[%s5617] sm:$0xff]
        %v5619 = vld [vmem:[%s5617 + $0x8] sm:$0xff]
        %v5620 = vld [vmem:[%s5617 + $0x10] sm:$0xff]
        %v5621 = vld [vmem:[%s5617 + $0x18] sm:$0xff]
        %v5622 = vld [vmem:[%s5617 + $0x20] sm:$0xff]
        %v5623 = vld [vmem:[%s5617 + $0x28] sm:$0xff]
        %v5624 = vld [vmem:[%s5617 + $0x30] sm:$0xff]
        %v5625 = vld [vmem:[%s5617 + $0x38] sm:$0xff]
        %s5626 = scalar_lea.vmem %s4749, 5
        %v5627 = vld [vmem:[%s5626] ss:$8 sm:$0x3]
        %s5628 = scalar_lea.vmem %s4749, 6
        %v5629 = vld [vmem:[%s5628] ss:$8 sm:$0x3]
        %s5630 = scalar_lea.vmem %s4749, 7
        %v5631 = vld [vmem:[%s5630] ss:$8 sm:$0x3]
        %v5633 = vlaneseq
        %v5634 = vshrl.u32 %v5633, 7
        %v5635 = vsub.s32 0, %v5634
        %v5636 = vrot.slane %v5627, %v5635
        %v5639 = vsel %vm615, %v5611, 0
        %5641 = vmatprep.subr.mxu0 0.0
        %5642 = vmatpush1.msra.mxu0 0.0
        %5643 = vmatprep.subr.mxu0 0.0
        %5644 = vmatpush1.msra.mxu0 0.0
        %5645 = vmatprep.subr.mxu0 0.0
        %5646 = vmatpush1.msra.mxu0 0.0
        %5647 = vmatprep.subr.mxu0 0.0
        %5648 = vmatpush1.msra.mxu0 0.0
        %5649 = vmatprep.subr.mxu0 0.0
        %5650 = vmatpush1.msra.mxu0 0.0
        %5651 = vmatprep.subr.mxu0 0.0
        %5652 = vmatpush1.msra.mxu0 0.0
        %5653 = vmatprep.subr.mxu0 0.0
        %5654 = vmatpush1.msra.mxu0 0.0
        %5655 = vmatprep.subr.mxu0 0.0
        %5656 = vmatpush1.msra.mxu0 0.0
        %5657 = vmatprep.subr.mxu0 0.0
        %5658 = vmatpush1.msra.mxu0 0.0
        %5659 = vmatprep.subr.mxu0 0.0
        %5660 = vmatpush1.msra.mxu0 0.0
        %5661 = vmatprep.subr.mxu0 0.0
        %5662 = vmatpush1.msra.mxu0 0.0
        %5663 = vmatprep.subr.mxu0 0.0
        %5664 = vmatpush1.msra.mxu0 0.0
        %5665 = vmatprep.subr.mxu0 0.0
        %5666 = vmatpush1.msra.mxu0 %v5616
        %5667 = vmatprep.subr.mxu0 0.0
        %5668 = vmatpush1.msra.mxu0 %v5615
        %5669 = vmatprep.subr.mxu0 0.0
        %5670 = vmatpush1.msra.mxu0 %v5614
        %5671 = vmatprep.subr.mxu0 0.0
        %5672 = vmatpush1.msra.mxu0 %v5613
        %5673 = vmatprep.subr.mxu0 0.0
        %5674 = vmatpush2.msra.mxu0 0.0
        %5675 = vmatprep.subr.mxu0 0.0
        %5676 = vmatpush2.msra.mxu0 0.0
        %5677 = vmatprep.subr.mxu0 0.0
        %5678 = vmatpush2.msra.mxu0 0.0
        %5679 = vmatprep.subr.mxu0 0.0
        %5680 = vmatpush2.msra.mxu0 0.0
        %5681 = vmatprep.subr.mxu0 0.0
        %5682 = vmatpush2.msra.mxu0 0.0
        %5683 = vmatprep.subr.mxu0 0.0
        %5684 = vmatpush2.msra.mxu0 0.0
        %5685 = vmatprep.subr.mxu0 0.0
        %5686 = vmatpush2.msra.mxu0 0.0
        %5687 = vmatprep.subr.mxu0 0.0
        %5688 = vmatpush2.msra.mxu0 0.0
        %5689 = vmatprep.subr.mxu0 0.0
        %5690 = vmatpush2.msra.mxu0 0.0
        %5691 = vmatprep.subr.mxu0 0.0
        %5692 = vmatpush2.msra.mxu0 0.0
        %5693 = vmatprep.subr.mxu0 0.0
        %5694 = vmatpush2.msra.mxu0 0.0
        %5695 = vmatprep.subr.mxu0 0.0
        %5696 = vmatpush2.msra.mxu0 0.0
        %5697 = vmatprep.subr.mxu0 0.0
        %5698 = vmatpush2.msra.mxu0 0.0
        %5699 = vmatprep.subr.mxu0 0.0
        %5700 = vmatpush2.msra.mxu0 0.0
        %5701 = vmatprep.subr.mxu0 0.0
        %5702 = vmatpush2.msra.mxu0 0.0
        %5703 = vmatprep.subr.mxu0 0.0
        %5704 = vmatpush2.msra.mxu0 0.0
        %5705 = vmatprep.mubr.f32.mxu0 0.0
        %5706 = vmatmul.mubr.f32.gmra.mxu0 %v5639
        %v5707 = vpop.f32.mrf.mxu0
        %v5708 = vadd.f32 %v5636, %v5707
        %v5709 = vpop.f32.mrf.mxu0
        %5710 = vdwg.mxu0
        %v5712 = vlaneseq
        %v5713 = vshrl.u32 %v5712, 7
        %v5714 = vsub.s32 0, %v5713
        %v5715 = vrot.slane %v5629, %v5714
        %v5716 = vlaneseq
        %v5717 = vshrl.u32 %v5716, 7
        %v5718 = vsub.s32 1, %v5717
        %v5719 = vrot.slane %v5629, %v5718
        %5722 = vmatprep.subr.mxu0 0.0
        %5723 = vmatpush1.msra.mxu0 0.0
        %5724 = vmatprep.subr.mxu0 0.0
        %5725 = vmatpush1.msra.mxu0 0.0
        %5726 = vmatprep.subr.mxu0 0.0
        %5727 = vmatpush1.msra.mxu0 0.0
        %5728 = vmatprep.subr.mxu0 0.0
        %5729 = vmatpush1.msra.mxu0 0.0
        %5730 = vmatprep.subr.mxu0 0.0
        %5731 = vmatpush1.msra.mxu0 0.0
        %5732 = vmatprep.subr.mxu0 0.0
        %5733 = vmatpush1.msra.mxu0 0.0
        %5734 = vmatprep.subr.mxu0 0.0
        %5735 = vmatpush1.msra.mxu0 0.0
        %5736 = vmatprep.subr.mxu0 0.0
        %5737 = vmatpush1.msra.mxu0 0.0
        %5738 = vmatprep.subr.mxu0 0.0
        %5739 = vmatpush1.msra.mxu0 0.0
        %5740 = vmatprep.subr.mxu0 0.0
        %5741 = vmatpush1.msra.mxu0 0.0
        %5742 = vmatprep.subr.mxu0 0.0
        %5743 = vmatpush1.msra.mxu0 0.0
        %5744 = vmatprep.subr.mxu0 0.0
        %5745 = vmatpush1.msra.mxu0 0.0
        %5746 = vmatprep.subr.mxu0 %v5625
        %5747 = vmatpush1.msra.mxu0 %v5624
        %5748 = vmatprep.subr.mxu0 %v5623
        %5749 = vmatpush1.msra.mxu0 %v5622
        %5750 = vmatprep.subr.mxu0 %v5621
        %5751 = vmatpush1.msra.mxu0 %v5620
        %5752 = vmatprep.subr.mxu0 %v5619
        %5753 = vmatpush1.msra.mxu0 %v5618
        %5754 = vmatprep.subr.mxu0 0.0
        %5755 = vmatpush2.msra.mxu0 0.0
        %5756 = vmatprep.subr.mxu0 0.0
        %5757 = vmatpush2.msra.mxu0 0.0
        %5758 = vmatprep.subr.mxu0 0.0
        %5759 = vmatpush2.msra.mxu0 0.0
        %5760 = vmatprep.subr.mxu0 0.0
        %5761 = vmatpush2.msra.mxu0 0.0
        %5762 = vmatprep.subr.mxu0 0.0
        %5763 = vmatpush2.msra.mxu0 0.0
        %5764 = vmatprep.subr.mxu0 0.0
        %5765 = vmatpush2.msra.mxu0 0.0
        %5766 = vmatprep.subr.mxu0 0.0
        %5767 = vmatpush2.msra.mxu0 0.0
        %5768 = vmatprep.subr.mxu0 0.0
        %5769 = vmatpush2.msra.mxu0 0.0
        %5770 = vmatprep.subr.mxu0 0.0
        %5771 = vmatpush2.msra.mxu0 0.0
        %5772 = vmatprep.subr.mxu0 0.0
        %5773 = vmatpush2.msra.mxu0 0.0
        %5774 = vmatprep.subr.mxu0 0.0
        %5775 = vmatpush2.msra.mxu0 0.0
        %5776 = vmatprep.subr.mxu0 0.0
        %5777 = vmatpush2.msra.mxu0 0.0
        %5778 = vmatprep.subr.mxu0 0.0
        %5779 = vmatpush2.msra.mxu0 0.0
        %5780 = vmatprep.subr.mxu0 0.0
        %5781 = vmatpush2.msra.mxu0 0.0
        %5782 = vmatprep.subr.mxu0 0.0
        %5783 = vmatpush2.msra.mxu0 0.0
        %5784 = vmatprep.subr.mxu0 0.0
        %5785 = vmatpush2.msra.mxu0 0.0
        %5786 = vmatprep.mubr.f32.mxu0 0.0
        %5787 = vmatmul.mubr.f32.gmra.mxu0 %v3759
        %v5788 = vpop.f32.mrf.mxu0
        %v5789 = vadd.f32 %v5715, %v5788
        %v5790 = vpop.f32.mrf.mxu0
        %v5791 = vadd.f32 %v5719, %v5790
        %5792 = vdwg.mxu0
        %v5794 = vsel %vm777, %v5708, 0
        %v5797 = vsel %vm777, %v5789, 0
        %5799 = vmatprep.subr.mxu0 0.0
        %5800 = vmatpush1.xpose.msra.mxu0 0.0
        %5801 = vmatprep.subr.mxu0 0.0
        %5802 = vmatpush1.xpose.msra.mxu0 0.0
        %5803 = vmatprep.subr.mxu0 0.0
        %5804 = vmatpush1.xpose.msra.mxu0 0.0
        %5805 = vmatprep.subr.mxu0 0.0
        %5806 = vmatpush1.xpose.msra.mxu0 0.0
        %5807 = vmatprep.subr.mxu0 0.0
        %5808 = vmatpush1.xpose.msra.mxu0 0.0
        %5809 = vmatprep.subr.mxu0 0.0
        %5810 = vmatpush1.xpose.msra.mxu0 0.0
        %5811 = vmatprep.subr.mxu0 0.0
        %5812 = vmatpush1.xpose.msra.mxu0 0.0
        %5813 = vmatprep.subr.mxu0 0.0
        %5814 = vmatpush1.xpose.msra.mxu0 0.0
        %5815 = vmatprep.subr.mxu0 0.0
        %5816 = vmatpush1.xpose.msra.mxu0 0.0
        %5817 = vmatprep.subr.mxu0 0.0
        %5818 = vmatpush1.xpose.msra.mxu0 0.0
        %5819 = vmatprep.subr.mxu0 0.0
        %5820 = vmatpush1.xpose.msra.mxu0 0.0
        %5821 = vmatprep.subr.mxu0 0.0
        %5822 = vmatpush1.xpose.msra.mxu0 0.0
        %5823 = vmatprep.subr.mxu0 0.0
        %5824 = vmatpush1.xpose.msra.mxu0 0.0
        %5825 = vmatprep.subr.mxu0 0.0
        %5826 = vmatpush1.xpose.msra.mxu0 0.0
        %5827 = vmatprep.subr.mxu0 0.0
        %5828 = vmatpush1.xpose.msra.mxu0 0.0
        %5829 = vmatprep.subr.mxu0 0.0
        %5830 = vmatpush1.xpose.msra.mxu0 %v5797
        %5831 = vmatprep.subr.mxu0 0.0
        %5832 = vmatpush2.xpose.msra.mxu0 0.0
        %5833 = vmatprep.subr.mxu0 0.0
        %5834 = vmatpush2.xpose.msra.mxu0 0.0
        %5835 = vmatprep.subr.mxu0 0.0
        %5836 = vmatpush2.xpose.msra.mxu0 0.0
        %5837 = vmatprep.subr.mxu0 0.0
        %5838 = vmatpush2.xpose.msra.mxu0 0.0
        %5839 = vmatprep.subr.mxu0 0.0
        %5840 = vmatpush2.xpose.msra.mxu0 0.0
        %5841 = vmatprep.subr.mxu0 0.0
        %5842 = vmatpush2.xpose.msra.mxu0 0.0
        %5843 = vmatprep.subr.mxu0 0.0
        %5844 = vmatpush2.xpose.msra.mxu0 0.0
        %5845 = vmatprep.subr.mxu0 0.0
        %5846 = vmatpush2.xpose.msra.mxu0 0.0
        %5847 = vmatprep.subr.mxu0 0.0
        %5848 = vmatpush2.xpose.msra.mxu0 0.0
        %5849 = vmatprep.subr.mxu0 0.0
        %5850 = vmatpush2.xpose.msra.mxu0 0.0
        %5851 = vmatprep.subr.mxu0 0.0
        %5852 = vmatpush2.xpose.msra.mxu0 0.0
        %5853 = vmatprep.subr.mxu0 0.0
        %5854 = vmatpush2.xpose.msra.mxu0 0.0
        %5855 = vmatprep.subr.mxu0 0.0
        %5856 = vmatpush2.xpose.msra.mxu0 0.0
        %5857 = vmatprep.subr.mxu0 0.0
        %5858 = vmatpush2.xpose.msra.mxu0 0.0
        %5859 = vmatprep.subr.mxu0 0.0
        %5860 = vmatpush2.xpose.msra.mxu0 0.0
        %5861 = vmatprep.subr.mxu0 0.0
        %5862 = vmatpush2.xpose.msra.mxu0 0.0
        %5863 = vmatprep.mubr.f32.mxu0 0.0
        %5864 = vmatmul.mubr.f32.gmra.mxu0 %v5794
        %v5865 = vpop.f32.mrf.mxu0
        %v5866 = vadd.f32 %v775, %v5865
        %v5867 = vpop.f32.mrf.mxu0
        %5868 = vdwg.mxu0
        %v5869 = vsel %vm777, %v5866, -inf
        %5870 = vmax.xlane.f32.xlu0 %v5869
        %v5871 = vpop.xlane.xlu0 %5870
        %v5872 = vsub.f32 %v5866, %v5871
        %v5873 = vmul.f32 %v5872, 1.442695
        %v5874 = vpow.pop %v5873
        %v5875 = vsel %vm777, %v5874, 0.0
        %5876 = vadd.xlane.f32.xlu0 %v5875
        %v5877 = vpop.xlane.xlu0 %5876
        %v5878 = vrcp.pop %v5877
        %v5879 = vmul.f32 %v5874, %v5878
        %5880 = vrot.lane.b32.xlu0 %v5708, 120
        %v5881 = vpop.permute.xlu0 %5880
        %5882 = vrot.lane.b32.xlu0 %v5789, 120
        %v5883 = vpop.permute.xlu0 %5882
        %v5884 = vsel %vm777, %v5881, 0
        %v5886 = vsel %vm777, %v5883, 0
        %5888 = vmatprep.subr.mxu0 0.0
        %5889 = vmatpush1.xpose.msra.mxu0 0.0
        %5890 = vmatprep.subr.mxu0 0.0
        %5891 = vmatpush1.xpose.msra.mxu0 0.0
        %5892 = vmatprep.subr.mxu0 0.0
        %5893 = vmatpush1.xpose.msra.mxu0 0.0
        %5894 = vmatprep.subr.mxu0 0.0
        %5895 = vmatpush1.xpose.msra.mxu0 0.0
        %5896 = vmatprep.subr.mxu0 0.0
        %5897 = vmatpush1.xpose.msra.mxu0 0.0
        %5898 = vmatprep.subr.mxu0 0.0
        %5899 = vmatpush1.xpose.msra.mxu0 0.0
        %5900 = vmatprep.subr.mxu0 0.0
        %5901 = vmatpush1.xpose.msra.mxu0 0.0
        %5902 = vmatprep.subr.mxu0 0.0
        %5903 = vmatpush1.xpose.msra.mxu0 0.0
        %5904 = vmatprep.subr.mxu0 0.0
        %5905 = vmatpush1.xpose.msra.mxu0 0.0
        %5906 = vmatprep.subr.mxu0 0.0
        %5907 = vmatpush1.xpose.msra.mxu0 0.0
        %5908 = vmatprep.subr.mxu0 0.0
        %5909 = vmatpush1.xpose.msra.mxu0 0.0
        %5910 = vmatprep.subr.mxu0 0.0
        %5911 = vmatpush1.xpose.msra.mxu0 0.0
        %5912 = vmatprep.subr.mxu0 0.0
        %5913 = vmatpush1.xpose.msra.mxu0 0.0
        %5914 = vmatprep.subr.mxu0 0.0
        %5915 = vmatpush1.xpose.msra.mxu0 0.0
        %5916 = vmatprep.subr.mxu0 0.0
        %5917 = vmatpush1.xpose.msra.mxu0 0.0
        %5918 = vmatprep.subr.mxu0 0.0
        %5919 = vmatpush1.xpose.msra.mxu0 %v5886
        %5920 = vmatprep.subr.mxu0 0.0
        %5921 = vmatpush2.xpose.msra.mxu0 0.0
        %5922 = vmatprep.subr.mxu0 0.0
        %5923 = vmatpush2.xpose.msra.mxu0 0.0
        %5924 = vmatprep.subr.mxu0 0.0
        %5925 = vmatpush2.xpose.msra.mxu0 0.0
        %5926 = vmatprep.subr.mxu0 0.0
        %5927 = vmatpush2.xpose.msra.mxu0 0.0
        %5928 = vmatprep.subr.mxu0 0.0
        %5929 = vmatpush2.xpose.msra.mxu0 0.0
        %5930 = vmatprep.subr.mxu0 0.0
        %5931 = vmatpush2.xpose.msra.mxu0 0.0
        %5932 = vmatprep.subr.mxu0 0.0
        %5933 = vmatpush2.xpose.msra.mxu0 0.0
        %5934 = vmatprep.subr.mxu0 0.0
        %5935 = vmatpush2.xpose.msra.mxu0 0.0
        %5936 = vmatprep.subr.mxu0 0.0
        %5937 = vmatpush2.xpose.msra.mxu0 0.0
        %5938 = vmatprep.subr.mxu0 0.0
        %5939 = vmatpush2.xpose.msra.mxu0 0.0
        %5940 = vmatprep.subr.mxu0 0.0
        %5941 = vmatpush2.xpose.msra.mxu0 0.0
        %5942 = vmatprep.subr.mxu0 0.0
        %5943 = vmatpush2.xpose.msra.mxu0 0.0
        %5944 = vmatprep.subr.mxu0 0.0
        %5945 = vmatpush2.xpose.msra.mxu0 0.0
        %5946 = vmatprep.subr.mxu0 0.0
        %5947 = vmatpush2.xpose.msra.mxu0 0.0
        %5948 = vmatprep.subr.mxu0 0.0
        %5949 = vmatpush2.xpose.msra.mxu0 0.0
        %5950 = vmatprep.subr.mxu0 0.0
        %5951 = vmatpush2.xpose.msra.mxu0 0.0
        %5952 = vmatprep.mubr.f32.mxu0 0.0
        %5953 = vmatmul.mubr.f32.gmra.mxu0 %v5884
        %v5954 = vpop.f32.mrf.mxu0
        %v5955 = vadd.f32 %v775, %v5954
        %v5956 = vpop.f32.mrf.mxu0
        %5957 = vdwg.mxu0
        %v5958 = vsel %vm777, %v5955, -inf
        %5959 = vmax.xlane.f32.xlu0 %v5958
        %v5960 = vpop.xlane.xlu0 %5959
        %v5961 = vsub.f32 %v5955, %v5960
        %v5962 = vmul.f32 %v5961, 1.442695
        %v5963 = vpow.pop %v5962
        %v5964 = vsel %vm777, %v5963, 0.0
        %5965 = vadd.xlane.f32.xlu0 %v5964
        %v5966 = vpop.xlane.xlu0 %5965
        %v5967 = vrcp.pop %v5966
        %v5968 = vmul.f32 %v5963, %v5967
        %5969 = vrot.lane.b32.xlu0 %v5789, 64
        %v5970 = vpop.permute.xlu0 %5969
        %v5973 = vsel %vm777, %v5968, 0
        %5975 = vmatprep.subr.mxu0 0.0
        %5976 = vmatpush1.msra.mxu0 0.0
        %5977 = vmatprep.subr.mxu0 0.0
        %5978 = vmatpush1.msra.mxu0 0.0
        %5979 = vmatprep.subr.mxu0 0.0
        %5980 = vmatpush1.msra.mxu0 0.0
        %5981 = vmatprep.subr.mxu0 0.0
        %5982 = vmatpush1.msra.mxu0 0.0
        %5983 = vmatprep.subr.mxu0 0.0
        %5984 = vmatpush1.msra.mxu0 0.0
        %5985 = vmatprep.subr.mxu0 0.0
        %5986 = vmatpush1.msra.mxu0 0.0
        %5987 = vmatprep.subr.mxu0 0.0
        %5988 = vmatpush1.msra.mxu0 0.0
        %5989 = vmatprep.subr.mxu0 0.0
        %5990 = vmatpush1.msra.mxu0 0.0
        %5991 = vmatprep.subr.mxu0 0.0
        %5992 = vmatpush1.msra.mxu0 0.0
        %5993 = vmatprep.subr.mxu0 0.0
        %5994 = vmatpush1.msra.mxu0 0.0
        %5995 = vmatprep.subr.mxu0 0.0
        %5996 = vmatpush1.msra.mxu0 0.0
        %5997 = vmatprep.subr.mxu0 0.0
        %5998 = vmatpush1.msra.mxu0 0.0
        %5999 = vmatprep.subr.mxu0 0.0
        %6000 = vmatpush1.msra.mxu0 0.0
        %6001 = vmatprep.subr.mxu0 0.0
        %6002 = vmatpush1.msra.mxu0 0.0
        %6003 = vmatprep.subr.mxu0 0.0
        %6004 = vmatpush1.msra.mxu0 0.0
        %6005 = vmatprep.subr.mxu0 0.0
        %6006 = vmatpush1.msra.mxu0 %v5970
        %6007 = vmatprep.subr.mxu0 0.0
        %6008 = vmatpush2.msra.mxu0 0.0
        %6009 = vmatprep.subr.mxu0 0.0
        %6010 = vmatpush2.msra.mxu0 0.0
        %6011 = vmatprep.subr.mxu0 0.0
        %6012 = vmatpush2.msra.mxu0 0.0
        %6013 = vmatprep.subr.mxu0 0.0
        %6014 = vmatpush2.msra.mxu0 0.0
        %6015 = vmatprep.subr.mxu0 0.0
        %6016 = vmatpush2.msra.mxu0 0.0
        %6017 = vmatprep.subr.mxu0 0.0
        %6018 = vmatpush2.msra.mxu0 0.0
        %6019 = vmatprep.subr.mxu0 0.0
        %6020 = vmatpush2.msra.mxu0 0.0
        %6021 = vmatprep.subr.mxu0 0.0
        %6022 = vmatpush2.msra.mxu0 0.0
        %6023 = vmatprep.subr.mxu0 0.0
        %6024 = vmatpush2.msra.mxu0 0.0
        %6025 = vmatprep.subr.mxu0 0.0
        %6026 = vmatpush2.msra.mxu0 0.0
        %6027 = vmatprep.subr.mxu0 0.0
        %6028 = vmatpush2.msra.mxu0 0.0
        %6029 = vmatprep.subr.mxu0 0.0
        %6030 = vmatpush2.msra.mxu0 0.0
        %6031 = vmatprep.subr.mxu0 0.0
        %6032 = vmatpush2.msra.mxu0 0.0
        %6033 = vmatprep.subr.mxu0 0.0
        %6034 = vmatpush2.msra.mxu0 0.0
        %6035 = vmatprep.subr.mxu0 0.0
        %6036 = vmatpush2.msra.mxu0 0.0
        %6037 = vmatprep.subr.mxu0 0.0
        %6038 = vmatpush2.msra.mxu0 0.0
        %6039 = vmatprep.mubr.f32.mxu0 0.0
        %6040 = vmatmul.mubr.f32.gmra.mxu0 %v5973
        %v6041 = vpop.f32.mrf.mxu0
        %v6042 = vadd.f32 0.0, %v6041
        %v6043 = vpop.f32.mrf.mxu0
        %6044 = vdwg.mxu0
        %6045 = vrot.lane.b32.xlu0 %v5789, 96
        %v6046 = vpop.permute.xlu0 %6045
        %v6049 = vsel %vm777, %v5879, 0
        %6051 = vmatprep.subr.mxu0 0.0
        %6052 = vmatpush1.msra.mxu0 0.0
        %6053 = vmatprep.subr.mxu0 0.0
        %6054 = vmatpush1.msra.mxu0 0.0
        %6055 = vmatprep.subr.mxu0 0.0
        %6056 = vmatpush1.msra.mxu0 0.0
        %6057 = vmatprep.subr.mxu0 0.0
        %6058 = vmatpush1.msra.mxu0 0.0
        %6059 = vmatprep.subr.mxu0 0.0
        %6060 = vmatpush1.msra.mxu0 0.0
        %6061 = vmatprep.subr.mxu0 0.0
        %6062 = vmatpush1.msra.mxu0 0.0
        %6063 = vmatprep.subr.mxu0 0.0
        %6064 = vmatpush1.msra.mxu0 0.0
        %6065 = vmatprep.subr.mxu0 0.0
        %6066 = vmatpush1.msra.mxu0 0.0
        %6067 = vmatprep.subr.mxu0 0.0
        %6068 = vmatpush1.msra.mxu0 0.0
        %6069 = vmatprep.subr.mxu0 0.0
        %6070 = vmatpush1.msra.mxu0 0.0
        %6071 = vmatprep.subr.mxu0 0.0
        %6072 = vmatpush1.msra.mxu0 0.0
        %6073 = vmatprep.subr.mxu0 0.0
        %6074 = vmatpush1.msra.mxu0 0.0
        %6075 = vmatprep.subr.mxu0 0.0
        %6076 = vmatpush1.msra.mxu0 0.0
        %6077 = vmatprep.subr.mxu0 0.0
        %6078 = vmatpush1.msra.mxu0 0.0
        %6079 = vmatprep.subr.mxu0 0.0
        %6080 = vmatpush1.msra.mxu0 0.0
        %6081 = vmatprep.subr.mxu0 0.0
        %6082 = vmatpush1.msra.mxu0 %v6046
        %6083 = vmatprep.subr.mxu0 0.0
        %6084 = vmatpush2.msra.mxu0 0.0
        %6085 = vmatprep.subr.mxu0 0.0
        %6086 = vmatpush2.msra.mxu0 0.0
        %6087 = vmatprep.subr.mxu0 0.0
        %6088 = vmatpush2.msra.mxu0 0.0
        %6089 = vmatprep.subr.mxu0 0.0
        %6090 = vmatpush2.msra.mxu0 0.0
        %6091 = vmatprep.subr.mxu0 0.0
        %6092 = vmatpush2.msra.mxu0 0.0
        %6093 = vmatprep.subr.mxu0 0.0
        %6094 = vmatpush2.msra.mxu0 0.0
        %6095 = vmatprep.subr.mxu0 0.0
        %6096 = vmatpush2.msra.mxu0 0.0
        %6097 = vmatprep.subr.mxu0 0.0
        %6098 = vmatpush2.msra.mxu0 0.0
        %6099 = vmatprep.subr.mxu0 0.0
        %6100 = vmatpush2.msra.mxu0 0.0
        %6101 = vmatprep.subr.mxu0 0.0
        %6102 = vmatpush2.msra.mxu0 0.0
        %6103 = vmatprep.subr.mxu0 0.0
        %6104 = vmatpush2.msra.mxu0 0.0
        %6105 = vmatprep.subr.mxu0 0.0
        %6106 = vmatpush2.msra.mxu0 0.0
        %6107 = vmatprep.subr.mxu0 0.0
        %6108 = vmatpush2.msra.mxu0 0.0
        %6109 = vmatprep.subr.mxu0 0.0
        %6110 = vmatpush2.msra.mxu0 0.0
        %6111 = vmatprep.subr.mxu0 0.0
        %6112 = vmatpush2.msra.mxu0 0.0
        %6113 = vmatprep.subr.mxu0 0.0
        %6114 = vmatpush2.msra.mxu0 0.0
        %6115 = vmatprep.mubr.f32.mxu0 0.0
        %6116 = vmatmul.mubr.f32.gmra.mxu0 %v6049
        %v6117 = vpop.f32.mrf.mxu0
        %v6118 = vadd.f32 %v6042, %v6117
        %v6119 = vpop.f32.mrf.mxu0
        %6120 = vdwg.mxu0
        %6121 = vrot.lane.b32.xlu0 %v5708, 112
        %v6122 = vpop.permute.xlu0 %6121
        %6123 = vrot.lane.b32.xlu0 %v5789, 112
        %v6124 = vpop.permute.xlu0 %6123
        %v6125 = vsel %vm777, %v6122, 0
        %v6127 = vsel %vm777, %v6124, 0
        %6129 = vmatprep.subr.mxu0 0.0
        %6130 = vmatpush1.xpose.msra.mxu0 0.0
        %6131 = vmatprep.subr.mxu0 0.0
        %6132 = vmatpush1.xpose.msra.mxu0 0.0
        %6133 = vmatprep.subr.mxu0 0.0
        %6134 = vmatpush1.xpose.msra.mxu0 0.0
        %6135 = vmatprep.subr.mxu0 0.0
        %6136 = vmatpush1.xpose.msra.mxu0 0.0
        %6137 = vmatprep.subr.mxu0 0.0
        %6138 = vmatpush1.xpose.msra.mxu0 0.0
        %6139 = vmatprep.subr.mxu0 0.0
        %6140 = vmatpush1.xpose.msra.mxu0 0.0
        %6141 = vmatprep.subr.mxu0 0.0
        %6142 = vmatpush1.xpose.msra.mxu0 0.0
        %6143 = vmatprep.subr.mxu0 0.0
        %6144 = vmatpush1.xpose.msra.mxu0 0.0
        %6145 = vmatprep.subr.mxu0 0.0
        %6146 = vmatpush1.xpose.msra.mxu0 0.0
        %6147 = vmatprep.subr.mxu0 0.0
        %6148 = vmatpush1.xpose.msra.mxu0 0.0
        %6149 = vmatprep.subr.mxu0 0.0
        %6150 = vmatpush1.xpose.msra.mxu0 0.0
        %6151 = vmatprep.subr.mxu0 0.0
        %6152 = vmatpush1.xpose.msra.mxu0 0.0
        %6153 = vmatprep.subr.mxu0 0.0
        %6154 = vmatpush1.xpose.msra.mxu0 0.0
        %6155 = vmatprep.subr.mxu0 0.0
        %6156 = vmatpush1.xpose.msra.mxu0 0.0
        %6157 = vmatprep.subr.mxu0 0.0
        %6158 = vmatpush1.xpose.msra.mxu0 0.0
        %6159 = vmatprep.subr.mxu0 0.0
        %6160 = vmatpush1.xpose.msra.mxu0 %v6127
        %6161 = vmatprep.subr.mxu0 0.0
        %6162 = vmatpush2.xpose.msra.mxu0 0.0
        %6163 = vmatprep.subr.mxu0 0.0
        %6164 = vmatpush2.xpose.msra.mxu0 0.0
        %6165 = vmatprep.subr.mxu0 0.0
        %6166 = vmatpush2.xpose.msra.mxu0 0.0
        %6167 = vmatprep.subr.mxu0 0.0
        %6168 = vmatpush2.xpose.msra.mxu0 0.0
        %6169 = vmatprep.subr.mxu0 0.0
        %6170 = vmatpush2.xpose.msra.mxu0 0.0
        %6171 = vmatprep.subr.mxu0 0.0
        %6172 = vmatpush2.xpose.msra.mxu0 0.0
        %6173 = vmatprep.subr.mxu0 0.0
        %6174 = vmatpush2.xpose.msra.mxu0 0.0
        %6175 = vmatprep.subr.mxu0 0.0
        %6176 = vmatpush2.xpose.msra.mxu0 0.0
        %6177 = vmatprep.subr.mxu0 0.0
        %6178 = vmatpush2.xpose.msra.mxu0 0.0
        %6179 = vmatprep.subr.mxu0 0.0
        %6180 = vmatpush2.xpose.msra.mxu0 0.0
        %6181 = vmatprep.subr.mxu0 0.0
        %6182 = vmatpush2.xpose.msra.mxu0 0.0
        %6183 = vmatprep.subr.mxu0 0.0
        %6184 = vmatpush2.xpose.msra.mxu0 0.0
        %6185 = vmatprep.subr.mxu0 0.0
        %6186 = vmatpush2.xpose.msra.mxu0 0.0
        %6187 = vmatprep.subr.mxu0 0.0
        %6188 = vmatpush2.xpose.msra.mxu0 0.0
        %6189 = vmatprep.subr.mxu0 0.0
        %6190 = vmatpush2.xpose.msra.mxu0 0.0
        %6191 = vmatprep.subr.mxu0 0.0
        %6192 = vmatpush2.xpose.msra.mxu0 0.0
        %6193 = vmatprep.mubr.f32.mxu0 0.0
        %6194 = vmatmul.mubr.f32.gmra.mxu0 %v6125
        %v6195 = vpop.f32.mrf.mxu0
        %v6196 = vadd.f32 %v775, %v6195
        %v6197 = vpop.f32.mrf.mxu0
        %6198 = vdwg.mxu0
        %v6199 = vsel %vm777, %v6196, -inf
        %6200 = vmax.xlane.f32.xlu0 %v6199
        %v6201 = vpop.xlane.xlu0 %6200
        %v6202 = vsub.f32 %v6196, %v6201
        %v6203 = vmul.f32 %v6202, 1.442695
        %v6204 = vpow.pop %v6203
        %v6205 = vsel %vm777, %v6204, 0.0
        %6206 = vadd.xlane.f32.xlu0 %v6205
        %v6207 = vpop.xlane.xlu0 %6206
        %v6208 = vrcp.pop %v6207
        %v6209 = vmul.f32 %v6204, %v6208
        %6210 = vrot.lane.b32.xlu0 %v5789, 32
        %v6211 = vpop.permute.xlu0 %6210
        %v6214 = vsel %vm777, %v6209, 0
        %6216 = vmatprep.subr.mxu0 0.0
        %6217 = vmatpush1.msra.mxu0 0.0
        %6218 = vmatprep.subr.mxu0 0.0
        %6219 = vmatpush1.msra.mxu0 0.0
        %6220 = vmatprep.subr.mxu0 0.0
        %6221 = vmatpush1.msra.mxu0 0.0
        %6222 = vmatprep.subr.mxu0 0.0
        %6223 = vmatpush1.msra.mxu0 0.0
        %6224 = vmatprep.subr.mxu0 0.0
        %6225 = vmatpush1.msra.mxu0 0.0
        %6226 = vmatprep.subr.mxu0 0.0
        %6227 = vmatpush1.msra.mxu0 0.0
        %6228 = vmatprep.subr.mxu0 0.0
        %6229 = vmatpush1.msra.mxu0 0.0
        %6230 = vmatprep.subr.mxu0 0.0
        %6231 = vmatpush1.msra.mxu0 0.0
        %6232 = vmatprep.subr.mxu0 0.0
        %6233 = vmatpush1.msra.mxu0 0.0
        %6234 = vmatprep.subr.mxu0 0.0
        %6235 = vmatpush1.msra.mxu0 0.0
        %6236 = vmatprep.subr.mxu0 0.0
        %6237 = vmatpush1.msra.mxu0 0.0
        %6238 = vmatprep.subr.mxu0 0.0
        %6239 = vmatpush1.msra.mxu0 0.0
        %6240 = vmatprep.subr.mxu0 0.0
        %6241 = vmatpush1.msra.mxu0 0.0
        %6242 = vmatprep.subr.mxu0 0.0
        %6243 = vmatpush1.msra.mxu0 0.0
        %6244 = vmatprep.subr.mxu0 0.0
        %6245 = vmatpush1.msra.mxu0 0.0
        %6246 = vmatprep.subr.mxu0 0.0
        %6247 = vmatpush1.msra.mxu0 %v6211
        %6248 = vmatprep.subr.mxu0 0.0
        %6249 = vmatpush2.msra.mxu0 0.0
        %6250 = vmatprep.subr.mxu0 0.0
        %6251 = vmatpush2.msra.mxu0 0.0
        %6252 = vmatprep.subr.mxu0 0.0
        %6253 = vmatpush2.msra.mxu0 0.0
        %6254 = vmatprep.subr.mxu0 0.0
        %6255 = vmatpush2.msra.mxu0 0.0
        %6256 = vmatprep.subr.mxu0 0.0
        %6257 = vmatpush2.msra.mxu0 0.0
        %6258 = vmatprep.subr.mxu0 0.0
        %6259 = vmatpush2.msra.mxu0 0.0
        %6260 = vmatprep.subr.mxu0 0.0
        %6261 = vmatpush2.msra.mxu0 0.0
        %6262 = vmatprep.subr.mxu0 0.0
        %6263 = vmatpush2.msra.mxu0 0.0
        %6264 = vmatprep.subr.mxu0 0.0
        %6265 = vmatpush2.msra.mxu0 0.0
        %6266 = vmatprep.subr.mxu0 0.0
        %6267 = vmatpush2.msra.mxu0 0.0
        %6268 = vmatprep.subr.mxu0 0.0
        %6269 = vmatpush2.msra.mxu0 0.0
        %6270 = vmatprep.subr.mxu0 0.0
        %6271 = vmatpush2.msra.mxu0 0.0
        %6272 = vmatprep.subr.mxu0 0.0
        %6273 = vmatpush2.msra.mxu0 0.0
        %6274 = vmatprep.subr.mxu0 0.0
        %6275 = vmatpush2.msra.mxu0 0.0
        %6276 = vmatprep.subr.mxu0 0.0
        %6277 = vmatpush2.msra.mxu0 0.0
        %6278 = vmatprep.subr.mxu0 0.0
        %6279 = vmatpush2.msra.mxu0 0.0
        %6280 = vmatprep.mubr.f32.mxu0 0.0
        %6281 = vmatmul.mubr.f32.gmra.mxu0 %v6214
        %v6282 = vpop.f32.mrf.mxu0
        %v6283 = vadd.f32 0.0, %v6282
        %v6284 = vpop.f32.mrf.mxu0
        %6285 = vdwg.mxu0
        %v6286 = vadd.f32 %v6118, %v6283
        %6287 = vrot.lane.b32.xlu0 %v5708, 104
        %v6288 = vpop.permute.xlu0 %6287
        %6289 = vrot.lane.b32.xlu0 %v5789, 104
        %v6290 = vpop.permute.xlu0 %6289
        %v6291 = vsel %vm777, %v6288, 0
        %v6293 = vsel %vm777, %v6290, 0
        %6295 = vmatprep.subr.mxu0 0.0
        %6296 = vmatpush1.xpose.msra.mxu0 0.0
        %6297 = vmatprep.subr.mxu0 0.0
        %6298 = vmatpush1.xpose.msra.mxu0 0.0
        %6299 = vmatprep.subr.mxu0 0.0
        %6300 = vmatpush1.xpose.msra.mxu0 0.0
        %6301 = vmatprep.subr.mxu0 0.0
        %6302 = vmatpush1.xpose.msra.mxu0 0.0
        %6303 = vmatprep.subr.mxu0 0.0
        %6304 = vmatpush1.xpose.msra.mxu0 0.0
        %6305 = vmatprep.subr.mxu0 0.0
        %6306 = vmatpush1.xpose.msra.mxu0 0.0
        %6307 = vmatprep.subr.mxu0 0.0
        %6308 = vmatpush1.xpose.msra.mxu0 0.0
        %6309 = vmatprep.subr.mxu0 0.0
        %6310 = vmatpush1.xpose.msra.mxu0 0.0
        %6311 = vmatprep.subr.mxu0 0.0
        %6312 = vmatpush1.xpose.msra.mxu0 0.0
        %6313 = vmatprep.subr.mxu0 0.0
        %6314 = vmatpush1.xpose.msra.mxu0 0.0
        %6315 = vmatprep.subr.mxu0 0.0
        %6316 = vmatpush1.xpose.msra.mxu0 0.0
        %6317 = vmatprep.subr.mxu0 0.0
        %6318 = vmatpush1.xpose.msra.mxu0 0.0
        %6319 = vmatprep.subr.mxu0 0.0
        %6320 = vmatpush1.xpose.msra.mxu0 0.0
        %6321 = vmatprep.subr.mxu0 0.0
        %6322 = vmatpush1.xpose.msra.mxu0 0.0
        %6323 = vmatprep.subr.mxu0 0.0
        %6324 = vmatpush1.xpose.msra.mxu0 0.0
        %6325 = vmatprep.subr.mxu0 0.0
        %6326 = vmatpush1.xpose.msra.mxu0 %v6293
        %6327 = vmatprep.subr.mxu0 0.0
        %6328 = vmatpush2.xpose.msra.mxu0 0.0
        %6329 = vmatprep.subr.mxu0 0.0
        %6330 = vmatpush2.xpose.msra.mxu0 0.0
        %6331 = vmatprep.subr.mxu0 0.0
        %6332 = vmatpush2.xpose.msra.mxu0 0.0
        %6333 = vmatprep.subr.mxu0 0.0
        %6334 = vmatpush2.xpose.msra.mxu0 0.0
        %6335 = vmatprep.subr.mxu0 0.0
        %6336 = vmatpush2.xpose.msra.mxu0 0.0
        %6337 = vmatprep.subr.mxu0 0.0
        %6338 = vmatpush2.xpose.msra.mxu0 0.0
        %6339 = vmatprep.subr.mxu0 0.0
        %6340 = vmatpush2.xpose.msra.mxu0 0.0
        %6341 = vmatprep.subr.mxu0 0.0
        %6342 = vmatpush2.xpose.msra.mxu0 0.0
        %6343 = vmatprep.subr.mxu0 0.0
        %6344 = vmatpush2.xpose.msra.mxu0 0.0
        %6345 = vmatprep.subr.mxu0 0.0
        %6346 = vmatpush2.xpose.msra.mxu0 0.0
        %6347 = vmatprep.subr.mxu0 0.0
        %6348 = vmatpush2.xpose.msra.mxu0 0.0
        %6349 = vmatprep.subr.mxu0 0.0
        %6350 = vmatpush2.xpose.msra.mxu0 0.0
        %6351 = vmatprep.subr.mxu0 0.0
        %6352 = vmatpush2.xpose.msra.mxu0 0.0
        %6353 = vmatprep.subr.mxu0 0.0
        %6354 = vmatpush2.xpose.msra.mxu0 0.0
        %6355 = vmatprep.subr.mxu0 0.0
        %6356 = vmatpush2.xpose.msra.mxu0 0.0
        %6357 = vmatprep.subr.mxu0 0.0
        %6358 = vmatpush2.xpose.msra.mxu0 0.0
        %6359 = vmatprep.mubr.f32.mxu0 0.0
        %6360 = vmatmul.mubr.f32.gmra.mxu0 %v6291
        %v6361 = vpop.f32.mrf.mxu0
        %v6362 = vadd.f32 %v775, %v6361
        %v6363 = vpop.f32.mrf.mxu0
        %6364 = vdwg.mxu0
        %v6365 = vsel %vm777, %v6362, -inf
        %6366 = vmax.xlane.f32.xlu0 %v6365
        %v6367 = vpop.xlane.xlu0 %6366
        %v6368 = vsub.f32 %v6362, %v6367
        %v6369 = vmul.f32 %v6368, 1.442695
        %v6370 = vpow.pop %v6369
        %v6371 = vsel %vm777, %v6370, 0.0
        %6372 = vadd.xlane.f32.xlu0 %v6371
        %v6373 = vpop.xlane.xlu0 %6372
        %v6374 = vrcp.pop %v6373
        %v6375 = vmul.f32 %v6370, %v6374
        %v6377 = vsel %vm777, %v6375, 0
        %6379 = vmatprep.subr.mxu0 0.0
        %6380 = vmatpush1.msra.mxu0 0.0
        %6381 = vmatprep.subr.mxu0 0.0
        %6382 = vmatpush1.msra.mxu0 0.0
        %6383 = vmatprep.subr.mxu0 0.0
        %6384 = vmatpush1.msra.mxu0 0.0
        %6385 = vmatprep.subr.mxu0 0.0
        %6386 = vmatpush1.msra.mxu0 0.0
        %6387 = vmatprep.subr.mxu0 0.0
        %6388 = vmatpush1.msra.mxu0 0.0
        %6389 = vmatprep.subr.mxu0 0.0
        %6390 = vmatpush1.msra.mxu0 0.0
        %6391 = vmatprep.subr.mxu0 0.0
        %6392 = vmatpush1.msra.mxu0 0.0
        %6393 = vmatprep.subr.mxu0 0.0
        %6394 = vmatpush1.msra.mxu0 0.0
        %6395 = vmatprep.subr.mxu0 0.0
        %6396 = vmatpush1.msra.mxu0 0.0
        %6397 = vmatprep.subr.mxu0 0.0
        %6398 = vmatpush1.msra.mxu0 0.0
        %6399 = vmatprep.subr.mxu0 0.0
        %6400 = vmatpush1.msra.mxu0 0.0
        %6401 = vmatprep.subr.mxu0 0.0
        %6402 = vmatpush1.msra.mxu0 0.0
        %6403 = vmatprep.subr.mxu0 0.0
        %6404 = vmatpush1.msra.mxu0 0.0
        %6405 = vmatprep.subr.mxu0 0.0
        %6406 = vmatpush1.msra.mxu0 0.0
        %6407 = vmatprep.subr.mxu0 0.0
        %6408 = vmatpush1.msra.mxu0 0.0
        %6409 = vmatprep.subr.mxu0 0.0
        %6410 = vmatpush1.msra.mxu0 %v5791
        %6411 = vmatprep.subr.mxu0 0.0
        %6412 = vmatpush2.msra.mxu0 0.0
        %6413 = vmatprep.subr.mxu0 0.0
        %6414 = vmatpush2.msra.mxu0 0.0
        %6415 = vmatprep.subr.mxu0 0.0
        %6416 = vmatpush2.msra.mxu0 0.0
        %6417 = vmatprep.subr.mxu0 0.0
        %6418 = vmatpush2.msra.mxu0 0.0
        %6419 = vmatprep.subr.mxu0 0.0
        %6420 = vmatpush2.msra.mxu0 0.0
        %6421 = vmatprep.subr.mxu0 0.0
        %6422 = vmatpush2.msra.mxu0 0.0
        %6423 = vmatprep.subr.mxu0 0.0
        %6424 = vmatpush2.msra.mxu0 0.0
        %6425 = vmatprep.subr.mxu0 0.0
        %6426 = vmatpush2.msra.mxu0 0.0
        %6427 = vmatprep.subr.mxu0 0.0
        %6428 = vmatpush2.msra.mxu0 0.0
        %6429 = vmatprep.subr.mxu0 0.0
        %6430 = vmatpush2.msra.mxu0 0.0
        %6431 = vmatprep.subr.mxu0 0.0
        %6432 = vmatpush2.msra.mxu0 0.0
        %6433 = vmatprep.subr.mxu0 0.0
        %6434 = vmatpush2.msra.mxu0 0.0
        %6435 = vmatprep.subr.mxu0 0.0
        %6436 = vmatpush2.msra.mxu0 0.0
        %6437 = vmatprep.subr.mxu0 0.0
        %6438 = vmatpush2.msra.mxu0 0.0
        %6439 = vmatprep.subr.mxu0 0.0
        %6440 = vmatpush2.msra.mxu0 0.0
        %6441 = vmatprep.subr.mxu0 0.0
        %6442 = vmatpush2.msra.mxu0 0.0
        %6443 = vmatprep.mubr.f32.mxu0 0.0
        %6444 = vmatmul.mubr.f32.gmra.mxu0 %v6377
        %v6445 = vpop.f32.mrf.mxu0
        %v6446 = vadd.f32 0.0, %v6445
        %v6447 = vpop.f32.mrf.mxu0
        %6448 = vdwg.mxu0
        %v6449 = vadd.f32 %v6286, %v6446
        %v6451 = vlaneseq
        %v6452 = vshrl.u32 %v6451, 7
        %v6453 = vsub.s32 0, %v6452
        %v6454 = vrot.slane %v5631, %v6453
        %v6456 = vadd.f32 %v6449, %v6454
        %v6457 = vadd.f32 %v5611, %v6456
        %s6458 = scalar_lea.vmem %s4749, 16
        %v6459 = vld [vmem:[%s6458] ss:$8 sm:$0x3]
        %s6460 = scalar_lea.vmem %s4749, 17
        %v6461 = vld [vmem:[%s6460] ss:$8 sm:$0x3]
        %v6462 = vsel %vm615, %v6457, 0.0
        %6463 = vadd.xlane.f32.xlu0 %v6462
        %v6464 = vpop.xlane.xlu0 %6463
        %v6465 = vmul.f32 %v6464, %v1450
        %v6466 = vsub.f32 %v6457, %v6465
        %v6467 = vmul.f32 %v6466, %v6466
        %v6468 = vsel %vm615, %v6467, 0.0
        %6469 = vadd.xlane.f32.xlu0 %v6468
        %v6470 = vpop.xlane.xlu0 %6469
        %v6471 = vmul.f32 %v6470, %v1450
        %v6472 = vadd.f32 %v6471, 1e-05
        %v6473 = vrsqrt.pop %v6472
        %v6474 = vmul.f32 %v6466, %v6473
        %v6476 = vlaneseq
        %v6477 = vshrl.u32 %v6476, 7
        %v6478 = vsub.s32 0, %v6477
        %v6479 = vrot.slane %v6459, %v6478
        %v6481 = vmul.f32 %v6474, %v6479
        %v6483 = vlaneseq
        %v6484 = vshrl.u32 %v6483, 7
        %v6485 = vsub.s32 0, %v6484
        %v6486 = vrot.slane %v6461, %v6485
        %v6488 = vadd.f32 %v6481, %v6486
        %s6489 = scalar_lea.vmem %s12, 32
        %v6490 = vld [vmem:[%s6489] sm:$0xff]
        %v6491 = vld [vmem:[%s6489 + $0x8] sm:$0xff]
        %v6492 = vld [vmem:[%s6489 + $0x10] sm:$0xff]
        %v6493 = vld [vmem:[%s6489 + $0x18] sm:$0xff]
        %s6494 = scalar_lea.vmem %s4749, 18
        %v6495 = vld [vmem:[%s6494] ss:$8 sm:$0x3]
        %s6496 = scalar_lea.vmem %s13, 64
        %v6497 = vld [vmem:[%s6496] sm:$0xff]
        %v6498 = vld [vmem:[%s6496 + $0x8] sm:$0xff]
        %v6499 = vld [vmem:[%s6496 + $0x10] sm:$0xff]
        %v6500 = vld [vmem:[%s6496 + $0x18] sm:$0xff]
        %v6501 = vld [vmem:[%s6496 + $0x20] sm:$0xff]
        %v6502 = vld [vmem:[%s6496 + $0x28] sm:$0xff]
        %v6503 = vld [vmem:[%s6496 + $0x30] sm:$0xff]
        %v6504 = vld [vmem:[%s6496 + $0x38] sm:$0xff]
        %s6505 = scalar_lea.vmem %s4749, 19
        %v6506 = vld [vmem:[%s6505] ss:$8 sm:$0x3]
        %v6508 = vlaneseq
        %v6509 = vshrl.u32 %v6508, 7
        %v6510 = vsub.s32 0, %v6509
        %v6511 = vrot.slane %v6495, %v6510
        %v6514 = vsel %vm615, %v6488, 0
        %6516 = vmatprep.subr.mxu0 0.0
        %6517 = vmatpush1.msra.mxu0 0.0
        %6518 = vmatprep.subr.mxu0 0.0
        %6519 = vmatpush1.msra.mxu0 0.0
        %6520 = vmatprep.subr.mxu0 0.0
        %6521 = vmatpush1.msra.mxu0 0.0
        %6522 = vmatprep.subr.mxu0 0.0
        %6523 = vmatpush1.msra.mxu0 0.0
        %6524 = vmatprep.subr.mxu0 0.0
        %6525 = vmatpush1.msra.mxu0 0.0
        %6526 = vmatprep.subr.mxu0 0.0
        %6527 = vmatpush1.msra.mxu0 0.0
        %6528 = vmatprep.subr.mxu0 0.0
        %6529 = vmatpush1.msra.mxu0 0.0
        %6530 = vmatprep.subr.mxu0 0.0
        %6531 = vmatpush1.msra.mxu0 0.0
        %6532 = vmatprep.subr.mxu0 0.0
        %6533 = vmatpush1.msra.mxu0 0.0
        %6534 = vmatprep.subr.mxu0 0.0
        %6535 = vmatpush1.msra.mxu0 0.0
        %6536 = vmatprep.subr.mxu0 0.0
        %6537 = vmatpush1.msra.mxu0 0.0
        %6538 = vmatprep.subr.mxu0 0.0
        %6539 = vmatpush1.msra.mxu0 0.0
        %6540 = vmatprep.subr.mxu0 0.0
        %6541 = vmatpush1.msra.mxu0 %v6493
        %6542 = vmatprep.subr.mxu0 0.0
        %6543 = vmatpush1.msra.mxu0 %v6492
        %6544 = vmatprep.subr.mxu0 0.0
        %6545 = vmatpush1.msra.mxu0 %v6491
        %6546 = vmatprep.subr.mxu0 0.0
        %6547 = vmatpush1.msra.mxu0 %v6490
        %6548 = vmatprep.subr.mxu0 0.0
        %6549 = vmatpush2.msra.mxu0 0.0
        %6550 = vmatprep.subr.mxu0 0.0
        %6551 = vmatpush2.msra.mxu0 0.0
        %6552 = vmatprep.subr.mxu0 0.0
        %6553 = vmatpush2.msra.mxu0 0.0
        %6554 = vmatprep.subr.mxu0 0.0
        %6555 = vmatpush2.msra.mxu0 0.0
        %6556 = vmatprep.subr.mxu0 0.0
        %6557 = vmatpush2.msra.mxu0 0.0
        %6558 = vmatprep.subr.mxu0 0.0
        %6559 = vmatpush2.msra.mxu0 0.0
        %6560 = vmatprep.subr.mxu0 0.0
        %6561 = vmatpush2.msra.mxu0 0.0
        %6562 = vmatprep.subr.mxu0 0.0
        %6563 = vmatpush2.msra.mxu0 0.0
        %6564 = vmatprep.subr.mxu0 0.0
        %6565 = vmatpush2.msra.mxu0 0.0
        %6566 = vmatprep.subr.mxu0 0.0
        %6567 = vmatpush2.msra.mxu0 0.0
        %6568 = vmatprep.subr.mxu0 0.0
        %6569 = vmatpush2.msra.mxu0 0.0
        %6570 = vmatprep.subr.mxu0 0.0
        %6571 = vmatpush2.msra.mxu0 0.0
        %6572 = vmatprep.subr.mxu0 0.0
        %6573 = vmatpush2.msra.mxu0 0.0
        %6574 = vmatprep.subr.mxu0 0.0
        %6575 = vmatpush2.msra.mxu0 0.0
        %6576 = vmatprep.subr.mxu0 0.0
        %6577 = vmatpush2.msra.mxu0 0.0
        %6578 = vmatprep.subr.mxu0 0.0
        %6579 = vmatpush2.msra.mxu0 0.0
        %6580 = vmatprep.mubr.f32.mxu0 0.0
        %6581 = vmatmul.mubr.f32.gmra.mxu0 %v6514
        %v6582 = vpop.f32.mrf.mxu0
        %v6583 = vadd.f32 %v6511, %v6582
        %v6584 = vpop.f32.mrf.mxu0
        %6585 = vdwg.mxu0
        %v6586 = vmax.f32 %v6583, 0.0
        %v6588 = vlaneseq
        %v6589 = vshrl.u32 %v6588, 7
        %v6590 = vsub.s32 0, %v6589
        %v6591 = vrot.slane %v6506, %v6590
        %v6594 = vsel %vm1577, %v6586, 0
        %6596 = vmatprep.subr.mxu0 0.0
        %6597 = vmatpush1.msra.mxu0 0.0
        %6598 = vmatprep.subr.mxu0 0.0
        %6599 = vmatpush1.msra.mxu0 0.0
        %6600 = vmatprep.subr.mxu0 0.0
        %6601 = vmatpush1.msra.mxu0 0.0
        %6602 = vmatprep.subr.mxu0 0.0
        %6603 = vmatpush1.msra.mxu0 0.0
        %6604 = vmatprep.subr.mxu0 0.0
        %6605 = vmatpush1.msra.mxu0 0.0
        %6606 = vmatprep.subr.mxu0 0.0
        %6607 = vmatpush1.msra.mxu0 0.0
        %6608 = vmatprep.subr.mxu0 0.0
        %6609 = vmatpush1.msra.mxu0 0.0
        %6610 = vmatprep.subr.mxu0 0.0
        %6611 = vmatpush1.msra.mxu0 0.0
        %6612 = vmatprep.subr.mxu0 0.0
        %6613 = vmatpush1.msra.mxu0 %v6504
        %6614 = vmatprep.subr.mxu0 0.0
        %6615 = vmatpush1.msra.mxu0 %v6503
        %6616 = vmatprep.subr.mxu0 0.0
        %6617 = vmatpush1.msra.mxu0 %v6502
        %6618 = vmatprep.subr.mxu0 0.0
        %6619 = vmatpush1.msra.mxu0 %v6501
        %6620 = vmatprep.subr.mxu0 0.0
        %6621 = vmatpush1.msra.mxu0 %v6500
        %6622 = vmatprep.subr.mxu0 0.0
        %6623 = vmatpush1.msra.mxu0 %v6499
        %6624 = vmatprep.subr.mxu0 0.0
        %6625 = vmatpush1.msra.mxu0 %v6498
        %6626 = vmatprep.subr.mxu0 0.0
        %6627 = vmatpush1.msra.mxu0 %v6497
        %6628 = vmatprep.subr.mxu0 0.0
        %6629 = vmatpush2.msra.mxu0 0.0
        %6630 = vmatprep.subr.mxu0 0.0
        %6631 = vmatpush2.msra.mxu0 0.0
        %6632 = vmatprep.subr.mxu0 0.0
        %6633 = vmatpush2.msra.mxu0 0.0
        %6634 = vmatprep.subr.mxu0 0.0
        %6635 = vmatpush2.msra.mxu0 0.0
        %6636 = vmatprep.subr.mxu0 0.0
        %6637 = vmatpush2.msra.mxu0 0.0
        %6638 = vmatprep.subr.mxu0 0.0
        %6639 = vmatpush2.msra.mxu0 0.0
        %6640 = vmatprep.subr.mxu0 0.0
        %6641 = vmatpush2.msra.mxu0 0.0
        %6642 = vmatprep.subr.mxu0 0.0
        %6643 = vmatpush2.msra.mxu0 0.0
        %6644 = vmatprep.subr.mxu0 0.0
        %6645 = vmatpush2.msra.mxu0 0.0
        %6646 = vmatprep.subr.mxu0 0.0
        %6647 = vmatpush2.msra.mxu0 0.0
        %6648 = vmatprep.subr.mxu0 0.0
        %6649 = vmatpush2.msra.mxu0 0.0
        %6650 = vmatprep.subr.mxu0 0.0
        %6651 = vmatpush2.msra.mxu0 0.0
        %6652 = vmatprep.subr.mxu0 0.0
        %6653 = vmatpush2.msra.mxu0 0.0
        %6654 = vmatprep.subr.mxu0 0.0
        %6655 = vmatpush2.msra.mxu0 0.0
        %6656 = vmatprep.subr.mxu0 0.0
        %6657 = vmatpush2.msra.mxu0 0.0
        %6658 = vmatprep.subr.mxu0 0.0
        %6659 = vmatpush2.msra.mxu0 0.0
        %6660 = vmatprep.mubr.f32.mxu0 0.0
        %6661 = vmatmul.mubr.f32.gmra.mxu0 %v6594
        %v6662 = vpop.f32.mrf.mxu0
        %v6663 = vadd.f32 %v6591, %v6662
        %v6664 = vpop.f32.mrf.mxu0
        %6665 = vdwg.mxu0
        %v6666 = vadd.f32 %v6488, %v6663
        %s6667 = scalar_lea.vmem %s4749, 20
        %v6668 = vld [vmem:[%s6667] ss:$8 sm:$0x3]
        %s6669 = scalar_lea.vmem %s4749, 21
        %v6670 = vld [vmem:[%s6669] ss:$8 sm:$0x3]
        %v6671 = vsel %vm615, %v6666, 0.0
        %6672 = vadd.xlane.f32.xlu0 %v6671
        %v6673 = vpop.xlane.xlu0 %6672
        %v6674 = vmul.f32 %v6673, %v1450
        %v6675 = vsub.f32 %v6666, %v6674
        %v6676 = vmul.f32 %v6675, %v6675
        %v6677 = vsel %vm615, %v6676, 0.0
        %6678 = vadd.xlane.f32.xlu0 %v6677
        %v6679 = vpop.xlane.xlu0 %6678
        %v6680 = vmul.f32 %v6679, %v1450
        %v6681 = vadd.f32 %v6680, 1e-05
        %v6682 = vrsqrt.pop %v6681
        %v6683 = vmul.f32 %v6675, %v6682
        %v6685 = vlaneseq
        %v6686 = vshrl.u32 %v6685, 7
        %v6687 = vsub.s32 0, %v6686
        %v6688 = vrot.slane %v6668, %v6687
        %v6690 = vmul.f32 %v6683, %v6688
        %v6692 = vlaneseq
        %v6693 = vshrl.u32 %v6692, 7
        %v6694 = vsub.s32 0, %v6693
        %v6695 = vrot.slane %v6670, %v6694
        %v6697 = vadd.f32 %v6690, %v6695
        %v6698 = vld [vmem:[#allocation2] sm:$0xff]
        %v6699 = vld [vmem:[#allocation2 + $0x8] sm:$0xff]
        %v6700 = vld [vmem:[#allocation2 + $0x10] sm:$0xff]
        %v6701 = vld [vmem:[#allocation2 + $0x18] sm:$0xff]
        %v6702 = vld [vmem:[%s16] sm:$0x1]
        %v6704 = vlaneseq
        %v6705 = vshrl.u32 %v6704, 7
        %v6706 = vsub.s32 0, %v6705
        %v6707 = vrot.slane %v6702, %v6706
        %v6710 = vsel %vm615, %v6697, 0
        %6712 = vmatprep.subr.mxu0 0.0
        %6713 = vmatpush1.msra.mxu0 0.0
        %6714 = vmatprep.subr.mxu0 0.0
        %6715 = vmatpush1.msra.mxu0 0.0
        %6716 = vmatprep.subr.mxu0 0.0
        %6717 = vmatpush1.msra.mxu0 0.0
        %6718 = vmatprep.subr.mxu0 0.0
        %6719 = vmatpush1.msra.mxu0 0.0
        %6720 = vmatprep.subr.mxu0 0.0
        %6721 = vmatpush1.msra.mxu0 0.0
        %6722 = vmatprep.subr.mxu0 0.0
        %6723 = vmatpush1.msra.mxu0 0.0
        %6724 = vmatprep.subr.mxu0 0.0
        %6725 = vmatpush1.msra.mxu0 0.0
        %6726 = vmatprep.subr.mxu0 0.0
        %6727 = vmatpush1.msra.mxu0 0.0
        %6728 = vmatprep.subr.mxu0 0.0
        %6729 = vmatpush1.msra.mxu0 0.0
        %6730 = vmatprep.subr.mxu0 0.0
        %6731 = vmatpush1.msra.mxu0 0.0
        %6732 = vmatprep.subr.mxu0 0.0
        %6733 = vmatpush1.msra.mxu0 0.0
        %6734 = vmatprep.subr.mxu0 0.0
        %6735 = vmatpush1.msra.mxu0 0.0
        %6736 = vmatprep.subr.mxu0 0.0
        %6737 = vmatpush1.msra.mxu0 %v6701
        %6738 = vmatprep.subr.mxu0 0.0
        %6739 = vmatpush1.msra.mxu0 %v6700
        %6740 = vmatprep.subr.mxu0 0.0
        %6741 = vmatpush1.msra.mxu0 %v6699
        %6742 = vmatprep.subr.mxu0 0.0
        %6743 = vmatpush1.msra.mxu0 %v6698
        %6744 = vmatprep.subr.mxu0 0.0
        %6745 = vmatpush2.msra.mxu0 0.0
        %6746 = vmatprep.subr.mxu0 0.0
        %6747 = vmatpush2.msra.mxu0 0.0
        %6748 = vmatprep.subr.mxu0 0.0
        %6749 = vmatpush2.msra.mxu0 0.0
        %6750 = vmatprep.subr.mxu0 0.0
        %6751 = vmatpush2.msra.mxu0 0.0
        %6752 = vmatprep.subr.mxu0 0.0
        %6753 = vmatpush2.msra.mxu0 0.0
        %6754 = vmatprep.subr.mxu0 0.0
        %6755 = vmatpush2.msra.mxu0 0.0
        %6756 = vmatprep.subr.mxu0 0.0
        %6757 = vmatpush2.msra.mxu0 0.0
        %6758 = vmatprep.subr.mxu0 0.0
        %6759 = vmatpush2.msra.mxu0 0.0
        %6760 = vmatprep.subr.mxu0 0.0
        %6761 = vmatpush2.msra.mxu0 0.0
        %6762 = vmatprep.subr.mxu0 0.0
        %6763 = vmatpush2.msra.mxu0 0.0
        %6764 = vmatprep.subr.mxu0 0.0
        %6765 = vmatpush2.msra.mxu0 0.0
        %6766 = vmatprep.subr.mxu0 0.0
        %6767 = vmatpush2.msra.mxu0 0.0
        %6768 = vmatprep.subr.mxu0 0.0
        %6769 = vmatpush2.msra.mxu0 0.0
        %6770 = vmatprep.subr.mxu0 0.0
        %6771 = vmatpush2.msra.mxu0 0.0
        %6772 = vmatprep.subr.mxu0 0.0
        %6773 = vmatpush2.msra.mxu0 0.0
        %6774 = vmatprep.subr.mxu0 0.0
        %6775 = vmatpush2.msra.mxu0 0.0
        %6776 = vmatprep.mubr.f32.mxu0 0.0
        %6777 = vmatmul.mubr.f32.gmra.mxu0 %v6710
        %v6778 = vpop.f32.mrf.mxu0
        %v6779 = vadd.f32 %v6707, %v6778
        %v6780 = vpop.f32.mrf.mxu0
        %6781 = vdwg.mxu0
        %v6782 = vsel %vm1577, %v6779, -inf
        %6783 = vmax.xlane.f32.xlu0 %v6782
        %v6784 = vpop.xlane.xlu0 %6783
        %v6785 = vsub.f32 %v6779, %v6784
        %v6786 = vmul.f32 %v6785, 1.442695
        %v6787 = vpow.pop %v6786
        %v6788 = vsel %vm1577, %v6787, 0.0
        %6789 = vadd.xlane.f32.xlu0 %v6788
        %v6790 = vpop.xlane.xlu0 %6789
        %v6791 = vlog2.pop %v6790
        %v6792 = vmul.f32 %v6791, 0.6931472
        %v6793 = vadd.f32 %v6792, %v6784
        %v6794 = vsub.f32 %v6779, %v6793
        %6795 = vst.msk [vmem:[%s578] sm:$0xff] %vm1577, %v6794
        %s6796 = sand.u32 %s412, 1
        %s6797 = scalar_lea.sflag [#allocation4], %s6796
        %s6798 = sand.u32 %s412, 1
        %s6799 = smul.addr %s6798, 8
        %s6800 = scalar_lea.vmem [#allocation5], %s6799
        // Predicated region
        $region93: #{_lambda_.1} parent=87 // pred_check
          %p6801 = pneg %p422
        $region94: #{_lambda_.1} parent=87 // pred_check_branch
          %6803 = sbr.rel (%p6801) target = $region96
        $region95: #{_lambda_.1} parent=87 // pred_region
          %s6805 = ssub.s32 128, 128
          %6806 = vsyncadd %s6797, %s6805
          %s6807 = smul.addr %s32, 128
          %s6808 = scalar_lea.hbm %s17, %s6807
          %s6810 = sshll.u32 %s6800, 4
          %s6811 = int_to_ptr.vmem [resolvable:$true] %s6810
          %6813 = dma.vmem_to_hbm [thread:$0]  %s6811, 128, %s6808, %s6797
        $region96: #{_lambda_.1} parent=87 // pred_fallthru
          _
      $region88: #{_lambda_.1} parent=5 // pred_fallthru
        _
      %p6814 = scmp.le.s32.totalorder 2, %s27
      // Predicated region
      $region97: #{_lambda_.1} parent=5 // pred_check
        %p6815 = pneg %p6814
      $region98: #{_lambda_.1} parent=5 // pred_check_branch
        %6817 = sbr.rel (%p6815) target = $region100
      $region99: #{_lambda_.1} parent=5 // pred_region
        %s6818 = ssub.s32 %s27, 2
        // Predicated region
        $region101: #{_lambda_.1} parent=99 // pred_check
          %p6819 = pneg %p428
        $region102: #{_lambda_.1} parent=99 // pred_check_branch
          %6821 = sbr.rel (%p6819) target = $region104
        $region103: #{_lambda_.1} parent=99 // pred_region
          %s6822 = sand.u32 %s413, 1
          %s6823 = scalar_lea.sflag [#allocation4], %s6822
          %s6824 = sand.u32 %s413, 1
          %s6825 = smul.addr %s6824, 8
          %s6826 = scalar_lea.vmem [#allocation5], %s6825
          %6827 = dma.done %s6823, 128
        $region104: #{_lambda_.1} parent=99 // pred_fallthru
          _
      $region100: #{_lambda_.1} parent=5 // pred_fallthru
        _
    $region6: #{_lambda_.1} parent=1 // loop_footer
      %s31 = sadd.s32 1, %s27
    $region7: #{_lambda_.1} parent=1 // loop_footer_branch
      %26 = sbr.rel target = $region3
    $region8: #{_lambda_.1} parent=1 // loop_exit
      _
    %6828 = vsyncpa [#allocation3], 1
    %s6829 = scalar_lea.sflag [#allocation3], 1
    %6830 = vsyncpa %s6829, 1
    %6831 = vsyncpa [#allocation4], 1
    %s6832 = scalar_lea.sflag [#allocation4], 1
    %6833 = vsyncpa %s6832, 1

</llo_original>
